<compile_context>
chip_gen: v7x
topology: tpu7x:2x2x1
jax: 0.10.0
libtpu: 0.0.40
codegen_flags: <defaults>
</compile_context>

<pallas_src>
import math
import functools

import jax
import jax.numpy as jnp
from jax.experimental import pallas as pl
from jax.experimental.pallas import tpu as pltpu


LN_EPS = 1e-5
NEG_INF = -1e30  # large negative instead of -inf (avoids NaN on fully-masked rows)


def _layernorm(v, gamma, beta):
    mu = jnp.mean(v, axis=-1, keepdims=True)
    var = jnp.mean((v - mu) ** 2, axis=-1, keepdims=True)
    return (v - mu) * jax.lax.rsqrt(var + LN_EPS) * gamma + beta


def _swish(v):
    return v * jax.nn.sigmoid(v)


def _dotgat_kernel(heads, approx_recip,
                   x_ref, m_ref,
                   gnw_ref, gnb_ref, wqkv_ref,
                   flnw_ref, flnb_ref,
                   w1_ref, b1_ref, w2_ref, b2_ref,
                   o_ref):
    rows, F_dim = x_ref.shape            # rows = Bt * A
    Bt, A, _ = m_ref.shape
    dh = F_dim // heads
    mm_dtype = wqkv_ref.dtype            # matmul operand dtype (bf16 or f32)

    gnw = gnw_ref[...]                   # (1, F)
    gnb = gnb_ref[...]

    # ---- input norm + fused QKV projection on the flattened (Bt*A, F) slab ----
    # 1/sqrt(dh) is already folded into the Q columns of wqkv (host side).
    xn = _layernorm(x_ref[...], gnw, gnb)
    qkv = jnp.dot(xn.astype(mm_dtype), wqkv_ref[...],
                  preferred_element_type=jnp.float32)       # (rows, 3F) f32
    qkv = qkv.astype(mm_dtype)           # cast once for all heads (no per-head casts)

    # ---- additive mask bias (computed once for all heads) ----
    m = m_ref[...]                       # (Bt, A, A): int8 {0,1} or precomputed f32 bias
    if m.dtype == jnp.int8:
        bias = jnp.where(m > 0, jnp.float32(0.0), jnp.float32(NEG_INF))
    else:
        bias = m.astype(jnp.float32)

    # ---- per-head attention, einsums batched over the Bt axis ----
    # TODO(synk): dropout not implemented (module default dropout=0 / eval mode => p=0).
    head_outs = []
    for h in range(heads):
        lo = h * dh
        qh = qkv[:, lo:lo + dh].reshape(Bt, A, dh)
        kh = qkv[:, F_dim + lo:F_dim + lo + dh].reshape(Bt, A, dh)
        vh = qkv[:, 2 * F_dim + lo:2 * F_dim + lo + dh].reshape(Bt, A, dh)
        s = jnp.einsum("bqd,bkd->bqk", qh, kh,
                       preferred_element_type=jnp.float32) + bias      # (Bt, A, A)
        s = s - jnp.max(s, axis=-1, keepdims=True)
        p = jnp.exp(s)
        denom = jnp.sum(p, axis=-1, keepdims=True)
        if approx_recip:
            p = p * pl.reciprocal(denom, approx=True)   # EUP slot, ~free
        else:
            p = p / denom                               # exact path for validation
        oh = jnp.einsum("bqk,bkd->bqd", p.astype(mm_dtype), vh,
                        preferred_element_type=jnp.float32)            # (Bt, A, dh)
        head_outs.append(oh)

    # One lane-dense assembly of the head outputs (no scratch, no masked stores,
    # no VMEM store->load roundtrip); column order matches the weight layout.
    attn = jnp.concatenate(head_outs, axis=-1).reshape(rows, F_dim)

    # ---- forward_proj: LayerNorm -> Linear -> Swish -> Linear -> Swish ----
    h1 = _layernorm(attn, flnw_ref[...], flnb_ref[...])
    h1 = jnp.dot(h1.astype(mm_dtype), w1_ref[...],
                 preferred_element_type=jnp.float32) + b1_ref[...]
    h1 = _swish(h1)
    h2 = jnp.dot(h1.astype(mm_dtype), w2_ref[...],
                 preferred_element_type=jnp.float32) + b2_ref[...]
    h2 = _swish(h2)

    # ---- return self.norm(out)  (same LayerNorm params as the input norm) ----
    o_ref[...] = _layernorm(h2, gnw, gnb).astype(o_ref.dtype)


def _vmem_capacity_bytes(default=64 << 20):
    """Per-core VMEM capacity; conservative v7x default if the query fails."""
    try:
        cap = int(pltpu.get_tpu_info().vmem_capacity_bytes)
        if cap > 0:
            return cap
    except Exception:
        pass
    return default


def _per_batch_vmem_bytes(A, F_dim, heads, mask_elem_bytes):
    """Generous per-batch-element working-set estimate (bytes) inside one grid step."""
    rowF = A * F_dim * 4
    io = 2 * 2 * rowF + 2 * A * A * mask_elem_bytes        # double-buffered x/out + mask blocks
    act = 14 * rowF                                        # xn, qkv (f32 + lp), head outs, attn, h1, h2, casts
    attn_tmp = (3 + min(heads, 4)) * A * A * 4             # bias + s + p (+ unroll-liveness slack)
    return io + act + attn_tmp


def _pick_batch_tile(B, A, F_dim, heads, mask_elem_bytes, budget_bytes,
                     target_rows=2048):
    """Largest divisor Bt of B such that:
       (a) the per-step working set fits the VMEM budget,
       (b) Bt*A stays near the measured ~512-2048-row sweet spot (no 256-row cap),
       (c) the grid keeps >= 2 steps when B allows (both v7x TensorCores get work),
       (d) Bt*A is a multiple of 8 (sublane tiling of the 2-D (Bt*A, F) block)."""
    per = max(1, _per_batch_vmem_bytes(A, F_dim, heads, mask_elem_bytes))
    cap = max(1, min(B, budget_bytes // per, max(1, target_rows // max(A, 1))))
    if B >= 2:
        cap = min(cap, max(1, B // 2))
    for bt in range(cap, 0, -1):
        if B % bt == 0 and (bt * A) % 8 == 0:
            return bt
    # No divisor satisfies the sublane constraint: fall back to one full-batch step
    # (a full-extent block dim is always legal).
    return B


def dot_gat_head(x, connectivity, params, heads=4,
                 matmul_dtype=jnp.bfloat16, batch_tile=None, approx_recip=True):
    """x: (B, A, F) f32; connectivity: (B, A, A) {0,1} (any dtype); params: dict."""
    B, A, F_dim = x.shape
    assert F_dim % heads == 0
    dh = F_dim // heads
    scale = 1.0 / math.sqrt(dh)      # torch SDPA default scale = 1/sqrt(head_dim)

    # Fused QKV weight with the softmax scale folded into the Q columns; matmul
    # weights pre-cast on the host (halves HBM traffic on the bf16 path), LayerNorm
    # params and biases stay f32.
    cast = lambda w: w.astype(matmul_dtype)
    wqkv = jnp.concatenate(
        [params["wq_t"] * scale, params["wk_t"], params["wv_t"]], axis=1)   # (F, 3F)
    param_list = [
        params["norm_w"], params["norm_b"],        # (1, F)
        cast(wqkv),                                # (F, 3F)
        params["fln_w"], params["fln_b"],          # (1, F)
        cast(params["w1_t"]), params["b1"],        # (F, F), (1, F)
        cast(params["w2_t"]), params["b2"],        # (F, F), (1, F)
    ]

    # Mask representation: int8 only pays off when A >= 128 (VMEM int8 tiles pad to
    # (32,128)); for small A, ship the additive f32 bias directly.
    if A >= 128:
        conn = connectivity.astype(jnp.int8)
        mask_bytes = 1
    else:
        conn = jnp.where(connectivity > 0, 0.0, NEG_INF).astype(jnp.float32)
        mask_bytes = 4

    # ---- generation-aware VMEM budgeting ----
    cap = _vmem_capacity_bytes()                             # 64 MiB v7x, 128 MiB v5e/v6e
    param_bytes = int(sum(int(p.size) * p.dtype.itemsize for p in param_list))
    param_resident = 2 * param_bytes                         # worst case: double-buffered params
    block_budget = max(1 << 20, int(0.5 * (cap - param_resident)))

    if batch_tile is None:
        Bt = _pick_batch_tile(B, A, F_dim, heads, mask_bytes, block_budget)
    else:
        Bt = batch_tile
    assert B % Bt == 0

    est_total = param_resident + Bt * _per_batch_vmem_bytes(A, F_dim, heads, mask_bytes)
    vmem_limit = int(min(cap, max(2 * est_total, 48 << 20)))

    # Present x / out as 2-D (B*A, F) slabs: simple rectangular DMA tiles and a
    # lane-dense writeback when F >= 128 (at F < 128 stores stay partially masked).
    x2 = x.reshape(B * A, F_dim)
    kernel = functools.partial(_dotgat_kernel, heads, approx_recip)

    def build(single_buffer_params):
        if single_buffer_params:
            # Grid-invariant params: single buffer (no second copy of the weights).
            pspec = lambda p: pl.BlockSpec(p.shape, lambda b, n=p.ndim: (0,) * n,
                                           pipeline_mode=pl.Buffered(1))
        else:
            pspec = lambda p: pl.BlockSpec(p.shape, lambda b, n=p.ndim: (0,) * n)
        in_specs = [
            pl.BlockSpec((Bt * A, F_dim), lambda b: (b, 0)),     # x slab
            pl.BlockSpec((Bt, A, A), lambda b: (b, 0, 0)),       # mask / additive bias
        ] + [pspec(p) for p in param_list]
        return pl.pallas_call(
            kernel,
            out_shape=jax.ShapeDtypeStruct((B * A, F_dim), x.dtype),
            grid=(B // Bt,),
            in_specs=in_specs,
            out_specs=pl.BlockSpec((Bt * A, F_dim), lambda b: (b, 0)),
            compiler_params=pltpu.CompilerParams(
                dimension_semantics=("parallel",),
                vmem_limit_bytes=vmem_limit),
        )

    try:
        out2 = build(single_buffer_params=True)(x2, conn, *param_list)
    except Exception:
        # Fallback: default (double-buffered) parameter blocks if Buffered(1) is
        # rejected by the running JAX/Mosaic version.
        out2 = build(single_buffer_params=False)(x2, conn, *param_list)
    return out2.reshape(B, A, F_dim)


def reference_jax(x, connectivity, params, heads=4):
    """Pure-JAX reference mirroring the PyTorch forward."""
    B, A, F_dim = x.shape
    dh = F_dim // heads

    def ln(v, g, b):
        mu = v.mean(-1, keepdims=True)
        var = ((v - mu) ** 2).mean(-1, keepdims=True)
        return (v - mu) / jnp.sqrt(var + LN_EPS) * g + b

    xn = ln(x, params["norm_w"][0], params["norm_b"][0])
    q = xn @ params["wq_t"]
    k = xn @ params["wk_t"]
    v = xn @ params["wv_t"]
    q = q.reshape(B, A, heads, dh).transpose(0, 2, 1, 3)
    k = k.reshape(B, A, heads, dh).transpose(0, 2, 1, 3)
    v = v.reshape(B, A, heads, dh).transpose(0, 2, 1, 3)
    s = jnp.einsum("bhqd,bhkd->bhqk", q, k) / math.sqrt(dh)
    s = jnp.where(connectivity[:, None, :, :] > 0, s, NEG_INF)
    p = jax.nn.softmax(s, axis=-1)
    out = jnp.einsum("bhqk,bhkd->bhqd", p, v)
    out = out.transpose(0, 2, 1, 3).reshape(B, A, F_dim)
    h1 = ln(out, params["fln_w"][0], params["fln_b"][0])
    h1 = h1 @ params["w1_t"] + params["b1"][0]
    h1 = h1 * jax.nn.sigmoid(h1)
    h2 = h1 @ params["w2_t"] + params["b2"][0]
    h2 = h2 * jax.nn.sigmoid(h2)
    return ln(h2, params["norm_w"][0], params["norm_b"][0])


def make_params(key, F_dim):
    ks = jax.random.split(key, 8)
    s = 0.1
    return {
        "norm_w": jnp.ones((1, F_dim), jnp.float32),
        "norm_b": jnp.zeros((1, F_dim), jnp.float32),
        "wq_t": s * jax.random.normal(ks[0], (F_dim, F_dim), jnp.float32),
        "wk_t": s * jax.random.normal(ks[1], (F_dim, F_dim), jnp.float32),
        "wv_t": s * jax.random.normal(ks[2], (F_dim, F_dim), jnp.float32),
        "fln_w": jnp.ones((1, F_dim), jnp.float32),
        "fln_b": jnp.zeros((1, F_dim), jnp.float32),
        "w1_t": s * jax.random.normal(ks[3], (F_dim, F_dim), jnp.float32),
        "b1": s * jax.random.normal(ks[4], (1, F_dim), jnp.float32),
        "w2_t": s * jax.random.normal(ks[5], (F_dim, F_dim), jnp.float32),
        "b2": s * jax.random.normal(ks[6], (1, F_dim), jnp.float32),
    }


if __name__ == "__main__":
    B, A, F_dim, HEADS = 8, 8, 32, 4   # in_features == out_features == 32, head_dim = 8

    key = jax.random.PRNGKey(0)
    kx, kc, kp = jax.random.split(key, 3)

    x = jax.random.normal(kx, (B, A, F_dim), jnp.float32)
    conn = jax.random.uniform(kc, (B, A, A)) > 0.3
    # ensure every node attends at least to itself (avoids fully-masked softmax rows)
    conn = jnp.logical_or(conn, jnp.eye(A, dtype=bool)[None]).astype(jnp.int8)

    params = make_params(kp, F_dim)
    ref = jax.block_until_ready(reference_jax(x, conn, params, heads=HEADS))

    # f32 matmul path + exact reciprocal: semantic check of the forward.
    out_f32 = jax.block_until_ready(
        dot_gat_head(x, conn, params, heads=HEADS,
                     matmul_dtype=jnp.float32, approx_recip=False))
    assert out_f32.shape == (B, A, F_dim)
    err32 = float(jnp.max(jnp.abs(out_f32 - ref)))
    assert jnp.allclose(out_f32, ref, atol=1e-2, rtol=1e-2), err32

    # default path: bf16 MXU operands (full-rate MXU), f32 accumulation, approx recip.
    out_bf16 = jax.block_until_ready(dot_gat_head(x, conn, params, heads=HEADS))
    errbf = float(jnp.max(jnp.abs(out_bf16 - ref)))
    assert jnp.allclose(out_bf16, ref, atol=1e-1, rtol=1e-1), errbf

    print("KERNEL_OK")
</pallas_src>

<mosaic_0001>
module attributes {stable_mosaic.version = 11 : i64} {
  func.func @_dotgat_kernel(%arg0: i32, %arg1: memref<32x32xf32, #tpu.memory_space<vmem>>, %arg2: memref<4x8x8xf32, #tpu.memory_space<vmem>>, %arg3: memref<1x32xf32, #tpu.memory_space<vmem>>, %arg4: memref<1x32xf32, #tpu.memory_space<vmem>>, %arg5: memref<32x96xf32, #tpu.memory_space<vmem>>, %arg6: memref<1x32xf32, #tpu.memory_space<vmem>>, %arg7: memref<1x32xf32, #tpu.memory_space<vmem>>, %arg8: memref<32x32xf32, #tpu.memory_space<vmem>>, %arg9: memref<1x32xf32, #tpu.memory_space<vmem>>, %arg10: memref<32x32xf32, #tpu.memory_space<vmem>>, %arg11: memref<1x32xf32, #tpu.memory_space<vmem>>, %arg12: memref<32x32xf32, #tpu.memory_space<vmem>>) attributes {dimension_semantics = [#tpu.dimension_semantics<parallel>], iteration_bounds = array<i64: 2>, scalar_prefetch = 0 : i64, scratch_operands = 0 : i64, tpu.core_type = #tpu.core_type<tc>, window_params = [{transform_indices = @transform_0, window_bounds = array<i64: 32, 32>}, {transform_indices = @transform_1, window_bounds = array<i64: 4, 8, 8>}, {pipeline_mode = #tpu.pipeline_mode<synchronous>, transform_indices = @transform_2, window_bounds = array<i64: 1, 32>}, {pipeline_mode = #tpu.pipeline_mode<synchronous>, transform_indices = @transform_3, window_bounds = array<i64: 1, 32>}, {pipeline_mode = #tpu.pipeline_mode<synchronous>, transform_indices = @transform_4, window_bounds = array<i64: 32, 96>}, {pipeline_mode = #tpu.pipeline_mode<synchronous>, transform_indices = @transform_5, window_bounds = array<i64: 1, 32>}, {pipeline_mode = #tpu.pipeline_mode<synchronous>, transform_indices = @transform_6, window_bounds = array<i64: 1, 32>}, {pipeline_mode = #tpu.pipeline_mode<synchronous>, transform_indices = @transform_7, window_bounds = array<i64: 32, 32>}, {pipeline_mode = #tpu.pipeline_mode<synchronous>, transform_indices = @transform_8, window_bounds = array<i64: 1, 32>}, {pipeline_mode = #tpu.pipeline_mode<synchronous>, transform_indices = @transform_9, window_bounds = array<i64: 32, 32>}, {pipeline_mode = #tpu.pipeline_mode<synchronous>, transform_indices = @transform_10, window_bounds = array<i64: 1, 32>}, {transform_indices = @transform_11, window_bounds = array<i64: 32, 32>}]} {
    %c0 = arith.constant 0 : index
    %c0_0 = arith.constant 0 : index
    %0 = vector.load %arg3[%c0, %c0_0] : memref<1x32xf32, #tpu.memory_space<vmem>>, vector<1x32xf32>
    %c0_1 = arith.constant 0 : index
    %c0_2 = arith.constant 0 : index
    %1 = vector.load %arg4[%c0_1, %c0_2] : memref<1x32xf32, #tpu.memory_space<vmem>>, vector<1x32xf32>
    %c0_3 = arith.constant 0 : index
    %c0_4 = arith.constant 0 : index
    %2 = vector.load %arg1[%c0_3, %c0_4] : memref<32x32xf32, #tpu.memory_space<vmem>>, vector<32x32xf32>
    %cst = arith.constant dense<0.000000e+00> : vector<32xf32>
    %3 = vector.multi_reduction <add>, %2, %cst [1] : vector<32x32xf32> to vector<32xf32>
    %4 = vector.shape_cast %3 : vector<32xf32> to vector<32x1xf32>
    %cst_5 = arith.constant 3.200000e+01 : f32
    %5 = vector.broadcast %cst_5 : f32 to vector<32x1xf32>
    %6 = arith.divf %4, %5 : vector<32x1xf32>
    %7 = vector.broadcast %6 : vector<32x1xf32> to vector<32x32xf32>
    %8 = arith.subf %2, %7 : vector<32x32xf32>
    %9 = arith.mulf %8, %8 : vector<32x32xf32>
    %cst_6 = arith.constant dense<0.000000e+00> : vector<32xf32>
    %10 = vector.multi_reduction <add>, %9, %cst_6 [1] : vector<32x32xf32> to vector<32xf32>
    %11 = vector.shape_cast %10 : vector<32xf32> to vector<32x1xf32>
    %cst_7 = arith.constant 3.200000e+01 : f32
    %12 = vector.broadcast %cst_7 : f32 to vector<32x1xf32>
    %13 = arith.divf %11, %12 : vector<32x1xf32>
    %14 = vector.broadcast %6 : vector<32x1xf32> to vector<32x32xf32>
    %15 = arith.subf %2, %14 : vector<32x32xf32>
    %cst_8 = arith.constant 9.99999974E-6 : f32
    %16 = vector.broadcast %cst_8 : f32 to vector<32x1xf32>
    %17 = arith.addf %13, %16 : vector<32x1xf32>
    %18 = math.rsqrt %17 : vector<32x1xf32>
    %19 = vector.broadcast %18 : vector<32x1xf32> to vector<32x32xf32>
    %20 = arith.mulf %15, %19 : vector<32x32xf32>
    %21 = vector.broadcast %0 : vector<1x32xf32> to vector<32x32xf32>
    %22 = arith.mulf %20, %21 : vector<32x32xf32>
    %23 = vector.broadcast %1 : vector<1x32xf32> to vector<32x32xf32>
    %24 = arith.addf %22, %23 : vector<32x32xf32>
    %c0_9 = arith.constant 0 : index
    %c0_10 = arith.constant 0 : index
    %25 = vector.load %arg5[%c0_9, %c0_10] : memref<32x96xf32, #tpu.memory_space<vmem>>, vector<32x96xf32>
    %cst_11 = arith.constant dense<0.000000e+00> : vector<32x96xf32>
    %26 = tpu.matmul %24, %25, %cst_11 {dimension_numbers = #tpu.dot_dimension_numbers<[1], [0], [0], [1], [0, 0, 1, 1], [], []>} : vector<32x32xf32>, vector<32x96xf32>, vector<32x96xf32> -> vector<32x96xf32>
    %c0_12 = arith.constant 0 : index
    %c0_13 = arith.constant 0 : index
    %c0_14 = arith.constant 0 : index
    %27 = vector.load %arg2[%c0_12, %c0_13, %c0_14] : memref<4x8x8xf32, #tpu.memory_space<vmem>>, vector<4x8x8xf32>
    %28 = vector.extract_strided_slice %26 {offsets = [0, 0], sizes = [32, 8], strides = [1, 1]} : vector<32x96xf32> to vector<32x8xf32>
    %29 = vector.shape_cast %28 : vector<32x8xf32> to vector<4x8x8xf32>
    %30 = vector.extract_strided_slice %26 {offsets = [0, 32], sizes = [32, 8], strides = [1, 1]} : vector<32x96xf32> to vector<32x8xf32>
    %31 = vector.shape_cast %30 : vector<32x8xf32> to vector<4x8x8xf32>
    %32 = vector.extract_strided_slice %26 {offsets = [0, 64], sizes = [32, 8], strides = [1, 1]} : vector<32x96xf32> to vector<32x8xf32>
    %33 = vector.shape_cast %32 : vector<32x8xf32> to vector<4x8x8xf32>
    "tpu.trace_start"() <{level = 10 : i32, message = "bqd,bkd->bqk"}> : () -> ()
    %cst_15 = arith.constant dense<0.000000e+00> : vector<4x8x8xf32>
    %34 = tpu.matmul %29, %31, %cst_15 {dimension_numbers = #tpu.dot_dimension_numbers<[2], [2], [1], [1], [0, 0, 0, 1, 1, 1], [0], [0]>} : vector<4x8x8xf32>, vector<4x8x8xf32>, vector<4x8x8xf32> -> vector<4x8x8xf32>
    "tpu.trace_stop"() : () -> ()
    %35 = arith.addf %34, %27 : vector<4x8x8xf32>
    %cst_16 = arith.constant dense<0xFF800000> : vector<4x8xf32>
    %36 = vector.multi_reduction <maximumf>, %35, %cst_16 [2] : vector<4x8x8xf32> to vector<4x8xf32>
    %37 = vector.shape_cast %36 : vector<4x8xf32> to vector<4x8x1xf32>
    %38 = vector.broadcast %37 : vector<4x8x1xf32> to vector<4x8x8xf32>
    %39 = arith.subf %35, %38 : vector<4x8x8xf32>
    %40 = math.exp %39 : vector<4x8x8xf32>
    %cst_17 = arith.constant dense<0.000000e+00> : vector<4x8xf32>
    %41 = vector.multi_reduction <add>, %40, %cst_17 [2] : vector<4x8x8xf32> to vector<4x8xf32>
    %42 = vector.shape_cast %41 : vector<4x8xf32> to vector<4x8x1xf32>
    %43 = vector.broadcast %42 : vector<4x8x1xf32> to vector<4x8x8xf32>
    %44 = arith.divf %40, %43 : vector<4x8x8xf32>
    "tpu.trace_start"() <{level = 10 : i32, message = "bqk,bkd->bqd"}> : () -> ()
    %cst_18 = arith.constant dense<0.000000e+00> : vector<4x8x8xf32>
    %45 = tpu.matmul %44, %33, %cst_18 {dimension_numbers = #tpu.dot_dimension_numbers<[2], [1], [1], [2], [0, 0, 0, 1, 1, 2], [0], [0]>} : vector<4x8x8xf32>, vector<4x8x8xf32>, vector<4x8x8xf32> -> vector<4x8x8xf32>
    "tpu.trace_stop"() : () -> ()
    %46 = vector.extract_strided_slice %26 {offsets = [0, 8], sizes = [32, 8], strides = [1, 1]} : vector<32x96xf32> to vector<32x8xf32>
    %47 = vector.shape_cast %46 : vector<32x8xf32> to vector<4x8x8xf32>
    %48 = vector.extract_strided_slice %26 {offsets = [0, 40], sizes = [32, 8], strides = [1, 1]} : vector<32x96xf32> to vector<32x8xf32>
    %49 = vector.shape_cast %48 : vector<32x8xf32> to vector<4x8x8xf32>
    %50 = vector.extract_strided_slice %26 {offsets = [0, 72], sizes = [32, 8], strides = [1, 1]} : vector<32x96xf32> to vector<32x8xf32>
    %51 = vector.shape_cast %50 : vector<32x8xf32> to vector<4x8x8xf32>
    "tpu.trace_start"() <{level = 10 : i32, message = "bqd,bkd->bqk"}> : () -> ()
    %cst_19 = arith.constant dense<0.000000e+00> : vector<4x8x8xf32>
    %52 = tpu.matmul %47, %49, %cst_19 {dimension_numbers = #tpu.dot_dimension_numbers<[2], [2], [1], [1], [0, 0, 0, 1, 1, 1], [0], [0]>} : vector<4x8x8xf32>, vector<4x8x8xf32>, vector<4x8x8xf32> -> vector<4x8x8xf32>
    "tpu.trace_stop"() : () -> ()
    %53 = arith.addf %52, %27 : vector<4x8x8xf32>
    %cst_20 = arith.constant dense<0xFF800000> : vector<4x8xf32>
    %54 = vector.multi_reduction <maximumf>, %53, %cst_20 [2] : vector<4x8x8xf32> to vector<4x8xf32>
    %55 = vector.shape_cast %54 : vector<4x8xf32> to vector<4x8x1xf32>
    %56 = vector.broadcast %55 : vector<4x8x1xf32> to vector<4x8x8xf32>
    %57 = arith.subf %53, %56 : vector<4x8x8xf32>
    %58 = math.exp %57 : vector<4x8x8xf32>
    %cst_21 = arith.constant dense<0.000000e+00> : vector<4x8xf32>
    %59 = vector.multi_reduction <add>, %58, %cst_21 [2] : vector<4x8x8xf32> to vector<4x8xf32>
    %60 = vector.shape_cast %59 : vector<4x8xf32> to vector<4x8x1xf32>
    %61 = vector.broadcast %60 : vector<4x8x1xf32> to vector<4x8x8xf32>
    %62 = arith.divf %58, %61 : vector<4x8x8xf32>
    "tpu.trace_start"() <{level = 10 : i32, message = "bqk,bkd->bqd"}> : () -> ()
    %cst_22 = arith.constant dense<0.000000e+00> : vector<4x8x8xf32>
    %63 = tpu.matmul %62, %51, %cst_22 {dimension_numbers = #tpu.dot_dimension_numbers<[2], [1], [1], [2], [0, 0, 0, 1, 1, 2], [0], [0]>} : vector<4x8x8xf32>, vector<4x8x8xf32>, vector<4x8x8xf32> -> vector<4x8x8xf32>
    "tpu.trace_stop"() : () -> ()
    %64 = vector.extract_strided_slice %26 {offsets = [0, 16], sizes = [32, 8], strides = [1, 1]} : vector<32x96xf32> to vector<32x8xf32>
    %65 = vector.shape_cast %64 : vector<32x8xf32> to vector<4x8x8xf32>
    %66 = vector.extract_strided_slice %26 {offsets = [0, 48], sizes = [32, 8], strides = [1, 1]} : vector<32x96xf32> to vector<32x8xf32>
    %67 = vector.shape_cast %66 : vector<32x8xf32> to vector<4x8x8xf32>
    %68 = vector.extract_strided_slice %26 {offsets = [0, 80], sizes = [32, 8], strides = [1, 1]} : vector<32x96xf32> to vector<32x8xf32>
    %69 = vector.shape_cast %68 : vector<32x8xf32> to vector<4x8x8xf32>
    "tpu.trace_start"() <{level = 10 : i32, message = "bqd,bkd->bqk"}> : () -> ()
    %cst_23 = arith.constant dense<0.000000e+00> : vector<4x8x8xf32>
    %70 = tpu.matmul %65, %67, %cst_23 {dimension_numbers = #tpu.dot_dimension_numbers<[2], [2], [1], [1], [0, 0, 0, 1, 1, 1], [0], [0]>} : vector<4x8x8xf32>, vector<4x8x8xf32>, vector<4x8x8xf32> -> vector<4x8x8xf32>
    "tpu.trace_stop"() : () -> ()
    %71 = arith.addf %70, %27 : vector<4x8x8xf32>
    %cst_24 = arith.constant dense<0xFF800000> : vector<4x8xf32>
    %72 = vector.multi_reduction <maximumf>, %71, %cst_24 [2] : vector<4x8x8xf32> to vector<4x8xf32>
    %73 = vector.shape_cast %72 : vector<4x8xf32> to vector<4x8x1xf32>
    %74 = vector.broadcast %73 : vector<4x8x1xf32> to vector<4x8x8xf32>
    %75 = arith.subf %71, %74 : vector<4x8x8xf32>
    %76 = math.exp %75 : vector<4x8x8xf32>
    %cst_25 = arith.constant dense<0.000000e+00> : vector<4x8xf32>
    %77 = vector.multi_reduction <add>, %76, %cst_25 [2] : vector<4x8x8xf32> to vector<4x8xf32>
    %78 = vector.shape_cast %77 : vector<4x8xf32> to vector<4x8x1xf32>
    %79 = vector.broadcast %78 : vector<4x8x1xf32> to vector<4x8x8xf32>
    %80 = arith.divf %76, %79 : vector<4x8x8xf32>
    "tpu.trace_start"() <{level = 10 : i32, message = "bqk,bkd->bqd"}> : () -> ()
    %cst_26 = arith.constant dense<0.000000e+00> : vector<4x8x8xf32>
    %81 = tpu.matmul %80, %69, %cst_26 {dimension_numbers = #tpu.dot_dimension_numbers<[2], [1], [1], [2], [0, 0, 0, 1, 1, 2], [0], [0]>} : vector<4x8x8xf32>, vector<4x8x8xf32>, vector<4x8x8xf32> -> vector<4x8x8xf32>
    "tpu.trace_stop"() : () -> ()
    %82 = vector.extract_strided_slice %26 {offsets = [0, 24], sizes = [32, 8], strides = [1, 1]} : vector<32x96xf32> to vector<32x8xf32>
    %83 = vector.shape_cast %82 : vector<32x8xf32> to vector<4x8x8xf32>
    %84 = vector.extract_strided_slice %26 {offsets = [0, 56], sizes = [32, 8], strides = [1, 1]} : vector<32x96xf32> to vector<32x8xf32>
    %85 = vector.shape_cast %84 : vector<32x8xf32> to vector<4x8x8xf32>
    %86 = vector.extract_strided_slice %26 {offsets = [0, 88], sizes = [32, 8], strides = [1, 1]} : vector<32x96xf32> to vector<32x8xf32>
    %87 = vector.shape_cast %86 : vector<32x8xf32> to vector<4x8x8xf32>
    "tpu.trace_start"() <{level = 10 : i32, message = "bqd,bkd->bqk"}> : () -> ()
    %cst_27 = arith.constant dense<0.000000e+00> : vector<4x8x8xf32>
    %88 = tpu.matmul %83, %85, %cst_27 {dimension_numbers = #tpu.dot_dimension_numbers<[2], [2], [1], [1], [0, 0, 0, 1, 1, 1], [0], [0]>} : vector<4x8x8xf32>, vector<4x8x8xf32>, vector<4x8x8xf32> -> vector<4x8x8xf32>
    "tpu.trace_stop"() : () -> ()
    %89 = arith.addf %88, %27 : vector<4x8x8xf32>
    %cst_28 = arith.constant dense<0xFF800000> : vector<4x8xf32>
    %90 = vector.multi_reduction <maximumf>, %89, %cst_28 [2] : vector<4x8x8xf32> to vector<4x8xf32>
    %91 = vector.shape_cast %90 : vector<4x8xf32> to vector<4x8x1xf32>
    %92 = vector.broadcast %91 : vector<4x8x1xf32> to vector<4x8x8xf32>
    %93 = arith.subf %89, %92 : vector<4x8x8xf32>
    %94 = math.exp %93 : vector<4x8x8xf32>
    %cst_29 = arith.constant dense<0.000000e+00> : vector<4x8xf32>
    %95 = vector.multi_reduction <add>, %94, %cst_29 [2] : vector<4x8x8xf32> to vector<4x8xf32>
    %96 = vector.shape_cast %95 : vector<4x8xf32> to vector<4x8x1xf32>
    %97 = vector.broadcast %96 : vector<4x8x1xf32> to vector<4x8x8xf32>
    %98 = arith.divf %94, %97 : vector<4x8x8xf32>
    "tpu.trace_start"() <{level = 10 : i32, message = "bqk,bkd->bqd"}> : () -> ()
    %cst_30 = arith.constant dense<0.000000e+00> : vector<4x8x8xf32>
    %99 = tpu.matmul %98, %87, %cst_30 {dimension_numbers = #tpu.dot_dimension_numbers<[2], [1], [1], [2], [0, 0, 0, 1, 1, 2], [0], [0]>} : vector<4x8x8xf32>, vector<4x8x8xf32>, vector<4x8x8xf32> -> vector<4x8x8xf32>
    "tpu.trace_stop"() : () -> ()
    %100 = tpu.concatenate %45, %63, %81, %99 in 2 : vector<4x8x8xf32>, vector<4x8x8xf32>, vector<4x8x8xf32>, vector<4x8x8xf32> -> vector<4x8x32xf32>
    %101 = vector.shape_cast %100 : vector<4x8x32xf32> to vector<32x32xf32>
    %c0_31 = arith.constant 0 : index
    %c0_32 = arith.constant 0 : index
    %102 = vector.load %arg6[%c0_31, %c0_32] : memref<1x32xf32, #tpu.memory_space<vmem>>, vector<1x32xf32>
    %c0_33 = arith.constant 0 : index
    %c0_34 = arith.constant 0 : index
    %103 = vector.load %arg7[%c0_33, %c0_34] : memref<1x32xf32, #tpu.memory_space<vmem>>, vector<1x32xf32>
    %cst_35 = arith.constant dense<0.000000e+00> : vector<32xf32>
    %104 = vector.multi_reduction <add>, %101, %cst_35 [1] : vector<32x32xf32> to vector<32xf32>
    %105 = vector.shape_cast %104 : vector<32xf32> to vector<32x1xf32>
    %cst_36 = arith.constant 3.200000e+01 : f32
    %106 = vector.broadcast %cst_36 : f32 to vector<32x1xf32>
    %107 = arith.divf %105, %106 : vector<32x1xf32>
    %108 = vector.broadcast %107 : vector<32x1xf32> to vector<32x32xf32>
    %109 = arith.subf %101, %108 : vector<32x32xf32>
    %110 = arith.mulf %109, %109 : vector<32x32xf32>
    %cst_37 = arith.constant dense<0.000000e+00> : vector<32xf32>
    %111 = vector.multi_reduction <add>, %110, %cst_37 [1] : vector<32x32xf32> to vector<32xf32>
    %112 = vector.shape_cast %111 : vector<32xf32> to vector<32x1xf32>
    %cst_38 = arith.constant 3.200000e+01 : f32
    %113 = vector.broadcast %cst_38 : f32 to vector<32x1xf32>
    %114 = arith.divf %112, %113 : vector<32x1xf32>
    %115 = vector.broadcast %107 : vector<32x1xf32> to vector<32x32xf32>
    %116 = arith.subf %101, %115 : vector<32x32xf32>
    %cst_39 = arith.constant 9.99999974E-6 : f32
    %117 = vector.broadcast %cst_39 : f32 to vector<32x1xf32>
    %118 = arith.addf %114, %117 : vector<32x1xf32>
    %119 = math.rsqrt %118 : vector<32x1xf32>
    %120 = vector.broadcast %119 : vector<32x1xf32> to vector<32x32xf32>
    %121 = arith.mulf %116, %120 : vector<32x32xf32>
    %122 = vector.broadcast %102 : vector<1x32xf32> to vector<32x32xf32>
    %123 = arith.mulf %121, %122 : vector<32x32xf32>
    %124 = vector.broadcast %103 : vector<1x32xf32> to vector<32x32xf32>
    %125 = arith.addf %123, %124 : vector<32x32xf32>
    %c0_40 = arith.constant 0 : index
    %c0_41 = arith.constant 0 : index
    %126 = vector.load %arg8[%c0_40, %c0_41] : memref<32x32xf32, #tpu.memory_space<vmem>>, vector<32x32xf32>
    %cst_42 = arith.constant dense<0.000000e+00> : vector<32x32xf32>
    %127 = tpu.matmul %125, %126, %cst_42 {dimension_numbers = #tpu.dot_dimension_numbers<[1], [0], [0], [1], [0, 0, 1, 1], [], []>} : vector<32x32xf32>, vector<32x32xf32>, vector<32x32xf32> -> vector<32x32xf32>
    %c0_43 = arith.constant 0 : index
    %c0_44 = arith.constant 0 : index
    %128 = vector.load %arg9[%c0_43, %c0_44] : memref<1x32xf32, #tpu.memory_space<vmem>>, vector<1x32xf32>
    %129 = vector.broadcast %128 : vector<1x32xf32> to vector<32x32xf32>
    %130 = arith.addf %127, %129 : vector<32x32xf32>
    %131 = arith.negf %130 : vector<32x32xf32>
    %132 = math.exp %131 : vector<32x32xf32>
    %cst_45 = arith.constant 1.000000e+00 : f32
    %133 = vector.broadcast %cst_45 : f32 to vector<32x32xf32>
    %134 = arith.addf %133, %132 : vector<32x32xf32>
    %135 = arith.divf %133, %134 : vector<32x32xf32>
    %136 = arith.mulf %130, %135 : vector<32x32xf32>
    %c0_46 = arith.constant 0 : index
    %c0_47 = arith.constant 0 : index
    %137 = vector.load %arg10[%c0_46, %c0_47] : memref<32x32xf32, #tpu.memory_space<vmem>>, vector<32x32xf32>
    %cst_48 = arith.constant dense<0.000000e+00> : vector<32x32xf32>
    %138 = tpu.matmul %136, %137, %cst_48 {dimension_numbers = #tpu.dot_dimension_numbers<[1], [0], [0], [1], [0, 0, 1, 1], [], []>} : vector<32x32xf32>, vector<32x32xf32>, vector<32x32xf32> -> vector<32x32xf32>
    %c0_49 = arith.constant 0 : index
    %c0_50 = arith.constant 0 : index
    %139 = vector.load %arg11[%c0_49, %c0_50] : memref<1x32xf32, #tpu.memory_space<vmem>>, vector<1x32xf32>
    %140 = vector.broadcast %139 : vector<1x32xf32> to vector<32x32xf32>
    %141 = arith.addf %138, %140 : vector<32x32xf32>
    %142 = arith.negf %141 : vector<32x32xf32>
    %143 = math.exp %142 : vector<32x32xf32>
    %cst_51 = arith.constant 1.000000e+00 : f32
    %144 = vector.broadcast %cst_51 : f32 to vector<32x32xf32>
    %145 = arith.addf %144, %143 : vector<32x32xf32>
    %146 = arith.divf %144, %145 : vector<32x32xf32>
    %147 = arith.mulf %141, %146 : vector<32x32xf32>
    %cst_52 = arith.constant dense<0.000000e+00> : vector<32xf32>
    %148 = vector.multi_reduction <add>, %147, %cst_52 [1] : vector<32x32xf32> to vector<32xf32>
    %149 = vector.shape_cast %148 : vector<32xf32> to vector<32x1xf32>
    %cst_53 = arith.constant 3.200000e+01 : f32
    %150 = vector.broadcast %cst_53 : f32 to vector<32x1xf32>
    %151 = arith.divf %149, %150 : vector<32x1xf32>
    %152 = vector.broadcast %151 : vector<32x1xf32> to vector<32x32xf32>
    %153 = arith.subf %147, %152 : vector<32x32xf32>
    %154 = arith.mulf %153, %153 : vector<32x32xf32>
    %cst_54 = arith.constant dense<0.000000e+00> : vector<32xf32>
    %155 = vector.multi_reduction <add>, %154, %cst_54 [1] : vector<32x32xf32> to vector<32xf32>
    %156 = vector.shape_cast %155 : vector<32xf32> to vector<32x1xf32>
    %cst_55 = arith.constant 3.200000e+01 : f32
    %157 = vector.broadcast %cst_55 : f32 to vector<32x1xf32>
    %158 = arith.divf %156, %157 : vector<32x1xf32>
    %159 = vector.broadcast %151 : vector<32x1xf32> to vector<32x32xf32>
    %160 = arith.subf %147, %159 : vector<32x32xf32>
    %cst_56 = arith.constant 9.99999974E-6 : f32
    %161 = vector.broadcast %cst_56 : f32 to vector<32x1xf32>
    %162 = arith.addf %158, %161 : vector<32x1xf32>
    %163 = math.rsqrt %162 : vector<32x1xf32>
    %164 = vector.broadcast %163 : vector<32x1xf32> to vector<32x32xf32>
    %165 = arith.mulf %160, %164 : vector<32x32xf32>
    %166 = vector.broadcast %0 : vector<1x32xf32> to vector<32x32xf32>
    %167 = arith.mulf %165, %166 : vector<32x32xf32>
    %168 = vector.broadcast %1 : vector<1x32xf32> to vector<32x32xf32>
    %169 = arith.addf %167, %168 : vector<32x32xf32>
    %c0_57 = arith.constant 0 : index
    %c0_58 = arith.constant 0 : index
    %170 = vector.load %arg12[%c0_57, %c0_58] : memref<32x32xf32, #tpu.memory_space<vmem>>, vector<32x32xf32>
    tpu.vector_store %arg12[%c0_57, %c0_58], %169 {strides = array<i32>} : memref<32x32xf32, #tpu.memory_space<vmem>>, vector<32x32xf32>,
    return
  }
  func.func @transform_0(%arg0: i32) -> (i32, i32) {
    %c0_i32 = arith.constant 0 : i32
    %c0_i32_0 = arith.constant 0 : i32
    return %arg0, %c0_i32 : i32, i32
  }
  func.func @transform_1(%arg0: i32) -> (i32, i32, i32) {
    %c0_i32 = arith.constant 0 : i32
    %c0_i32_0 = arith.constant 0 : i32
    %c0_i32_1 = arith.constant 0 : i32
    return %arg0, %c0_i32, %c0_i32_0 : i32, i32, i32
  }
  func.func @transform_2(%arg0: i32) -> (i32, i32) {
    %c0_i32 = arith.constant 0 : i32
    %c0_i32_0 = arith.constant 0 : i32
    %c0_i32_1 = arith.constant 0 : i32
    return %c0_i32, %c0_i32_0 : i32, i32
  }
  func.func @transform_3(%arg0: i32) -> (i32, i32) {
    %c0_i32 = arith.constant 0 : i32
    %c0_i32_0 = arith.constant 0 : i32
    %c0_i32_1 = arith.constant 0 : i32
    return %c0_i32, %c0_i32_0 : i32, i32
  }
  func.func @transform_4(%arg0: i32) -> (i32, i32) {
    %c0_i32 = arith.constant 0 : i32
    %c0_i32_0 = arith.constant 0 : i32
    %c0_i32_1 = arith.constant 0 : i32
    return %c0_i32, %c0_i32_0 : i32, i32
  }
  func.func @transform_5(%arg0: i32) -> (i32, i32) {
    %c0_i32 = arith.constant 0 : i32
    %c0_i32_0 = arith.constant 0 : i32
    %c0_i32_1 = arith.constant 0 : i32
    return %c0_i32, %c0_i32_0 : i32, i32
  }
  func.func @transform_6(%arg0: i32) -> (i32, i32) {
    %c0_i32 = arith.constant 0 : i32
    %c0_i32_0 = arith.constant 0 : i32
    %c0_i32_1 = arith.constant 0 : i32
    return %c0_i32, %c0_i32_0 : i32, i32
  }
  func.func @transform_7(%arg0: i32) -> (i32, i32) {
    %c0_i32 = arith.constant 0 : i32
    %c0_i32_0 = arith.constant 0 : i32
    %c0_i32_1 = arith.constant 0 : i32
    return %c0_i32, %c0_i32_0 : i32, i32
  }
  func.func @transform_8(%arg0: i32) -> (i32, i32) {
    %c0_i32 = arith.constant 0 : i32
    %c0_i32_0 = arith.constant 0 : i32
    %c0_i32_1 = arith.constant 0 : i32
    return %c0_i32, %c0_i32_0 : i32, i32
  }
  func.func @transform_9(%arg0: i32) -> (i32, i32) {
    %c0_i32 = arith.constant 0 : i32
    %c0_i32_0 = arith.constant 0 : i32
    %c0_i32_1 = arith.constant 0 : i32
    return %c0_i32, %c0_i32_0 : i32, i32
  }
  func.func @transform_10(%arg0: i32) -> (i32, i32) {
    %c0_i32 = arith.constant 0 : i32
    %c0_i32_0 = arith.constant 0 : i32
    %c0_i32_1 = arith.constant 0 : i32
    return %c0_i32, %c0_i32_0 : i32, i32
  }
  func.func @transform_11(%arg0: i32) -> (i32, i32) {
    %c0_i32 = arith.constant 0 : i32
    %c0_i32_0 = arith.constant 0 : i32
    return %arg0, %c0_i32 : i32, i32
  }
}

module attributes {stable_mosaic.version = 11 : i64} {
  func.func @_dotgat_kernel(%arg0: i32, %arg1: memref<32x32xf32, #tpu.memory_space<vmem>>, %arg2: memref<4x8x8xf32, #tpu.memory_space<vmem>>, %arg3: memref<1x32xf32, #tpu.memory_space<vmem>>, %arg4: memref<1x32xf32, #tpu.memory_space<vmem>>, %arg5: memref<32x96xf32, #tpu.memory_space<vmem>>, %arg6: memref<1x32xf32, #tpu.memory_space<vmem>>, %arg7: memref<1x32xf32, #tpu.memory_space<vmem>>, %arg8: memref<32x32xf32, #tpu.memory_space<vmem>>, %arg9: memref<1x32xf32, #tpu.memory_space<vmem>>, %arg10: memref<32x32xf32, #tpu.memory_space<vmem>>, %arg11: memref<1x32xf32, #tpu.memory_space<vmem>>, %arg12: memref<32x32xf32, #tpu.memory_space<vmem>>) attributes {dimension_semantics = [#tpu.dimension_semantics<parallel>], iteration_bounds = array<i64: 2>, scalar_prefetch = 0 : i64, scratch_operands = 0 : i64, tpu.core_type = #tpu.core_type<tc>, window_params = [{transform_indices = @transform_0, window_bounds = array<i64: 32, 32>}, {transform_indices = @transform_1, window_bounds = array<i64: 4, 8, 8>}, {pipeline_mode = #tpu.pipeline_mode<synchronous>, transform_indices = @transform_2, window_bounds = array<i64: 1, 32>}, {pipeline_mode = #tpu.pipeline_mode<synchronous>, transform_indices = @transform_3, window_bounds = array<i64: 1, 32>}, {pipeline_mode = #tpu.pipeline_mode<synchronous>, transform_indices = @transform_4, window_bounds = array<i64: 32, 96>}, {pipeline_mode = #tpu.pipeline_mode<synchronous>, transform_indices = @transform_5, window_bounds = array<i64: 1, 32>}, {pipeline_mode = #tpu.pipeline_mode<synchronous>, transform_indices = @transform_6, window_bounds = array<i64: 1, 32>}, {pipeline_mode = #tpu.pipeline_mode<synchronous>, transform_indices = @transform_7, window_bounds = array<i64: 32, 32>}, {pipeline_mode = #tpu.pipeline_mode<synchronous>, transform_indices = @transform_8, window_bounds = array<i64: 1, 32>}, {pipeline_mode = #tpu.pipeline_mode<synchronous>, transform_indices = @transform_9, window_bounds = array<i64: 32, 32>}, {pipeline_mode = #tpu.pipeline_mode<synchronous>, transform_indices = @transform_10, window_bounds = array<i64: 1, 32>}, {transform_indices = @transform_11, window_bounds = array<i64: 32, 32>}]} {
    %c0 = arith.constant 0 : index
    %c0_0 = arith.constant 0 : index
    %0 = vector.load %arg3[%c0, %c0_0] : memref<1x32xf32, #tpu.memory_space<vmem>>, vector<1x32xf32>
    %c0_1 = arith.constant 0 : index
    %c0_2 = arith.constant 0 : index
    %1 = vector.load %arg4[%c0_1, %c0_2] : memref<1x32xf32, #tpu.memory_space<vmem>>, vector<1x32xf32>
    %c0_3 = arith.constant 0 : index
    %c0_4 = arith.constant 0 : index
    %2 = vector.load %arg1[%c0_3, %c0_4] : memref<32x32xf32, #tpu.memory_space<vmem>>, vector<32x32xf32>
    %cst = arith.constant dense<0.000000e+00> : vector<32xf32>
    %3 = vector.multi_reduction <add>, %2, %cst [1] : vector<32x32xf32> to vector<32xf32>
    %4 = vector.shape_cast %3 : vector<32xf32> to vector<32x1xf32>
    %cst_5 = arith.constant 3.200000e+01 : f32
    %5 = vector.broadcast %cst_5 : f32 to vector<32x1xf32>
    %6 = arith.divf %4, %5 : vector<32x1xf32>
    %7 = vector.broadcast %6 : vector<32x1xf32> to vector<32x32xf32>
    %8 = arith.subf %2, %7 : vector<32x32xf32>
    %9 = arith.mulf %8, %8 : vector<32x32xf32>
    %cst_6 = arith.constant dense<0.000000e+00> : vector<32xf32>
    %10 = vector.multi_reduction <add>, %9, %cst_6 [1] : vector<32x32xf32> to vector<32xf32>
    %11 = vector.shape_cast %10 : vector<32xf32> to vector<32x1xf32>
    %cst_7 = arith.constant 3.200000e+01 : f32
    %12 = vector.broadcast %cst_7 : f32 to vector<32x1xf32>
    %13 = arith.divf %11, %12 : vector<32x1xf32>
    %14 = vector.broadcast %6 : vector<32x1xf32> to vector<32x32xf32>
    %15 = arith.subf %2, %14 : vector<32x32xf32>
    %cst_8 = arith.constant 9.99999974E-6 : f32
    %16 = vector.broadcast %cst_8 : f32 to vector<32x1xf32>
    %17 = arith.addf %13, %16 : vector<32x1xf32>
    %18 = math.rsqrt %17 : vector<32x1xf32>
    %19 = vector.broadcast %18 : vector<32x1xf32> to vector<32x32xf32>
    %20 = arith.mulf %15, %19 : vector<32x32xf32>
    %21 = vector.broadcast %0 : vector<1x32xf32> to vector<32x32xf32>
    %22 = arith.mulf %20, %21 : vector<32x32xf32>
    %23 = vector.broadcast %1 : vector<1x32xf32> to vector<32x32xf32>
    %24 = arith.addf %22, %23 : vector<32x32xf32>
    %c0_9 = arith.constant 0 : index
    %c0_10 = arith.constant 0 : index
    %25 = vector.load %arg5[%c0_9, %c0_10] : memref<32x96xf32, #tpu.memory_space<vmem>>, vector<32x96xf32>
    %cst_11 = arith.constant dense<0.000000e+00> : vector<32x96xf32>
    %26 = tpu.matmul %24, %25, %cst_11 {dimension_numbers = #tpu.dot_dimension_numbers<[1], [0], [0], [1], [0, 0, 1, 1], [], []>} : vector<32x32xf32>, vector<32x96xf32>, vector<32x96xf32> -> vector<32x96xf32>
    %c0_12 = arith.constant 0 : index
    %c0_13 = arith.constant 0 : index
    %c0_14 = arith.constant 0 : index
    %27 = vector.load %arg2[%c0_12, %c0_13, %c0_14] : memref<4x8x8xf32, #tpu.memory_space<vmem>>, vector<4x8x8xf32>
    %28 = vector.extract_strided_slice %26 {offsets = [0, 0], sizes = [32, 8], strides = [1, 1]} : vector<32x96xf32> to vector<32x8xf32>
    %29 = vector.shape_cast %28 : vector<32x8xf32> to vector<4x8x8xf32>
    %30 = vector.extract_strided_slice %26 {offsets = [0, 32], sizes = [32, 8], strides = [1, 1]} : vector<32x96xf32> to vector<32x8xf32>
    %31 = vector.shape_cast %30 : vector<32x8xf32> to vector<4x8x8xf32>
    %32 = vector.extract_strided_slice %26 {offsets = [0, 64], sizes = [32, 8], strides = [1, 1]} : vector<32x96xf32> to vector<32x8xf32>
    %33 = vector.shape_cast %32 : vector<32x8xf32> to vector<4x8x8xf32>
    "tpu.trace_start"() <{level = 10 : i32, message = "bqd,bkd->bqk"}> : () -> ()
    %cst_15 = arith.constant dense<0.000000e+00> : vector<4x8x8xf32>
    %34 = tpu.matmul %29, %31, %cst_15 {dimension_numbers = #tpu.dot_dimension_numbers<[2], [2], [1], [1], [0, 0, 0, 1, 1, 1], [0], [0]>} : vector<4x8x8xf32>, vector<4x8x8xf32>, vector<4x8x8xf32> -> vector<4x8x8xf32>
    "tpu.trace_stop"() : () -> ()
    %35 = arith.addf %34, %27 : vector<4x8x8xf32>
    %cst_16 = arith.constant dense<0xFF800000> : vector<4x8xf32>
    %36 = vector.multi_reduction <maximumf>, %35, %cst_16 [2] : vector<4x8x8xf32> to vector<4x8xf32>
    %37 = vector.shape_cast %36 : vector<4x8xf32> to vector<4x8x1xf32>
    %38 = vector.broadcast %37 : vector<4x8x1xf32> to vector<4x8x8xf32>
    %39 = arith.subf %35, %38 : vector<4x8x8xf32>
    %40 = math.exp %39 : vector<4x8x8xf32>
    %cst_17 = arith.constant dense<0.000000e+00> : vector<4x8xf32>
    %41 = vector.multi_reduction <add>, %40, %cst_17 [2] : vector<4x8x8xf32> to vector<4x8xf32>
    %42 = vector.shape_cast %41 : vector<4x8xf32> to vector<4x8x1xf32>
    %43 = vector.broadcast %42 : vector<4x8x1xf32> to vector<4x8x8xf32>
    %44 = arith.divf %40, %43 : vector<4x8x8xf32>
    "tpu.trace_start"() <{level = 10 : i32, message = "bqk,bkd->bqd"}> : () -> ()
    %cst_18 = arith.constant dense<0.000000e+00> : vector<4x8x8xf32>
    %45 = tpu.matmul %44, %33, %cst_18 {dimension_numbers = #tpu.dot_dimension_numbers<[2], [1], [1], [2], [0, 0, 0, 1, 1, 2], [0], [0]>} : vector<4x8x8xf32>, vector<4x8x8xf32>, vector<4x8x8xf32> -> vector<4x8x8xf32>
    "tpu.trace_stop"() : () -> ()
    %46 = vector.extract_strided_slice %26 {offsets = [0, 8], sizes = [32, 8], strides = [1, 1]} : vector<32x96xf32> to vector<32x8xf32>
    %47 = vector.shape_cast %46 : vector<32x8xf32> to vector<4x8x8xf32>
    %48 = vector.extract_strided_slice %26 {offsets = [0, 40], sizes = [32, 8], strides = [1, 1]} : vector<32x96xf32> to vector<32x8xf32>
    %49 = vector.shape_cast %48 : vector<32x8xf32> to vector<4x8x8xf32>
    %50 = vector.extract_strided_slice %26 {offsets = [0, 72], sizes = [32, 8], strides = [1, 1]} : vector<32x96xf32> to vector<32x8xf32>
    %51 = vector.shape_cast %50 : vector<32x8xf32> to vector<4x8x8xf32>
    "tpu.trace_start"() <{level = 10 : i32, message = "bqd,bkd->bqk"}> : () -> ()
    %cst_19 = arith.constant dense<0.000000e+00> : vector<4x8x8xf32>
    %52 = tpu.matmul %47, %49, %cst_19 {dimension_numbers = #tpu.dot_dimension_numbers<[2], [2], [1], [1], [0, 0, 0, 1, 1, 1], [0], [0]>} : vector<4x8x8xf32>, vector<4x8x8xf32>, vector<4x8x8xf32> -> vector<4x8x8xf32>
    "tpu.trace_stop"() : () -> ()
    %53 = arith.addf %52, %27 : vector<4x8x8xf32>
    %cst_20 = arith.constant dense<0xFF800000> : vector<4x8xf32>
    %54 = vector.multi_reduction <maximumf>, %53, %cst_20 [2] : vector<4x8x8xf32> to vector<4x8xf32>
    %55 = vector.shape_cast %54 : vector<4x8xf32> to vector<4x8x1xf32>
    %56 = vector.broadcast %55 : vector<4x8x1xf32> to vector<4x8x8xf32>
    %57 = arith.subf %53, %56 : vector<4x8x8xf32>
    %58 = math.exp %57 : vector<4x8x8xf32>
    %cst_21 = arith.constant dense<0.000000e+00> : vector<4x8xf32>
    %59 = vector.multi_reduction <add>, %58, %cst_21 [2] : vector<4x8x8xf32> to vector<4x8xf32>
    %60 = vector.shape_cast %59 : vector<4x8xf32> to vector<4x8x1xf32>
    %61 = vector.broadcast %60 : vector<4x8x1xf32> to vector<4x8x8xf32>
    %62 = arith.divf %58, %61 : vector<4x8x8xf32>
    "tpu.trace_start"() <{level = 10 : i32, message = "bqk,bkd->bqd"}> : () -> ()
    %cst_22 = arith.constant dense<0.000000e+00> : vector<4x8x8xf32>
    %63 = tpu.matmul %62, %51, %cst_22 {dimension_numbers = #tpu.dot_dimension_numbers<[2], [1], [1], [2], [0, 0, 0, 1, 1, 2], [0], [0]>} : vector<4x8x8xf32>, vector<4x8x8xf32>, vector<4x8x8xf32> -> vector<4x8x8xf32>
    "tpu.trace_stop"() : () -> ()
    %64 = vector.extract_strided_slice %26 {offsets = [0, 16], sizes = [32, 8], strides = [1, 1]} : vector<32x96xf32> to vector<32x8xf32>
    %65 = vector.shape_cast %64 : vector<32x8xf32> to vector<4x8x8xf32>
    %66 = vector.extract_strided_slice %26 {offsets = [0, 48], sizes = [32, 8], strides = [1, 1]} : vector<32x96xf32> to vector<32x8xf32>
    %67 = vector.shape_cast %66 : vector<32x8xf32> to vector<4x8x8xf32>
    %68 = vector.extract_strided_slice %26 {offsets = [0, 80], sizes = [32, 8], strides = [1, 1]} : vector<32x96xf32> to vector<32x8xf32>
    %69 = vector.shape_cast %68 : vector<32x8xf32> to vector<4x8x8xf32>
    "tpu.trace_start"() <{level = 10 : i32, message = "bqd,bkd->bqk"}> : () -> ()
    %cst_23 = arith.constant dense<0.000000e+00> : vector<4x8x8xf32>
    %70 = tpu.matmul %65, %67, %cst_23 {dimension_numbers = #tpu.dot_dimension_numbers<[2], [2], [1], [1], [0, 0, 0, 1, 1, 1], [0], [0]>} : vector<4x8x8xf32>, vector<4x8x8xf32>, vector<4x8x8xf32> -> vector<4x8x8xf32>
    "tpu.trace_stop"() : () -> ()
    %71 = arith.addf %70, %27 : vector<4x8x8xf32>
    %cst_24 = arith.constant dense<0xFF800000> : vector<4x8xf32>
    %72 = vector.multi_reduction <maximumf>, %71, %cst_24 [2] : vector<4x8x8xf32> to vector<4x8xf32>
    %73 = vector.shape_cast %72 : vector<4x8xf32> to vector<4x8x1xf32>
    %74 = vector.broadcast %73 : vector<4x8x1xf32> to vector<4x8x8xf32>
    %75 = arith.subf %71, %74 : vector<4x8x8xf32>
    %76 = math.exp %75 : vector<4x8x8xf32>
    %cst_25 = arith.constant dense<0.000000e+00> : vector<4x8xf32>
    %77 = vector.multi_reduction <add>, %76, %cst_25 [2] : vector<4x8x8xf32> to vector<4x8xf32>
    %78 = vector.shape_cast %77 : vector<4x8xf32> to vector<4x8x1xf32>
    %79 = vector.broadcast %78 : vector<4x8x1xf32> to vector<4x8x8xf32>
    %80 = arith.divf %76, %79 : vector<4x8x8xf32>
    "tpu.trace_start"() <{level = 10 : i32, message = "bqk,bkd->bqd"}> : () -> ()
    %cst_26 = arith.constant dense<0.000000e+00> : vector<4x8x8xf32>
    %81 = tpu.matmul %80, %69, %cst_26 {dimension_numbers = #tpu.dot_dimension_numbers<[2], [1], [1], [2], [0, 0, 0, 1, 1, 2], [0], [0]>} : vector<4x8x8xf32>, vector<4x8x8xf32>, vector<4x8x8xf32> -> vector<4x8x8xf32>
    "tpu.trace_stop"() : () -> ()
    %82 = vector.extract_strided_slice %26 {offsets = [0, 24], sizes = [32, 8], strides = [1, 1]} : vector<32x96xf32> to vector<32x8xf32>
    %83 = vector.shape_cast %82 : vector<32x8xf32> to vector<4x8x8xf32>
    %84 = vector.extract_strided_slice %26 {offsets = [0, 56], sizes = [32, 8], strides = [1, 1]} : vector<32x96xf32> to vector<32x8xf32>
    %85 = vector.shape_cast %84 : vector<32x8xf32> to vector<4x8x8xf32>
    %86 = vector.extract_strided_slice %26 {offsets = [0, 88], sizes = [32, 8], strides = [1, 1]} : vector<32x96xf32> to vector<32x8xf32>
    %87 = vector.shape_cast %86 : vector<32x8xf32> to vector<4x8x8xf32>
    "tpu.trace_start"() <{level = 10 : i32, message = "bqd,bkd->bqk"}> : () -> ()
    %cst_27 = arith.constant dense<0.000000e+00> : vector<4x8x8xf32>
    %88 = tpu.matmul %83, %85, %cst_27 {dimension_numbers = #tpu.dot_dimension_numbers<[2], [2], [1], [1], [0, 0, 0, 1, 1, 1], [0], [0]>} : vector<4x8x8xf32>, vector<4x8x8xf32>, vector<4x8x8xf32> -> vector<4x8x8xf32>
    "tpu.trace_stop"() : () -> ()
    %89 = arith.addf %88, %27 : vector<4x8x8xf32>
    %cst_28 = arith.constant dense<0xFF800000> : vector<4x8xf32>
    %90 = vector.multi_reduction <maximumf>, %89, %cst_28 [2] : vector<4x8x8xf32> to vector<4x8xf32>
    %91 = vector.shape_cast %90 : vector<4x8xf32> to vector<4x8x1xf32>
    %92 = vector.broadcast %91 : vector<4x8x1xf32> to vector<4x8x8xf32>
    %93 = arith.subf %89, %92 : vector<4x8x8xf32>
    %94 = math.exp %93 : vector<4x8x8xf32>
    %cst_29 = arith.constant dense<0.000000e+00> : vector<4x8xf32>
    %95 = vector.multi_reduction <add>, %94, %cst_29 [2] : vector<4x8x8xf32> to vector<4x8xf32>
    %96 = vector.shape_cast %95 : vector<4x8xf32> to vector<4x8x1xf32>
    %97 = vector.broadcast %96 : vector<4x8x1xf32> to vector<4x8x8xf32>
    %98 = arith.divf %94, %97 : vector<4x8x8xf32>
    "tpu.trace_start"() <{level = 10 : i32, message = "bqk,bkd->bqd"}> : () -> ()
    %cst_30 = arith.constant dense<0.000000e+00> : vector<4x8x8xf32>
    %99 = tpu.matmul %98, %87, %cst_30 {dimension_numbers = #tpu.dot_dimension_numbers<[2], [1], [1], [2], [0, 0, 0, 1, 1, 2], [0], [0]>} : vector<4x8x8xf32>, vector<4x8x8xf32>, vector<4x8x8xf32> -> vector<4x8x8xf32>
    "tpu.trace_stop"() : () -> ()
    %100 = tpu.concatenate %45, %63, %81, %99 in 2 : vector<4x8x8xf32>, vector<4x8x8xf32>, vector<4x8x8xf32>, vector<4x8x8xf32> -> vector<4x8x32xf32>
    %101 = vector.shape_cast %100 : vector<4x8x32xf32> to vector<32x32xf32>
    %c0_31 = arith.constant 0 : index
    %c0_32 = arith.constant 0 : index
    %102 = vector.load %arg6[%c0_31, %c0_32] : memref<1x32xf32, #tpu.memory_space<vmem>>, vector<1x32xf32>
    %c0_33 = arith.constant 0 : index
    %c0_34 = arith.constant 0 : index
    %103 = vector.load %arg7[%c0_33, %c0_34] : memref<1x32xf32, #tpu.memory_space<vmem>>, vector<1x32xf32>
    %cst_35 = arith.constant dense<0.000000e+00> : vector<32xf32>
    %104 = vector.multi_reduction <add>, %101, %cst_35 [1] : vector<32x32xf32> to vector<32xf32>
    %105 = vector.shape_cast %104 : vector<32xf32> to vector<32x1xf32>
    %cst_36 = arith.constant 3.200000e+01 : f32
    %106 = vector.broadcast %cst_36 : f32 to vector<32x1xf32>
    %107 = arith.divf %105, %106 : vector<32x1xf32>
    %108 = vector.broadcast %107 : vector<32x1xf32> to vector<32x32xf32>
    %109 = arith.subf %101, %108 : vector<32x32xf32>
    %110 = arith.mulf %109, %109 : vector<32x32xf32>
    %cst_37 = arith.constant dense<0.000000e+00> : vector<32xf32>
    %111 = vector.multi_reduction <add>, %110, %cst_37 [1] : vector<32x32xf32> to vector<32xf32>
    %112 = vector.shape_cast %111 : vector<32xf32> to vector<32x1xf32>
    %cst_38 = arith.constant 3.200000e+01 : f32
    %113 = vector.broadcast %cst_38 : f32 to vector<32x1xf32>
    %114 = arith.divf %112, %113 : vector<32x1xf32>
    %115 = vector.broadcast %107 : vector<32x1xf32> to vector<32x32xf32>
    %116 = arith.subf %101, %115 : vector<32x32xf32>
    %cst_39 = arith.constant 9.99999974E-6 : f32
    %117 = vector.broadcast %cst_39 : f32 to vector<32x1xf32>
    %118 = arith.addf %114, %117 : vector<32x1xf32>
    %119 = math.rsqrt %118 : vector<32x1xf32>
    %120 = vector.broadcast %119 : vector<32x1xf32> to vector<32x32xf32>
    %121 = arith.mulf %116, %120 : vector<32x32xf32>
    %122 = vector.broadcast %102 : vector<1x32xf32> to vector<32x32xf32>
    %123 = arith.mulf %121, %122 : vector<32x32xf32>
    %124 = vector.broadcast %103 : vector<1x32xf32> to vector<32x32xf32>
    %125 = arith.addf %123, %124 : vector<32x32xf32>
    %c0_40 = arith.constant 0 : index
    %c0_41 = arith.constant 0 : index
    %126 = vector.load %arg8[%c0_40, %c0_41] : memref<32x32xf32, #tpu.memory_space<vmem>>, vector<32x32xf32>
    %cst_42 = arith.constant dense<0.000000e+00> : vector<32x32xf32>
    %127 = tpu.matmul %125, %126, %cst_42 {dimension_numbers = #tpu.dot_dimension_numbers<[1], [0], [0], [1], [0, 0, 1, 1], [], []>} : vector<32x32xf32>, vector<32x32xf32>, vector<32x32xf32> -> vector<32x32xf32>
    %c0_43 = arith.constant 0 : index
    %c0_44 = arith.constant 0 : index
    %128 = vector.load %arg9[%c0_43, %c0_44] : memref<1x32xf32, #tpu.memory_space<vmem>>, vector<1x32xf32>
    %129 = vector.broadcast %128 : vector<1x32xf32> to vector<32x32xf32>
    %130 = arith.addf %127, %129 : vector<32x32xf32>
    %131 = arith.negf %130 : vector<32x32xf32>
    %132 = math.exp %131 : vector<32x32xf32>
    %cst_45 = arith.constant 1.000000e+00 : f32
    %133 = vector.broadcast %cst_45 : f32 to vector<32x32xf32>
    %134 = arith.addf %133, %132 : vector<32x32xf32>
    %135 = arith.divf %133, %134 : vector<32x32xf32>
    %136 = arith.mulf %130, %135 : vector<32x32xf32>
    %c0_46 = arith.constant 0 : index
    %c0_47 = arith.constant 0 : index
    %137 = vector.load %arg10[%c0_46, %c0_47] : memref<32x32xf32, #tpu.memory_space<vmem>>, vector<32x32xf32>
    %cst_48 = arith.constant dense<0.000000e+00> : vector<32x32xf32>
    %138 = tpu.matmul %136, %137, %cst_48 {dimension_numbers = #tpu.dot_dimension_numbers<[1], [0], [0], [1], [0, 0, 1, 1], [], []>} : vector<32x32xf32>, vector<32x32xf32>, vector<32x32xf32> -> vector<32x32xf32>
    %c0_49 = arith.constant 0 : index
    %c0_50 = arith.constant 0 : index
    %139 = vector.load %arg11[%c0_49, %c0_50] : memref<1x32xf32, #tpu.memory_space<vmem>>, vector<1x32xf32>
    %140 = vector.broadcast %139 : vector<1x32xf32> to vector<32x32xf32>
    %141 = arith.addf %138, %140 : vector<32x32xf32>
    %142 = arith.negf %141 : vector<32x32xf32>
    %143 = math.exp %142 : vector<32x32xf32>
    %cst_51 = arith.constant 1.000000e+00 : f32
    %144 = vector.broadcast %cst_51 : f32 to vector<32x32xf32>
    %145 = arith.addf %144, %143 : vector<32x32xf32>
    %146 = arith.divf %144, %145 : vector<32x32xf32>
    %147 = arith.mulf %141, %146 : vector<32x32xf32>
    %cst_52 = arith.constant dense<0.000000e+00> : vector<32xf32>
    %148 = vector.multi_reduction <add>, %147, %cst_52 [1] : vector<32x32xf32> to vector<32xf32>
    %149 = vector.shape_cast %148 : vector<32xf32> to vector<32x1xf32>
    %cst_53 = arith.constant 3.200000e+01 : f32
    %150 = vector.broadcast %cst_53 : f32 to vector<32x1xf32>
    %151 = arith.divf %149, %150 : vector<32x1xf32>
    %152 = vector.broadcast %151 : vector<32x1xf32> to vector<32x32xf32>
    %153 = arith.subf %147, %152 : vector<32x32xf32>
    %154 = arith.mulf %153, %153 : vector<32x32xf32>
    %cst_54 = arith.constant dense<0.000000e+00> : vector<32xf32>
    %155 = vector.multi_reduction <add>, %154, %cst_54 [1] : vector<32x32xf32> to vector<32xf32>
    %156 = vector.shape_cast %155 : vector<32xf32> to vector<32x1xf32>
    %cst_55 = arith.constant 3.200000e+01 : f32
    %157 = vector.broadcast %cst_55 : f32 to vector<32x1xf32>
    %158 = arith.divf %156, %157 : vector<32x1xf32>
    %159 = vector.broadcast %151 : vector<32x1xf32> to vector<32x32xf32>
    %160 = arith.subf %147, %159 : vector<32x32xf32>
    %cst_56 = arith.constant 9.99999974E-6 : f32
    %161 = vector.broadcast %cst_56 : f32 to vector<32x1xf32>
    %162 = arith.addf %158, %161 : vector<32x1xf32>
    %163 = math.rsqrt %162 : vector<32x1xf32>
    %164 = vector.broadcast %163 : vector<32x1xf32> to vector<32x32xf32>
    %165 = arith.mulf %160, %164 : vector<32x32xf32>
    %166 = vector.broadcast %0 : vector<1x32xf32> to vector<32x32xf32>
    %167 = arith.mulf %165, %166 : vector<32x32xf32>
    %168 = vector.broadcast %1 : vector<1x32xf32> to vector<32x32xf32>
    %169 = arith.addf %167, %168 : vector<32x32xf32>
    %c0_57 = arith.constant 0 : index
    %c0_58 = arith.constant 0 : index
    %170 = vector.load %arg12[%c0_57, %c0_58] : memref<32x32xf32, #tpu.memory_space<vmem>>, vector<32x32xf32>
    tpu.vector_store %arg12[%c0_57, %c0_58], %169 {strides = array<i32>} : memref<32x32xf32, #tpu.memory_space<vmem>>, vector<32x32xf32>,
    return
  }
  func.func @transform_0(%arg0: i32) -> (i32, i32) {
    %c0_i32 = arith.constant 0 : i32
    %c0_i32_0 = arith.constant 0 : i32
    return %arg0, %c0_i32 : i32, i32
  }
  func.func @transform_1(%arg0: i32) -> (i32, i32, i32) {
    %c0_i32 = arith.constant 0 : i32
    %c0_i32_0 = arith.constant 0 : i32
    %c0_i32_1 = arith.constant 0 : i32
    return %arg0, %c0_i32, %c0_i32_0 : i32, i32, i32
  }
  func.func @transform_2(%arg0: i32) -> (i32, i32) {
    %c0_i32 = arith.constant 0 : i32
    %c0_i32_0 = arith.constant 0 : i32
    %c0_i32_1 = arith.constant 0 : i32
    return %c0_i32, %c0_i32_0 : i32, i32
  }
  func.func @transform_3(%arg0: i32) -> (i32, i32) {
    %c0_i32 = arith.constant 0 : i32
    %c0_i32_0 = arith.constant 0 : i32
    %c0_i32_1 = arith.constant 0 : i32
    return %c0_i32, %c0_i32_0 : i32, i32
  }
  func.func @transform_4(%arg0: i32) -> (i32, i32) {
    %c0_i32 = arith.constant 0 : i32
    %c0_i32_0 = arith.constant 0 : i32
    %c0_i32_1 = arith.constant 0 : i32
    return %c0_i32, %c0_i32_0 : i32, i32
  }
  func.func @transform_5(%arg0: i32) -> (i32, i32) {
    %c0_i32 = arith.constant 0 : i32
    %c0_i32_0 = arith.constant 0 : i32
    %c0_i32_1 = arith.constant 0 : i32
    return %c0_i32, %c0_i32_0 : i32, i32
  }
  func.func @transform_6(%arg0: i32) -> (i32, i32) {
    %c0_i32 = arith.constant 0 : i32
    %c0_i32_0 = arith.constant 0 : i32
    %c0_i32_1 = arith.constant 0 : i32
    return %c0_i32, %c0_i32_0 : i32, i32
  }
  func.func @transform_7(%arg0: i32) -> (i32, i32) {
    %c0_i32 = arith.constant 0 : i32
    %c0_i32_0 = arith.constant 0 : i32
    %c0_i32_1 = arith.constant 0 : i32
    return %c0_i32, %c0_i32_0 : i32, i32
  }
  func.func @transform_8(%arg0: i32) -> (i32, i32) {
    %c0_i32 = arith.constant 0 : i32
    %c0_i32_0 = arith.constant 0 : i32
    %c0_i32_1 = arith.constant 0 : i32
    return %c0_i32, %c0_i32_0 : i32, i32
  }
  func.func @transform_9(%arg0: i32) -> (i32, i32) {
    %c0_i32 = arith.constant 0 : i32
    %c0_i32_0 = arith.constant 0 : i32
    %c0_i32_1 = arith.constant 0 : i32
    return %c0_i32, %c0_i32_0 : i32, i32
  }
  func.func @transform_10(%arg0: i32) -> (i32, i32) {
    %c0_i32 = arith.constant 0 : i32
    %c0_i32_0 = arith.constant 0 : i32
    %c0_i32_1 = arith.constant 0 : i32
    return %c0_i32, %c0_i32_0 : i32, i32
  }
  func.func @transform_11(%arg0: i32) -> (i32, i32) {
    %c0_i32 = arith.constant 0 : i32
    %c0_i32_0 = arith.constant 0 : i32
    return %arg0, %c0_i32 : i32, i32
  }
}

</mosaic_0001>

<llo_original>
// kernel: tpu_custom_call.1
$region0: #{tpu_custom_call.1}
  #allocation0 [shape = 'u32[]', space=smem, size = 0x4, offset = 0x4, fixed_abs, tag = 'smem constant byte address 0x4 - core index']
  #allocation1 [shape = 'u32[144,128]{1,0:T(1,128)}', space=vmem, size = 0x12000, scoped, tag = 'internal scratch']
  %s0 = inlined_call_operand.vmem [shape: f32[64,32], index: 0, kind: input, shape index: {}]
  %s1 = inlined_call_operand.vmem [shape: f32[8,8,8], index: 1, kind: input, shape index: {}]
  %s2 = inlined_call_operand.vmem [shape: f32[1,32], index: 2, kind: input, shape index: {}]
  %s3 = inlined_call_operand.vmem [shape: f32[1,32], index: 3, kind: input, shape index: {}]
  %s4 = inlined_call_operand.vmem [shape: f32[32,96], index: 4, kind: input, shape index: {}]
  %s5 = inlined_call_operand.hbm [shape: f32[1,32], index: 5, kind: input, shape index: {}]
  %s6 = inlined_call_operand.hbm [shape: f32[1,32], index: 6, kind: input, shape index: {}]
  %s7 = inlined_call_operand.hbm [shape: f32[32,32], index: 7, kind: input, shape index: {}]
  %s8 = inlined_call_operand.hbm [shape: f32[1,32], index: 8, kind: input, shape index: {}]
  %s9 = inlined_call_operand.vmem [shape: f32[32,32], index: 9, kind: input, shape index: {}]
  %s10 = inlined_call_operand.vmem [shape: f32[1,32], index: 10, kind: input, shape index: {}]
  %s11 = inlined_call_operand.vmem [shape: f32[64,32], index: 11, kind: output, shape index: {}]
  %s12 = sld [smem:[#allocation0]]
  $region93: #{tpu_custom_call.1} parent=0
    _
  %s14 = ssub.s32 1, %s12
  %s15 = scalar_select 0, %s14, %s12
  $region1: #{tpu_custom_call.1} parent=0
    #allocation2 [shape = 'u8[512]{0}', space=vmem, size = 0x400, scoped, tag = 'input window, operand 5, single buffered']
    #allocation3 [shape = 's32[2]{0}', space=sflag, size = 0x8, scoped, tag = 'scoped memory for tpu_custom_call.1']
    #allocation4 [shape = 'u8[512]{0}', space=vmem, size = 0x400, scoped, tag = 'input window, operand 6, single buffered']
    #allocation5 [shape = 's32[1]{0}', space=sflag, size = 0x4, scoped, tag = 'scoped memory for tpu_custom_call.1']
    #allocation6 [shape = 'u8[16384]{0}', space=vmem, size = 0x4000, scoped, tag = 'input window, operand 7, single buffered']
    #allocation7 [shape = 'u8[512]{0}', space=vmem, size = 0x400, scoped, tag = 'input window, operand 8, single buffered']
    #allocation8 [shape = 's32[1]{0}', space=sflag, size = 0x4, scoped, tag = 'scoped memory for tpu_custom_call.1']
    %16 = vsyncpa [#allocation3], 0
    %17 = vsyncpa [#allocation5], 0
    %18 = vsyncpa [#allocation8], 0
    loop: start=0, step=1, limit=4
    $region2: #{tpu_custom_call.1} parent=1 // loop_pre_header
      _
    $region3: #{tpu_custom_call.1} parent=1 // loop_header
      %s20 = sphi 0, %s24
      %p21 = scmp.ge.s32.totalorder %s20, 4
      %s30 = sphi 0, %s32
      %s33 = sphi 0, %s30
      %s34 = sphi 0, %s33
      %s50 = sphi 0, %s34
      %s56 = sphi 0, %s58
      %s59 = sphi 0, %s56
      %s60 = sphi 0, %s59
      %s76 = sphi 0, %s60
      %s80 = sphi 0, %s80
      %s82 = sphi 0, %s80
      %s83 = sphi 0, %s82
      %s97 = sphi 0, %s83
      %s101 = sphi 0, %s101
      %s103 = sphi 0, %s101
      %s104 = sphi 0, %s103
      %s118 = sphi 0, %s104
      %s122 = sphi 0, %s122
      %s124 = sphi 0, %s122
      %s125 = sphi 0, %s124
      %s139 = sphi 0, %s125
      %s143 = sphi 0, %s143
      %s145 = sphi 0, %s143
      %s146 = sphi 0, %s145
      %s160 = sphi 0, %s146
      %s164 = sphi 0, %s164
      %s166 = sphi 0, %s164
      %s167 = sphi 0, %s166
      %s181 = sphi 0, %s167
      %s185 = sphi 0, %s185
      %s187 = sphi 0, %s185
      %s188 = sphi 0, %s187
      %s202 = sphi 0, %s188
      %s206 = sphi 0, %s206
      %s208 = sphi 0, %s206
      %s209 = sphi 0, %s208
      %s223 = sphi 0, %s209
      %s227 = sphi 0, %s227
      %s229 = sphi 0, %s227
      %s230 = sphi 0, %s229
      %s244 = sphi 0, %s230
      %s248 = sphi 0, %s248
      %s250 = sphi 0, %s248
      %s251 = sphi 0, %s250
      %s265 = sphi 0, %s251
      %s271 = sphi 0, %s273
      %s274 = sphi 0, %s271
      %s275 = sphi 0, %s274
      %s291 = sphi 0, %s275
    $region4: #{tpu_custom_call.1} parent=1 // loop_header_branch
      %23 = sbr.rel (%p21) target = $region8
    $region5: #{tpu_custom_call.1} parent=1 // loop_body
      %s25 = ssub.s32 %s20, 1
      %s26 = ssub.s32 %s20, 2
      %s27 = sadd.s32 %s20, 1
      %s28 = ssub.s32 %s20, %s27
      %p29 = scmp.eq.s32.totalorder %s28, 0
      %s31 = sadd.s32 %s30, 1
      %s32 = scalar_select %p29, %s30, %s31
      %p35 = pneg %p29
      %p36 = scmp.eq.s32.totalorder %s20, 1
      %p37 = por %p35, %p36
      %p38 = scmp.ne.s32.totalorder %s30, %s33
      %p39 = scmp.eq.s32.totalorder %s20, 0
      %p40 = por %p38, %p39
      %p41 = scmp.ne.s32.totalorder %s30, %s33
      %p42 = scmp.eq.s32.totalorder %s25, 1
      %p43 = por %p41, %p42
      %p44 = scmp.ne.s32.totalorder %s33, %s34
      %p45 = scmp.eq.s32.totalorder %s25, 0
      %p46 = por %p44, %p45
      %p47 = scmp.ne.s32.totalorder %s33, %s34
      %p48 = scmp.eq.s32.totalorder %s26, 1
      %p49 = por %p47, %p48
      %p51 = scmp.ne.s32.totalorder %s34, %s50
      %p52 = scmp.eq.s32.totalorder %s26, 0
      %p53 = por %p51, %p52
      %s54 = ssub.s32 %s20, %s27
      %p55 = scmp.eq.s32.totalorder %s54, 0
      %s57 = sadd.s32 %s56, 1
      %s58 = scalar_select %p55, %s56, %s57
      %p61 = pneg %p55
      %p62 = scmp.eq.s32.totalorder %s20, 1
      %p63 = por %p61, %p62
      %p64 = scmp.ne.s32.totalorder %s56, %s59
      %p65 = scmp.eq.s32.totalorder %s20, 0
      %p66 = por %p64, %p65
      %p67 = scmp.ne.s32.totalorder %s56, %s59
      %p68 = scmp.eq.s32.totalorder %s25, 1
      %p69 = por %p67, %p68
      %p70 = scmp.ne.s32.totalorder %s59, %s60
      %p71 = scmp.eq.s32.totalorder %s25, 0
      %p72 = por %p70, %p71
      %p73 = scmp.ne.s32.totalorder %s59, %s60
      %p74 = scmp.eq.s32.totalorder %s26, 1
      %p75 = por %p73, %p74
      %p77 = scmp.ne.s32.totalorder %s60, %s76
      %p78 = scmp.eq.s32.totalorder %s26, 0
      %p79 = por %p77, %p78
      %s81 = sadd.s32 %s80, 1
      %p84 = scmp.eq.s32.totalorder %s20, 1
      %p85 = scmp.ne.s32.totalorder %s80, %s82
      %p86 = scmp.eq.s32.totalorder %s20, 0
      %p87 = por %p85, %p86
      %p88 = scmp.ne.s32.totalorder %s80, %s82
      %p89 = scmp.eq.s32.totalorder %s25, 1
      %p90 = por %p88, %p89
      %p91 = scmp.ne.s32.totalorder %s82, %s83
      %p92 = scmp.eq.s32.totalorder %s25, 0
      %p93 = por %p91, %p92
      %p94 = scmp.ne.s32.totalorder %s82, %s83
      %p95 = scmp.eq.s32.totalorder %s26, 1
      %p96 = por %p94, %p95
      %p98 = scmp.ne.s32.totalorder %s83, %s97
      %p99 = scmp.eq.s32.totalorder %s26, 0
      %p100 = por %p98, %p99
      %s102 = sadd.s32 %s101, 1
      %p105 = scmp.eq.s32.totalorder %s20, 1
      %p106 = scmp.ne.s32.totalorder %s101, %s103
      %p107 = scmp.eq.s32.totalorder %s20, 0
      %p108 = por %p106, %p107
      %p109 = scmp.ne.s32.totalorder %s101, %s103
      %p110 = scmp.eq.s32.totalorder %s25, 1
      %p111 = por %p109, %p110
      %p112 = scmp.ne.s32.totalorder %s103, %s104
      %p113 = scmp.eq.s32.totalorder %s25, 0
      %p114 = por %p112, %p113
      %p115 = scmp.ne.s32.totalorder %s103, %s104
      %p116 = scmp.eq.s32.totalorder %s26, 1
      %p117 = por %p115, %p116
      %p119 = scmp.ne.s32.totalorder %s104, %s118
      %p120 = scmp.eq.s32.totalorder %s26, 0
      %p121 = por %p119, %p120
      %s123 = sadd.s32 %s122, 1
      %p126 = scmp.eq.s32.totalorder %s20, 1
      %p127 = scmp.ne.s32.totalorder %s122, %s124
      %p128 = scmp.eq.s32.totalorder %s20, 0
      %p129 = por %p127, %p128
      %p130 = scmp.ne.s32.totalorder %s122, %s124
      %p131 = scmp.eq.s32.totalorder %s25, 1
      %p132 = por %p130, %p131
      %p133 = scmp.ne.s32.totalorder %s124, %s125
      %p134 = scmp.eq.s32.totalorder %s25, 0
      %p135 = por %p133, %p134
      %p136 = scmp.ne.s32.totalorder %s124, %s125
      %p137 = scmp.eq.s32.totalorder %s26, 1
      %p138 = por %p136, %p137
      %p140 = scmp.ne.s32.totalorder %s125, %s139
      %p141 = scmp.eq.s32.totalorder %s26, 0
      %p142 = por %p140, %p141
      %s144 = sadd.s32 %s143, 1
      %p147 = scmp.eq.s32.totalorder %s20, 1
      %p148 = scmp.ne.s32.totalorder %s143, %s145
      %p149 = scmp.eq.s32.totalorder %s20, 0
      %p150 = por %p148, %p149
      %p151 = scmp.ne.s32.totalorder %s143, %s145
      %p152 = scmp.eq.s32.totalorder %s25, 1
      %p153 = por %p151, %p152
      %p154 = scmp.ne.s32.totalorder %s145, %s146
      %p155 = scmp.eq.s32.totalorder %s25, 0
      %p156 = por %p154, %p155
      %p157 = scmp.ne.s32.totalorder %s145, %s146
      %p158 = scmp.eq.s32.totalorder %s26, 1
      %p159 = por %p157, %p158
      %p161 = scmp.ne.s32.totalorder %s146, %s160
      %p162 = scmp.eq.s32.totalorder %s26, 0
      %p163 = por %p161, %p162
      %s165 = sadd.s32 %s164, 1
      %p168 = scmp.eq.s32.totalorder %s20, 1
      %p169 = scmp.ne.s32.totalorder %s164, %s166
      %p170 = scmp.eq.s32.totalorder %s20, 0
      %p171 = por %p169, %p170
      %p172 = scmp.ne.s32.totalorder %s164, %s166
      %p173 = scmp.eq.s32.totalorder %s25, 1
      %p174 = por %p172, %p173
      %p175 = scmp.ne.s32.totalorder %s166, %s167
      %p176 = scmp.eq.s32.totalorder %s25, 0
      %p177 = por %p175, %p176
      %p178 = scmp.ne.s32.totalorder %s166, %s167
      %p179 = scmp.eq.s32.totalorder %s26, 1
      %p180 = por %p178, %p179
      %p182 = scmp.ne.s32.totalorder %s167, %s181
      %p183 = scmp.eq.s32.totalorder %s26, 0
      %p184 = por %p182, %p183
      %s186 = sadd.s32 %s185, 1
      %p189 = scmp.eq.s32.totalorder %s20, 1
      %p190 = scmp.ne.s32.totalorder %s185, %s187
      %p191 = scmp.eq.s32.totalorder %s20, 0
      %p192 = por %p190, %p191
      %p193 = scmp.ne.s32.totalorder %s185, %s187
      %p194 = scmp.eq.s32.totalorder %s25, 1
      %p195 = por %p193, %p194
      %p196 = scmp.ne.s32.totalorder %s187, %s188
      %p197 = scmp.eq.s32.totalorder %s25, 0
      %p198 = por %p196, %p197
      %p199 = scmp.ne.s32.totalorder %s187, %s188
      %p200 = scmp.eq.s32.totalorder %s26, 1
      %p201 = por %p199, %p200
      %p203 = scmp.ne.s32.totalorder %s188, %s202
      %p204 = scmp.eq.s32.totalorder %s26, 0
      %p205 = por %p203, %p204
      %s207 = sadd.s32 %s206, 1
      %p210 = scmp.eq.s32.totalorder %s20, 1
      %p211 = scmp.ne.s32.totalorder %s206, %s208
      %p212 = scmp.eq.s32.totalorder %s20, 0
      %p213 = por %p211, %p212
      %p214 = scmp.ne.s32.totalorder %s206, %s208
      %p215 = scmp.eq.s32.totalorder %s25, 1
      %p216 = por %p214, %p215
      %p217 = scmp.ne.s32.totalorder %s208, %s209
      %p218 = scmp.eq.s32.totalorder %s25, 0
      %p219 = por %p217, %p218
      %p220 = scmp.ne.s32.totalorder %s208, %s209
      %p221 = scmp.eq.s32.totalorder %s26, 1
      %p222 = por %p220, %p221
      %p224 = scmp.ne.s32.totalorder %s209, %s223
      %p225 = scmp.eq.s32.totalorder %s26, 0
      %p226 = por %p224, %p225
      %s228 = sadd.s32 %s227, 1
      %p231 = scmp.eq.s32.totalorder %s20, 1
      %p232 = scmp.ne.s32.totalorder %s227, %s229
      %p233 = scmp.eq.s32.totalorder %s20, 0
      %p234 = por %p232, %p233
      %p235 = scmp.ne.s32.totalorder %s227, %s229
      %p236 = scmp.eq.s32.totalorder %s25, 1
      %p237 = por %p235, %p236
      %p238 = scmp.ne.s32.totalorder %s229, %s230
      %p239 = scmp.eq.s32.totalorder %s25, 0
      %p240 = por %p238, %p239
      %p241 = scmp.ne.s32.totalorder %s229, %s230
      %p242 = scmp.eq.s32.totalorder %s26, 1
      %p243 = por %p241, %p242
      %p245 = scmp.ne.s32.totalorder %s230, %s244
      %p246 = scmp.eq.s32.totalorder %s26, 0
      %p247 = por %p245, %p246
      %s249 = sadd.s32 %s248, 1
      %p252 = scmp.eq.s32.totalorder %s20, 1
      %p253 = scmp.ne.s32.totalorder %s248, %s250
      %p254 = scmp.eq.s32.totalorder %s20, 0
      %p255 = por %p253, %p254
      %p256 = scmp.ne.s32.totalorder %s248, %s250
      %p257 = scmp.eq.s32.totalorder %s25, 1
      %p258 = por %p256, %p257
      %p259 = scmp.ne.s32.totalorder %s250, %s251
      %p260 = scmp.eq.s32.totalorder %s25, 0
      %p261 = por %p259, %p260
      %p262 = scmp.ne.s32.totalorder %s250, %s251
      %p263 = scmp.eq.s32.totalorder %s26, 1
      %p264 = por %p262, %p263
      %p266 = scmp.ne.s32.totalorder %s251, %s265
      %p267 = scmp.eq.s32.totalorder %s26, 0
      %p268 = por %p266, %p267
      %s269 = ssub.s32 %s20, %s27
      %p270 = scmp.eq.s32.totalorder %s269, 0
      %s272 = sadd.s32 %s271, 1
      %s273 = scalar_select %p270, %s271, %s272
      %p276 = pneg %p270
      %p277 = scmp.eq.s32.totalorder %s20, 1
      %p278 = por %p276, %p277
      %p279 = scmp.ne.s32.totalorder %s271, %s274
      %p280 = scmp.eq.s32.totalorder %s20, 0
      %p281 = por %p279, %p280
      %p282 = scmp.ne.s32.totalorder %s271, %s274
      %p283 = scmp.eq.s32.totalorder %s25, 1
      %p284 = por %p282, %p283
      %p285 = scmp.ne.s32.totalorder %s274, %s275
      %p286 = scmp.eq.s32.totalorder %s25, 0
      %p287 = por %p285, %p286
      %p288 = scmp.ne.s32.totalorder %s274, %s275
      %p289 = scmp.eq.s32.totalorder %s26, 1
      %p290 = por %p288, %p289
      %p292 = scmp.ne.s32.totalorder %s275, %s291
      %p293 = scmp.eq.s32.totalorder %s26, 0
      %p294 = por %p292, %p293
      %p295 = scmp.le.s32.totalorder 1, %s20
      %p296 = scmp.lt.s32.totalorder %s20, 3
      %p297 = pnand %p295, %p296
      %p298 = pneg %p297
      // Predicated region
      $region9: #{tpu_custom_call.1} parent=5 // pred_check
        _
      $region10: #{tpu_custom_call.1} parent=5 // pred_check_branch
        %300 = sbr.rel (%p297) target = $region12
      $region11: #{tpu_custom_call.1} parent=5 // pred_region
        %s301 = ssub.s32 %s20, 1
        // Predicated region
        $region13: #{tpu_custom_call.1} parent=11 // pred_check
          %p302 = pneg %p93
        $region14: #{tpu_custom_call.1} parent=11 // pred_check_branch
          %304 = sbr.rel (%p302) target = $region16
        $region15: #{tpu_custom_call.1} parent=11 // pred_region
          _
        $region16: #{tpu_custom_call.1} parent=11 // pred_fallthru
          _
        // Predicated region
        $region17: #{tpu_custom_call.1} parent=11 // pred_check
          %p305 = pneg %p114
        $region18: #{tpu_custom_call.1} parent=11 // pred_check_branch
          %307 = sbr.rel (%p305) target = $region20
        $region19: #{tpu_custom_call.1} parent=11 // pred_region
          _
        $region20: #{tpu_custom_call.1} parent=11 // pred_fallthru
          _
        // Predicated region
        $region21: #{tpu_custom_call.1} parent=11 // pred_check
          %p308 = pneg %p135
        $region22: #{tpu_custom_call.1} parent=11 // pred_check_branch
          %310 = sbr.rel (%p308) target = $region24
        $region23: #{tpu_custom_call.1} parent=11 // pred_region
          _
        $region24: #{tpu_custom_call.1} parent=11 // pred_fallthru
          _
        // Predicated region
        $region25: #{tpu_custom_call.1} parent=11 // pred_check
          %p311 = pneg %p156
        $region26: #{tpu_custom_call.1} parent=11 // pred_check_branch
          %313 = sbr.rel (%p311) target = $region28
        $region27: #{tpu_custom_call.1} parent=11 // pred_region
          %s315 = ssub.s32 16, 16
          %316 = vsyncadd [#allocation3], %s315
          %s318 = sshll.u32 [#allocation2], 4
          %s319 = int_to_ptr.vmem [resolvable:$true] %s318
          %321 = dma.hbm_to_vmem [thread:$0]  %s5, 16, %s319, [#allocation3]
        $region28: #{tpu_custom_call.1} parent=11 // pred_fallthru
          _
        // Predicated region
        $region29: #{tpu_custom_call.1} parent=11 // pred_check
          %p322 = pneg %p177
        $region30: #{tpu_custom_call.1} parent=11 // pred_check_branch
          %324 = sbr.rel (%p322) target = $region32
        $region31: #{tpu_custom_call.1} parent=11 // pred_region
          %s326 = ssub.s32 16, 16
          %327 = vsyncadd [#allocation5], %s326
          %s329 = sshll.u32 [#allocation4], 4
          %s330 = int_to_ptr.vmem [resolvable:$true] %s329
          %332 = dma.hbm_to_vmem [thread:$0]  %s6, 16, %s330, [#allocation5]
        $region32: #{tpu_custom_call.1} parent=11 // pred_fallthru
          _
        // Predicated region
        $region33: #{tpu_custom_call.1} parent=11 // pred_check
          %p333 = pneg %p198
        $region34: #{tpu_custom_call.1} parent=11 // pred_check_branch
          %335 = sbr.rel (%p333) target = $region36
        $region35: #{tpu_custom_call.1} parent=11 // pred_region
          %s337 = ssub.s32 512, 512
          %338 = vsyncadd [#allocation5], %s337
          %s339 = sshll.u32 [#allocation6], 4
          %s340 = int_to_ptr.vmem [resolvable:$true] %s339
          %345 = dma.hbm_to_vmem [thread:$0]  %s7, 512, %s340, [#allocation5], 128, 128, 8
        $region36: #{tpu_custom_call.1} parent=11 // pred_fallthru
          _
        // Predicated region
        $region37: #{tpu_custom_call.1} parent=11 // pred_check
          %p346 = pneg %p219
        $region38: #{tpu_custom_call.1} parent=11 // pred_check_branch
          %348 = sbr.rel (%p346) target = $region40
        $region39: #{tpu_custom_call.1} parent=11 // pred_region
          %s350 = ssub.s32 16, 16
          %351 = vsyncadd [#allocation8], %s350
          %s353 = sshll.u32 [#allocation7], 4
          %s354 = int_to_ptr.vmem [resolvable:$true] %s353
          %356 = dma.hbm_to_vmem [thread:$0]  %s8, 16, %s354, [#allocation8]
        $region40: #{tpu_custom_call.1} parent=11 // pred_fallthru
          _
        // Predicated region
        $region41: #{tpu_custom_call.1} parent=11 // pred_check
          %p357 = pneg %p240
        $region42: #{tpu_custom_call.1} parent=11 // pred_check_branch
          %359 = sbr.rel (%p357) target = $region44
        $region43: #{tpu_custom_call.1} parent=11 // pred_region
          _
        $region44: #{tpu_custom_call.1} parent=11 // pred_fallthru
          _
        // Predicated region
        $region45: #{tpu_custom_call.1} parent=11 // pred_check
          %p360 = pneg %p261
        $region46: #{tpu_custom_call.1} parent=11 // pred_check_branch
          %362 = sbr.rel (%p360) target = $region48
        $region47: #{tpu_custom_call.1} parent=11 // pred_region
          _
        $region48: #{tpu_custom_call.1} parent=11 // pred_fallthru
          _
      $region12: #{tpu_custom_call.1} parent=5 // pred_fallthru
        _
      %p363 = scmp.lt.s32.totalorder %s20, 2
      // Predicated region
      $region49: #{tpu_custom_call.1} parent=5 // pred_check
        %p364 = pneg %p363
      $region50: #{tpu_custom_call.1} parent=5 // pred_check_branch
        %366 = sbr.rel (%p364) target = $region52
      $region51: #{tpu_custom_call.1} parent=5 // pred_region
        // Predicated region
        $region53: #{tpu_custom_call.1} parent=51 // pred_check
          %p367 = pneg %p40
        $region54: #{tpu_custom_call.1} parent=51 // pred_check_branch
          %369 = sbr.rel (%p367) target = $region56
        $region55: #{tpu_custom_call.1} parent=51 // pred_region
          %s370 = smul.u32 4, %s20
          %p371 = scmp.lt.s32.totalorder %s370, 7
          %s372 = scalar_select %p371, %s370, 7
          %s373 = smul.addr %s372, 8
          %s374 = scalar_lea.vmem %s0, %s373
          %s375 = smul.u32 4, %s20
        $region56: #{tpu_custom_call.1} parent=51 // pred_fallthru
          _
        // Predicated region
        $region57: #{tpu_custom_call.1} parent=51 // pred_check
          %p376 = pneg %p66
        $region58: #{tpu_custom_call.1} parent=51 // pred_check_branch
          %378 = sbr.rel (%p376) target = $region60
        $region59: #{tpu_custom_call.1} parent=51 // pred_region
          %s379 = smul.u32 4, %s20
          %p380 = scmp.lt.s32.totalorder %s379, 7
          %s381 = scalar_select %p380, %s379, 7
          %s382 = smul.addr %s381, 8
          %s383 = scalar_lea.vmem %s1, %s382
          %s384 = smul.u32 4, %s20
        $region60: #{tpu_custom_call.1} parent=51 // pred_fallthru
          _
      $region52: #{tpu_custom_call.1} parent=5 // pred_fallthru
        _
      %p385 = scmp.le.s32.totalorder 1, %s20
      %p386 = scmp.lt.s32.totalorder %s20, 3
      %p387 = pnand %p385, %p386
      %p388 = pneg %p387
      // Predicated region
      $region61: #{tpu_custom_call.1} parent=5 // pred_check
        _
      $region62: #{tpu_custom_call.1} parent=5 // pred_check_branch
        %390 = sbr.rel (%p387) target = $region64
      $region63: #{tpu_custom_call.1} parent=5 // pred_region
        %s391 = ssub.s32 %s20, 1
        // Predicated region
        $region65: #{tpu_custom_call.1} parent=63 // pred_check
          %p392 = pneg %p156
        $region66: #{tpu_custom_call.1} parent=63 // pred_check_branch
          %394 = sbr.rel (%p392) target = $region68
        $region67: #{tpu_custom_call.1} parent=63 // pred_region
          %395 = dma.done [#allocation3], 16
        $region68: #{tpu_custom_call.1} parent=63 // pred_fallthru
          _
        // Predicated region
        $region69: #{tpu_custom_call.1} parent=63 // pred_check
          %p396 = pneg %p177
        $region70: #{tpu_custom_call.1} parent=63 // pred_check_branch
          %398 = sbr.rel (%p396) target = $region72
        $region71: #{tpu_custom_call.1} parent=63 // pred_region
          %399 = dma.done [#allocation5], 16
        $region72: #{tpu_custom_call.1} parent=63 // pred_fallthru
          _
        // Predicated region
        $region73: #{tpu_custom_call.1} parent=63 // pred_check
          %p400 = pneg %p198
        $region74: #{tpu_custom_call.1} parent=63 // pred_check_branch
          %402 = sbr.rel (%p400) target = $region76
        $region75: #{tpu_custom_call.1} parent=63 // pred_region
          %403 = dma.done [#allocation5], 512
        $region76: #{tpu_custom_call.1} parent=63 // pred_fallthru
          _
        // Predicated region
        $region77: #{tpu_custom_call.1} parent=63 // pred_check
          %p404 = pneg %p219
        $region78: #{tpu_custom_call.1} parent=63 // pred_check_branch
          %406 = sbr.rel (%p404) target = $region80
        $region79: #{tpu_custom_call.1} parent=63 // pred_region
          %407 = dma.done [#allocation8], 16
        $region80: #{tpu_custom_call.1} parent=63 // pred_fallthru
          _
        %s408 = smul.u32 4, %s25
        %p409 = scmp.lt.s32.totalorder %s408, 7
        %s410 = scalar_select %p409, %s408, 7
        %s411 = smul.addr %s410, 8
        %s412 = scalar_lea.vmem %s0, %s411
        %p413 = pneg %p46
        %p414 = pneg %p43
        %s415 = smul.u32 4, %s25
        %p416 = scmp.lt.s32.totalorder %s415, 7
        %s417 = scalar_select %p416, %s415, 7
        %s418 = smul.addr %s417, 8
        %s419 = scalar_lea.vmem %s1, %s418
        %p420 = pneg %p72
        %p421 = pneg %p69
        %p422 = pneg %p93
        %p423 = pneg %p90
        %p424 = pneg %p114
        %p425 = pneg %p111
        %p426 = pneg %p135
        %p427 = pneg %p132
        %p428 = pneg %p156
        %p429 = pneg %p153
        %p430 = pneg %p177
        %p431 = pneg %p174
        %p432 = pneg %p198
        %p433 = pneg %p195
        %p434 = pneg %p219
        %p435 = pneg %p216
        %p436 = pneg %p240
        %p437 = pneg %p237
        %p438 = pneg %p261
        %p439 = pneg %p258
        %p440 = pneg %p287
        %p441 = pneg %p284
        %s442 = smul.u32 4, %s25
        %p443 = scmp.lt.s32.totalorder %s442, 7
        %s444 = scalar_select %p443, %s442, 7
        %s445 = smul.addr %s444, 8
        %s446 = scalar_lea.vmem %s11, %s445
        %s447 = smul.u32 4, %s25
        %p448 = scmp.lt.s32.totalorder %s447, 7
        %s449 = scalar_select %p448, %s447, 7
        %s450 = smul.addr %s449, 8
        %s451 = scalar_lea.vmem %s0, %s450
        %s452 = smul.u32 4, %s25
        %s453 = smul.u32 4, %s25
        %p454 = scmp.lt.s32.totalorder %s453, 7
        %s455 = scalar_select %p454, %s453, 7
        %s456 = smul.addr %s455, 8
        %s457 = scalar_lea.vmem %s1, %s456
        %s458 = smul.u32 4, %s25
        %s459 = smul.u32 4, %s25
        %p460 = scmp.lt.s32.totalorder %s459, 7
        %s461 = scalar_select %p460, %s459, 7
        %s462 = smul.addr %s461, 8
        %s463 = scalar_lea.vmem %s11, %s462
        %s464 = smul.u32 4, %s25
        %v465 = vld [vmem:[%s2] sm:$0x1]
        %v466 = vld [vmem:[%s3] sm:$0x1]
        %v467 = vld [vmem:[%s451] sm:$0xff]
        %v468 = vld [vmem:[%s451 + $0x8] sm:$0xff]
        %v469 = vld [vmem:[%s451 + $0x10] sm:$0xff]
        %v470 = vld [vmem:[%s451 + $0x18] sm:$0xff]
        %vm471 = vcmask 261120
        %v472 = vsel %vm471, %v467, 0.0
        %473 = vadd.xlane.f32.xlu0 %v472
        %v474 = vpop.xlane.xlu0 %473
        %v475 = vsel %vm471, %v468, 0.0
        %476 = vadd.xlane.f32.xlu0 %v475
        %v477 = vpop.xlane.xlu0 %476
        %v478 = vsel %vm471, %v469, 0.0
        %479 = vadd.xlane.f32.xlu0 %v478
        %v480 = vpop.xlane.xlu0 %479
        %v481 = vsel %vm471, %v470, 0.0
        %482 = vadd.xlane.f32.xlu0 %v481
        %v483 = vpop.xlane.xlu0 %482
        %v484 = vrcp.pop 32.0
        %v485 = vmul.f32 %v474, %v484
        %v486 = vmul.f32 %v477, %v484
        %v487 = vmul.f32 %v480, %v484
        %v488 = vmul.f32 %v483, %v484
        %v489 = vsub.f32 %v467, %v485
        %v490 = vsub.f32 %v468, %v486
        %v491 = vsub.f32 %v469, %v487
        %v492 = vsub.f32 %v470, %v488
        %v493 = vmul.f32 %v489, %v489
        %v494 = vmul.f32 %v490, %v490
        %v495 = vmul.f32 %v491, %v491
        %v496 = vmul.f32 %v492, %v492
        %v497 = vsel %vm471, %v493, 0.0
        %498 = vadd.xlane.f32.xlu0 %v497
        %v499 = vpop.xlane.xlu0 %498
        %v500 = vsel %vm471, %v494, 0.0
        %501 = vadd.xlane.f32.xlu0 %v500
        %v502 = vpop.xlane.xlu0 %501
        %v503 = vsel %vm471, %v495, 0.0
        %504 = vadd.xlane.f32.xlu0 %v503
        %v505 = vpop.xlane.xlu0 %504
        %v506 = vsel %vm471, %v496, 0.0
        %507 = vadd.xlane.f32.xlu0 %v506
        %v508 = vpop.xlane.xlu0 %507
        %v509 = vmul.f32 %v499, %v484
        %v510 = vmul.f32 %v502, %v484
        %v511 = vmul.f32 %v505, %v484
        %v512 = vmul.f32 %v508, %v484
        %v513 = vadd.f32 %v509, 1e-05
        %v514 = vadd.f32 %v510, 1e-05
        %v515 = vadd.f32 %v511, 1e-05
        %v516 = vadd.f32 %v512, 1e-05
        %v517 = vrsqrt.pop %v513
        %v518 = vrsqrt.pop %v514
        %v519 = vrsqrt.pop %v515
        %v520 = vrsqrt.pop %v516
        %v521 = vmul.f32 %v489, %v517
        %v522 = vmul.f32 %v490, %v518
        %v523 = vmul.f32 %v491, %v519
        %v524 = vmul.f32 %v492, %v520
        %v526 = vlaneseq
        %v527 = vshrl.u32 %v526, 7
        %v528 = vsub.s32 0, %v527
        %v529 = vrot.slane %v465, %v528
        %v531 = vmul.f32 %v521, %v529
        %v532 = vmul.f32 %v522, %v529
        %v533 = vmul.f32 %v523, %v529
        %v534 = vmul.f32 %v524, %v529
        %v536 = vlaneseq
        %v537 = vshrl.u32 %v536, 7
        %v538 = vsub.s32 0, %v537
        %v539 = vrot.slane %v466, %v538
        %v541 = vadd.f32 %v531, %v539
        %v542 = vadd.f32 %v532, %v539
        %v543 = vadd.f32 %v533, %v539
        %v544 = vadd.f32 %v534, %v539
        %v545 = vld [vmem:[%s4] sm:$0xff]
        %v546 = vld [vmem:[%s4 + $0x8] sm:$0xff]
        %v547 = vld [vmem:[%s4 + $0x10] sm:$0xff]
        %v548 = vld [vmem:[%s4 + $0x18] sm:$0xff]
        %v550 = vsel %vm471, %v541, 0
        %v553 = vsel %vm471, %v542, 0
        %v556 = vsel %vm471, %v543, 0
        %v559 = vsel %vm471, %v544, 0
        %561 = vmatprep.subr.mxu0 0.0
        %562 = vmatpush1.msra.mxu0 %v545
        %563 = vmatprep.subr.mxu0 0.0
        %564 = vmatpush1.msra.mxu0 %v546
        %565 = vmatprep.subr.mxu0 0.0
        %566 = vmatpush1.msra.mxu0 %v547
        %567 = vmatprep.subr.mxu0 0.0
        %568 = vmatpush1.msra.mxu0 %v548
        %569 = vmatprep.subr.mxu0 0.0
        %570 = vmatpush1.msra.mxu0 0.0
        %571 = vmatprep.subr.mxu0 0.0
        %572 = vmatpush1.msra.mxu0 0.0
        %573 = vmatprep.subr.mxu0 0.0
        %574 = vmatpush1.msra.mxu0 0.0
        %575 = vmatprep.subr.mxu0 0.0
        %576 = vmatpush1.msra.mxu0 0.0
        %577 = vmatprep.subr.mxu0 0.0
        %578 = vmatpush1.msra.mxu0 0.0
        %579 = vmatprep.subr.mxu0 0.0
        %580 = vmatpush1.msra.mxu0 0.0
        %581 = vmatprep.subr.mxu0 0.0
        %582 = vmatpush1.msra.mxu0 0.0
        %583 = vmatprep.subr.mxu0 0.0
        %584 = vmatpush1.msra.mxu0 0.0
        %585 = vmatprep.subr.mxu0 0.0
        %586 = vmatpush1.msra.mxu0 0.0
        %587 = vmatprep.subr.mxu0 0.0
        %588 = vmatpush1.msra.mxu0 0.0
        %589 = vmatprep.subr.mxu0 0.0
        %590 = vmatpush1.msra.mxu0 0.0
        %591 = vmatprep.subr.mxu0 0.0
        %592 = vmatpush1.msra.mxu0 0.0
        %593 = vmatprep.subr.mxu0 0.0
        %594 = vmatpush1.msra.mxu0 0.0
        %595 = vmatprep.subr.mxu0 0.0
        %596 = vmatpush1.msra.mxu0 0.0
        %597 = vmatprep.subr.mxu0 0.0
        %598 = vmatpush1.msra.mxu0 0.0
        %599 = vmatprep.subr.mxu0 0.0
        %600 = vmatpush1.msra.mxu0 0.0
        %601 = vmatprep.subr.mxu0 0.0
        %602 = vmatpush1.msra.mxu0 0.0
        %603 = vmatprep.subr.mxu0 0.0
        %604 = vmatpush1.msra.mxu0 0.0
        %605 = vmatprep.subr.mxu0 0.0
        %606 = vmatpush1.msra.mxu0 0.0
        %607 = vmatprep.subr.mxu0 0.0
        %608 = vmatpush1.msra.mxu0 0.0
        %609 = vmatprep.subr.mxu0 0.0
        %610 = vmatpush1.msra.mxu0 0.0
        %611 = vmatprep.subr.mxu0 0.0
        %612 = vmatpush1.msra.mxu0 0.0
        %613 = vmatprep.subr.mxu0 0.0
        %614 = vmatpush1.msra.mxu0 0.0
        %615 = vmatprep.subr.mxu0 0.0
        %616 = vmatpush1.msra.mxu0 0.0
        %617 = vmatprep.subr.mxu0 0.0
        %618 = vmatpush1.msra.mxu0 0.0
        %619 = vmatprep.subr.mxu0 0.0
        %620 = vmatpush1.msra.mxu0 0.0
        %621 = vmatprep.subr.mxu0 0.0
        %622 = vmatpush1.msra.mxu0 0.0
        %623 = vmatprep.subr.mxu0 0.0
        %624 = vmatpush1.msra.mxu0 0.0
        %625 = vmatprep.mubr.f32.mxu0 0.0
        %626 = vmatmul.mubr.f32.gmra.mrb[0].mxu0 %v550
        %v627 = vpop.f32.mrb[0].mxu0
        %v628 = vadd.f32 0.0, %v627
        %v629 = vpop.f32.mrb[0].mxu0
        %630 = vmatprep.mubr.f32.mxu0 0.0
        %631 = vmatmul.mubr.f32.gmra.mrb[0].mxu0 %v553
        %v632 = vpop.f32.mrb[0].mxu0
        %v633 = vadd.f32 0.0, %v632
        %v634 = vpop.f32.mrb[0].mxu0
        %635 = vmatprep.mubr.f32.mxu0 0.0
        %636 = vmatmul.mubr.f32.gmra.mrb[0].mxu0 %v556
        %v637 = vpop.f32.mrb[0].mxu0
        %v638 = vadd.f32 0.0, %v637
        %v639 = vpop.f32.mrb[0].mxu0
        %640 = vmatprep.mubr.f32.mxu0 0.0
        %641 = vmatmul.mubr.f32.gmra.mrb[0].mxu0 %v559
        %v642 = vpop.f32.mrb[0].mxu0
        %v643 = vadd.f32 0.0, %v642
        %v644 = vpop.f32.mrb[0].mxu0
        %645 = vdwg.mxu0
        %v646 = vld [vmem:[%s457] sm:$0xff]
        %v647 = vld [vmem:[%s457 + $0x8] sm:$0xff]
        %v648 = vld [vmem:[%s457 + $0x10] sm:$0xff]
        %v649 = vld [vmem:[%s457 + $0x18] sm:$0xff]
        %651 = vrot.lane.b32.xlu0 %v628, 96
        %v652 = vpop.permute.xlu0 %651
        %vm653 = vcmask 64512
        %v654 = vsel %vm653, %v628, 0
        %v656 = vsel %vm653, %v652, 0
        %658 = vmatprep.subr.mxu0 0.0
        %659 = vmatpush1.xpose.msra.mxu0 %v656
        %660 = vmatprep.subr.mxu0 0.0
        %661 = vmatpush1.xpose.msra.mxu0 0.0
        %662 = vmatprep.subr.mxu0 0.0
        %663 = vmatpush1.xpose.msra.mxu0 0.0
        %664 = vmatprep.subr.mxu0 0.0
        %665 = vmatpush1.xpose.msra.mxu0 0.0
        %666 = vmatprep.subr.mxu0 0.0
        %667 = vmatpush1.xpose.msra.mxu0 0.0
        %668 = vmatprep.subr.mxu0 0.0
        %669 = vmatpush1.xpose.msra.mxu0 0.0
        %670 = vmatprep.subr.mxu0 0.0
        %671 = vmatpush1.xpose.msra.mxu0 0.0
        %672 = vmatprep.subr.mxu0 0.0
        %673 = vmatpush1.xpose.msra.mxu0 0.0
        %674 = vmatprep.subr.mxu0 0.0
        %675 = vmatpush1.xpose.msra.mxu0 0.0
        %676 = vmatprep.subr.mxu0 0.0
        %677 = vmatpush1.xpose.msra.mxu0 0.0
        %678 = vmatprep.subr.mxu0 0.0
        %679 = vmatpush1.xpose.msra.mxu0 0.0
        %680 = vmatprep.subr.mxu0 0.0
        %681 = vmatpush1.xpose.msra.mxu0 0.0
        %682 = vmatprep.subr.mxu0 0.0
        %683 = vmatpush1.xpose.msra.mxu0 0.0
        %684 = vmatprep.subr.mxu0 0.0
        %685 = vmatpush1.xpose.msra.mxu0 0.0
        %686 = vmatprep.subr.mxu0 0.0
        %687 = vmatpush1.xpose.msra.mxu0 0.0
        %688 = vmatprep.subr.mxu0 0.0
        %689 = vmatpush1.xpose.msra.mxu0 0.0
        %690 = vmatprep.subr.mxu0 0.0
        %691 = vmatpush1.xpose.msra.mxu0 0.0
        %692 = vmatprep.subr.mxu0 0.0
        %693 = vmatpush1.xpose.msra.mxu0 0.0
        %694 = vmatprep.subr.mxu0 0.0
        %695 = vmatpush1.xpose.msra.mxu0 0.0
        %696 = vmatprep.subr.mxu0 0.0
        %697 = vmatpush1.xpose.msra.mxu0 0.0
        %698 = vmatprep.subr.mxu0 0.0
        %699 = vmatpush1.xpose.msra.mxu0 0.0
        %700 = vmatprep.subr.mxu0 0.0
        %701 = vmatpush1.xpose.msra.mxu0 0.0
        %702 = vmatprep.subr.mxu0 0.0
        %703 = vmatpush1.xpose.msra.mxu0 0.0
        %704 = vmatprep.subr.mxu0 0.0
        %705 = vmatpush1.xpose.msra.mxu0 0.0
        %706 = vmatprep.subr.mxu0 0.0
        %707 = vmatpush1.xpose.msra.mxu0 0.0
        %708 = vmatprep.subr.mxu0 0.0
        %709 = vmatpush1.xpose.msra.mxu0 0.0
        %710 = vmatprep.subr.mxu0 0.0
        %711 = vmatpush1.xpose.msra.mxu0 0.0
        %712 = vmatprep.subr.mxu0 0.0
        %713 = vmatpush1.xpose.msra.mxu0 0.0
        %714 = vmatprep.subr.mxu0 0.0
        %715 = vmatpush1.xpose.msra.mxu0 0.0
        %716 = vmatprep.subr.mxu0 0.0
        %717 = vmatpush1.xpose.msra.mxu0 0.0
        %718 = vmatprep.subr.mxu0 0.0
        %719 = vmatpush1.xpose.msra.mxu0 0.0
        %720 = vmatprep.subr.mxu0 0.0
        %721 = vmatpush1.xpose.msra.mxu0 0.0
        %722 = vmatprep.mubr.f32.mxu0 0.0
        %723 = vmatmul.mubr.f32.gmra.mrb[0].mxu0 %v654
        %v724 = vpop.f32.mrb[0].mxu0
        %v725 = vadd.f32 %v646, %v724
        %v726 = vpop.f32.mrb[0].mxu0
        %727 = vdwg.mxu0
        %729 = vrot.lane.b32.xlu0 %v633, 96
        %v730 = vpop.permute.xlu0 %729
        %v731 = vsel %vm653, %v633, 0
        %v733 = vsel %vm653, %v730, 0
        %735 = vmatprep.subr.mxu0 0.0
        %736 = vmatpush1.xpose.msra.mxu0 %v733
        %737 = vmatprep.subr.mxu0 0.0
        %738 = vmatpush1.xpose.msra.mxu0 0.0
        %739 = vmatprep.subr.mxu0 0.0
        %740 = vmatpush1.xpose.msra.mxu0 0.0
        %741 = vmatprep.subr.mxu0 0.0
        %742 = vmatpush1.xpose.msra.mxu0 0.0
        %743 = vmatprep.subr.mxu0 0.0
        %744 = vmatpush1.xpose.msra.mxu0 0.0
        %745 = vmatprep.subr.mxu0 0.0
        %746 = vmatpush1.xpose.msra.mxu0 0.0
        %747 = vmatprep.subr.mxu0 0.0
        %748 = vmatpush1.xpose.msra.mxu0 0.0
        %749 = vmatprep.subr.mxu0 0.0
        %750 = vmatpush1.xpose.msra.mxu0 0.0
        %751 = vmatprep.subr.mxu0 0.0
        %752 = vmatpush1.xpose.msra.mxu0 0.0
        %753 = vmatprep.subr.mxu0 0.0
        %754 = vmatpush1.xpose.msra.mxu0 0.0
        %755 = vmatprep.subr.mxu0 0.0
        %756 = vmatpush1.xpose.msra.mxu0 0.0
        %757 = vmatprep.subr.mxu0 0.0
        %758 = vmatpush1.xpose.msra.mxu0 0.0
        %759 = vmatprep.subr.mxu0 0.0
        %760 = vmatpush1.xpose.msra.mxu0 0.0
        %761 = vmatprep.subr.mxu0 0.0
        %762 = vmatpush1.xpose.msra.mxu0 0.0
        %763 = vmatprep.subr.mxu0 0.0
        %764 = vmatpush1.xpose.msra.mxu0 0.0
        %765 = vmatprep.subr.mxu0 0.0
        %766 = vmatpush1.xpose.msra.mxu0 0.0
        %767 = vmatprep.subr.mxu0 0.0
        %768 = vmatpush1.xpose.msra.mxu0 0.0
        %769 = vmatprep.subr.mxu0 0.0
        %770 = vmatpush1.xpose.msra.mxu0 0.0
        %771 = vmatprep.subr.mxu0 0.0
        %772 = vmatpush1.xpose.msra.mxu0 0.0
        %773 = vmatprep.subr.mxu0 0.0
        %774 = vmatpush1.xpose.msra.mxu0 0.0
        %775 = vmatprep.subr.mxu0 0.0
        %776 = vmatpush1.xpose.msra.mxu0 0.0
        %777 = vmatprep.subr.mxu0 0.0
        %778 = vmatpush1.xpose.msra.mxu0 0.0
        %779 = vmatprep.subr.mxu0 0.0
        %780 = vmatpush1.xpose.msra.mxu0 0.0
        %781 = vmatprep.subr.mxu0 0.0
        %782 = vmatpush1.xpose.msra.mxu0 0.0
        %783 = vmatprep.subr.mxu0 0.0
        %784 = vmatpush1.xpose.msra.mxu0 0.0
        %785 = vmatprep.subr.mxu0 0.0
        %786 = vmatpush1.xpose.msra.mxu0 0.0
        %787 = vmatprep.subr.mxu0 0.0
        %788 = vmatpush1.xpose.msra.mxu0 0.0
        %789 = vmatprep.subr.mxu0 0.0
        %790 = vmatpush1.xpose.msra.mxu0 0.0
        %791 = vmatprep.subr.mxu0 0.0
        %792 = vmatpush1.xpose.msra.mxu0 0.0
        %793 = vmatprep.subr.mxu0 0.0
        %794 = vmatpush1.xpose.msra.mxu0 0.0
        %795 = vmatprep.subr.mxu0 0.0
        %796 = vmatpush1.xpose.msra.mxu0 0.0
        %797 = vmatprep.subr.mxu0 0.0
        %798 = vmatpush1.xpose.msra.mxu0 0.0
        %799 = vmatprep.mubr.f32.mxu0 0.0
        %800 = vmatmul.mubr.f32.gmra.mrb[0].mxu0 %v731
        %v801 = vpop.f32.mrb[0].mxu0
        %v802 = vadd.f32 %v647, %v801
        %v803 = vpop.f32.mrb[0].mxu0
        %804 = vdwg.mxu0
        %806 = vrot.lane.b32.xlu0 %v638, 96
        %v807 = vpop.permute.xlu0 %806
        %v808 = vsel %vm653, %v638, 0
        %v810 = vsel %vm653, %v807, 0
        %812 = vmatprep.subr.mxu0 0.0
        %813 = vmatpush1.xpose.msra.mxu0 %v810
        %814 = vmatprep.subr.mxu0 0.0
        %815 = vmatpush1.xpose.msra.mxu0 0.0
        %816 = vmatprep.subr.mxu0 0.0
        %817 = vmatpush1.xpose.msra.mxu0 0.0
        %818 = vmatprep.subr.mxu0 0.0
        %819 = vmatpush1.xpose.msra.mxu0 0.0
        %820 = vmatprep.subr.mxu0 0.0
        %821 = vmatpush1.xpose.msra.mxu0 0.0
        %822 = vmatprep.subr.mxu0 0.0
        %823 = vmatpush1.xpose.msra.mxu0 0.0
        %824 = vmatprep.subr.mxu0 0.0
        %825 = vmatpush1.xpose.msra.mxu0 0.0
        %826 = vmatprep.subr.mxu0 0.0
        %827 = vmatpush1.xpose.msra.mxu0 0.0
        %828 = vmatprep.subr.mxu0 0.0
        %829 = vmatpush1.xpose.msra.mxu0 0.0
        %830 = vmatprep.subr.mxu0 0.0
        %831 = vmatpush1.xpose.msra.mxu0 0.0
        %832 = vmatprep.subr.mxu0 0.0
        %833 = vmatpush1.xpose.msra.mxu0 0.0
        %834 = vmatprep.subr.mxu0 0.0
        %835 = vmatpush1.xpose.msra.mxu0 0.0
        %836 = vmatprep.subr.mxu0 0.0
        %837 = vmatpush1.xpose.msra.mxu0 0.0
        %838 = vmatprep.subr.mxu0 0.0
        %839 = vmatpush1.xpose.msra.mxu0 0.0
        %840 = vmatprep.subr.mxu0 0.0
        %841 = vmatpush1.xpose.msra.mxu0 0.0
        %842 = vmatprep.subr.mxu0 0.0
        %843 = vmatpush1.xpose.msra.mxu0 0.0
        %844 = vmatprep.subr.mxu0 0.0
        %845 = vmatpush1.xpose.msra.mxu0 0.0
        %846 = vmatprep.subr.mxu0 0.0
        %847 = vmatpush1.xpose.msra.mxu0 0.0
        %848 = vmatprep.subr.mxu0 0.0
        %849 = vmatpush1.xpose.msra.mxu0 0.0
        %850 = vmatprep.subr.mxu0 0.0
        %851 = vmatpush1.xpose.msra.mxu0 0.0
        %852 = vmatprep.subr.mxu0 0.0
        %853 = vmatpush1.xpose.msra.mxu0 0.0
        %854 = vmatprep.subr.mxu0 0.0
        %855 = vmatpush1.xpose.msra.mxu0 0.0
        %856 = vmatprep.subr.mxu0 0.0
        %857 = vmatpush1.xpose.msra.mxu0 0.0
        %858 = vmatprep.subr.mxu0 0.0
        %859 = vmatpush1.xpose.msra.mxu0 0.0
        %860 = vmatprep.subr.mxu0 0.0
        %861 = vmatpush1.xpose.msra.mxu0 0.0
        %862 = vmatprep.subr.mxu0 0.0
        %863 = vmatpush1.xpose.msra.mxu0 0.0
        %864 = vmatprep.subr.mxu0 0.0
        %865 = vmatpush1.xpose.msra.mxu0 0.0
        %866 = vmatprep.subr.mxu0 0.0
        %867 = vmatpush1.xpose.msra.mxu0 0.0
        %868 = vmatprep.subr.mxu0 0.0
        %869 = vmatpush1.xpose.msra.mxu0 0.0
        %870 = vmatprep.subr.mxu0 0.0
        %871 = vmatpush1.xpose.msra.mxu0 0.0
        %872 = vmatprep.subr.mxu0 0.0
        %873 = vmatpush1.xpose.msra.mxu0 0.0
        %874 = vmatprep.subr.mxu0 0.0
        %875 = vmatpush1.xpose.msra.mxu0 0.0
        %876 = vmatprep.mubr.f32.mxu0 0.0
        %877 = vmatmul.mubr.f32.gmra.mrb[0].mxu0 %v808
        %v878 = vpop.f32.mrb[0].mxu0
        %v879 = vadd.f32 %v648, %v878
        %v880 = vpop.f32.mrb[0].mxu0
        %881 = vdwg.mxu0
        %883 = vrot.lane.b32.xlu0 %v643, 96
        %v884 = vpop.permute.xlu0 %883
        %v885 = vsel %vm653, %v643, 0
        %v887 = vsel %vm653, %v884, 0
        %889 = vmatprep.subr.mxu0 0.0
        %890 = vmatpush1.xpose.msra.mxu0 %v887
        %891 = vmatprep.subr.mxu0 0.0
        %892 = vmatpush1.xpose.msra.mxu0 0.0
        %893 = vmatprep.subr.mxu0 0.0
        %894 = vmatpush1.xpose.msra.mxu0 0.0
        %895 = vmatprep.subr.mxu0 0.0
        %896 = vmatpush1.xpose.msra.mxu0 0.0
        %897 = vmatprep.subr.mxu0 0.0
        %898 = vmatpush1.xpose.msra.mxu0 0.0
        %899 = vmatprep.subr.mxu0 0.0
        %900 = vmatpush1.xpose.msra.mxu0 0.0
        %901 = vmatprep.subr.mxu0 0.0
        %902 = vmatpush1.xpose.msra.mxu0 0.0
        %903 = vmatprep.subr.mxu0 0.0
        %904 = vmatpush1.xpose.msra.mxu0 0.0
        %905 = vmatprep.subr.mxu0 0.0
        %906 = vmatpush1.xpose.msra.mxu0 0.0
        %907 = vmatprep.subr.mxu0 0.0
        %908 = vmatpush1.xpose.msra.mxu0 0.0
        %909 = vmatprep.subr.mxu0 0.0
        %910 = vmatpush1.xpose.msra.mxu0 0.0
        %911 = vmatprep.subr.mxu0 0.0
        %912 = vmatpush1.xpose.msra.mxu0 0.0
        %913 = vmatprep.subr.mxu0 0.0
        %914 = vmatpush1.xpose.msra.mxu0 0.0
        %915 = vmatprep.subr.mxu0 0.0
        %916 = vmatpush1.xpose.msra.mxu0 0.0
        %917 = vmatprep.subr.mxu0 0.0
        %918 = vmatpush1.xpose.msra.mxu0 0.0
        %919 = vmatprep.subr.mxu0 0.0
        %920 = vmatpush1.xpose.msra.mxu0 0.0
        %921 = vmatprep.subr.mxu0 0.0
        %922 = vmatpush1.xpose.msra.mxu0 0.0
        %923 = vmatprep.subr.mxu0 0.0
        %924 = vmatpush1.xpose.msra.mxu0 0.0
        %925 = vmatprep.subr.mxu0 0.0
        %926 = vmatpush1.xpose.msra.mxu0 0.0
        %927 = vmatprep.subr.mxu0 0.0
        %928 = vmatpush1.xpose.msra.mxu0 0.0
        %929 = vmatprep.subr.mxu0 0.0
        %930 = vmatpush1.xpose.msra.mxu0 0.0
        %931 = vmatprep.subr.mxu0 0.0
        %932 = vmatpush1.xpose.msra.mxu0 0.0
        %933 = vmatprep.subr.mxu0 0.0
        %934 = vmatpush1.xpose.msra.mxu0 0.0
        %935 = vmatprep.subr.mxu0 0.0
        %936 = vmatpush1.xpose.msra.mxu0 0.0
        %937 = vmatprep.subr.mxu0 0.0
        %938 = vmatpush1.xpose.msra.mxu0 0.0
        %939 = vmatprep.subr.mxu0 0.0
        %940 = vmatpush1.xpose.msra.mxu0 0.0
        %941 = vmatprep.subr.mxu0 0.0
        %942 = vmatpush1.xpose.msra.mxu0 0.0
        %943 = vmatprep.subr.mxu0 0.0
        %944 = vmatpush1.xpose.msra.mxu0 0.0
        %945 = vmatprep.subr.mxu0 0.0
        %946 = vmatpush1.xpose.msra.mxu0 0.0
        %947 = vmatprep.subr.mxu0 0.0
        %948 = vmatpush1.xpose.msra.mxu0 0.0
        %949 = vmatprep.subr.mxu0 0.0
        %950 = vmatpush1.xpose.msra.mxu0 0.0
        %951 = vmatprep.subr.mxu0 0.0
        %952 = vmatpush1.xpose.msra.mxu0 0.0
        %953 = vmatprep.mubr.f32.mxu0 0.0
        %954 = vmatmul.mubr.f32.gmra.mrb[0].mxu0 %v885
        %v955 = vpop.f32.mrb[0].mxu0
        %v956 = vadd.f32 %v649, %v955
        %v957 = vpop.f32.mrb[0].mxu0
        %958 = vdwg.mxu0
        %v959 = vsel %vm653, %v725, -inf
        %960 = vmax.xlane.f32.xlu0 %v959
        %v961 = vpop.xlane.xlu0 %960
        %v962 = vsel %vm653, %v802, -inf
        %963 = vmax.xlane.f32.xlu0 %v962
        %v964 = vpop.xlane.xlu0 %963
        %v965 = vsel %vm653, %v879, -inf
        %966 = vmax.xlane.f32.xlu0 %v965
        %v967 = vpop.xlane.xlu0 %966
        %v968 = vsel %vm653, %v956, -inf
        %969 = vmax.xlane.f32.xlu0 %v968
        %v970 = vpop.xlane.xlu0 %969
        %v971 = vsub.f32 %v725, %v961
        %v972 = vsub.f32 %v802, %v964
        %v973 = vsub.f32 %v879, %v967
        %v974 = vsub.f32 %v956, %v970
        %v975 = vmul.f32 %v971, 1.442695
        %v976 = vpow.pop %v975
        %v977 = vmul.f32 %v972, 1.442695
        %v978 = vpow.pop %v977
        %v979 = vmul.f32 %v973, 1.442695
        %v980 = vpow.pop %v979
        %v981 = vmul.f32 %v974, 1.442695
        %v982 = vpow.pop %v981
        %v983 = vsel %vm653, %v976, 0.0
        %984 = vadd.xlane.f32.xlu0 %v983
        %v985 = vpop.xlane.xlu0 %984
        %v986 = vsel %vm653, %v978, 0.0
        %987 = vadd.xlane.f32.xlu0 %v986
        %v988 = vpop.xlane.xlu0 %987
        %v989 = vsel %vm653, %v980, 0.0
        %990 = vadd.xlane.f32.xlu0 %v989
        %v991 = vpop.xlane.xlu0 %990
        %v992 = vsel %vm653, %v982, 0.0
        %993 = vadd.xlane.f32.xlu0 %v992
        %v994 = vpop.xlane.xlu0 %993
        %v995 = vrcp.pop %v985
        %v996 = vmul.f32 %v976, %v995
        %v997 = vrcp.pop %v988
        %v998 = vmul.f32 %v978, %v997
        %v999 = vrcp.pop %v991
        %v1000 = vmul.f32 %v980, %v999
        %v1001 = vrcp.pop %v994
        %v1002 = vmul.f32 %v982, %v1001
        %1003 = vrot.lane.b32.xlu0 %v628, 64
        %v1004 = vpop.permute.xlu0 %1003
        %v1007 = vsel %vm653, %v996, 0
        %1009 = vmatprep.subr.mxu0 0.0
        %1010 = vmatpush1.msra.mxu0 %v1004
        %1011 = vmatprep.subr.mxu0 0.0
        %1012 = vmatpush1.msra.mxu0 0.0
        %1013 = vmatprep.subr.mxu0 0.0
        %1014 = vmatpush1.msra.mxu0 0.0
        %1015 = vmatprep.subr.mxu0 0.0
        %1016 = vmatpush1.msra.mxu0 0.0
        %1017 = vmatprep.subr.mxu0 0.0
        %1018 = vmatpush1.msra.mxu0 0.0
        %1019 = vmatprep.subr.mxu0 0.0
        %1020 = vmatpush1.msra.mxu0 0.0
        %1021 = vmatprep.subr.mxu0 0.0
        %1022 = vmatpush1.msra.mxu0 0.0
        %1023 = vmatprep.subr.mxu0 0.0
        %1024 = vmatpush1.msra.mxu0 0.0
        %1025 = vmatprep.subr.mxu0 0.0
        %1026 = vmatpush1.msra.mxu0 0.0
        %1027 = vmatprep.subr.mxu0 0.0
        %1028 = vmatpush1.msra.mxu0 0.0
        %1029 = vmatprep.subr.mxu0 0.0
        %1030 = vmatpush1.msra.mxu0 0.0
        %1031 = vmatprep.subr.mxu0 0.0
        %1032 = vmatpush1.msra.mxu0 0.0
        %1033 = vmatprep.subr.mxu0 0.0
        %1034 = vmatpush1.msra.mxu0 0.0
        %1035 = vmatprep.subr.mxu0 0.0
        %1036 = vmatpush1.msra.mxu0 0.0
        %1037 = vmatprep.subr.mxu0 0.0
        %1038 = vmatpush1.msra.mxu0 0.0
        %1039 = vmatprep.subr.mxu0 0.0
        %1040 = vmatpush1.msra.mxu0 0.0
        %1041 = vmatprep.subr.mxu0 0.0
        %1042 = vmatpush1.msra.mxu0 0.0
        %1043 = vmatprep.subr.mxu0 0.0
        %1044 = vmatpush1.msra.mxu0 0.0
        %1045 = vmatprep.subr.mxu0 0.0
        %1046 = vmatpush1.msra.mxu0 0.0
        %1047 = vmatprep.subr.mxu0 0.0
        %1048 = vmatpush1.msra.mxu0 0.0
        %1049 = vmatprep.subr.mxu0 0.0
        %1050 = vmatpush1.msra.mxu0 0.0
        %1051 = vmatprep.subr.mxu0 0.0
        %1052 = vmatpush1.msra.mxu0 0.0
        %1053 = vmatprep.subr.mxu0 0.0
        %1054 = vmatpush1.msra.mxu0 0.0
        %1055 = vmatprep.subr.mxu0 0.0
        %1056 = vmatpush1.msra.mxu0 0.0
        %1057 = vmatprep.subr.mxu0 0.0
        %1058 = vmatpush1.msra.mxu0 0.0
        %1059 = vmatprep.subr.mxu0 0.0
        %1060 = vmatpush1.msra.mxu0 0.0
        %1061 = vmatprep.subr.mxu0 0.0
        %1062 = vmatpush1.msra.mxu0 0.0
        %1063 = vmatprep.subr.mxu0 0.0
        %1064 = vmatpush1.msra.mxu0 0.0
        %1065 = vmatprep.subr.mxu0 0.0
        %1066 = vmatpush1.msra.mxu0 0.0
        %1067 = vmatprep.subr.mxu0 0.0
        %1068 = vmatpush1.msra.mxu0 0.0
        %1069 = vmatprep.subr.mxu0 0.0
        %1070 = vmatpush1.msra.mxu0 0.0
        %1071 = vmatprep.subr.mxu0 0.0
        %1072 = vmatpush1.msra.mxu0 0.0
        %1073 = vmatprep.mubr.f32.mxu0 0.0
        %1074 = vmatmul.mubr.f32.gmra.mrb[0].mxu0 %v1007
        %v1075 = vpop.f32.mrb[0].mxu0
        %v1076 = vadd.f32 0.0, %v1075
        %v1077 = vpop.f32.mrb[0].mxu0
        %1078 = vdwg.mxu0
        %1079 = vrot.lane.b32.xlu0 %v633, 64
        %v1080 = vpop.permute.xlu0 %1079
        %v1083 = vsel %vm653, %v998, 0
        %1085 = vmatprep.subr.mxu0 0.0
        %1086 = vmatpush1.msra.mxu0 %v1080
        %1087 = vmatprep.subr.mxu0 0.0
        %1088 = vmatpush1.msra.mxu0 0.0
        %1089 = vmatprep.subr.mxu0 0.0
        %1090 = vmatpush1.msra.mxu0 0.0
        %1091 = vmatprep.subr.mxu0 0.0
        %1092 = vmatpush1.msra.mxu0 0.0
        %1093 = vmatprep.subr.mxu0 0.0
        %1094 = vmatpush1.msra.mxu0 0.0
        %1095 = vmatprep.subr.mxu0 0.0
        %1096 = vmatpush1.msra.mxu0 0.0
        %1097 = vmatprep.subr.mxu0 0.0
        %1098 = vmatpush1.msra.mxu0 0.0
        %1099 = vmatprep.subr.mxu0 0.0
        %1100 = vmatpush1.msra.mxu0 0.0
        %1101 = vmatprep.subr.mxu0 0.0
        %1102 = vmatpush1.msra.mxu0 0.0
        %1103 = vmatprep.subr.mxu0 0.0
        %1104 = vmatpush1.msra.mxu0 0.0
        %1105 = vmatprep.subr.mxu0 0.0
        %1106 = vmatpush1.msra.mxu0 0.0
        %1107 = vmatprep.subr.mxu0 0.0
        %1108 = vmatpush1.msra.mxu0 0.0
        %1109 = vmatprep.subr.mxu0 0.0
        %1110 = vmatpush1.msra.mxu0 0.0
        %1111 = vmatprep.subr.mxu0 0.0
        %1112 = vmatpush1.msra.mxu0 0.0
        %1113 = vmatprep.subr.mxu0 0.0
        %1114 = vmatpush1.msra.mxu0 0.0
        %1115 = vmatprep.subr.mxu0 0.0
        %1116 = vmatpush1.msra.mxu0 0.0
        %1117 = vmatprep.subr.mxu0 0.0
        %1118 = vmatpush1.msra.mxu0 0.0
        %1119 = vmatprep.subr.mxu0 0.0
        %1120 = vmatpush1.msra.mxu0 0.0
        %1121 = vmatprep.subr.mxu0 0.0
        %1122 = vmatpush1.msra.mxu0 0.0
        %1123 = vmatprep.subr.mxu0 0.0
        %1124 = vmatpush1.msra.mxu0 0.0
        %1125 = vmatprep.subr.mxu0 0.0
        %1126 = vmatpush1.msra.mxu0 0.0
        %1127 = vmatprep.subr.mxu0 0.0
        %1128 = vmatpush1.msra.mxu0 0.0
        %1129 = vmatprep.subr.mxu0 0.0
        %1130 = vmatpush1.msra.mxu0 0.0
        %1131 = vmatprep.subr.mxu0 0.0
        %1132 = vmatpush1.msra.mxu0 0.0
        %1133 = vmatprep.subr.mxu0 0.0
        %1134 = vmatpush1.msra.mxu0 0.0
        %1135 = vmatprep.subr.mxu0 0.0
        %1136 = vmatpush1.msra.mxu0 0.0
        %1137 = vmatprep.subr.mxu0 0.0
        %1138 = vmatpush1.msra.mxu0 0.0
        %1139 = vmatprep.subr.mxu0 0.0
        %1140 = vmatpush1.msra.mxu0 0.0
        %1141 = vmatprep.subr.mxu0 0.0
        %1142 = vmatpush1.msra.mxu0 0.0
        %1143 = vmatprep.subr.mxu0 0.0
        %1144 = vmatpush1.msra.mxu0 0.0
        %1145 = vmatprep.subr.mxu0 0.0
        %1146 = vmatpush1.msra.mxu0 0.0
        %1147 = vmatprep.subr.mxu0 0.0
        %1148 = vmatpush1.msra.mxu0 0.0
        %1149 = vmatprep.mubr.f32.mxu0 0.0
        %1150 = vmatmul.mubr.f32.gmra.mrb[0].mxu0 %v1083
        %v1151 = vpop.f32.mrb[0].mxu0
        %v1152 = vadd.f32 0.0, %v1151
        %v1153 = vpop.f32.mrb[0].mxu0
        %1154 = vdwg.mxu0
        %1155 = vrot.lane.b32.xlu0 %v638, 64
        %v1156 = vpop.permute.xlu0 %1155
        %v1159 = vsel %vm653, %v1000, 0
        %1161 = vmatprep.subr.mxu0 0.0
        %1162 = vmatpush1.msra.mxu0 %v1156
        %1163 = vmatprep.subr.mxu0 0.0
        %1164 = vmatpush1.msra.mxu0 0.0
        %1165 = vmatprep.subr.mxu0 0.0
        %1166 = vmatpush1.msra.mxu0 0.0
        %1167 = vmatprep.subr.mxu0 0.0
        %1168 = vmatpush1.msra.mxu0 0.0
        %1169 = vmatprep.subr.mxu0 0.0
        %1170 = vmatpush1.msra.mxu0 0.0
        %1171 = vmatprep.subr.mxu0 0.0
        %1172 = vmatpush1.msra.mxu0 0.0
        %1173 = vmatprep.subr.mxu0 0.0
        %1174 = vmatpush1.msra.mxu0 0.0
        %1175 = vmatprep.subr.mxu0 0.0
        %1176 = vmatpush1.msra.mxu0 0.0
        %1177 = vmatprep.subr.mxu0 0.0
        %1178 = vmatpush1.msra.mxu0 0.0
        %1179 = vmatprep.subr.mxu0 0.0
        %1180 = vmatpush1.msra.mxu0 0.0
        %1181 = vmatprep.subr.mxu0 0.0
        %1182 = vmatpush1.msra.mxu0 0.0
        %1183 = vmatprep.subr.mxu0 0.0
        %1184 = vmatpush1.msra.mxu0 0.0
        %1185 = vmatprep.subr.mxu0 0.0
        %1186 = vmatpush1.msra.mxu0 0.0
        %1187 = vmatprep.subr.mxu0 0.0
        %1188 = vmatpush1.msra.mxu0 0.0
        %1189 = vmatprep.subr.mxu0 0.0
        %1190 = vmatpush1.msra.mxu0 0.0
        %1191 = vmatprep.subr.mxu0 0.0
        %1192 = vmatpush1.msra.mxu0 0.0
        %1193 = vmatprep.subr.mxu0 0.0
        %1194 = vmatpush1.msra.mxu0 0.0
        %1195 = vmatprep.subr.mxu0 0.0
        %1196 = vmatpush1.msra.mxu0 0.0
        %1197 = vmatprep.subr.mxu0 0.0
        %1198 = vmatpush1.msra.mxu0 0.0
        %1199 = vmatprep.subr.mxu0 0.0
        %1200 = vmatpush1.msra.mxu0 0.0
        %1201 = vmatprep.subr.mxu0 0.0
        %1202 = vmatpush1.msra.mxu0 0.0
        %1203 = vmatprep.subr.mxu0 0.0
        %1204 = vmatpush1.msra.mxu0 0.0
        %1205 = vmatprep.subr.mxu0 0.0
        %1206 = vmatpush1.msra.mxu0 0.0
        %1207 = vmatprep.subr.mxu0 0.0
        %1208 = vmatpush1.msra.mxu0 0.0
        %1209 = vmatprep.subr.mxu0 0.0
        %1210 = vmatpush1.msra.mxu0 0.0
        %1211 = vmatprep.subr.mxu0 0.0
        %1212 = vmatpush1.msra.mxu0 0.0
        %1213 = vmatprep.subr.mxu0 0.0
        %1214 = vmatpush1.msra.mxu0 0.0
        %1215 = vmatprep.subr.mxu0 0.0
        %1216 = vmatpush1.msra.mxu0 0.0
        %1217 = vmatprep.subr.mxu0 0.0
        %1218 = vmatpush1.msra.mxu0 0.0
        %1219 = vmatprep.subr.mxu0 0.0
        %1220 = vmatpush1.msra.mxu0 0.0
        %1221 = vmatprep.subr.mxu0 0.0
        %1222 = vmatpush1.msra.mxu0 0.0
        %1223 = vmatprep.subr.mxu0 0.0
        %1224 = vmatpush1.msra.mxu0 0.0
        %1225 = vmatprep.mubr.f32.mxu0 0.0
        %1226 = vmatmul.mubr.f32.gmra.mrb[0].mxu0 %v1159
        %v1227 = vpop.f32.mrb[0].mxu0
        %v1228 = vadd.f32 0.0, %v1227
        %v1229 = vpop.f32.mrb[0].mxu0
        %1230 = vdwg.mxu0
        %1231 = vrot.lane.b32.xlu0 %v643, 64
        %v1232 = vpop.permute.xlu0 %1231
        %v1235 = vsel %vm653, %v1002, 0
        %1237 = vmatprep.subr.mxu0 0.0
        %1238 = vmatpush1.msra.mxu0 %v1232
        %1239 = vmatprep.subr.mxu0 0.0
        %1240 = vmatpush1.msra.mxu0 0.0
        %1241 = vmatprep.subr.mxu0 0.0
        %1242 = vmatpush1.msra.mxu0 0.0
        %1243 = vmatprep.subr.mxu0 0.0
        %1244 = vmatpush1.msra.mxu0 0.0
        %1245 = vmatprep.subr.mxu0 0.0
        %1246 = vmatpush1.msra.mxu0 0.0
        %1247 = vmatprep.subr.mxu0 0.0
        %1248 = vmatpush1.msra.mxu0 0.0
        %1249 = vmatprep.subr.mxu0 0.0
        %1250 = vmatpush1.msra.mxu0 0.0
        %1251 = vmatprep.subr.mxu0 0.0
        %1252 = vmatpush1.msra.mxu0 0.0
        %1253 = vmatprep.subr.mxu0 0.0
        %1254 = vmatpush1.msra.mxu0 0.0
        %1255 = vmatprep.subr.mxu0 0.0
        %1256 = vmatpush1.msra.mxu0 0.0
        %1257 = vmatprep.subr.mxu0 0.0
        %1258 = vmatpush1.msra.mxu0 0.0
        %1259 = vmatprep.subr.mxu0 0.0
        %1260 = vmatpush1.msra.mxu0 0.0
        %1261 = vmatprep.subr.mxu0 0.0
        %1262 = vmatpush1.msra.mxu0 0.0
        %1263 = vmatprep.subr.mxu0 0.0
        %1264 = vmatpush1.msra.mxu0 0.0
        %1265 = vmatprep.subr.mxu0 0.0
        %1266 = vmatpush1.msra.mxu0 0.0
        %1267 = vmatprep.subr.mxu0 0.0
        %1268 = vmatpush1.msra.mxu0 0.0
        %1269 = vmatprep.subr.mxu0 0.0
        %1270 = vmatpush1.msra.mxu0 0.0
        %1271 = vmatprep.subr.mxu0 0.0
        %1272 = vmatpush1.msra.mxu0 0.0
        %1273 = vmatprep.subr.mxu0 0.0
        %1274 = vmatpush1.msra.mxu0 0.0
        %1275 = vmatprep.subr.mxu0 0.0
        %1276 = vmatpush1.msra.mxu0 0.0
        %1277 = vmatprep.subr.mxu0 0.0
        %1278 = vmatpush1.msra.mxu0 0.0
        %1279 = vmatprep.subr.mxu0 0.0
        %1280 = vmatpush1.msra.mxu0 0.0
        %1281 = vmatprep.subr.mxu0 0.0
        %1282 = vmatpush1.msra.mxu0 0.0
        %1283 = vmatprep.subr.mxu0 0.0
        %1284 = vmatpush1.msra.mxu0 0.0
        %1285 = vmatprep.subr.mxu0 0.0
        %1286 = vmatpush1.msra.mxu0 0.0
        %1287 = vmatprep.subr.mxu0 0.0
        %1288 = vmatpush1.msra.mxu0 0.0
        %1289 = vmatprep.subr.mxu0 0.0
        %1290 = vmatpush1.msra.mxu0 0.0
        %1291 = vmatprep.subr.mxu0 0.0
        %1292 = vmatpush1.msra.mxu0 0.0
        %1293 = vmatprep.subr.mxu0 0.0
        %1294 = vmatpush1.msra.mxu0 0.0
        %1295 = vmatprep.subr.mxu0 0.0
        %1296 = vmatpush1.msra.mxu0 0.0
        %1297 = vmatprep.subr.mxu0 0.0
        %1298 = vmatpush1.msra.mxu0 0.0
        %1299 = vmatprep.subr.mxu0 0.0
        %1300 = vmatpush1.msra.mxu0 0.0
        %1301 = vmatprep.mubr.f32.mxu0 0.0
        %1302 = vmatmul.mubr.f32.gmra.mrb[0].mxu0 %v1235
        %v1303 = vpop.f32.mrb[0].mxu0
        %v1304 = vadd.f32 0.0, %v1303
        %v1305 = vpop.f32.mrb[0].mxu0
        %1306 = vdwg.mxu0
        %1307 = vrot.lane.b32.xlu0 %v628, 120
        %v1308 = vpop.permute.xlu0 %1307
        %1309 = vrot.lane.b32.xlu0 %v628, 88
        %v1310 = vpop.permute.xlu0 %1309
        %v1311 = vsel %vm653, %v1308, 0
        %v1313 = vsel %vm653, %v1310, 0
        %1315 = vmatprep.subr.mxu0 0.0
        %1316 = vmatpush1.xpose.msra.mxu0 %v1313
        %1317 = vmatprep.subr.mxu0 0.0
        %1318 = vmatpush1.xpose.msra.mxu0 0.0
        %1319 = vmatprep.subr.mxu0 0.0
        %1320 = vmatpush1.xpose.msra.mxu0 0.0
        %1321 = vmatprep.subr.mxu0 0.0
        %1322 = vmatpush1.xpose.msra.mxu0 0.0
        %1323 = vmatprep.subr.mxu0 0.0
        %1324 = vmatpush1.xpose.msra.mxu0 0.0
        %1325 = vmatprep.subr.mxu0 0.0
        %1326 = vmatpush1.xpose.msra.mxu0 0.0
        %1327 = vmatprep.subr.mxu0 0.0
        %1328 = vmatpush1.xpose.msra.mxu0 0.0
        %1329 = vmatprep.subr.mxu0 0.0
        %1330 = vmatpush1.xpose.msra.mxu0 0.0
        %1331 = vmatprep.subr.mxu0 0.0
        %1332 = vmatpush1.xpose.msra.mxu0 0.0
        %1333 = vmatprep.subr.mxu0 0.0
        %1334 = vmatpush1.xpose.msra.mxu0 0.0
        %1335 = vmatprep.subr.mxu0 0.0
        %1336 = vmatpush1.xpose.msra.mxu0 0.0
        %1337 = vmatprep.subr.mxu0 0.0
        %1338 = vmatpush1.xpose.msra.mxu0 0.0
        %1339 = vmatprep.subr.mxu0 0.0
        %1340 = vmatpush1.xpose.msra.mxu0 0.0
        %1341 = vmatprep.subr.mxu0 0.0
        %1342 = vmatpush1.xpose.msra.mxu0 0.0
        %1343 = vmatprep.subr.mxu0 0.0
        %1344 = vmatpush1.xpose.msra.mxu0 0.0
        %1345 = vmatprep.subr.mxu0 0.0
        %1346 = vmatpush1.xpose.msra.mxu0 0.0
        %1347 = vmatprep.subr.mxu0 0.0
        %1348 = vmatpush1.xpose.msra.mxu0 0.0
        %1349 = vmatprep.subr.mxu0 0.0
        %1350 = vmatpush1.xpose.msra.mxu0 0.0
        %1351 = vmatprep.subr.mxu0 0.0
        %1352 = vmatpush1.xpose.msra.mxu0 0.0
        %1353 = vmatprep.subr.mxu0 0.0
        %1354 = vmatpush1.xpose.msra.mxu0 0.0
        %1355 = vmatprep.subr.mxu0 0.0
        %1356 = vmatpush1.xpose.msra.mxu0 0.0
        %1357 = vmatprep.subr.mxu0 0.0
        %1358 = vmatpush1.xpose.msra.mxu0 0.0
        %1359 = vmatprep.subr.mxu0 0.0
        %1360 = vmatpush1.xpose.msra.mxu0 0.0
        %1361 = vmatprep.subr.mxu0 0.0
        %1362 = vmatpush1.xpose.msra.mxu0 0.0
        %1363 = vmatprep.subr.mxu0 0.0
        %1364 = vmatpush1.xpose.msra.mxu0 0.0
        %1365 = vmatprep.subr.mxu0 0.0
        %1366 = vmatpush1.xpose.msra.mxu0 0.0
        %1367 = vmatprep.subr.mxu0 0.0
        %1368 = vmatpush1.xpose.msra.mxu0 0.0
        %1369 = vmatprep.subr.mxu0 0.0
        %1370 = vmatpush1.xpose.msra.mxu0 0.0
        %1371 = vmatprep.subr.mxu0 0.0
        %1372 = vmatpush1.xpose.msra.mxu0 0.0
        %1373 = vmatprep.subr.mxu0 0.0
        %1374 = vmatpush1.xpose.msra.mxu0 0.0
        %1375 = vmatprep.subr.mxu0 0.0
        %1376 = vmatpush1.xpose.msra.mxu0 0.0
        %1377 = vmatprep.subr.mxu0 0.0
        %1378 = vmatpush1.xpose.msra.mxu0 0.0
        %1379 = vmatprep.mubr.f32.mxu0 0.0
        %1380 = vmatmul.mubr.f32.gmra.mrb[0].mxu0 %v1311
        %v1381 = vpop.f32.mrb[0].mxu0
        %v1382 = vadd.f32 %v646, %v1381
        %v1383 = vpop.f32.mrb[0].mxu0
        %1384 = vdwg.mxu0
        %1385 = vrot.lane.b32.xlu0 %v633, 120
        %v1386 = vpop.permute.xlu0 %1385
        %1387 = vrot.lane.b32.xlu0 %v633, 88
        %v1388 = vpop.permute.xlu0 %1387
        %v1389 = vsel %vm653, %v1386, 0
        %v1391 = vsel %vm653, %v1388, 0
        %1393 = vmatprep.subr.mxu0 0.0
        %1394 = vmatpush1.xpose.msra.mxu0 %v1391
        %1395 = vmatprep.subr.mxu0 0.0
        %1396 = vmatpush1.xpose.msra.mxu0 0.0
        %1397 = vmatprep.subr.mxu0 0.0
        %1398 = vmatpush1.xpose.msra.mxu0 0.0
        %1399 = vmatprep.subr.mxu0 0.0
        %1400 = vmatpush1.xpose.msra.mxu0 0.0
        %1401 = vmatprep.subr.mxu0 0.0
        %1402 = vmatpush1.xpose.msra.mxu0 0.0
        %1403 = vmatprep.subr.mxu0 0.0
        %1404 = vmatpush1.xpose.msra.mxu0 0.0
        %1405 = vmatprep.subr.mxu0 0.0
        %1406 = vmatpush1.xpose.msra.mxu0 0.0
        %1407 = vmatprep.subr.mxu0 0.0
        %1408 = vmatpush1.xpose.msra.mxu0 0.0
        %1409 = vmatprep.subr.mxu0 0.0
        %1410 = vmatpush1.xpose.msra.mxu0 0.0
        %1411 = vmatprep.subr.mxu0 0.0
        %1412 = vmatpush1.xpose.msra.mxu0 0.0
        %1413 = vmatprep.subr.mxu0 0.0
        %1414 = vmatpush1.xpose.msra.mxu0 0.0
        %1415 = vmatprep.subr.mxu0 0.0
        %1416 = vmatpush1.xpose.msra.mxu0 0.0
        %1417 = vmatprep.subr.mxu0 0.0
        %1418 = vmatpush1.xpose.msra.mxu0 0.0
        %1419 = vmatprep.subr.mxu0 0.0
        %1420 = vmatpush1.xpose.msra.mxu0 0.0
        %1421 = vmatprep.subr.mxu0 0.0
        %1422 = vmatpush1.xpose.msra.mxu0 0.0
        %1423 = vmatprep.subr.mxu0 0.0
        %1424 = vmatpush1.xpose.msra.mxu0 0.0
        %1425 = vmatprep.subr.mxu0 0.0
        %1426 = vmatpush1.xpose.msra.mxu0 0.0
        %1427 = vmatprep.subr.mxu0 0.0
        %1428 = vmatpush1.xpose.msra.mxu0 0.0
        %1429 = vmatprep.subr.mxu0 0.0
        %1430 = vmatpush1.xpose.msra.mxu0 0.0
        %1431 = vmatprep.subr.mxu0 0.0
        %1432 = vmatpush1.xpose.msra.mxu0 0.0
        %1433 = vmatprep.subr.mxu0 0.0
        %1434 = vmatpush1.xpose.msra.mxu0 0.0
        %1435 = vmatprep.subr.mxu0 0.0
        %1436 = vmatpush1.xpose.msra.mxu0 0.0
        %1437 = vmatprep.subr.mxu0 0.0
        %1438 = vmatpush1.xpose.msra.mxu0 0.0
        %1439 = vmatprep.subr.mxu0 0.0
        %1440 = vmatpush1.xpose.msra.mxu0 0.0
        %1441 = vmatprep.subr.mxu0 0.0
        %1442 = vmatpush1.xpose.msra.mxu0 0.0
        %1443 = vmatprep.subr.mxu0 0.0
        %1444 = vmatpush1.xpose.msra.mxu0 0.0
        %1445 = vmatprep.subr.mxu0 0.0
        %1446 = vmatpush1.xpose.msra.mxu0 0.0
        %1447 = vmatprep.subr.mxu0 0.0
        %1448 = vmatpush1.xpose.msra.mxu0 0.0
        %1449 = vmatprep.subr.mxu0 0.0
        %1450 = vmatpush1.xpose.msra.mxu0 0.0
        %1451 = vmatprep.subr.mxu0 0.0
        %1452 = vmatpush1.xpose.msra.mxu0 0.0
        %1453 = vmatprep.subr.mxu0 0.0
        %1454 = vmatpush1.xpose.msra.mxu0 0.0
        %1455 = vmatprep.subr.mxu0 0.0
        %1456 = vmatpush1.xpose.msra.mxu0 0.0
        %1457 = vmatprep.mubr.f32.mxu0 0.0
        %1458 = vmatmul.mubr.f32.gmra.mrb[0].mxu0 %v1389
        %v1459 = vpop.f32.mrb[0].mxu0
        %v1460 = vadd.f32 %v647, %v1459
        %v1461 = vpop.f32.mrb[0].mxu0
        %1462 = vdwg.mxu0
        %1463 = vrot.lane.b32.xlu0 %v638, 120
        %v1464 = vpop.permute.xlu0 %1463
        %1465 = vrot.lane.b32.xlu0 %v638, 88
        %v1466 = vpop.permute.xlu0 %1465
        %v1467 = vsel %vm653, %v1464, 0
        %v1469 = vsel %vm653, %v1466, 0
        %1471 = vmatprep.subr.mxu0 0.0
        %1472 = vmatpush1.xpose.msra.mxu0 %v1469
        %1473 = vmatprep.subr.mxu0 0.0
        %1474 = vmatpush1.xpose.msra.mxu0 0.0
        %1475 = vmatprep.subr.mxu0 0.0
        %1476 = vmatpush1.xpose.msra.mxu0 0.0
        %1477 = vmatprep.subr.mxu0 0.0
        %1478 = vmatpush1.xpose.msra.mxu0 0.0
        %1479 = vmatprep.subr.mxu0 0.0
        %1480 = vmatpush1.xpose.msra.mxu0 0.0
        %1481 = vmatprep.subr.mxu0 0.0
        %1482 = vmatpush1.xpose.msra.mxu0 0.0
        %1483 = vmatprep.subr.mxu0 0.0
        %1484 = vmatpush1.xpose.msra.mxu0 0.0
        %1485 = vmatprep.subr.mxu0 0.0
        %1486 = vmatpush1.xpose.msra.mxu0 0.0
        %1487 = vmatprep.subr.mxu0 0.0
        %1488 = vmatpush1.xpose.msra.mxu0 0.0
        %1489 = vmatprep.subr.mxu0 0.0
        %1490 = vmatpush1.xpose.msra.mxu0 0.0
        %1491 = vmatprep.subr.mxu0 0.0
        %1492 = vmatpush1.xpose.msra.mxu0 0.0
        %1493 = vmatprep.subr.mxu0 0.0
        %1494 = vmatpush1.xpose.msra.mxu0 0.0
        %1495 = vmatprep.subr.mxu0 0.0
        %1496 = vmatpush1.xpose.msra.mxu0 0.0
        %1497 = vmatprep.subr.mxu0 0.0
        %1498 = vmatpush1.xpose.msra.mxu0 0.0
        %1499 = vmatprep.subr.mxu0 0.0
        %1500 = vmatpush1.xpose.msra.mxu0 0.0
        %1501 = vmatprep.subr.mxu0 0.0
        %1502 = vmatpush1.xpose.msra.mxu0 0.0
        %1503 = vmatprep.subr.mxu0 0.0
        %1504 = vmatpush1.xpose.msra.mxu0 0.0
        %1505 = vmatprep.subr.mxu0 0.0
        %1506 = vmatpush1.xpose.msra.mxu0 0.0
        %1507 = vmatprep.subr.mxu0 0.0
        %1508 = vmatpush1.xpose.msra.mxu0 0.0
        %1509 = vmatprep.subr.mxu0 0.0
        %1510 = vmatpush1.xpose.msra.mxu0 0.0
        %1511 = vmatprep.subr.mxu0 0.0
        %1512 = vmatpush1.xpose.msra.mxu0 0.0
        %1513 = vmatprep.subr.mxu0 0.0
        %1514 = vmatpush1.xpose.msra.mxu0 0.0
        %1515 = vmatprep.subr.mxu0 0.0
        %1516 = vmatpush1.xpose.msra.mxu0 0.0
        %1517 = vmatprep.subr.mxu0 0.0
        %1518 = vmatpush1.xpose.msra.mxu0 0.0
        %1519 = vmatprep.subr.mxu0 0.0
        %1520 = vmatpush1.xpose.msra.mxu0 0.0
        %1521 = vmatprep.subr.mxu0 0.0
        %1522 = vmatpush1.xpose.msra.mxu0 0.0
        %1523 = vmatprep.subr.mxu0 0.0
        %1524 = vmatpush1.xpose.msra.mxu0 0.0
        %1525 = vmatprep.subr.mxu0 0.0
        %1526 = vmatpush1.xpose.msra.mxu0 0.0
        %1527 = vmatprep.subr.mxu0 0.0
        %1528 = vmatpush1.xpose.msra.mxu0 0.0
        %1529 = vmatprep.subr.mxu0 0.0
        %1530 = vmatpush1.xpose.msra.mxu0 0.0
        %1531 = vmatprep.subr.mxu0 0.0
        %1532 = vmatpush1.xpose.msra.mxu0 0.0
        %1533 = vmatprep.subr.mxu0 0.0
        %1534 = vmatpush1.xpose.msra.mxu0 0.0
        %1535 = vmatprep.mubr.f32.mxu0 0.0
        %1536 = vmatmul.mubr.f32.gmra.mrb[0].mxu0 %v1467
        %v1537 = vpop.f32.mrb[0].mxu0
        %v1538 = vadd.f32 %v648, %v1537
        %v1539 = vpop.f32.mrb[0].mxu0
        %1540 = vdwg.mxu0
        %1541 = vrot.lane.b32.xlu0 %v643, 120
        %v1542 = vpop.permute.xlu0 %1541
        %1543 = vrot.lane.b32.xlu0 %v643, 88
        %v1544 = vpop.permute.xlu0 %1543
        %v1545 = vsel %vm653, %v1542, 0
        %v1547 = vsel %vm653, %v1544, 0
        %1549 = vmatprep.subr.mxu0 0.0
        %1550 = vmatpush1.xpose.msra.mxu0 %v1547
        %1551 = vmatprep.subr.mxu0 0.0
        %1552 = vmatpush1.xpose.msra.mxu0 0.0
        %1553 = vmatprep.subr.mxu0 0.0
        %1554 = vmatpush1.xpose.msra.mxu0 0.0
        %1555 = vmatprep.subr.mxu0 0.0
        %1556 = vmatpush1.xpose.msra.mxu0 0.0
        %1557 = vmatprep.subr.mxu0 0.0
        %1558 = vmatpush1.xpose.msra.mxu0 0.0
        %1559 = vmatprep.subr.mxu0 0.0
        %1560 = vmatpush1.xpose.msra.mxu0 0.0
        %1561 = vmatprep.subr.mxu0 0.0
        %1562 = vmatpush1.xpose.msra.mxu0 0.0
        %1563 = vmatprep.subr.mxu0 0.0
        %1564 = vmatpush1.xpose.msra.mxu0 0.0
        %1565 = vmatprep.subr.mxu0 0.0
        %1566 = vmatpush1.xpose.msra.mxu0 0.0
        %1567 = vmatprep.subr.mxu0 0.0
        %1568 = vmatpush1.xpose.msra.mxu0 0.0
        %1569 = vmatprep.subr.mxu0 0.0
        %1570 = vmatpush1.xpose.msra.mxu0 0.0
        %1571 = vmatprep.subr.mxu0 0.0
        %1572 = vmatpush1.xpose.msra.mxu0 0.0
        %1573 = vmatprep.subr.mxu0 0.0
        %1574 = vmatpush1.xpose.msra.mxu0 0.0
        %1575 = vmatprep.subr.mxu0 0.0
        %1576 = vmatpush1.xpose.msra.mxu0 0.0
        %1577 = vmatprep.subr.mxu0 0.0
        %1578 = vmatpush1.xpose.msra.mxu0 0.0
        %1579 = vmatprep.subr.mxu0 0.0
        %1580 = vmatpush1.xpose.msra.mxu0 0.0
        %1581 = vmatprep.subr.mxu0 0.0
        %1582 = vmatpush1.xpose.msra.mxu0 0.0
        %1583 = vmatprep.subr.mxu0 0.0
        %1584 = vmatpush1.xpose.msra.mxu0 0.0
        %1585 = vmatprep.subr.mxu0 0.0
        %1586 = vmatpush1.xpose.msra.mxu0 0.0
        %1587 = vmatprep.subr.mxu0 0.0
        %1588 = vmatpush1.xpose.msra.mxu0 0.0
        %1589 = vmatprep.subr.mxu0 0.0
        %1590 = vmatpush1.xpose.msra.mxu0 0.0
        %1591 = vmatprep.subr.mxu0 0.0
        %1592 = vmatpush1.xpose.msra.mxu0 0.0
        %1593 = vmatprep.subr.mxu0 0.0
        %1594 = vmatpush1.xpose.msra.mxu0 0.0
        %1595 = vmatprep.subr.mxu0 0.0
        %1596 = vmatpush1.xpose.msra.mxu0 0.0
        %1597 = vmatprep.subr.mxu0 0.0
        %1598 = vmatpush1.xpose.msra.mxu0 0.0
        %1599 = vmatprep.subr.mxu0 0.0
        %1600 = vmatpush1.xpose.msra.mxu0 0.0
        %1601 = vmatprep.subr.mxu0 0.0
        %1602 = vmatpush1.xpose.msra.mxu0 0.0
        %1603 = vmatprep.subr.mxu0 0.0
        %1604 = vmatpush1.xpose.msra.mxu0 0.0
        %1605 = vmatprep.subr.mxu0 0.0
        %1606 = vmatpush1.xpose.msra.mxu0 0.0
        %1607 = vmatprep.subr.mxu0 0.0
        %1608 = vmatpush1.xpose.msra.mxu0 0.0
        %1609 = vmatprep.subr.mxu0 0.0
        %1610 = vmatpush1.xpose.msra.mxu0 0.0
        %1611 = vmatprep.subr.mxu0 0.0
        %1612 = vmatpush1.xpose.msra.mxu0 0.0
        %1613 = vmatprep.mubr.f32.mxu0 0.0
        %1614 = vmatmul.mubr.f32.gmra.mrb[0].mxu0 %v1545
        %v1615 = vpop.f32.mrb[0].mxu0
        %v1616 = vadd.f32 %v649, %v1615
        %v1617 = vpop.f32.mrb[0].mxu0
        %1618 = vdwg.mxu0
        %v1619 = vsel %vm653, %v1382, -inf
        %1620 = vmax.xlane.f32.xlu0 %v1619
        %v1621 = vpop.xlane.xlu0 %1620
        %v1622 = vsel %vm653, %v1460, -inf
        %1623 = vmax.xlane.f32.xlu0 %v1622
        %v1624 = vpop.xlane.xlu0 %1623
        %v1625 = vsel %vm653, %v1538, -inf
        %1626 = vmax.xlane.f32.xlu0 %v1625
        %v1627 = vpop.xlane.xlu0 %1626
        %v1628 = vsel %vm653, %v1616, -inf
        %1629 = vmax.xlane.f32.xlu0 %v1628
        %v1630 = vpop.xlane.xlu0 %1629
        %v1631 = vsub.f32 %v1382, %v1621
        %v1632 = vsub.f32 %v1460, %v1624
        %v1633 = vsub.f32 %v1538, %v1627
        %v1634 = vsub.f32 %v1616, %v1630
        %v1635 = vmul.f32 %v1631, 1.442695
        %v1636 = vpow.pop %v1635
        %v1637 = vmul.f32 %v1632, 1.442695
        %v1638 = vpow.pop %v1637
        %v1639 = vmul.f32 %v1633, 1.442695
        %v1640 = vpow.pop %v1639
        %v1641 = vmul.f32 %v1634, 1.442695
        %v1642 = vpow.pop %v1641
        %v1643 = vsel %vm653, %v1636, 0.0
        %1644 = vadd.xlane.f32.xlu0 %v1643
        %v1645 = vpop.xlane.xlu0 %1644
        %v1646 = vsel %vm653, %v1638, 0.0
        %1647 = vadd.xlane.f32.xlu0 %v1646
        %v1648 = vpop.xlane.xlu0 %1647
        %v1649 = vsel %vm653, %v1640, 0.0
        %1650 = vadd.xlane.f32.xlu0 %v1649
        %v1651 = vpop.xlane.xlu0 %1650
        %v1652 = vsel %vm653, %v1642, 0.0
        %1653 = vadd.xlane.f32.xlu0 %v1652
        %v1654 = vpop.xlane.xlu0 %1653
        %v1655 = vrcp.pop %v1645
        %v1656 = vmul.f32 %v1636, %v1655
        %v1657 = vrcp.pop %v1648
        %v1658 = vmul.f32 %v1638, %v1657
        %v1659 = vrcp.pop %v1651
        %v1660 = vmul.f32 %v1640, %v1659
        %v1661 = vrcp.pop %v1654
        %v1662 = vmul.f32 %v1642, %v1661
        %1663 = vrot.lane.b32.xlu0 %v628, 56
        %v1664 = vpop.permute.xlu0 %1663
        %v1667 = vsel %vm653, %v1656, 0
        %1669 = vmatprep.subr.mxu0 0.0
        %1670 = vmatpush1.msra.mxu0 %v1664
        %1671 = vmatprep.subr.mxu0 0.0
        %1672 = vmatpush1.msra.mxu0 0.0
        %1673 = vmatprep.subr.mxu0 0.0
        %1674 = vmatpush1.msra.mxu0 0.0
        %1675 = vmatprep.subr.mxu0 0.0
        %1676 = vmatpush1.msra.mxu0 0.0
        %1677 = vmatprep.subr.mxu0 0.0
        %1678 = vmatpush1.msra.mxu0 0.0
        %1679 = vmatprep.subr.mxu0 0.0
        %1680 = vmatpush1.msra.mxu0 0.0
        %1681 = vmatprep.subr.mxu0 0.0
        %1682 = vmatpush1.msra.mxu0 0.0
        %1683 = vmatprep.subr.mxu0 0.0
        %1684 = vmatpush1.msra.mxu0 0.0
        %1685 = vmatprep.subr.mxu0 0.0
        %1686 = vmatpush1.msra.mxu0 0.0
        %1687 = vmatprep.subr.mxu0 0.0
        %1688 = vmatpush1.msra.mxu0 0.0
        %1689 = vmatprep.subr.mxu0 0.0
        %1690 = vmatpush1.msra.mxu0 0.0
        %1691 = vmatprep.subr.mxu0 0.0
        %1692 = vmatpush1.msra.mxu0 0.0
        %1693 = vmatprep.subr.mxu0 0.0
        %1694 = vmatpush1.msra.mxu0 0.0
        %1695 = vmatprep.subr.mxu0 0.0
        %1696 = vmatpush1.msra.mxu0 0.0
        %1697 = vmatprep.subr.mxu0 0.0
        %1698 = vmatpush1.msra.mxu0 0.0
        %1699 = vmatprep.subr.mxu0 0.0
        %1700 = vmatpush1.msra.mxu0 0.0
        %1701 = vmatprep.subr.mxu0 0.0
        %1702 = vmatpush1.msra.mxu0 0.0
        %1703 = vmatprep.subr.mxu0 0.0
        %1704 = vmatpush1.msra.mxu0 0.0
        %1705 = vmatprep.subr.mxu0 0.0
        %1706 = vmatpush1.msra.mxu0 0.0
        %1707 = vmatprep.subr.mxu0 0.0
        %1708 = vmatpush1.msra.mxu0 0.0
        %1709 = vmatprep.subr.mxu0 0.0
        %1710 = vmatpush1.msra.mxu0 0.0
        %1711 = vmatprep.subr.mxu0 0.0
        %1712 = vmatpush1.msra.mxu0 0.0
        %1713 = vmatprep.subr.mxu0 0.0
        %1714 = vmatpush1.msra.mxu0 0.0
        %1715 = vmatprep.subr.mxu0 0.0
        %1716 = vmatpush1.msra.mxu0 0.0
        %1717 = vmatprep.subr.mxu0 0.0
        %1718 = vmatpush1.msra.mxu0 0.0
        %1719 = vmatprep.subr.mxu0 0.0
        %1720 = vmatpush1.msra.mxu0 0.0
        %1721 = vmatprep.subr.mxu0 0.0
        %1722 = vmatpush1.msra.mxu0 0.0
        %1723 = vmatprep.subr.mxu0 0.0
        %1724 = vmatpush1.msra.mxu0 0.0
        %1725 = vmatprep.subr.mxu0 0.0
        %1726 = vmatpush1.msra.mxu0 0.0
        %1727 = vmatprep.subr.mxu0 0.0
        %1728 = vmatpush1.msra.mxu0 0.0
        %1729 = vmatprep.subr.mxu0 0.0
        %1730 = vmatpush1.msra.mxu0 0.0
        %1731 = vmatprep.subr.mxu0 0.0
        %1732 = vmatpush1.msra.mxu0 0.0
        %1733 = vmatprep.mubr.f32.mxu0 0.0
        %1734 = vmatmul.mubr.f32.gmra.mrb[0].mxu0 %v1667
        %v1735 = vpop.f32.mrb[0].mxu0
        %v1736 = vadd.f32 0.0, %v1735
        %v1737 = vpop.f32.mrb[0].mxu0
        %1738 = vdwg.mxu0
        %1739 = vrot.lane.b32.xlu0 %v633, 56
        %v1740 = vpop.permute.xlu0 %1739
        %v1743 = vsel %vm653, %v1658, 0
        %1745 = vmatprep.subr.mxu0 0.0
        %1746 = vmatpush1.msra.mxu0 %v1740
        %1747 = vmatprep.subr.mxu0 0.0
        %1748 = vmatpush1.msra.mxu0 0.0
        %1749 = vmatprep.subr.mxu0 0.0
        %1750 = vmatpush1.msra.mxu0 0.0
        %1751 = vmatprep.subr.mxu0 0.0
        %1752 = vmatpush1.msra.mxu0 0.0
        %1753 = vmatprep.subr.mxu0 0.0
        %1754 = vmatpush1.msra.mxu0 0.0
        %1755 = vmatprep.subr.mxu0 0.0
        %1756 = vmatpush1.msra.mxu0 0.0
        %1757 = vmatprep.subr.mxu0 0.0
        %1758 = vmatpush1.msra.mxu0 0.0
        %1759 = vmatprep.subr.mxu0 0.0
        %1760 = vmatpush1.msra.mxu0 0.0
        %1761 = vmatprep.subr.mxu0 0.0
        %1762 = vmatpush1.msra.mxu0 0.0
        %1763 = vmatprep.subr.mxu0 0.0
        %1764 = vmatpush1.msra.mxu0 0.0
        %1765 = vmatprep.subr.mxu0 0.0
        %1766 = vmatpush1.msra.mxu0 0.0
        %1767 = vmatprep.subr.mxu0 0.0
        %1768 = vmatpush1.msra.mxu0 0.0
        %1769 = vmatprep.subr.mxu0 0.0
        %1770 = vmatpush1.msra.mxu0 0.0
        %1771 = vmatprep.subr.mxu0 0.0
        %1772 = vmatpush1.msra.mxu0 0.0
        %1773 = vmatprep.subr.mxu0 0.0
        %1774 = vmatpush1.msra.mxu0 0.0
        %1775 = vmatprep.subr.mxu0 0.0
        %1776 = vmatpush1.msra.mxu0 0.0
        %1777 = vmatprep.subr.mxu0 0.0
        %1778 = vmatpush1.msra.mxu0 0.0
        %1779 = vmatprep.subr.mxu0 0.0
        %1780 = vmatpush1.msra.mxu0 0.0
        %1781 = vmatprep.subr.mxu0 0.0
        %1782 = vmatpush1.msra.mxu0 0.0
        %1783 = vmatprep.subr.mxu0 0.0
        %1784 = vmatpush1.msra.mxu0 0.0
        %1785 = vmatprep.subr.mxu0 0.0
        %1786 = vmatpush1.msra.mxu0 0.0
        %1787 = vmatprep.subr.mxu0 0.0
        %1788 = vmatpush1.msra.mxu0 0.0
        %1789 = vmatprep.subr.mxu0 0.0
        %1790 = vmatpush1.msra.mxu0 0.0
        %1791 = vmatprep.subr.mxu0 0.0
        %1792 = vmatpush1.msra.mxu0 0.0
        %1793 = vmatprep.subr.mxu0 0.0
        %1794 = vmatpush1.msra.mxu0 0.0
        %1795 = vmatprep.subr.mxu0 0.0
        %1796 = vmatpush1.msra.mxu0 0.0
        %1797 = vmatprep.subr.mxu0 0.0
        %1798 = vmatpush1.msra.mxu0 0.0
        %1799 = vmatprep.subr.mxu0 0.0
        %1800 = vmatpush1.msra.mxu0 0.0
        %1801 = vmatprep.subr.mxu0 0.0
        %1802 = vmatpush1.msra.mxu0 0.0
        %1803 = vmatprep.subr.mxu0 0.0
        %1804 = vmatpush1.msra.mxu0 0.0
        %1805 = vmatprep.subr.mxu0 0.0
        %1806 = vmatpush1.msra.mxu0 0.0
        %1807 = vmatprep.subr.mxu0 0.0
        %1808 = vmatpush1.msra.mxu0 0.0
        %1809 = vmatprep.mubr.f32.mxu0 0.0
        %1810 = vmatmul.mubr.f32.gmra.mrb[0].mxu0 %v1743
        %v1811 = vpop.f32.mrb[0].mxu0
        %v1812 = vadd.f32 0.0, %v1811
        %v1813 = vpop.f32.mrb[0].mxu0
        %1814 = vdwg.mxu0
        %1815 = vrot.lane.b32.xlu0 %v638, 56
        %v1816 = vpop.permute.xlu0 %1815
        %v1819 = vsel %vm653, %v1660, 0
        %1821 = vmatprep.subr.mxu0 0.0
        %1822 = vmatpush1.msra.mxu0 %v1816
        %1823 = vmatprep.subr.mxu0 0.0
        %1824 = vmatpush1.msra.mxu0 0.0
        %1825 = vmatprep.subr.mxu0 0.0
        %1826 = vmatpush1.msra.mxu0 0.0
        %1827 = vmatprep.subr.mxu0 0.0
        %1828 = vmatpush1.msra.mxu0 0.0
        %1829 = vmatprep.subr.mxu0 0.0
        %1830 = vmatpush1.msra.mxu0 0.0
        %1831 = vmatprep.subr.mxu0 0.0
        %1832 = vmatpush1.msra.mxu0 0.0
        %1833 = vmatprep.subr.mxu0 0.0
        %1834 = vmatpush1.msra.mxu0 0.0
        %1835 = vmatprep.subr.mxu0 0.0
        %1836 = vmatpush1.msra.mxu0 0.0
        %1837 = vmatprep.subr.mxu0 0.0
        %1838 = vmatpush1.msra.mxu0 0.0
        %1839 = vmatprep.subr.mxu0 0.0
        %1840 = vmatpush1.msra.mxu0 0.0
        %1841 = vmatprep.subr.mxu0 0.0
        %1842 = vmatpush1.msra.mxu0 0.0
        %1843 = vmatprep.subr.mxu0 0.0
        %1844 = vmatpush1.msra.mxu0 0.0
        %1845 = vmatprep.subr.mxu0 0.0
        %1846 = vmatpush1.msra.mxu0 0.0
        %1847 = vmatprep.subr.mxu0 0.0
        %1848 = vmatpush1.msra.mxu0 0.0
        %1849 = vmatprep.subr.mxu0 0.0
        %1850 = vmatpush1.msra.mxu0 0.0
        %1851 = vmatprep.subr.mxu0 0.0
        %1852 = vmatpush1.msra.mxu0 0.0
        %1853 = vmatprep.subr.mxu0 0.0
        %1854 = vmatpush1.msra.mxu0 0.0
        %1855 = vmatprep.subr.mxu0 0.0
        %1856 = vmatpush1.msra.mxu0 0.0
        %1857 = vmatprep.subr.mxu0 0.0
        %1858 = vmatpush1.msra.mxu0 0.0
        %1859 = vmatprep.subr.mxu0 0.0
        %1860 = vmatpush1.msra.mxu0 0.0
        %1861 = vmatprep.subr.mxu0 0.0
        %1862 = vmatpush1.msra.mxu0 0.0
        %1863 = vmatprep.subr.mxu0 0.0
        %1864 = vmatpush1.msra.mxu0 0.0
        %1865 = vmatprep.subr.mxu0 0.0
        %1866 = vmatpush1.msra.mxu0 0.0
        %1867 = vmatprep.subr.mxu0 0.0
        %1868 = vmatpush1.msra.mxu0 0.0
        %1869 = vmatprep.subr.mxu0 0.0
        %1870 = vmatpush1.msra.mxu0 0.0
        %1871 = vmatprep.subr.mxu0 0.0
        %1872 = vmatpush1.msra.mxu0 0.0
        %1873 = vmatprep.subr.mxu0 0.0
        %1874 = vmatpush1.msra.mxu0 0.0
        %1875 = vmatprep.subr.mxu0 0.0
        %1876 = vmatpush1.msra.mxu0 0.0
        %1877 = vmatprep.subr.mxu0 0.0
        %1878 = vmatpush1.msra.mxu0 0.0
        %1879 = vmatprep.subr.mxu0 0.0
        %1880 = vmatpush1.msra.mxu0 0.0
        %1881 = vmatprep.subr.mxu0 0.0
        %1882 = vmatpush1.msra.mxu0 0.0
        %1883 = vmatprep.subr.mxu0 0.0
        %1884 = vmatpush1.msra.mxu0 0.0
        %1885 = vmatprep.mubr.f32.mxu0 0.0
        %1886 = vmatmul.mubr.f32.gmra.mrb[0].mxu0 %v1819
        %v1887 = vpop.f32.mrb[0].mxu0
        %v1888 = vadd.f32 0.0, %v1887
        %v1889 = vpop.f32.mrb[0].mxu0
        %1890 = vdwg.mxu0
        %1891 = vrot.lane.b32.xlu0 %v643, 56
        %v1892 = vpop.permute.xlu0 %1891
        %v1895 = vsel %vm653, %v1662, 0
        %1897 = vmatprep.subr.mxu0 0.0
        %1898 = vmatpush1.msra.mxu0 %v1892
        %1899 = vmatprep.subr.mxu0 0.0
        %1900 = vmatpush1.msra.mxu0 0.0
        %1901 = vmatprep.subr.mxu0 0.0
        %1902 = vmatpush1.msra.mxu0 0.0
        %1903 = vmatprep.subr.mxu0 0.0
        %1904 = vmatpush1.msra.mxu0 0.0
        %1905 = vmatprep.subr.mxu0 0.0
        %1906 = vmatpush1.msra.mxu0 0.0
        %1907 = vmatprep.subr.mxu0 0.0
        %1908 = vmatpush1.msra.mxu0 0.0
        %1909 = vmatprep.subr.mxu0 0.0
        %1910 = vmatpush1.msra.mxu0 0.0
        %1911 = vmatprep.subr.mxu0 0.0
        %1912 = vmatpush1.msra.mxu0 0.0
        %1913 = vmatprep.subr.mxu0 0.0
        %1914 = vmatpush1.msra.mxu0 0.0
        %1915 = vmatprep.subr.mxu0 0.0
        %1916 = vmatpush1.msra.mxu0 0.0
        %1917 = vmatprep.subr.mxu0 0.0
        %1918 = vmatpush1.msra.mxu0 0.0
        %1919 = vmatprep.subr.mxu0 0.0
        %1920 = vmatpush1.msra.mxu0 0.0
        %1921 = vmatprep.subr.mxu0 0.0
        %1922 = vmatpush1.msra.mxu0 0.0
        %1923 = vmatprep.subr.mxu0 0.0
        %1924 = vmatpush1.msra.mxu0 0.0
        %1925 = vmatprep.subr.mxu0 0.0
        %1926 = vmatpush1.msra.mxu0 0.0
        %1927 = vmatprep.subr.mxu0 0.0
        %1928 = vmatpush1.msra.mxu0 0.0
        %1929 = vmatprep.subr.mxu0 0.0
        %1930 = vmatpush1.msra.mxu0 0.0
        %1931 = vmatprep.subr.mxu0 0.0
        %1932 = vmatpush1.msra.mxu0 0.0
        %1933 = vmatprep.subr.mxu0 0.0
        %1934 = vmatpush1.msra.mxu0 0.0
        %1935 = vmatprep.subr.mxu0 0.0
        %1936 = vmatpush1.msra.mxu0 0.0
        %1937 = vmatprep.subr.mxu0 0.0
        %1938 = vmatpush1.msra.mxu0 0.0
        %1939 = vmatprep.subr.mxu0 0.0
        %1940 = vmatpush1.msra.mxu0 0.0
        %1941 = vmatprep.subr.mxu0 0.0
        %1942 = vmatpush1.msra.mxu0 0.0
        %1943 = vmatprep.subr.mxu0 0.0
        %1944 = vmatpush1.msra.mxu0 0.0
        %1945 = vmatprep.subr.mxu0 0.0
        %1946 = vmatpush1.msra.mxu0 0.0
        %1947 = vmatprep.subr.mxu0 0.0
        %1948 = vmatpush1.msra.mxu0 0.0
        %1949 = vmatprep.subr.mxu0 0.0
        %1950 = vmatpush1.msra.mxu0 0.0
        %1951 = vmatprep.subr.mxu0 0.0
        %1952 = vmatpush1.msra.mxu0 0.0
        %1953 = vmatprep.subr.mxu0 0.0
        %1954 = vmatpush1.msra.mxu0 0.0
        %1955 = vmatprep.subr.mxu0 0.0
        %1956 = vmatpush1.msra.mxu0 0.0
        %1957 = vmatprep.subr.mxu0 0.0
        %1958 = vmatpush1.msra.mxu0 0.0
        %1959 = vmatprep.subr.mxu0 0.0
        %1960 = vmatpush1.msra.mxu0 0.0
        %1961 = vmatprep.mubr.f32.mxu0 0.0
        %1962 = vmatmul.mubr.f32.gmra.mrb[0].mxu0 %v1895
        %v1963 = vpop.f32.mrb[0].mxu0
        %v1964 = vadd.f32 0.0, %v1963
        %v1965 = vpop.f32.mrb[0].mxu0
        %1966 = vdwg.mxu0
        %1967 = vrot.lane.b32.xlu0 %v628, 112
        %v1968 = vpop.permute.xlu0 %1967
        %1969 = vrot.lane.b32.xlu0 %v628, 80
        %v1970 = vpop.permute.xlu0 %1969
        %v1971 = vsel %vm653, %v1968, 0
        %v1973 = vsel %vm653, %v1970, 0
        %1975 = vmatprep.subr.mxu0 0.0
        %1976 = vmatpush1.xpose.msra.mxu0 %v1973
        %1977 = vmatprep.subr.mxu0 0.0
        %1978 = vmatpush1.xpose.msra.mxu0 0.0
        %1979 = vmatprep.subr.mxu0 0.0
        %1980 = vmatpush1.xpose.msra.mxu0 0.0
        %1981 = vmatprep.subr.mxu0 0.0
        %1982 = vmatpush1.xpose.msra.mxu0 0.0
        %1983 = vmatprep.subr.mxu0 0.0
        %1984 = vmatpush1.xpose.msra.mxu0 0.0
        %1985 = vmatprep.subr.mxu0 0.0
        %1986 = vmatpush1.xpose.msra.mxu0 0.0
        %1987 = vmatprep.subr.mxu0 0.0
        %1988 = vmatpush1.xpose.msra.mxu0 0.0
        %1989 = vmatprep.subr.mxu0 0.0
        %1990 = vmatpush1.xpose.msra.mxu0 0.0
        %1991 = vmatprep.subr.mxu0 0.0
        %1992 = vmatpush1.xpose.msra.mxu0 0.0
        %1993 = vmatprep.subr.mxu0 0.0
        %1994 = vmatpush1.xpose.msra.mxu0 0.0
        %1995 = vmatprep.subr.mxu0 0.0
        %1996 = vmatpush1.xpose.msra.mxu0 0.0
        %1997 = vmatprep.subr.mxu0 0.0
        %1998 = vmatpush1.xpose.msra.mxu0 0.0
        %1999 = vmatprep.subr.mxu0 0.0
        %2000 = vmatpush1.xpose.msra.mxu0 0.0
        %2001 = vmatprep.subr.mxu0 0.0
        %2002 = vmatpush1.xpose.msra.mxu0 0.0
        %2003 = vmatprep.subr.mxu0 0.0
        %2004 = vmatpush1.xpose.msra.mxu0 0.0
        %2005 = vmatprep.subr.mxu0 0.0
        %2006 = vmatpush1.xpose.msra.mxu0 0.0
        %2007 = vmatprep.subr.mxu0 0.0
        %2008 = vmatpush1.xpose.msra.mxu0 0.0
        %2009 = vmatprep.subr.mxu0 0.0
        %2010 = vmatpush1.xpose.msra.mxu0 0.0
        %2011 = vmatprep.subr.mxu0 0.0
        %2012 = vmatpush1.xpose.msra.mxu0 0.0
        %2013 = vmatprep.subr.mxu0 0.0
        %2014 = vmatpush1.xpose.msra.mxu0 0.0
        %2015 = vmatprep.subr.mxu0 0.0
        %2016 = vmatpush1.xpose.msra.mxu0 0.0
        %2017 = vmatprep.subr.mxu0 0.0
        %2018 = vmatpush1.xpose.msra.mxu0 0.0
        %2019 = vmatprep.subr.mxu0 0.0
        %2020 = vmatpush1.xpose.msra.mxu0 0.0
        %2021 = vmatprep.subr.mxu0 0.0
        %2022 = vmatpush1.xpose.msra.mxu0 0.0
        %2023 = vmatprep.subr.mxu0 0.0
        %2024 = vmatpush1.xpose.msra.mxu0 0.0
        %2025 = vmatprep.subr.mxu0 0.0
        %2026 = vmatpush1.xpose.msra.mxu0 0.0
        %2027 = vmatprep.subr.mxu0 0.0
        %2028 = vmatpush1.xpose.msra.mxu0 0.0
        %2029 = vmatprep.subr.mxu0 0.0
        %2030 = vmatpush1.xpose.msra.mxu0 0.0
        %2031 = vmatprep.subr.mxu0 0.0
        %2032 = vmatpush1.xpose.msra.mxu0 0.0
        %2033 = vmatprep.subr.mxu0 0.0
        %2034 = vmatpush1.xpose.msra.mxu0 0.0
        %2035 = vmatprep.subr.mxu0 0.0
        %2036 = vmatpush1.xpose.msra.mxu0 0.0
        %2037 = vmatprep.subr.mxu0 0.0
        %2038 = vmatpush1.xpose.msra.mxu0 0.0
        %2039 = vmatprep.mubr.f32.mxu0 0.0
        %2040 = vmatmul.mubr.f32.gmra.mrb[0].mxu0 %v1971
        %v2041 = vpop.f32.mrb[0].mxu0
        %v2042 = vadd.f32 %v646, %v2041
        %v2043 = vpop.f32.mrb[0].mxu0
        %2044 = vdwg.mxu0
        %2045 = vrot.lane.b32.xlu0 %v633, 112
        %v2046 = vpop.permute.xlu0 %2045
        %2047 = vrot.lane.b32.xlu0 %v633, 80
        %v2048 = vpop.permute.xlu0 %2047
        %v2049 = vsel %vm653, %v2046, 0
        %v2051 = vsel %vm653, %v2048, 0
        %2053 = vmatprep.subr.mxu0 0.0
        %2054 = vmatpush1.xpose.msra.mxu0 %v2051
        %2055 = vmatprep.subr.mxu0 0.0
        %2056 = vmatpush1.xpose.msra.mxu0 0.0
        %2057 = vmatprep.subr.mxu0 0.0
        %2058 = vmatpush1.xpose.msra.mxu0 0.0
        %2059 = vmatprep.subr.mxu0 0.0
        %2060 = vmatpush1.xpose.msra.mxu0 0.0
        %2061 = vmatprep.subr.mxu0 0.0
        %2062 = vmatpush1.xpose.msra.mxu0 0.0
        %2063 = vmatprep.subr.mxu0 0.0
        %2064 = vmatpush1.xpose.msra.mxu0 0.0
        %2065 = vmatprep.subr.mxu0 0.0
        %2066 = vmatpush1.xpose.msra.mxu0 0.0
        %2067 = vmatprep.subr.mxu0 0.0
        %2068 = vmatpush1.xpose.msra.mxu0 0.0
        %2069 = vmatprep.subr.mxu0 0.0
        %2070 = vmatpush1.xpose.msra.mxu0 0.0
        %2071 = vmatprep.subr.mxu0 0.0
        %2072 = vmatpush1.xpose.msra.mxu0 0.0
        %2073 = vmatprep.subr.mxu0 0.0
        %2074 = vmatpush1.xpose.msra.mxu0 0.0
        %2075 = vmatprep.subr.mxu0 0.0
        %2076 = vmatpush1.xpose.msra.mxu0 0.0
        %2077 = vmatprep.subr.mxu0 0.0
        %2078 = vmatpush1.xpose.msra.mxu0 0.0
        %2079 = vmatprep.subr.mxu0 0.0
        %2080 = vmatpush1.xpose.msra.mxu0 0.0
        %2081 = vmatprep.subr.mxu0 0.0
        %2082 = vmatpush1.xpose.msra.mxu0 0.0
        %2083 = vmatprep.subr.mxu0 0.0
        %2084 = vmatpush1.xpose.msra.mxu0 0.0
        %2085 = vmatprep.subr.mxu0 0.0
        %2086 = vmatpush1.xpose.msra.mxu0 0.0
        %2087 = vmatprep.subr.mxu0 0.0
        %2088 = vmatpush1.xpose.msra.mxu0 0.0
        %2089 = vmatprep.subr.mxu0 0.0
        %2090 = vmatpush1.xpose.msra.mxu0 0.0
        %2091 = vmatprep.subr.mxu0 0.0
        %2092 = vmatpush1.xpose.msra.mxu0 0.0
        %2093 = vmatprep.subr.mxu0 0.0
        %2094 = vmatpush1.xpose.msra.mxu0 0.0
        %2095 = vmatprep.subr.mxu0 0.0
        %2096 = vmatpush1.xpose.msra.mxu0 0.0
        %2097 = vmatprep.subr.mxu0 0.0
        %2098 = vmatpush1.xpose.msra.mxu0 0.0
        %2099 = vmatprep.subr.mxu0 0.0
        %2100 = vmatpush1.xpose.msra.mxu0 0.0
        %2101 = vmatprep.subr.mxu0 0.0
        %2102 = vmatpush1.xpose.msra.mxu0 0.0
        %2103 = vmatprep.subr.mxu0 0.0
        %2104 = vmatpush1.xpose.msra.mxu0 0.0
        %2105 = vmatprep.subr.mxu0 0.0
        %2106 = vmatpush1.xpose.msra.mxu0 0.0
        %2107 = vmatprep.subr.mxu0 0.0
        %2108 = vmatpush1.xpose.msra.mxu0 0.0
        %2109 = vmatprep.subr.mxu0 0.0
        %2110 = vmatpush1.xpose.msra.mxu0 0.0
        %2111 = vmatprep.subr.mxu0 0.0
        %2112 = vmatpush1.xpose.msra.mxu0 0.0
        %2113 = vmatprep.subr.mxu0 0.0
        %2114 = vmatpush1.xpose.msra.mxu0 0.0
        %2115 = vmatprep.subr.mxu0 0.0
        %2116 = vmatpush1.xpose.msra.mxu0 0.0
        %2117 = vmatprep.mubr.f32.mxu0 0.0
        %2118 = vmatmul.mubr.f32.gmra.mrb[0].mxu0 %v2049
        %v2119 = vpop.f32.mrb[0].mxu0
        %v2120 = vadd.f32 %v647, %v2119
        %v2121 = vpop.f32.mrb[0].mxu0
        %2122 = vdwg.mxu0
        %2123 = vrot.lane.b32.xlu0 %v638, 112
        %v2124 = vpop.permute.xlu0 %2123
        %2125 = vrot.lane.b32.xlu0 %v638, 80
        %v2126 = vpop.permute.xlu0 %2125
        %v2127 = vsel %vm653, %v2124, 0
        %v2129 = vsel %vm653, %v2126, 0
        %2131 = vmatprep.subr.mxu0 0.0
        %2132 = vmatpush1.xpose.msra.mxu0 %v2129
        %2133 = vmatprep.subr.mxu0 0.0
        %2134 = vmatpush1.xpose.msra.mxu0 0.0
        %2135 = vmatprep.subr.mxu0 0.0
        %2136 = vmatpush1.xpose.msra.mxu0 0.0
        %2137 = vmatprep.subr.mxu0 0.0
        %2138 = vmatpush1.xpose.msra.mxu0 0.0
        %2139 = vmatprep.subr.mxu0 0.0
        %2140 = vmatpush1.xpose.msra.mxu0 0.0
        %2141 = vmatprep.subr.mxu0 0.0
        %2142 = vmatpush1.xpose.msra.mxu0 0.0
        %2143 = vmatprep.subr.mxu0 0.0
        %2144 = vmatpush1.xpose.msra.mxu0 0.0
        %2145 = vmatprep.subr.mxu0 0.0
        %2146 = vmatpush1.xpose.msra.mxu0 0.0
        %2147 = vmatprep.subr.mxu0 0.0
        %2148 = vmatpush1.xpose.msra.mxu0 0.0
        %2149 = vmatprep.subr.mxu0 0.0
        %2150 = vmatpush1.xpose.msra.mxu0 0.0
        %2151 = vmatprep.subr.mxu0 0.0
        %2152 = vmatpush1.xpose.msra.mxu0 0.0
        %2153 = vmatprep.subr.mxu0 0.0
        %2154 = vmatpush1.xpose.msra.mxu0 0.0
        %2155 = vmatprep.subr.mxu0 0.0
        %2156 = vmatpush1.xpose.msra.mxu0 0.0
        %2157 = vmatprep.subr.mxu0 0.0
        %2158 = vmatpush1.xpose.msra.mxu0 0.0
        %2159 = vmatprep.subr.mxu0 0.0
        %2160 = vmatpush1.xpose.msra.mxu0 0.0
        %2161 = vmatprep.subr.mxu0 0.0
        %2162 = vmatpush1.xpose.msra.mxu0 0.0
        %2163 = vmatprep.subr.mxu0 0.0
        %2164 = vmatpush1.xpose.msra.mxu0 0.0
        %2165 = vmatprep.subr.mxu0 0.0
        %2166 = vmatpush1.xpose.msra.mxu0 0.0
        %2167 = vmatprep.subr.mxu0 0.0
        %2168 = vmatpush1.xpose.msra.mxu0 0.0
        %2169 = vmatprep.subr.mxu0 0.0
        %2170 = vmatpush1.xpose.msra.mxu0 0.0
        %2171 = vmatprep.subr.mxu0 0.0
        %2172 = vmatpush1.xpose.msra.mxu0 0.0
        %2173 = vmatprep.subr.mxu0 0.0
        %2174 = vmatpush1.xpose.msra.mxu0 0.0
        %2175 = vmatprep.subr.mxu0 0.0
        %2176 = vmatpush1.xpose.msra.mxu0 0.0
        %2177 = vmatprep.subr.mxu0 0.0
        %2178 = vmatpush1.xpose.msra.mxu0 0.0
        %2179 = vmatprep.subr.mxu0 0.0
        %2180 = vmatpush1.xpose.msra.mxu0 0.0
        %2181 = vmatprep.subr.mxu0 0.0
        %2182 = vmatpush1.xpose.msra.mxu0 0.0
        %2183 = vmatprep.subr.mxu0 0.0
        %2184 = vmatpush1.xpose.msra.mxu0 0.0
        %2185 = vmatprep.subr.mxu0 0.0
        %2186 = vmatpush1.xpose.msra.mxu0 0.0
        %2187 = vmatprep.subr.mxu0 0.0
        %2188 = vmatpush1.xpose.msra.mxu0 0.0
        %2189 = vmatprep.subr.mxu0 0.0
        %2190 = vmatpush1.xpose.msra.mxu0 0.0
        %2191 = vmatprep.subr.mxu0 0.0
        %2192 = vmatpush1.xpose.msra.mxu0 0.0
        %2193 = vmatprep.subr.mxu0 0.0
        %2194 = vmatpush1.xpose.msra.mxu0 0.0
        %2195 = vmatprep.mubr.f32.mxu0 0.0
        %2196 = vmatmul.mubr.f32.gmra.mrb[0].mxu0 %v2127
        %v2197 = vpop.f32.mrb[0].mxu0
        %v2198 = vadd.f32 %v648, %v2197
        %v2199 = vpop.f32.mrb[0].mxu0
        %2200 = vdwg.mxu0
        %2201 = vrot.lane.b32.xlu0 %v643, 112
        %v2202 = vpop.permute.xlu0 %2201
        %2203 = vrot.lane.b32.xlu0 %v643, 80
        %v2204 = vpop.permute.xlu0 %2203
        %v2205 = vsel %vm653, %v2202, 0
        %v2207 = vsel %vm653, %v2204, 0
        %2209 = vmatprep.subr.mxu0 0.0
        %2210 = vmatpush1.xpose.msra.mxu0 %v2207
        %2211 = vmatprep.subr.mxu0 0.0
        %2212 = vmatpush1.xpose.msra.mxu0 0.0
        %2213 = vmatprep.subr.mxu0 0.0
        %2214 = vmatpush1.xpose.msra.mxu0 0.0
        %2215 = vmatprep.subr.mxu0 0.0
        %2216 = vmatpush1.xpose.msra.mxu0 0.0
        %2217 = vmatprep.subr.mxu0 0.0
        %2218 = vmatpush1.xpose.msra.mxu0 0.0
        %2219 = vmatprep.subr.mxu0 0.0
        %2220 = vmatpush1.xpose.msra.mxu0 0.0
        %2221 = vmatprep.subr.mxu0 0.0
        %2222 = vmatpush1.xpose.msra.mxu0 0.0
        %2223 = vmatprep.subr.mxu0 0.0
        %2224 = vmatpush1.xpose.msra.mxu0 0.0
        %2225 = vmatprep.subr.mxu0 0.0
        %2226 = vmatpush1.xpose.msra.mxu0 0.0
        %2227 = vmatprep.subr.mxu0 0.0
        %2228 = vmatpush1.xpose.msra.mxu0 0.0
        %2229 = vmatprep.subr.mxu0 0.0
        %2230 = vmatpush1.xpose.msra.mxu0 0.0
        %2231 = vmatprep.subr.mxu0 0.0
        %2232 = vmatpush1.xpose.msra.mxu0 0.0
        %2233 = vmatprep.subr.mxu0 0.0
        %2234 = vmatpush1.xpose.msra.mxu0 0.0
        %2235 = vmatprep.subr.mxu0 0.0
        %2236 = vmatpush1.xpose.msra.mxu0 0.0
        %2237 = vmatprep.subr.mxu0 0.0
        %2238 = vmatpush1.xpose.msra.mxu0 0.0
        %2239 = vmatprep.subr.mxu0 0.0
        %2240 = vmatpush1.xpose.msra.mxu0 0.0
        %2241 = vmatprep.subr.mxu0 0.0
        %2242 = vmatpush1.xpose.msra.mxu0 0.0
        %2243 = vmatprep.subr.mxu0 0.0
        %2244 = vmatpush1.xpose.msra.mxu0 0.0
        %2245 = vmatprep.subr.mxu0 0.0
        %2246 = vmatpush1.xpose.msra.mxu0 0.0
        %2247 = vmatprep.subr.mxu0 0.0
        %2248 = vmatpush1.xpose.msra.mxu0 0.0
        %2249 = vmatprep.subr.mxu0 0.0
        %2250 = vmatpush1.xpose.msra.mxu0 0.0
        %2251 = vmatprep.subr.mxu0 0.0
        %2252 = vmatpush1.xpose.msra.mxu0 0.0
        %2253 = vmatprep.subr.mxu0 0.0
        %2254 = vmatpush1.xpose.msra.mxu0 0.0
        %2255 = vmatprep.subr.mxu0 0.0
        %2256 = vmatpush1.xpose.msra.mxu0 0.0
        %2257 = vmatprep.subr.mxu0 0.0
        %2258 = vmatpush1.xpose.msra.mxu0 0.0
        %2259 = vmatprep.subr.mxu0 0.0
        %2260 = vmatpush1.xpose.msra.mxu0 0.0
        %2261 = vmatprep.subr.mxu0 0.0
        %2262 = vmatpush1.xpose.msra.mxu0 0.0
        %2263 = vmatprep.subr.mxu0 0.0
        %2264 = vmatpush1.xpose.msra.mxu0 0.0
        %2265 = vmatprep.subr.mxu0 0.0
        %2266 = vmatpush1.xpose.msra.mxu0 0.0
        %2267 = vmatprep.subr.mxu0 0.0
        %2268 = vmatpush1.xpose.msra.mxu0 0.0
        %2269 = vmatprep.subr.mxu0 0.0
        %2270 = vmatpush1.xpose.msra.mxu0 0.0
        %2271 = vmatprep.subr.mxu0 0.0
        %2272 = vmatpush1.xpose.msra.mxu0 0.0
        %2273 = vmatprep.mubr.f32.mxu0 0.0
        %2274 = vmatmul.mubr.f32.gmra.mrb[0].mxu0 %v2205
        %v2275 = vpop.f32.mrb[0].mxu0
        %v2276 = vadd.f32 %v649, %v2275
        %v2277 = vpop.f32.mrb[0].mxu0
        %2278 = vdwg.mxu0
        %v2279 = vsel %vm653, %v2042, -inf
        %2280 = vmax.xlane.f32.xlu0 %v2279
        %v2281 = vpop.xlane.xlu0 %2280
        %v2282 = vsel %vm653, %v2120, -inf
        %2283 = vmax.xlane.f32.xlu0 %v2282
        %v2284 = vpop.xlane.xlu0 %2283
        %v2285 = vsel %vm653, %v2198, -inf
        %2286 = vmax.xlane.f32.xlu0 %v2285
        %v2287 = vpop.xlane.xlu0 %2286
        %v2288 = vsel %vm653, %v2276, -inf
        %2289 = vmax.xlane.f32.xlu0 %v2288
        %v2290 = vpop.xlane.xlu0 %2289
        %v2291 = vsub.f32 %v2042, %v2281
        %v2292 = vsub.f32 %v2120, %v2284
        %v2293 = vsub.f32 %v2198, %v2287
        %v2294 = vsub.f32 %v2276, %v2290
        %v2295 = vmul.f32 %v2291, 1.442695
        %v2296 = vpow.pop %v2295
        %v2297 = vmul.f32 %v2292, 1.442695
        %v2298 = vpow.pop %v2297
        %v2299 = vmul.f32 %v2293, 1.442695
        %v2300 = vpow.pop %v2299
        %v2301 = vmul.f32 %v2294, 1.442695
        %v2302 = vpow.pop %v2301
        %v2303 = vsel %vm653, %v2296, 0.0
        %2304 = vadd.xlane.f32.xlu0 %v2303
        %v2305 = vpop.xlane.xlu0 %2304
        %v2306 = vsel %vm653, %v2298, 0.0
        %2307 = vadd.xlane.f32.xlu0 %v2306
        %v2308 = vpop.xlane.xlu0 %2307
        %v2309 = vsel %vm653, %v2300, 0.0
        %2310 = vadd.xlane.f32.xlu0 %v2309
        %v2311 = vpop.xlane.xlu0 %2310
        %v2312 = vsel %vm653, %v2302, 0.0
        %2313 = vadd.xlane.f32.xlu0 %v2312
        %v2314 = vpop.xlane.xlu0 %2313
        %v2315 = vrcp.pop %v2305
        %v2316 = vmul.f32 %v2296, %v2315
        %v2317 = vrcp.pop %v2308
        %v2318 = vmul.f32 %v2298, %v2317
        %v2319 = vrcp.pop %v2311
        %v2320 = vmul.f32 %v2300, %v2319
        %v2321 = vrcp.pop %v2314
        %v2322 = vmul.f32 %v2302, %v2321
        %2323 = vrot.lane.b32.xlu0 %v628, 48
        %v2324 = vpop.permute.xlu0 %2323
        %v2327 = vsel %vm653, %v2316, 0
        %2329 = vmatprep.subr.mxu0 0.0
        %2330 = vmatpush1.msra.mxu0 %v2324
        %2331 = vmatprep.subr.mxu0 0.0
        %2332 = vmatpush1.msra.mxu0 0.0
        %2333 = vmatprep.subr.mxu0 0.0
        %2334 = vmatpush1.msra.mxu0 0.0
        %2335 = vmatprep.subr.mxu0 0.0
        %2336 = vmatpush1.msra.mxu0 0.0
        %2337 = vmatprep.subr.mxu0 0.0
        %2338 = vmatpush1.msra.mxu0 0.0
        %2339 = vmatprep.subr.mxu0 0.0
        %2340 = vmatpush1.msra.mxu0 0.0
        %2341 = vmatprep.subr.mxu0 0.0
        %2342 = vmatpush1.msra.mxu0 0.0
        %2343 = vmatprep.subr.mxu0 0.0
        %2344 = vmatpush1.msra.mxu0 0.0
        %2345 = vmatprep.subr.mxu0 0.0
        %2346 = vmatpush1.msra.mxu0 0.0
        %2347 = vmatprep.subr.mxu0 0.0
        %2348 = vmatpush1.msra.mxu0 0.0
        %2349 = vmatprep.subr.mxu0 0.0
        %2350 = vmatpush1.msra.mxu0 0.0
        %2351 = vmatprep.subr.mxu0 0.0
        %2352 = vmatpush1.msra.mxu0 0.0
        %2353 = vmatprep.subr.mxu0 0.0
        %2354 = vmatpush1.msra.mxu0 0.0
        %2355 = vmatprep.subr.mxu0 0.0
        %2356 = vmatpush1.msra.mxu0 0.0
        %2357 = vmatprep.subr.mxu0 0.0
        %2358 = vmatpush1.msra.mxu0 0.0
        %2359 = vmatprep.subr.mxu0 0.0
        %2360 = vmatpush1.msra.mxu0 0.0
        %2361 = vmatprep.subr.mxu0 0.0
        %2362 = vmatpush1.msra.mxu0 0.0
        %2363 = vmatprep.subr.mxu0 0.0
        %2364 = vmatpush1.msra.mxu0 0.0
        %2365 = vmatprep.subr.mxu0 0.0
        %2366 = vmatpush1.msra.mxu0 0.0
        %2367 = vmatprep.subr.mxu0 0.0
        %2368 = vmatpush1.msra.mxu0 0.0
        %2369 = vmatprep.subr.mxu0 0.0
        %2370 = vmatpush1.msra.mxu0 0.0
        %2371 = vmatprep.subr.mxu0 0.0
        %2372 = vmatpush1.msra.mxu0 0.0
        %2373 = vmatprep.subr.mxu0 0.0
        %2374 = vmatpush1.msra.mxu0 0.0
        %2375 = vmatprep.subr.mxu0 0.0
        %2376 = vmatpush1.msra.mxu0 0.0
        %2377 = vmatprep.subr.mxu0 0.0
        %2378 = vmatpush1.msra.mxu0 0.0
        %2379 = vmatprep.subr.mxu0 0.0
        %2380 = vmatpush1.msra.mxu0 0.0
        %2381 = vmatprep.subr.mxu0 0.0
        %2382 = vmatpush1.msra.mxu0 0.0
        %2383 = vmatprep.subr.mxu0 0.0
        %2384 = vmatpush1.msra.mxu0 0.0
        %2385 = vmatprep.subr.mxu0 0.0
        %2386 = vmatpush1.msra.mxu0 0.0
        %2387 = vmatprep.subr.mxu0 0.0
        %2388 = vmatpush1.msra.mxu0 0.0
        %2389 = vmatprep.subr.mxu0 0.0
        %2390 = vmatpush1.msra.mxu0 0.0
        %2391 = vmatprep.subr.mxu0 0.0
        %2392 = vmatpush1.msra.mxu0 0.0
        %2393 = vmatprep.mubr.f32.mxu0 0.0
        %2394 = vmatmul.mubr.f32.gmra.mrb[0].mxu0 %v2327
        %v2395 = vpop.f32.mrb[0].mxu0
        %v2396 = vadd.f32 0.0, %v2395
        %v2397 = vpop.f32.mrb[0].mxu0
        %2398 = vdwg.mxu0
        %2399 = vrot.lane.b32.xlu0 %v633, 48
        %v2400 = vpop.permute.xlu0 %2399
        %v2403 = vsel %vm653, %v2318, 0
        %2405 = vmatprep.subr.mxu0 0.0
        %2406 = vmatpush1.msra.mxu0 %v2400
        %2407 = vmatprep.subr.mxu0 0.0
        %2408 = vmatpush1.msra.mxu0 0.0
        %2409 = vmatprep.subr.mxu0 0.0
        %2410 = vmatpush1.msra.mxu0 0.0
        %2411 = vmatprep.subr.mxu0 0.0
        %2412 = vmatpush1.msra.mxu0 0.0
        %2413 = vmatprep.subr.mxu0 0.0
        %2414 = vmatpush1.msra.mxu0 0.0
        %2415 = vmatprep.subr.mxu0 0.0
        %2416 = vmatpush1.msra.mxu0 0.0
        %2417 = vmatprep.subr.mxu0 0.0
        %2418 = vmatpush1.msra.mxu0 0.0
        %2419 = vmatprep.subr.mxu0 0.0
        %2420 = vmatpush1.msra.mxu0 0.0
        %2421 = vmatprep.subr.mxu0 0.0
        %2422 = vmatpush1.msra.mxu0 0.0
        %2423 = vmatprep.subr.mxu0 0.0
        %2424 = vmatpush1.msra.mxu0 0.0
        %2425 = vmatprep.subr.mxu0 0.0
        %2426 = vmatpush1.msra.mxu0 0.0
        %2427 = vmatprep.subr.mxu0 0.0
        %2428 = vmatpush1.msra.mxu0 0.0
        %2429 = vmatprep.subr.mxu0 0.0
        %2430 = vmatpush1.msra.mxu0 0.0
        %2431 = vmatprep.subr.mxu0 0.0
        %2432 = vmatpush1.msra.mxu0 0.0
        %2433 = vmatprep.subr.mxu0 0.0
        %2434 = vmatpush1.msra.mxu0 0.0
        %2435 = vmatprep.subr.mxu0 0.0
        %2436 = vmatpush1.msra.mxu0 0.0
        %2437 = vmatprep.subr.mxu0 0.0
        %2438 = vmatpush1.msra.mxu0 0.0
        %2439 = vmatprep.subr.mxu0 0.0
        %2440 = vmatpush1.msra.mxu0 0.0
        %2441 = vmatprep.subr.mxu0 0.0
        %2442 = vmatpush1.msra.mxu0 0.0
        %2443 = vmatprep.subr.mxu0 0.0
        %2444 = vmatpush1.msra.mxu0 0.0
        %2445 = vmatprep.subr.mxu0 0.0
        %2446 = vmatpush1.msra.mxu0 0.0
        %2447 = vmatprep.subr.mxu0 0.0
        %2448 = vmatpush1.msra.mxu0 0.0
        %2449 = vmatprep.subr.mxu0 0.0
        %2450 = vmatpush1.msra.mxu0 0.0
        %2451 = vmatprep.subr.mxu0 0.0
        %2452 = vmatpush1.msra.mxu0 0.0
        %2453 = vmatprep.subr.mxu0 0.0
        %2454 = vmatpush1.msra.mxu0 0.0
        %2455 = vmatprep.subr.mxu0 0.0
        %2456 = vmatpush1.msra.mxu0 0.0
        %2457 = vmatprep.subr.mxu0 0.0
        %2458 = vmatpush1.msra.mxu0 0.0
        %2459 = vmatprep.subr.mxu0 0.0
        %2460 = vmatpush1.msra.mxu0 0.0
        %2461 = vmatprep.subr.mxu0 0.0
        %2462 = vmatpush1.msra.mxu0 0.0
        %2463 = vmatprep.subr.mxu0 0.0
        %2464 = vmatpush1.msra.mxu0 0.0
        %2465 = vmatprep.subr.mxu0 0.0
        %2466 = vmatpush1.msra.mxu0 0.0
        %2467 = vmatprep.subr.mxu0 0.0
        %2468 = vmatpush1.msra.mxu0 0.0
        %2469 = vmatprep.mubr.f32.mxu0 0.0
        %2470 = vmatmul.mubr.f32.gmra.mrb[0].mxu0 %v2403
        %v2471 = vpop.f32.mrb[0].mxu0
        %v2472 = vadd.f32 0.0, %v2471
        %v2473 = vpop.f32.mrb[0].mxu0
        %2474 = vdwg.mxu0
        %2475 = vrot.lane.b32.xlu0 %v638, 48
        %v2476 = vpop.permute.xlu0 %2475
        %v2479 = vsel %vm653, %v2320, 0
        %2481 = vmatprep.subr.mxu0 0.0
        %2482 = vmatpush1.msra.mxu0 %v2476
        %2483 = vmatprep.subr.mxu0 0.0
        %2484 = vmatpush1.msra.mxu0 0.0
        %2485 = vmatprep.subr.mxu0 0.0
        %2486 = vmatpush1.msra.mxu0 0.0
        %2487 = vmatprep.subr.mxu0 0.0
        %2488 = vmatpush1.msra.mxu0 0.0
        %2489 = vmatprep.subr.mxu0 0.0
        %2490 = vmatpush1.msra.mxu0 0.0
        %2491 = vmatprep.subr.mxu0 0.0
        %2492 = vmatpush1.msra.mxu0 0.0
        %2493 = vmatprep.subr.mxu0 0.0
        %2494 = vmatpush1.msra.mxu0 0.0
        %2495 = vmatprep.subr.mxu0 0.0
        %2496 = vmatpush1.msra.mxu0 0.0
        %2497 = vmatprep.subr.mxu0 0.0
        %2498 = vmatpush1.msra.mxu0 0.0
        %2499 = vmatprep.subr.mxu0 0.0
        %2500 = vmatpush1.msra.mxu0 0.0
        %2501 = vmatprep.subr.mxu0 0.0
        %2502 = vmatpush1.msra.mxu0 0.0
        %2503 = vmatprep.subr.mxu0 0.0
        %2504 = vmatpush1.msra.mxu0 0.0
        %2505 = vmatprep.subr.mxu0 0.0
        %2506 = vmatpush1.msra.mxu0 0.0
        %2507 = vmatprep.subr.mxu0 0.0
        %2508 = vmatpush1.msra.mxu0 0.0
        %2509 = vmatprep.subr.mxu0 0.0
        %2510 = vmatpush1.msra.mxu0 0.0
        %2511 = vmatprep.subr.mxu0 0.0
        %2512 = vmatpush1.msra.mxu0 0.0
        %2513 = vmatprep.subr.mxu0 0.0
        %2514 = vmatpush1.msra.mxu0 0.0
        %2515 = vmatprep.subr.mxu0 0.0
        %2516 = vmatpush1.msra.mxu0 0.0
        %2517 = vmatprep.subr.mxu0 0.0
        %2518 = vmatpush1.msra.mxu0 0.0
        %2519 = vmatprep.subr.mxu0 0.0
        %2520 = vmatpush1.msra.mxu0 0.0
        %2521 = vmatprep.subr.mxu0 0.0
        %2522 = vmatpush1.msra.mxu0 0.0
        %2523 = vmatprep.subr.mxu0 0.0
        %2524 = vmatpush1.msra.mxu0 0.0
        %2525 = vmatprep.subr.mxu0 0.0
        %2526 = vmatpush1.msra.mxu0 0.0
        %2527 = vmatprep.subr.mxu0 0.0
        %2528 = vmatpush1.msra.mxu0 0.0
        %2529 = vmatprep.subr.mxu0 0.0
        %2530 = vmatpush1.msra.mxu0 0.0
        %2531 = vmatprep.subr.mxu0 0.0
        %2532 = vmatpush1.msra.mxu0 0.0
        %2533 = vmatprep.subr.mxu0 0.0
        %2534 = vmatpush1.msra.mxu0 0.0
        %2535 = vmatprep.subr.mxu0 0.0
        %2536 = vmatpush1.msra.mxu0 0.0
        %2537 = vmatprep.subr.mxu0 0.0
        %2538 = vmatpush1.msra.mxu0 0.0
        %2539 = vmatprep.subr.mxu0 0.0
        %2540 = vmatpush1.msra.mxu0 0.0
        %2541 = vmatprep.subr.mxu0 0.0
        %2542 = vmatpush1.msra.mxu0 0.0
        %2543 = vmatprep.subr.mxu0 0.0
        %2544 = vmatpush1.msra.mxu0 0.0
        %2545 = vmatprep.mubr.f32.mxu0 0.0
        %2546 = vmatmul.mubr.f32.gmra.mrb[0].mxu0 %v2479
        %v2547 = vpop.f32.mrb[0].mxu0
        %v2548 = vadd.f32 0.0, %v2547
        %v2549 = vpop.f32.mrb[0].mxu0
        %2550 = vdwg.mxu0
        %2551 = vrot.lane.b32.xlu0 %v643, 48
        %v2552 = vpop.permute.xlu0 %2551
        %v2555 = vsel %vm653, %v2322, 0
        %2557 = vmatprep.subr.mxu0 0.0
        %2558 = vmatpush1.msra.mxu0 %v2552
        %2559 = vmatprep.subr.mxu0 0.0
        %2560 = vmatpush1.msra.mxu0 0.0
        %2561 = vmatprep.subr.mxu0 0.0
        %2562 = vmatpush1.msra.mxu0 0.0
        %2563 = vmatprep.subr.mxu0 0.0
        %2564 = vmatpush1.msra.mxu0 0.0
        %2565 = vmatprep.subr.mxu0 0.0
        %2566 = vmatpush1.msra.mxu0 0.0
        %2567 = vmatprep.subr.mxu0 0.0
        %2568 = vmatpush1.msra.mxu0 0.0
        %2569 = vmatprep.subr.mxu0 0.0
        %2570 = vmatpush1.msra.mxu0 0.0
        %2571 = vmatprep.subr.mxu0 0.0
        %2572 = vmatpush1.msra.mxu0 0.0
        %2573 = vmatprep.subr.mxu0 0.0
        %2574 = vmatpush1.msra.mxu0 0.0
        %2575 = vmatprep.subr.mxu0 0.0
        %2576 = vmatpush1.msra.mxu0 0.0
        %2577 = vmatprep.subr.mxu0 0.0
        %2578 = vmatpush1.msra.mxu0 0.0
        %2579 = vmatprep.subr.mxu0 0.0
        %2580 = vmatpush1.msra.mxu0 0.0
        %2581 = vmatprep.subr.mxu0 0.0
        %2582 = vmatpush1.msra.mxu0 0.0
        %2583 = vmatprep.subr.mxu0 0.0
        %2584 = vmatpush1.msra.mxu0 0.0
        %2585 = vmatprep.subr.mxu0 0.0
        %2586 = vmatpush1.msra.mxu0 0.0
        %2587 = vmatprep.subr.mxu0 0.0
        %2588 = vmatpush1.msra.mxu0 0.0
        %2589 = vmatprep.subr.mxu0 0.0
        %2590 = vmatpush1.msra.mxu0 0.0
        %2591 = vmatprep.subr.mxu0 0.0
        %2592 = vmatpush1.msra.mxu0 0.0
        %2593 = vmatprep.subr.mxu0 0.0
        %2594 = vmatpush1.msra.mxu0 0.0
        %2595 = vmatprep.subr.mxu0 0.0
        %2596 = vmatpush1.msra.mxu0 0.0
        %2597 = vmatprep.subr.mxu0 0.0
        %2598 = vmatpush1.msra.mxu0 0.0
        %2599 = vmatprep.subr.mxu0 0.0
        %2600 = vmatpush1.msra.mxu0 0.0
        %2601 = vmatprep.subr.mxu0 0.0
        %2602 = vmatpush1.msra.mxu0 0.0
        %2603 = vmatprep.subr.mxu0 0.0
        %2604 = vmatpush1.msra.mxu0 0.0
        %2605 = vmatprep.subr.mxu0 0.0
        %2606 = vmatpush1.msra.mxu0 0.0
        %2607 = vmatprep.subr.mxu0 0.0
        %2608 = vmatpush1.msra.mxu0 0.0
        %2609 = vmatprep.subr.mxu0 0.0
        %2610 = vmatpush1.msra.mxu0 0.0
        %2611 = vmatprep.subr.mxu0 0.0
        %2612 = vmatpush1.msra.mxu0 0.0
        %2613 = vmatprep.subr.mxu0 0.0
        %2614 = vmatpush1.msra.mxu0 0.0
        %2615 = vmatprep.subr.mxu0 0.0
        %2616 = vmatpush1.msra.mxu0 0.0
        %2617 = vmatprep.subr.mxu0 0.0
        %2618 = vmatpush1.msra.mxu0 0.0
        %2619 = vmatprep.subr.mxu0 0.0
        %2620 = vmatpush1.msra.mxu0 0.0
        %2621 = vmatprep.mubr.f32.mxu0 0.0
        %2622 = vmatmul.mubr.f32.gmra.mrb[0].mxu0 %v2555
        %v2623 = vpop.f32.mrb[0].mxu0
        %v2624 = vadd.f32 0.0, %v2623
        %v2625 = vpop.f32.mrb[0].mxu0
        %2626 = vdwg.mxu0
        %2627 = vrot.lane.b32.xlu0 %v628, 104
        %v2628 = vpop.permute.xlu0 %2627
        %2629 = vrot.lane.b32.xlu0 %v628, 72
        %v2630 = vpop.permute.xlu0 %2629
        %v2631 = vsel %vm653, %v2628, 0
        %v2633 = vsel %vm653, %v2630, 0
        %2635 = vmatprep.subr.mxu0 0.0
        %2636 = vmatpush1.xpose.msra.mxu0 %v2633
        %2637 = vmatprep.subr.mxu0 0.0
        %2638 = vmatpush1.xpose.msra.mxu0 0.0
        %2639 = vmatprep.subr.mxu0 0.0
        %2640 = vmatpush1.xpose.msra.mxu0 0.0
        %2641 = vmatprep.subr.mxu0 0.0
        %2642 = vmatpush1.xpose.msra.mxu0 0.0
        %2643 = vmatprep.subr.mxu0 0.0
        %2644 = vmatpush1.xpose.msra.mxu0 0.0
        %2645 = vmatprep.subr.mxu0 0.0
        %2646 = vmatpush1.xpose.msra.mxu0 0.0
        %2647 = vmatprep.subr.mxu0 0.0
        %2648 = vmatpush1.xpose.msra.mxu0 0.0
        %2649 = vmatprep.subr.mxu0 0.0
        %2650 = vmatpush1.xpose.msra.mxu0 0.0
        %2651 = vmatprep.subr.mxu0 0.0
        %2652 = vmatpush1.xpose.msra.mxu0 0.0
        %2653 = vmatprep.subr.mxu0 0.0
        %2654 = vmatpush1.xpose.msra.mxu0 0.0
        %2655 = vmatprep.subr.mxu0 0.0
        %2656 = vmatpush1.xpose.msra.mxu0 0.0
        %2657 = vmatprep.subr.mxu0 0.0
        %2658 = vmatpush1.xpose.msra.mxu0 0.0
        %2659 = vmatprep.subr.mxu0 0.0
        %2660 = vmatpush1.xpose.msra.mxu0 0.0
        %2661 = vmatprep.subr.mxu0 0.0
        %2662 = vmatpush1.xpose.msra.mxu0 0.0
        %2663 = vmatprep.subr.mxu0 0.0
        %2664 = vmatpush1.xpose.msra.mxu0 0.0
        %2665 = vmatprep.subr.mxu0 0.0
        %2666 = vmatpush1.xpose.msra.mxu0 0.0
        %2667 = vmatprep.subr.mxu0 0.0
        %2668 = vmatpush1.xpose.msra.mxu0 0.0
        %2669 = vmatprep.subr.mxu0 0.0
        %2670 = vmatpush1.xpose.msra.mxu0 0.0
        %2671 = vmatprep.subr.mxu0 0.0
        %2672 = vmatpush1.xpose.msra.mxu0 0.0
        %2673 = vmatprep.subr.mxu0 0.0
        %2674 = vmatpush1.xpose.msra.mxu0 0.0
        %2675 = vmatprep.subr.mxu0 0.0
        %2676 = vmatpush1.xpose.msra.mxu0 0.0
        %2677 = vmatprep.subr.mxu0 0.0
        %2678 = vmatpush1.xpose.msra.mxu0 0.0
        %2679 = vmatprep.subr.mxu0 0.0
        %2680 = vmatpush1.xpose.msra.mxu0 0.0
        %2681 = vmatprep.subr.mxu0 0.0
        %2682 = vmatpush1.xpose.msra.mxu0 0.0
        %2683 = vmatprep.subr.mxu0 0.0
        %2684 = vmatpush1.xpose.msra.mxu0 0.0
        %2685 = vmatprep.subr.mxu0 0.0
        %2686 = vmatpush1.xpose.msra.mxu0 0.0
        %2687 = vmatprep.subr.mxu0 0.0
        %2688 = vmatpush1.xpose.msra.mxu0 0.0
        %2689 = vmatprep.subr.mxu0 0.0
        %2690 = vmatpush1.xpose.msra.mxu0 0.0
        %2691 = vmatprep.subr.mxu0 0.0
        %2692 = vmatpush1.xpose.msra.mxu0 0.0
        %2693 = vmatprep.subr.mxu0 0.0
        %2694 = vmatpush1.xpose.msra.mxu0 0.0
        %2695 = vmatprep.subr.mxu0 0.0
        %2696 = vmatpush1.xpose.msra.mxu0 0.0
        %2697 = vmatprep.subr.mxu0 0.0
        %2698 = vmatpush1.xpose.msra.mxu0 0.0
        %2699 = vmatprep.mubr.f32.mxu0 0.0
        %2700 = vmatmul.mubr.f32.gmra.mrb[0].mxu0 %v2631
        %v2701 = vpop.f32.mrb[0].mxu0
        %v2702 = vadd.f32 %v646, %v2701
        %v2703 = vpop.f32.mrb[0].mxu0
        %2704 = vdwg.mxu0
        %2705 = vrot.lane.b32.xlu0 %v633, 104
        %v2706 = vpop.permute.xlu0 %2705
        %2707 = vrot.lane.b32.xlu0 %v633, 72
        %v2708 = vpop.permute.xlu0 %2707
        %v2709 = vsel %vm653, %v2706, 0
        %v2711 = vsel %vm653, %v2708, 0
        %2713 = vmatprep.subr.mxu0 0.0
        %2714 = vmatpush1.xpose.msra.mxu0 %v2711
        %2715 = vmatprep.subr.mxu0 0.0
        %2716 = vmatpush1.xpose.msra.mxu0 0.0
        %2717 = vmatprep.subr.mxu0 0.0
        %2718 = vmatpush1.xpose.msra.mxu0 0.0
        %2719 = vmatprep.subr.mxu0 0.0
        %2720 = vmatpush1.xpose.msra.mxu0 0.0
        %2721 = vmatprep.subr.mxu0 0.0
        %2722 = vmatpush1.xpose.msra.mxu0 0.0
        %2723 = vmatprep.subr.mxu0 0.0
        %2724 = vmatpush1.xpose.msra.mxu0 0.0
        %2725 = vmatprep.subr.mxu0 0.0
        %2726 = vmatpush1.xpose.msra.mxu0 0.0
        %2727 = vmatprep.subr.mxu0 0.0
        %2728 = vmatpush1.xpose.msra.mxu0 0.0
        %2729 = vmatprep.subr.mxu0 0.0
        %2730 = vmatpush1.xpose.msra.mxu0 0.0
        %2731 = vmatprep.subr.mxu0 0.0
        %2732 = vmatpush1.xpose.msra.mxu0 0.0
        %2733 = vmatprep.subr.mxu0 0.0
        %2734 = vmatpush1.xpose.msra.mxu0 0.0
        %2735 = vmatprep.subr.mxu0 0.0
        %2736 = vmatpush1.xpose.msra.mxu0 0.0
        %2737 = vmatprep.subr.mxu0 0.0
        %2738 = vmatpush1.xpose.msra.mxu0 0.0
        %2739 = vmatprep.subr.mxu0 0.0
        %2740 = vmatpush1.xpose.msra.mxu0 0.0
        %2741 = vmatprep.subr.mxu0 0.0
        %2742 = vmatpush1.xpose.msra.mxu0 0.0
        %2743 = vmatprep.subr.mxu0 0.0
        %2744 = vmatpush1.xpose.msra.mxu0 0.0
        %2745 = vmatprep.subr.mxu0 0.0
        %2746 = vmatpush1.xpose.msra.mxu0 0.0
        %2747 = vmatprep.subr.mxu0 0.0
        %2748 = vmatpush1.xpose.msra.mxu0 0.0
        %2749 = vmatprep.subr.mxu0 0.0
        %2750 = vmatpush1.xpose.msra.mxu0 0.0
        %2751 = vmatprep.subr.mxu0 0.0
        %2752 = vmatpush1.xpose.msra.mxu0 0.0
        %2753 = vmatprep.subr.mxu0 0.0
        %2754 = vmatpush1.xpose.msra.mxu0 0.0
        %2755 = vmatprep.subr.mxu0 0.0
        %2756 = vmatpush1.xpose.msra.mxu0 0.0
        %2757 = vmatprep.subr.mxu0 0.0
        %2758 = vmatpush1.xpose.msra.mxu0 0.0
        %2759 = vmatprep.subr.mxu0 0.0
        %2760 = vmatpush1.xpose.msra.mxu0 0.0
        %2761 = vmatprep.subr.mxu0 0.0
        %2762 = vmatpush1.xpose.msra.mxu0 0.0
        %2763 = vmatprep.subr.mxu0 0.0
        %2764 = vmatpush1.xpose.msra.mxu0 0.0
        %2765 = vmatprep.subr.mxu0 0.0
        %2766 = vmatpush1.xpose.msra.mxu0 0.0
        %2767 = vmatprep.subr.mxu0 0.0
        %2768 = vmatpush1.xpose.msra.mxu0 0.0
        %2769 = vmatprep.subr.mxu0 0.0
        %2770 = vmatpush1.xpose.msra.mxu0 0.0
        %2771 = vmatprep.subr.mxu0 0.0
        %2772 = vmatpush1.xpose.msra.mxu0 0.0
        %2773 = vmatprep.subr.mxu0 0.0
        %2774 = vmatpush1.xpose.msra.mxu0 0.0
        %2775 = vmatprep.subr.mxu0 0.0
        %2776 = vmatpush1.xpose.msra.mxu0 0.0
        %2777 = vmatprep.mubr.f32.mxu0 0.0
        %2778 = vmatmul.mubr.f32.gmra.mrb[0].mxu0 %v2709
        %v2779 = vpop.f32.mrb[0].mxu0
        %v2780 = vadd.f32 %v647, %v2779
        %v2781 = vpop.f32.mrb[0].mxu0
        %2782 = vdwg.mxu0
        %2783 = vrot.lane.b32.xlu0 %v638, 104
        %v2784 = vpop.permute.xlu0 %2783
        %2785 = vrot.lane.b32.xlu0 %v638, 72
        %v2786 = vpop.permute.xlu0 %2785
        %v2787 = vsel %vm653, %v2784, 0
        %v2789 = vsel %vm653, %v2786, 0
        %2791 = vmatprep.subr.mxu0 0.0
        %2792 = vmatpush1.xpose.msra.mxu0 %v2789
        %2793 = vmatprep.subr.mxu0 0.0
        %2794 = vmatpush1.xpose.msra.mxu0 0.0
        %2795 = vmatprep.subr.mxu0 0.0
        %2796 = vmatpush1.xpose.msra.mxu0 0.0
        %2797 = vmatprep.subr.mxu0 0.0
        %2798 = vmatpush1.xpose.msra.mxu0 0.0
        %2799 = vmatprep.subr.mxu0 0.0
        %2800 = vmatpush1.xpose.msra.mxu0 0.0
        %2801 = vmatprep.subr.mxu0 0.0
        %2802 = vmatpush1.xpose.msra.mxu0 0.0
        %2803 = vmatprep.subr.mxu0 0.0
        %2804 = vmatpush1.xpose.msra.mxu0 0.0
        %2805 = vmatprep.subr.mxu0 0.0
        %2806 = vmatpush1.xpose.msra.mxu0 0.0
        %2807 = vmatprep.subr.mxu0 0.0
        %2808 = vmatpush1.xpose.msra.mxu0 0.0
        %2809 = vmatprep.subr.mxu0 0.0
        %2810 = vmatpush1.xpose.msra.mxu0 0.0
        %2811 = vmatprep.subr.mxu0 0.0
        %2812 = vmatpush1.xpose.msra.mxu0 0.0
        %2813 = vmatprep.subr.mxu0 0.0
        %2814 = vmatpush1.xpose.msra.mxu0 0.0
        %2815 = vmatprep.subr.mxu0 0.0
        %2816 = vmatpush1.xpose.msra.mxu0 0.0
        %2817 = vmatprep.subr.mxu0 0.0
        %2818 = vmatpush1.xpose.msra.mxu0 0.0
        %2819 = vmatprep.subr.mxu0 0.0
        %2820 = vmatpush1.xpose.msra.mxu0 0.0
        %2821 = vmatprep.subr.mxu0 0.0
        %2822 = vmatpush1.xpose.msra.mxu0 0.0
        %2823 = vmatprep.subr.mxu0 0.0
        %2824 = vmatpush1.xpose.msra.mxu0 0.0
        %2825 = vmatprep.subr.mxu0 0.0
        %2826 = vmatpush1.xpose.msra.mxu0 0.0
        %2827 = vmatprep.subr.mxu0 0.0
        %2828 = vmatpush1.xpose.msra.mxu0 0.0
        %2829 = vmatprep.subr.mxu0 0.0
        %2830 = vmatpush1.xpose.msra.mxu0 0.0
        %2831 = vmatprep.subr.mxu0 0.0
        %2832 = vmatpush1.xpose.msra.mxu0 0.0
        %2833 = vmatprep.subr.mxu0 0.0
        %2834 = vmatpush1.xpose.msra.mxu0 0.0
        %2835 = vmatprep.subr.mxu0 0.0
        %2836 = vmatpush1.xpose.msra.mxu0 0.0
        %2837 = vmatprep.subr.mxu0 0.0
        %2838 = vmatpush1.xpose.msra.mxu0 0.0
        %2839 = vmatprep.subr.mxu0 0.0
        %2840 = vmatpush1.xpose.msra.mxu0 0.0
        %2841 = vmatprep.subr.mxu0 0.0
        %2842 = vmatpush1.xpose.msra.mxu0 0.0
        %2843 = vmatprep.subr.mxu0 0.0
        %2844 = vmatpush1.xpose.msra.mxu0 0.0
        %2845 = vmatprep.subr.mxu0 0.0
        %2846 = vmatpush1.xpose.msra.mxu0 0.0
        %2847 = vmatprep.subr.mxu0 0.0
        %2848 = vmatpush1.xpose.msra.mxu0 0.0
        %2849 = vmatprep.subr.mxu0 0.0
        %2850 = vmatpush1.xpose.msra.mxu0 0.0
        %2851 = vmatprep.subr.mxu0 0.0
        %2852 = vmatpush1.xpose.msra.mxu0 0.0
        %2853 = vmatprep.subr.mxu0 0.0
        %2854 = vmatpush1.xpose.msra.mxu0 0.0
        %2855 = vmatprep.mubr.f32.mxu0 0.0
        %2856 = vmatmul.mubr.f32.gmra.mrb[0].mxu0 %v2787
        %v2857 = vpop.f32.mrb[0].mxu0
        %v2858 = vadd.f32 %v648, %v2857
        %v2859 = vpop.f32.mrb[0].mxu0
        %2860 = vdwg.mxu0
        %2861 = vrot.lane.b32.xlu0 %v643, 104
        %v2862 = vpop.permute.xlu0 %2861
        %2863 = vrot.lane.b32.xlu0 %v643, 72
        %v2864 = vpop.permute.xlu0 %2863
        %v2865 = vsel %vm653, %v2862, 0
        %v2867 = vsel %vm653, %v2864, 0
        %2869 = vmatprep.subr.mxu0 0.0
        %2870 = vmatpush1.xpose.msra.mxu0 %v2867
        %2871 = vmatprep.subr.mxu0 0.0
        %2872 = vmatpush1.xpose.msra.mxu0 0.0
        %2873 = vmatprep.subr.mxu0 0.0
        %2874 = vmatpush1.xpose.msra.mxu0 0.0
        %2875 = vmatprep.subr.mxu0 0.0
        %2876 = vmatpush1.xpose.msra.mxu0 0.0
        %2877 = vmatprep.subr.mxu0 0.0
        %2878 = vmatpush1.xpose.msra.mxu0 0.0
        %2879 = vmatprep.subr.mxu0 0.0
        %2880 = vmatpush1.xpose.msra.mxu0 0.0
        %2881 = vmatprep.subr.mxu0 0.0
        %2882 = vmatpush1.xpose.msra.mxu0 0.0
        %2883 = vmatprep.subr.mxu0 0.0
        %2884 = vmatpush1.xpose.msra.mxu0 0.0
        %2885 = vmatprep.subr.mxu0 0.0
        %2886 = vmatpush1.xpose.msra.mxu0 0.0
        %2887 = vmatprep.subr.mxu0 0.0
        %2888 = vmatpush1.xpose.msra.mxu0 0.0
        %2889 = vmatprep.subr.mxu0 0.0
        %2890 = vmatpush1.xpose.msra.mxu0 0.0
        %2891 = vmatprep.subr.mxu0 0.0
        %2892 = vmatpush1.xpose.msra.mxu0 0.0
        %2893 = vmatprep.subr.mxu0 0.0
        %2894 = vmatpush1.xpose.msra.mxu0 0.0
        %2895 = vmatprep.subr.mxu0 0.0
        %2896 = vmatpush1.xpose.msra.mxu0 0.0
        %2897 = vmatprep.subr.mxu0 0.0
        %2898 = vmatpush1.xpose.msra.mxu0 0.0
        %2899 = vmatprep.subr.mxu0 0.0
        %2900 = vmatpush1.xpose.msra.mxu0 0.0
        %2901 = vmatprep.subr.mxu0 0.0
        %2902 = vmatpush1.xpose.msra.mxu0 0.0
        %2903 = vmatprep.subr.mxu0 0.0
        %2904 = vmatpush1.xpose.msra.mxu0 0.0
        %2905 = vmatprep.subr.mxu0 0.0
        %2906 = vmatpush1.xpose.msra.mxu0 0.0
        %2907 = vmatprep.subr.mxu0 0.0
        %2908 = vmatpush1.xpose.msra.mxu0 0.0
        %2909 = vmatprep.subr.mxu0 0.0
        %2910 = vmatpush1.xpose.msra.mxu0 0.0
        %2911 = vmatprep.subr.mxu0 0.0
        %2912 = vmatpush1.xpose.msra.mxu0 0.0
        %2913 = vmatprep.subr.mxu0 0.0
        %2914 = vmatpush1.xpose.msra.mxu0 0.0
        %2915 = vmatprep.subr.mxu0 0.0
        %2916 = vmatpush1.xpose.msra.mxu0 0.0
        %2917 = vmatprep.subr.mxu0 0.0
        %2918 = vmatpush1.xpose.msra.mxu0 0.0
        %2919 = vmatprep.subr.mxu0 0.0
        %2920 = vmatpush1.xpose.msra.mxu0 0.0
        %2921 = vmatprep.subr.mxu0 0.0
        %2922 = vmatpush1.xpose.msra.mxu0 0.0
        %2923 = vmatprep.subr.mxu0 0.0
        %2924 = vmatpush1.xpose.msra.mxu0 0.0
        %2925 = vmatprep.subr.mxu0 0.0
        %2926 = vmatpush1.xpose.msra.mxu0 0.0
        %2927 = vmatprep.subr.mxu0 0.0
        %2928 = vmatpush1.xpose.msra.mxu0 0.0
        %2929 = vmatprep.subr.mxu0 0.0
        %2930 = vmatpush1.xpose.msra.mxu0 0.0
        %2931 = vmatprep.subr.mxu0 0.0
        %2932 = vmatpush1.xpose.msra.mxu0 0.0
        %2933 = vmatprep.mubr.f32.mxu0 0.0
        %2934 = vmatmul.mubr.f32.gmra.mrb[0].mxu0 %v2865
        %v2935 = vpop.f32.mrb[0].mxu0
        %v2936 = vadd.f32 %v649, %v2935
        %v2937 = vpop.f32.mrb[0].mxu0
        %2938 = vdwg.mxu0
        %v2939 = vsel %vm653, %v2702, -inf
        %2940 = vmax.xlane.f32.xlu0 %v2939
        %v2941 = vpop.xlane.xlu0 %2940
        %v2942 = vsel %vm653, %v2780, -inf
        %2943 = vmax.xlane.f32.xlu0 %v2942
        %v2944 = vpop.xlane.xlu0 %2943
        %v2945 = vsel %vm653, %v2858, -inf
        %2946 = vmax.xlane.f32.xlu0 %v2945
        %v2947 = vpop.xlane.xlu0 %2946
        %v2948 = vsel %vm653, %v2936, -inf
        %2949 = vmax.xlane.f32.xlu0 %v2948
        %v2950 = vpop.xlane.xlu0 %2949
        %v2951 = vsub.f32 %v2702, %v2941
        %v2952 = vsub.f32 %v2780, %v2944
        %v2953 = vsub.f32 %v2858, %v2947
        %v2954 = vsub.f32 %v2936, %v2950
        %v2955 = vmul.f32 %v2951, 1.442695
        %v2956 = vpow.pop %v2955
        %v2957 = vmul.f32 %v2952, 1.442695
        %v2958 = vpow.pop %v2957
        %v2959 = vmul.f32 %v2953, 1.442695
        %v2960 = vpow.pop %v2959
        %v2961 = vmul.f32 %v2954, 1.442695
        %v2962 = vpow.pop %v2961
        %v2963 = vsel %vm653, %v2956, 0.0
        %2964 = vadd.xlane.f32.xlu0 %v2963
        %v2965 = vpop.xlane.xlu0 %2964
        %v2966 = vsel %vm653, %v2958, 0.0
        %2967 = vadd.xlane.f32.xlu0 %v2966
        %v2968 = vpop.xlane.xlu0 %2967
        %v2969 = vsel %vm653, %v2960, 0.0
        %2970 = vadd.xlane.f32.xlu0 %v2969
        %v2971 = vpop.xlane.xlu0 %2970
        %v2972 = vsel %vm653, %v2962, 0.0
        %2973 = vadd.xlane.f32.xlu0 %v2972
        %v2974 = vpop.xlane.xlu0 %2973
        %v2975 = vrcp.pop %v2965
        %v2976 = vmul.f32 %v2956, %v2975
        %v2977 = vrcp.pop %v2968
        %v2978 = vmul.f32 %v2958, %v2977
        %v2979 = vrcp.pop %v2971
        %v2980 = vmul.f32 %v2960, %v2979
        %v2981 = vrcp.pop %v2974
        %v2982 = vmul.f32 %v2962, %v2981
        %2983 = vrot.lane.b32.xlu0 %v628, 40
        %v2984 = vpop.permute.xlu0 %2983
        %v2987 = vsel %vm653, %v2976, 0
        %2989 = vmatprep.subr.mxu0 0.0
        %2990 = vmatpush1.msra.mxu0 %v2984
        %2991 = vmatprep.subr.mxu0 0.0
        %2992 = vmatpush1.msra.mxu0 0.0
        %2993 = vmatprep.subr.mxu0 0.0
        %2994 = vmatpush1.msra.mxu0 0.0
        %2995 = vmatprep.subr.mxu0 0.0
        %2996 = vmatpush1.msra.mxu0 0.0
        %2997 = vmatprep.subr.mxu0 0.0
        %2998 = vmatpush1.msra.mxu0 0.0
        %2999 = vmatprep.subr.mxu0 0.0
        %3000 = vmatpush1.msra.mxu0 0.0
        %3001 = vmatprep.subr.mxu0 0.0
        %3002 = vmatpush1.msra.mxu0 0.0
        %3003 = vmatprep.subr.mxu0 0.0
        %3004 = vmatpush1.msra.mxu0 0.0
        %3005 = vmatprep.subr.mxu0 0.0
        %3006 = vmatpush1.msra.mxu0 0.0
        %3007 = vmatprep.subr.mxu0 0.0
        %3008 = vmatpush1.msra.mxu0 0.0
        %3009 = vmatprep.subr.mxu0 0.0
        %3010 = vmatpush1.msra.mxu0 0.0
        %3011 = vmatprep.subr.mxu0 0.0
        %3012 = vmatpush1.msra.mxu0 0.0
        %3013 = vmatprep.subr.mxu0 0.0
        %3014 = vmatpush1.msra.mxu0 0.0
        %3015 = vmatprep.subr.mxu0 0.0
        %3016 = vmatpush1.msra.mxu0 0.0
        %3017 = vmatprep.subr.mxu0 0.0
        %3018 = vmatpush1.msra.mxu0 0.0
        %3019 = vmatprep.subr.mxu0 0.0
        %3020 = vmatpush1.msra.mxu0 0.0
        %3021 = vmatprep.subr.mxu0 0.0
        %3022 = vmatpush1.msra.mxu0 0.0
        %3023 = vmatprep.subr.mxu0 0.0
        %3024 = vmatpush1.msra.mxu0 0.0
        %3025 = vmatprep.subr.mxu0 0.0
        %3026 = vmatpush1.msra.mxu0 0.0
        %3027 = vmatprep.subr.mxu0 0.0
        %3028 = vmatpush1.msra.mxu0 0.0
        %3029 = vmatprep.subr.mxu0 0.0
        %3030 = vmatpush1.msra.mxu0 0.0
        %3031 = vmatprep.subr.mxu0 0.0
        %3032 = vmatpush1.msra.mxu0 0.0
        %3033 = vmatprep.subr.mxu0 0.0
        %3034 = vmatpush1.msra.mxu0 0.0
        %3035 = vmatprep.subr.mxu0 0.0
        %3036 = vmatpush1.msra.mxu0 0.0
        %3037 = vmatprep.subr.mxu0 0.0
        %3038 = vmatpush1.msra.mxu0 0.0
        %3039 = vmatprep.subr.mxu0 0.0
        %3040 = vmatpush1.msra.mxu0 0.0
        %3041 = vmatprep.subr.mxu0 0.0
        %3042 = vmatpush1.msra.mxu0 0.0
        %3043 = vmatprep.subr.mxu0 0.0
        %3044 = vmatpush1.msra.mxu0 0.0
        %3045 = vmatprep.subr.mxu0 0.0
        %3046 = vmatpush1.msra.mxu0 0.0
        %3047 = vmatprep.subr.mxu0 0.0
        %3048 = vmatpush1.msra.mxu0 0.0
        %3049 = vmatprep.subr.mxu0 0.0
        %3050 = vmatpush1.msra.mxu0 0.0
        %3051 = vmatprep.subr.mxu0 0.0
        %3052 = vmatpush1.msra.mxu0 0.0
        %3053 = vmatprep.mubr.f32.mxu0 0.0
        %3054 = vmatmul.mubr.f32.gmra.mrb[0].mxu0 %v2987
        %v3055 = vpop.f32.mrb[0].mxu0
        %v3056 = vadd.f32 0.0, %v3055
        %v3057 = vpop.f32.mrb[0].mxu0
        %3058 = vdwg.mxu0
        %3059 = vrot.lane.b32.xlu0 %v633, 40
        %v3060 = vpop.permute.xlu0 %3059
        %v3063 = vsel %vm653, %v2978, 0
        %3065 = vmatprep.subr.mxu0 0.0
        %3066 = vmatpush1.msra.mxu0 %v3060
        %3067 = vmatprep.subr.mxu0 0.0
        %3068 = vmatpush1.msra.mxu0 0.0
        %3069 = vmatprep.subr.mxu0 0.0
        %3070 = vmatpush1.msra.mxu0 0.0
        %3071 = vmatprep.subr.mxu0 0.0
        %3072 = vmatpush1.msra.mxu0 0.0
        %3073 = vmatprep.subr.mxu0 0.0
        %3074 = vmatpush1.msra.mxu0 0.0
        %3075 = vmatprep.subr.mxu0 0.0
        %3076 = vmatpush1.msra.mxu0 0.0
        %3077 = vmatprep.subr.mxu0 0.0
        %3078 = vmatpush1.msra.mxu0 0.0
        %3079 = vmatprep.subr.mxu0 0.0
        %3080 = vmatpush1.msra.mxu0 0.0
        %3081 = vmatprep.subr.mxu0 0.0
        %3082 = vmatpush1.msra.mxu0 0.0
        %3083 = vmatprep.subr.mxu0 0.0
        %3084 = vmatpush1.msra.mxu0 0.0
        %3085 = vmatprep.subr.mxu0 0.0
        %3086 = vmatpush1.msra.mxu0 0.0
        %3087 = vmatprep.subr.mxu0 0.0
        %3088 = vmatpush1.msra.mxu0 0.0
        %3089 = vmatprep.subr.mxu0 0.0
        %3090 = vmatpush1.msra.mxu0 0.0
        %3091 = vmatprep.subr.mxu0 0.0
        %3092 = vmatpush1.msra.mxu0 0.0
        %3093 = vmatprep.subr.mxu0 0.0
        %3094 = vmatpush1.msra.mxu0 0.0
        %3095 = vmatprep.subr.mxu0 0.0
        %3096 = vmatpush1.msra.mxu0 0.0
        %3097 = vmatprep.subr.mxu0 0.0
        %3098 = vmatpush1.msra.mxu0 0.0
        %3099 = vmatprep.subr.mxu0 0.0
        %3100 = vmatpush1.msra.mxu0 0.0
        %3101 = vmatprep.subr.mxu0 0.0
        %3102 = vmatpush1.msra.mxu0 0.0
        %3103 = vmatprep.subr.mxu0 0.0
        %3104 = vmatpush1.msra.mxu0 0.0
        %3105 = vmatprep.subr.mxu0 0.0
        %3106 = vmatpush1.msra.mxu0 0.0
        %3107 = vmatprep.subr.mxu0 0.0
        %3108 = vmatpush1.msra.mxu0 0.0
        %3109 = vmatprep.subr.mxu0 0.0
        %3110 = vmatpush1.msra.mxu0 0.0
        %3111 = vmatprep.subr.mxu0 0.0
        %3112 = vmatpush1.msra.mxu0 0.0
        %3113 = vmatprep.subr.mxu0 0.0
        %3114 = vmatpush1.msra.mxu0 0.0
        %3115 = vmatprep.subr.mxu0 0.0
        %3116 = vmatpush1.msra.mxu0 0.0
        %3117 = vmatprep.subr.mxu0 0.0
        %3118 = vmatpush1.msra.mxu0 0.0
        %3119 = vmatprep.subr.mxu0 0.0
        %3120 = vmatpush1.msra.mxu0 0.0
        %3121 = vmatprep.subr.mxu0 0.0
        %3122 = vmatpush1.msra.mxu0 0.0
        %3123 = vmatprep.subr.mxu0 0.0
        %3124 = vmatpush1.msra.mxu0 0.0
        %3125 = vmatprep.subr.mxu0 0.0
        %3126 = vmatpush1.msra.mxu0 0.0
        %3127 = vmatprep.subr.mxu0 0.0
        %3128 = vmatpush1.msra.mxu0 0.0
        %3129 = vmatprep.mubr.f32.mxu0 0.0
        %3130 = vmatmul.mubr.f32.gmra.mrb[0].mxu0 %v3063
        %v3131 = vpop.f32.mrb[0].mxu0
        %v3132 = vadd.f32 0.0, %v3131
        %v3133 = vpop.f32.mrb[0].mxu0
        %3134 = vdwg.mxu0
        %3135 = vrot.lane.b32.xlu0 %v638, 40
        %v3136 = vpop.permute.xlu0 %3135
        %v3139 = vsel %vm653, %v2980, 0
        %3141 = vmatprep.subr.mxu0 0.0
        %3142 = vmatpush1.msra.mxu0 %v3136
        %3143 = vmatprep.subr.mxu0 0.0
        %3144 = vmatpush1.msra.mxu0 0.0
        %3145 = vmatprep.subr.mxu0 0.0
        %3146 = vmatpush1.msra.mxu0 0.0
        %3147 = vmatprep.subr.mxu0 0.0
        %3148 = vmatpush1.msra.mxu0 0.0
        %3149 = vmatprep.subr.mxu0 0.0
        %3150 = vmatpush1.msra.mxu0 0.0
        %3151 = vmatprep.subr.mxu0 0.0
        %3152 = vmatpush1.msra.mxu0 0.0
        %3153 = vmatprep.subr.mxu0 0.0
        %3154 = vmatpush1.msra.mxu0 0.0
        %3155 = vmatprep.subr.mxu0 0.0
        %3156 = vmatpush1.msra.mxu0 0.0
        %3157 = vmatprep.subr.mxu0 0.0
        %3158 = vmatpush1.msra.mxu0 0.0
        %3159 = vmatprep.subr.mxu0 0.0
        %3160 = vmatpush1.msra.mxu0 0.0
        %3161 = vmatprep.subr.mxu0 0.0
        %3162 = vmatpush1.msra.mxu0 0.0
        %3163 = vmatprep.subr.mxu0 0.0
        %3164 = vmatpush1.msra.mxu0 0.0
        %3165 = vmatprep.subr.mxu0 0.0
        %3166 = vmatpush1.msra.mxu0 0.0
        %3167 = vmatprep.subr.mxu0 0.0
        %3168 = vmatpush1.msra.mxu0 0.0
        %3169 = vmatprep.subr.mxu0 0.0
        %3170 = vmatpush1.msra.mxu0 0.0
        %3171 = vmatprep.subr.mxu0 0.0
        %3172 = vmatpush1.msra.mxu0 0.0
        %3173 = vmatprep.subr.mxu0 0.0
        %3174 = vmatpush1.msra.mxu0 0.0
        %3175 = vmatprep.subr.mxu0 0.0
        %3176 = vmatpush1.msra.mxu0 0.0
        %3177 = vmatprep.subr.mxu0 0.0
        %3178 = vmatpush1.msra.mxu0 0.0
        %3179 = vmatprep.subr.mxu0 0.0
        %3180 = vmatpush1.msra.mxu0 0.0
        %3181 = vmatprep.subr.mxu0 0.0
        %3182 = vmatpush1.msra.mxu0 0.0
        %3183 = vmatprep.subr.mxu0 0.0
        %3184 = vmatpush1.msra.mxu0 0.0
        %3185 = vmatprep.subr.mxu0 0.0
        %3186 = vmatpush1.msra.mxu0 0.0
        %3187 = vmatprep.subr.mxu0 0.0
        %3188 = vmatpush1.msra.mxu0 0.0
        %3189 = vmatprep.subr.mxu0 0.0
        %3190 = vmatpush1.msra.mxu0 0.0
        %3191 = vmatprep.subr.mxu0 0.0
        %3192 = vmatpush1.msra.mxu0 0.0
        %3193 = vmatprep.subr.mxu0 0.0
        %3194 = vmatpush1.msra.mxu0 0.0
        %3195 = vmatprep.subr.mxu0 0.0
        %3196 = vmatpush1.msra.mxu0 0.0
        %3197 = vmatprep.subr.mxu0 0.0
        %3198 = vmatpush1.msra.mxu0 0.0
        %3199 = vmatprep.subr.mxu0 0.0
        %3200 = vmatpush1.msra.mxu0 0.0
        %3201 = vmatprep.subr.mxu0 0.0
        %3202 = vmatpush1.msra.mxu0 0.0
        %3203 = vmatprep.subr.mxu0 0.0
        %3204 = vmatpush1.msra.mxu0 0.0
        %3205 = vmatprep.mubr.f32.mxu0 0.0
        %3206 = vmatmul.mubr.f32.gmra.mrb[0].mxu0 %v3139
        %v3207 = vpop.f32.mrb[0].mxu0
        %v3208 = vadd.f32 0.0, %v3207
        %v3209 = vpop.f32.mrb[0].mxu0
        %3210 = vdwg.mxu0
        %3211 = vrot.lane.b32.xlu0 %v643, 40
        %v3212 = vpop.permute.xlu0 %3211
        %v3215 = vsel %vm653, %v2982, 0
        %3217 = vmatprep.subr.mxu0 0.0
        %3218 = vmatpush1.msra.mxu0 %v3212
        %3219 = vmatprep.subr.mxu0 0.0
        %3220 = vmatpush1.msra.mxu0 0.0
        %3221 = vmatprep.subr.mxu0 0.0
        %3222 = vmatpush1.msra.mxu0 0.0
        %3223 = vmatprep.subr.mxu0 0.0
        %3224 = vmatpush1.msra.mxu0 0.0
        %3225 = vmatprep.subr.mxu0 0.0
        %3226 = vmatpush1.msra.mxu0 0.0
        %3227 = vmatprep.subr.mxu0 0.0
        %3228 = vmatpush1.msra.mxu0 0.0
        %3229 = vmatprep.subr.mxu0 0.0
        %3230 = vmatpush1.msra.mxu0 0.0
        %3231 = vmatprep.subr.mxu0 0.0
        %3232 = vmatpush1.msra.mxu0 0.0
        %3233 = vmatprep.subr.mxu0 0.0
        %3234 = vmatpush1.msra.mxu0 0.0
        %3235 = vmatprep.subr.mxu0 0.0
        %3236 = vmatpush1.msra.mxu0 0.0
        %3237 = vmatprep.subr.mxu0 0.0
        %3238 = vmatpush1.msra.mxu0 0.0
        %3239 = vmatprep.subr.mxu0 0.0
        %3240 = vmatpush1.msra.mxu0 0.0
        %3241 = vmatprep.subr.mxu0 0.0
        %3242 = vmatpush1.msra.mxu0 0.0
        %3243 = vmatprep.subr.mxu0 0.0
        %3244 = vmatpush1.msra.mxu0 0.0
        %3245 = vmatprep.subr.mxu0 0.0
        %3246 = vmatpush1.msra.mxu0 0.0
        %3247 = vmatprep.subr.mxu0 0.0
        %3248 = vmatpush1.msra.mxu0 0.0
        %3249 = vmatprep.subr.mxu0 0.0
        %3250 = vmatpush1.msra.mxu0 0.0
        %3251 = vmatprep.subr.mxu0 0.0
        %3252 = vmatpush1.msra.mxu0 0.0
        %3253 = vmatprep.subr.mxu0 0.0
        %3254 = vmatpush1.msra.mxu0 0.0
        %3255 = vmatprep.subr.mxu0 0.0
        %3256 = vmatpush1.msra.mxu0 0.0
        %3257 = vmatprep.subr.mxu0 0.0
        %3258 = vmatpush1.msra.mxu0 0.0
        %3259 = vmatprep.subr.mxu0 0.0
        %3260 = vmatpush1.msra.mxu0 0.0
        %3261 = vmatprep.subr.mxu0 0.0
        %3262 = vmatpush1.msra.mxu0 0.0
        %3263 = vmatprep.subr.mxu0 0.0
        %3264 = vmatpush1.msra.mxu0 0.0
        %3265 = vmatprep.subr.mxu0 0.0
        %3266 = vmatpush1.msra.mxu0 0.0
        %3267 = vmatprep.subr.mxu0 0.0
        %3268 = vmatpush1.msra.mxu0 0.0
        %3269 = vmatprep.subr.mxu0 0.0
        %3270 = vmatpush1.msra.mxu0 0.0
        %3271 = vmatprep.subr.mxu0 0.0
        %3272 = vmatpush1.msra.mxu0 0.0
        %3273 = vmatprep.subr.mxu0 0.0
        %3274 = vmatpush1.msra.mxu0 0.0
        %3275 = vmatprep.subr.mxu0 0.0
        %3276 = vmatpush1.msra.mxu0 0.0
        %3277 = vmatprep.subr.mxu0 0.0
        %3278 = vmatpush1.msra.mxu0 0.0
        %3279 = vmatprep.subr.mxu0 0.0
        %3280 = vmatpush1.msra.mxu0 0.0
        %3281 = vmatprep.mubr.f32.mxu0 0.0
        %3282 = vmatmul.mubr.f32.gmra.mrb[0].mxu0 %v3215
        %v3283 = vpop.f32.mrb[0].mxu0
        %v3284 = vadd.f32 0.0, %v3283
        %v3285 = vpop.f32.mrb[0].mxu0
        %3286 = vdwg.mxu0
        %3291 = vrot.lane.b32.xlu0 %v1736, 8
        %v3292 = vpop.permute.xlu0 %3291
        %3293 = vrot.lane.b32.xlu0 %v1812, 8
        %v3294 = vpop.permute.xlu0 %3293
        %3295 = vrot.lane.b32.xlu0 %v1888, 8
        %v3296 = vpop.permute.xlu0 %3295
        %3297 = vrot.lane.b32.xlu0 %v1964, 8
        %v3298 = vpop.permute.xlu0 %3297
        %3307 = vrot.lane.b32.xlu0 %v2396, 16
        %v3308 = vpop.permute.xlu0 %3307
        %3309 = vrot.lane.b32.xlu0 %v2472, 16
        %v3310 = vpop.permute.xlu0 %3309
        %3311 = vrot.lane.b32.xlu0 %v2548, 16
        %v3312 = vpop.permute.xlu0 %3311
        %3313 = vrot.lane.b32.xlu0 %v2624, 16
        %v3314 = vpop.permute.xlu0 %3313
        %3323 = vrot.lane.b32.xlu0 %v3056, 24
        %v3324 = vpop.permute.xlu0 %3323
        %3325 = vrot.lane.b32.xlu0 %v3132, 24
        %v3326 = vpop.permute.xlu0 %3325
        %3327 = vrot.lane.b32.xlu0 %v3208, 24
        %v3328 = vpop.permute.xlu0 %3327
        %3329 = vrot.lane.b32.xlu0 %v3284, 24
        %v3330 = vpop.permute.xlu0 %3329
        %v3335 = vsel %vm653, %v1076, %v3292
        %v3336 = vsel %vm653, %v1152, %v3294
        %v3337 = vsel %vm653, %v1228, %v3296
        %v3338 = vsel %vm653, %v1304, %v3298
        %vm3339 = vcmask 130048
        %v3340 = vsel %vm3339, %v3335, %v3308
        %v3341 = vsel %vm3339, %v3336, %v3310
        %v3342 = vsel %vm3339, %v3337, %v3312
        %v3343 = vsel %vm3339, %v3338, %v3314
        %vm3344 = vcmask 195584
        %v3345 = vsel %vm3344, %v3340, %v3324
        %v3346 = vsel %vm3344, %v3341, %v3326
        %v3347 = vsel %vm3344, %v3342, %v3328
        %v3348 = vsel %vm3344, %v3343, %v3330
        %v3349 = vld [vmem:[#allocation2] sm:$0x1]
        %v3350 = vld [vmem:[#allocation4] sm:$0x1]
        %v3351 = vsel %vm471, %v3345, 0.0
        %3352 = vadd.xlane.f32.xlu0 %v3351
        %v3353 = vpop.xlane.xlu0 %3352
        %v3354 = vsel %vm471, %v3346, 0.0
        %3355 = vadd.xlane.f32.xlu0 %v3354
        %v3356 = vpop.xlane.xlu0 %3355
        %v3357 = vsel %vm471, %v3347, 0.0
        %3358 = vadd.xlane.f32.xlu0 %v3357
        %v3359 = vpop.xlane.xlu0 %3358
        %v3360 = vsel %vm471, %v3348, 0.0
        %3361 = vadd.xlane.f32.xlu0 %v3360
        %v3362 = vpop.xlane.xlu0 %3361
        %v3363 = vmul.f32 %v3353, %v484
        %v3364 = vmul.f32 %v3356, %v484
        %v3365 = vmul.f32 %v3359, %v484
        %v3366 = vmul.f32 %v3362, %v484
        %v3367 = vsub.f32 %v3345, %v3363
        %v3368 = vsub.f32 %v3346, %v3364
        %v3369 = vsub.f32 %v3347, %v3365
        %v3370 = vsub.f32 %v3348, %v3366
        %v3371 = vmul.f32 %v3367, %v3367
        %v3372 = vmul.f32 %v3368, %v3368
        %v3373 = vmul.f32 %v3369, %v3369
        %v3374 = vmul.f32 %v3370, %v3370
        %v3375 = vsel %vm471, %v3371, 0.0
        %3376 = vadd.xlane.f32.xlu0 %v3375
        %v3377 = vpop.xlane.xlu0 %3376
        %v3378 = vsel %vm471, %v3372, 0.0
        %3379 = vadd.xlane.f32.xlu0 %v3378
        %v3380 = vpop.xlane.xlu0 %3379
        %v3381 = vsel %vm471, %v3373, 0.0
        %3382 = vadd.xlane.f32.xlu0 %v3381
        %v3383 = vpop.xlane.xlu0 %3382
        %v3384 = vsel %vm471, %v3374, 0.0
        %3385 = vadd.xlane.f32.xlu0 %v3384
        %v3386 = vpop.xlane.xlu0 %3385
        %v3387 = vmul.f32 %v3377, %v484
        %v3388 = vmul.f32 %v3380, %v484
        %v3389 = vmul.f32 %v3383, %v484
        %v3390 = vmul.f32 %v3386, %v484
        %v3391 = vadd.f32 %v3387, 1e-05
        %v3392 = vadd.f32 %v3388, 1e-05
        %v3393 = vadd.f32 %v3389, 1e-05
        %v3394 = vadd.f32 %v3390, 1e-05
        %v3395 = vrsqrt.pop %v3391
        %v3396 = vrsqrt.pop %v3392
        %v3397 = vrsqrt.pop %v3393
        %v3398 = vrsqrt.pop %v3394
        %v3399 = vmul.f32 %v3367, %v3395
        %v3400 = vmul.f32 %v3368, %v3396
        %v3401 = vmul.f32 %v3369, %v3397
        %v3402 = vmul.f32 %v3370, %v3398
        %v3404 = vlaneseq
        %v3405 = vshrl.u32 %v3404, 7
        %v3406 = vsub.s32 0, %v3405
        %v3407 = vrot.slane %v3349, %v3406
        %v3409 = vmul.f32 %v3399, %v3407
        %v3410 = vmul.f32 %v3400, %v3407
        %v3411 = vmul.f32 %v3401, %v3407
        %v3412 = vmul.f32 %v3402, %v3407
        %v3414 = vlaneseq
        %v3415 = vshrl.u32 %v3414, 7
        %v3416 = vsub.s32 0, %v3415
        %v3417 = vrot.slane %v3350, %v3416
        %v3419 = vadd.f32 %v3409, %v3417
        %v3420 = vadd.f32 %v3410, %v3417
        %v3421 = vadd.f32 %v3411, %v3417
        %v3422 = vadd.f32 %v3412, %v3417
        %v3423 = vld [vmem:[#allocation6] sm:$0xff]
        %v3424 = vld [vmem:[#allocation6 + $0x8] sm:$0xff]
        %v3425 = vld [vmem:[#allocation6 + $0x10] sm:$0xff]
        %v3426 = vld [vmem:[#allocation6 + $0x18] sm:$0xff]
        %v3427 = vld [vmem:[#allocation7] sm:$0x1]
        %v3429 = vlaneseq
        %v3430 = vshrl.u32 %v3429, 7
        %v3431 = vsub.s32 0, %v3430
        %v3432 = vrot.slane %v3427, %v3431
        %v3435 = vsel %vm471, %v3419, 0
        %v3438 = vsel %vm471, %v3420, 0
        %v3441 = vsel %vm471, %v3421, 0
        %v3444 = vsel %vm471, %v3422, 0
        %3446 = vmatprep.subr.mxu0 0.0
        %3447 = vmatpush1.msra.mxu0 %v3423
        %3448 = vmatprep.subr.mxu0 0.0
        %3449 = vmatpush1.msra.mxu0 %v3424
        %3450 = vmatprep.subr.mxu0 0.0
        %3451 = vmatpush1.msra.mxu0 %v3425
        %3452 = vmatprep.subr.mxu0 0.0
        %3453 = vmatpush1.msra.mxu0 %v3426
        %3454 = vmatprep.subr.mxu0 0.0
        %3455 = vmatpush1.msra.mxu0 0.0
        %3456 = vmatprep.subr.mxu0 0.0
        %3457 = vmatpush1.msra.mxu0 0.0
        %3458 = vmatprep.subr.mxu0 0.0
        %3459 = vmatpush1.msra.mxu0 0.0
        %3460 = vmatprep.subr.mxu0 0.0
        %3461 = vmatpush1.msra.mxu0 0.0
        %3462 = vmatprep.subr.mxu0 0.0
        %3463 = vmatpush1.msra.mxu0 0.0
        %3464 = vmatprep.subr.mxu0 0.0
        %3465 = vmatpush1.msra.mxu0 0.0
        %3466 = vmatprep.subr.mxu0 0.0
        %3467 = vmatpush1.msra.mxu0 0.0
        %3468 = vmatprep.subr.mxu0 0.0
        %3469 = vmatpush1.msra.mxu0 0.0
        %3470 = vmatprep.subr.mxu0 0.0
        %3471 = vmatpush1.msra.mxu0 0.0
        %3472 = vmatprep.subr.mxu0 0.0
        %3473 = vmatpush1.msra.mxu0 0.0
        %3474 = vmatprep.subr.mxu0 0.0
        %3475 = vmatpush1.msra.mxu0 0.0
        %3476 = vmatprep.subr.mxu0 0.0
        %3477 = vmatpush1.msra.mxu0 0.0
        %3478 = vmatprep.subr.mxu0 0.0
        %3479 = vmatpush1.msra.mxu0 0.0
        %3480 = vmatprep.subr.mxu0 0.0
        %3481 = vmatpush1.msra.mxu0 0.0
        %3482 = vmatprep.subr.mxu0 0.0
        %3483 = vmatpush1.msra.mxu0 0.0
        %3484 = vmatprep.subr.mxu0 0.0
        %3485 = vmatpush1.msra.mxu0 0.0
        %3486 = vmatprep.subr.mxu0 0.0
        %3487 = vmatpush1.msra.mxu0 0.0
        %3488 = vmatprep.subr.mxu0 0.0
        %3489 = vmatpush1.msra.mxu0 0.0
        %3490 = vmatprep.subr.mxu0 0.0
        %3491 = vmatpush1.msra.mxu0 0.0
        %3492 = vmatprep.subr.mxu0 0.0
        %3493 = vmatpush1.msra.mxu0 0.0
        %3494 = vmatprep.subr.mxu0 0.0
        %3495 = vmatpush1.msra.mxu0 0.0
        %3496 = vmatprep.subr.mxu0 0.0
        %3497 = vmatpush1.msra.mxu0 0.0
        %3498 = vmatprep.subr.mxu0 0.0
        %3499 = vmatpush1.msra.mxu0 0.0
        %3500 = vmatprep.subr.mxu0 0.0
        %3501 = vmatpush1.msra.mxu0 0.0
        %3502 = vmatprep.subr.mxu0 0.0
        %3503 = vmatpush1.msra.mxu0 0.0
        %3504 = vmatprep.subr.mxu0 0.0
        %3505 = vmatpush1.msra.mxu0 0.0
        %3506 = vmatprep.subr.mxu0 0.0
        %3507 = vmatpush1.msra.mxu0 0.0
        %3508 = vmatprep.subr.mxu0 0.0
        %3509 = vmatpush1.msra.mxu0 0.0
        %3510 = vmatprep.mubr.f32.mxu0 0.0
        %3511 = vmatmul.mubr.f32.gmra.mrb[0].mxu0 %v3435
        %v3512 = vpop.f32.mrb[0].mxu0
        %v3513 = vadd.f32 %v3432, %v3512
        %v3514 = vpop.f32.mrb[0].mxu0
        %3515 = vmatprep.mubr.f32.mxu0 0.0
        %3516 = vmatmul.mubr.f32.gmra.mrb[0].mxu0 %v3438
        %v3517 = vpop.f32.mrb[0].mxu0
        %v3518 = vadd.f32 %v3432, %v3517
        %v3519 = vpop.f32.mrb[0].mxu0
        %3520 = vmatprep.mubr.f32.mxu0 0.0
        %3521 = vmatmul.mubr.f32.gmra.mrb[0].mxu0 %v3441
        %v3522 = vpop.f32.mrb[0].mxu0
        %v3523 = vadd.f32 %v3432, %v3522
        %v3524 = vpop.f32.mrb[0].mxu0
        %3525 = vmatprep.mubr.f32.mxu0 0.0
        %3526 = vmatmul.mubr.f32.gmra.mrb[0].mxu0 %v3444
        %v3527 = vpop.f32.mrb[0].mxu0
        %v3528 = vadd.f32 %v3432, %v3527
        %v3529 = vpop.f32.mrb[0].mxu0
        %3530 = vdwg.mxu0
        %v3531 = vxor.u32 %v3513, 2147483648
        %v3532 = vxor.u32 %v3518, 2147483648
        %v3533 = vxor.u32 %v3523, 2147483648
        %v3534 = vxor.u32 %v3528, 2147483648
        %v3535 = vmul.f32 %v3531, 1.442695
        %v3536 = vpow.pop %v3535
        %v3537 = vmul.f32 %v3532, 1.442695
        %v3538 = vpow.pop %v3537
        %v3539 = vmul.f32 %v3533, 1.442695
        %v3540 = vpow.pop %v3539
        %v3541 = vmul.f32 %v3534, 1.442695
        %v3542 = vpow.pop %v3541
        %v3543 = vadd.f32 %v3536, 1.0
        %v3544 = vadd.f32 %v3538, 1.0
        %v3545 = vadd.f32 %v3540, 1.0
        %v3546 = vadd.f32 %v3542, 1.0
        %v3547 = vrcp.pop %v3543
        %v3548 = vmul.f32 1.0, %v3547
        %v3549 = vrcp.pop %v3544
        %v3550 = vmul.f32 1.0, %v3549
        %v3551 = vrcp.pop %v3545
        %v3552 = vmul.f32 1.0, %v3551
        %v3553 = vrcp.pop %v3546
        %v3554 = vmul.f32 1.0, %v3553
        %v3555 = vmul.f32 %v3513, %v3548
        %v3556 = vmul.f32 %v3518, %v3550
        %v3557 = vmul.f32 %v3523, %v3552
        %v3558 = vmul.f32 %v3528, %v3554
        %v3559 = vld [vmem:[%s9] sm:$0xff]
        %v3560 = vld [vmem:[%s9 + $0x8] sm:$0xff]
        %v3561 = vld [vmem:[%s9 + $0x10] sm:$0xff]
        %v3562 = vld [vmem:[%s9 + $0x18] sm:$0xff]
        %v3563 = vld [vmem:[%s10] sm:$0x1]
        %v3565 = vlaneseq
        %v3566 = vshrl.u32 %v3565, 7
        %v3567 = vsub.s32 0, %v3566
        %v3568 = vrot.slane %v3563, %v3567
        %v3571 = vsel %vm471, %v3555, 0
        %v3574 = vsel %vm471, %v3556, 0
        %v3577 = vsel %vm471, %v3557, 0
        %v3580 = vsel %vm471, %v3558, 0
        %3582 = vmatprep.subr.mxu0 0.0
        %3583 = vmatpush1.msra.mxu0 %v3559
        %3584 = vmatprep.subr.mxu0 0.0
        %3585 = vmatpush1.msra.mxu0 %v3560
        %3586 = vmatprep.subr.mxu0 0.0
        %3587 = vmatpush1.msra.mxu0 %v3561
        %3588 = vmatprep.subr.mxu0 0.0
        %3589 = vmatpush1.msra.mxu0 %v3562
        %3590 = vmatprep.subr.mxu0 0.0
        %3591 = vmatpush1.msra.mxu0 0.0
        %3592 = vmatprep.subr.mxu0 0.0
        %3593 = vmatpush1.msra.mxu0 0.0
        %3594 = vmatprep.subr.mxu0 0.0
        %3595 = vmatpush1.msra.mxu0 0.0
        %3596 = vmatprep.subr.mxu0 0.0
        %3597 = vmatpush1.msra.mxu0 0.0
        %3598 = vmatprep.subr.mxu0 0.0
        %3599 = vmatpush1.msra.mxu0 0.0
        %3600 = vmatprep.subr.mxu0 0.0
        %3601 = vmatpush1.msra.mxu0 0.0
        %3602 = vmatprep.subr.mxu0 0.0
        %3603 = vmatpush1.msra.mxu0 0.0
        %3604 = vmatprep.subr.mxu0 0.0
        %3605 = vmatpush1.msra.mxu0 0.0
        %3606 = vmatprep.subr.mxu0 0.0
        %3607 = vmatpush1.msra.mxu0 0.0
        %3608 = vmatprep.subr.mxu0 0.0
        %3609 = vmatpush1.msra.mxu0 0.0
        %3610 = vmatprep.subr.mxu0 0.0
        %3611 = vmatpush1.msra.mxu0 0.0
        %3612 = vmatprep.subr.mxu0 0.0
        %3613 = vmatpush1.msra.mxu0 0.0
        %3614 = vmatprep.subr.mxu0 0.0
        %3615 = vmatpush1.msra.mxu0 0.0
        %3616 = vmatprep.subr.mxu0 0.0
        %3617 = vmatpush1.msra.mxu0 0.0
        %3618 = vmatprep.subr.mxu0 0.0
        %3619 = vmatpush1.msra.mxu0 0.0
        %3620 = vmatprep.subr.mxu0 0.0
        %3621 = vmatpush1.msra.mxu0 0.0
        %3622 = vmatprep.subr.mxu0 0.0
        %3623 = vmatpush1.msra.mxu0 0.0
        %3624 = vmatprep.subr.mxu0 0.0
        %3625 = vmatpush1.msra.mxu0 0.0
        %3626 = vmatprep.subr.mxu0 0.0
        %3627 = vmatpush1.msra.mxu0 0.0
        %3628 = vmatprep.subr.mxu0 0.0
        %3629 = vmatpush1.msra.mxu0 0.0
        %3630 = vmatprep.subr.mxu0 0.0
        %3631 = vmatpush1.msra.mxu0 0.0
        %3632 = vmatprep.subr.mxu0 0.0
        %3633 = vmatpush1.msra.mxu0 0.0
        %3634 = vmatprep.subr.mxu0 0.0
        %3635 = vmatpush1.msra.mxu0 0.0
        %3636 = vmatprep.subr.mxu0 0.0
        %3637 = vmatpush1.msra.mxu0 0.0
        %3638 = vmatprep.subr.mxu0 0.0
        %3639 = vmatpush1.msra.mxu0 0.0
        %3640 = vmatprep.subr.mxu0 0.0
        %3641 = vmatpush1.msra.mxu0 0.0
        %3642 = vmatprep.subr.mxu0 0.0
        %3643 = vmatpush1.msra.mxu0 0.0
        %3644 = vmatprep.subr.mxu0 0.0
        %3645 = vmatpush1.msra.mxu0 0.0
        %3646 = vmatprep.mubr.f32.mxu0 0.0
        %3647 = vmatmul.mubr.f32.gmra.mrb[0].mxu0 %v3571
        %v3648 = vpop.f32.mrb[0].mxu0
        %v3649 = vadd.f32 %v3568, %v3648
        %v3650 = vpop.f32.mrb[0].mxu0
        %3651 = vmatprep.mubr.f32.mxu0 0.0
        %3652 = vmatmul.mubr.f32.gmra.mrb[0].mxu0 %v3574
        %v3653 = vpop.f32.mrb[0].mxu0
        %v3654 = vadd.f32 %v3568, %v3653
        %v3655 = vpop.f32.mrb[0].mxu0
        %3656 = vmatprep.mubr.f32.mxu0 0.0
        %3657 = vmatmul.mubr.f32.gmra.mrb[0].mxu0 %v3577
        %v3658 = vpop.f32.mrb[0].mxu0
        %v3659 = vadd.f32 %v3568, %v3658
        %v3660 = vpop.f32.mrb[0].mxu0
        %3661 = vmatprep.mubr.f32.mxu0 0.0
        %3662 = vmatmul.mubr.f32.gmra.mrb[0].mxu0 %v3580
        %v3663 = vpop.f32.mrb[0].mxu0
        %v3664 = vadd.f32 %v3568, %v3663
        %v3665 = vpop.f32.mrb[0].mxu0
        %3666 = vdwg.mxu0
        %v3667 = vxor.u32 %v3649, 2147483648
        %v3668 = vxor.u32 %v3654, 2147483648
        %v3669 = vxor.u32 %v3659, 2147483648
        %v3670 = vxor.u32 %v3664, 2147483648
        %v3671 = vmul.f32 %v3667, 1.442695
        %v3672 = vpow.pop %v3671
        %v3673 = vmul.f32 %v3668, 1.442695
        %v3674 = vpow.pop %v3673
        %v3675 = vmul.f32 %v3669, 1.442695
        %v3676 = vpow.pop %v3675
        %v3677 = vmul.f32 %v3670, 1.442695
        %v3678 = vpow.pop %v3677
        %v3679 = vadd.f32 %v3672, 1.0
        %v3680 = vadd.f32 %v3674, 1.0
        %v3681 = vadd.f32 %v3676, 1.0
        %v3682 = vadd.f32 %v3678, 1.0
        %v3683 = vrcp.pop %v3679
        %v3684 = vmul.f32 1.0, %v3683
        %v3685 = vrcp.pop %v3680
        %v3686 = vmul.f32 1.0, %v3685
        %v3687 = vrcp.pop %v3681
        %v3688 = vmul.f32 1.0, %v3687
        %v3689 = vrcp.pop %v3682
        %v3690 = vmul.f32 1.0, %v3689
        %v3691 = vmul.f32 %v3649, %v3684
        %v3692 = vmul.f32 %v3654, %v3686
        %v3693 = vmul.f32 %v3659, %v3688
        %v3694 = vmul.f32 %v3664, %v3690
        %v3695 = vsel %vm471, %v3691, 0.0
        %3696 = vadd.xlane.f32.xlu0 %v3695
        %v3697 = vpop.xlane.xlu0 %3696
        %v3698 = vsel %vm471, %v3692, 0.0
        %3699 = vadd.xlane.f32.xlu0 %v3698
        %v3700 = vpop.xlane.xlu0 %3699
        %v3701 = vsel %vm471, %v3693, 0.0
        %3702 = vadd.xlane.f32.xlu0 %v3701
        %v3703 = vpop.xlane.xlu0 %3702
        %v3704 = vsel %vm471, %v3694, 0.0
        %3705 = vadd.xlane.f32.xlu0 %v3704
        %v3706 = vpop.xlane.xlu0 %3705
        %v3707 = vmul.f32 %v3697, %v484
        %v3708 = vmul.f32 %v3700, %v484
        %v3709 = vmul.f32 %v3703, %v484
        %v3710 = vmul.f32 %v3706, %v484
        %v3711 = vsub.f32 %v3691, %v3707
        %v3712 = vsub.f32 %v3692, %v3708
        %v3713 = vsub.f32 %v3693, %v3709
        %v3714 = vsub.f32 %v3694, %v3710
        %v3715 = vmul.f32 %v3711, %v3711
        %v3716 = vmul.f32 %v3712, %v3712
        %v3717 = vmul.f32 %v3713, %v3713
        %v3718 = vmul.f32 %v3714, %v3714
        %v3719 = vsel %vm471, %v3715, 0.0
        %3720 = vadd.xlane.f32.xlu0 %v3719
        %v3721 = vpop.xlane.xlu0 %3720
        %v3722 = vsel %vm471, %v3716, 0.0
        %3723 = vadd.xlane.f32.xlu0 %v3722
        %v3724 = vpop.xlane.xlu0 %3723
        %v3725 = vsel %vm471, %v3717, 0.0
        %3726 = vadd.xlane.f32.xlu0 %v3725
        %v3727 = vpop.xlane.xlu0 %3726
        %v3728 = vsel %vm471, %v3718, 0.0
        %3729 = vadd.xlane.f32.xlu0 %v3728
        %v3730 = vpop.xlane.xlu0 %3729
        %v3731 = vmul.f32 %v3721, %v484
        %v3732 = vmul.f32 %v3724, %v484
        %v3733 = vmul.f32 %v3727, %v484
        %v3734 = vmul.f32 %v3730, %v484
        %v3735 = vadd.f32 %v3731, 1e-05
        %v3736 = vadd.f32 %v3732, 1e-05
        %v3737 = vadd.f32 %v3733, 1e-05
        %v3738 = vadd.f32 %v3734, 1e-05
        %v3739 = vrsqrt.pop %v3735
        %v3740 = vrsqrt.pop %v3736
        %v3741 = vrsqrt.pop %v3737
        %v3742 = vrsqrt.pop %v3738
        %v3743 = vmul.f32 %v3711, %v3739
        %v3744 = vmul.f32 %v3712, %v3740
        %v3745 = vmul.f32 %v3713, %v3741
        %v3746 = vmul.f32 %v3714, %v3742
        %v3747 = vmul.f32 %v3743, %v529
        %v3748 = vmul.f32 %v3744, %v529
        %v3749 = vmul.f32 %v3745, %v529
        %v3750 = vmul.f32 %v3746, %v529
        %v3751 = vadd.f32 %v3747, %v539
        %v3752 = vadd.f32 %v3748, %v539
        %v3753 = vadd.f32 %v3749, %v539
        %v3754 = vadd.f32 %v3750, %v539
        %3755 = vst.msk [vmem:[%s463] sm:$0xff] %vm471, %v3751
        %3756 = vst.msk [vmem:[%s463 + $0x8] sm:$0xff] %vm471, %v3752
        %3757 = vst.msk [vmem:[%s463 + $0x10] sm:$0xff] %vm471, %v3753
        %3758 = vst.msk [vmem:[%s463 + $0x18] sm:$0xff] %vm471, %v3754
        %s3759 = smul.u32 4, %s25
        %p3760 = scmp.lt.s32.totalorder %s3759, 7
        %s3761 = scalar_select %p3760, %s3759, 7
        %s3762 = smul.addr %s3761, 8
        %s3763 = scalar_lea.vmem %s11, %s3762
        // Predicated region
        $region81: #{tpu_custom_call.1} parent=63 // pred_check
          %p3764 = pneg %p284
        $region82: #{tpu_custom_call.1} parent=63 // pred_check_branch
          %3766 = sbr.rel (%p3764) target = $region84
        $region83: #{tpu_custom_call.1} parent=63 // pred_region
          %s3767 = smul.u32 4, %s25
        $region84: #{tpu_custom_call.1} parent=63 // pred_fallthru
          _
      $region64: #{tpu_custom_call.1} parent=5 // pred_fallthru
        _
      %p3768 = scmp.le.s32.totalorder 2, %s20
      // Predicated region
      $region85: #{tpu_custom_call.1} parent=5 // pred_check
        %p3769 = pneg %p3768
      $region86: #{tpu_custom_call.1} parent=5 // pred_check_branch
        %3771 = sbr.rel (%p3769) target = $region88
      $region87: #{tpu_custom_call.1} parent=5 // pred_region
        %s3772 = ssub.s32 %s20, 2
        // Predicated region
        $region89: #{tpu_custom_call.1} parent=87 // pred_check
          %p3773 = pneg %p290
        $region90: #{tpu_custom_call.1} parent=87 // pred_check_branch
          %3775 = sbr.rel (%p3773) target = $region92
        $region91: #{tpu_custom_call.1} parent=87 // pred_region
          %s3776 = smul.u32 4, %s26
          %p3777 = scmp.lt.s32.totalorder %s3776, 7
          %s3778 = scalar_select %p3777, %s3776, 7
          %s3779 = smul.addr %s3778, 8
          %s3780 = scalar_lea.vmem %s11, %s3779
        $region92: #{tpu_custom_call.1} parent=87 // pred_fallthru
          _
      $region88: #{tpu_custom_call.1} parent=5 // pred_fallthru
        _
    $region6: #{tpu_custom_call.1} parent=1 // loop_footer
      %s24 = sadd.s32 1, %s20
    $region7: #{tpu_custom_call.1} parent=1 // loop_footer_branch
      %19 = sbr.rel target = $region3
    $region8: #{tpu_custom_call.1} parent=1 // loop_exit
      _
    %3781 = vsyncpa [#allocation3], 1
    %s3782 = scalar_lea.sflag [#allocation3], 1
    %3783 = vsyncpa %s3782, 1
    %3784 = vsyncpa [#allocation5], 1
    %3785 = vsyncpa [#allocation8], 1

// kernel: tpu_custom_call.1
$region0: #{tpu_custom_call.1}
  #allocation0 [shape = 'u32[]', space=smem, size = 0x4, offset = 0x4, fixed_abs, tag = 'smem constant byte address 0x4 - core index']
  #allocation1 [shape = 'u32[144,128]{1,0:T(1,128)}', space=vmem, size = 0x12000, scoped, tag = 'internal scratch']
  %s0 = inlined_call_operand.vmem [shape: f32[64,32], index: 0, kind: input, shape index: {}]
  %s1 = inlined_call_operand.vmem [shape: f32[8,8,8], index: 1, kind: input, shape index: {}]
  %s2 = inlined_call_operand.vmem [shape: f32[1,32], index: 2, kind: input, shape index: {}]
  %s3 = inlined_call_operand.vmem [shape: f32[1,32], index: 3, kind: input, shape index: {}]
  %s4 = inlined_call_operand.vmem [shape: f32[32,96], index: 4, kind: input, shape index: {}]
  %s5 = inlined_call_operand.hbm [shape: f32[1,32], index: 5, kind: input, shape index: {}]
  %s6 = inlined_call_operand.hbm [shape: f32[1,32], index: 6, kind: input, shape index: {}]
  %s7 = inlined_call_operand.hbm [shape: f32[32,32], index: 7, kind: input, shape index: {}]
  %s8 = inlined_call_operand.hbm [shape: f32[1,32], index: 8, kind: input, shape index: {}]
  %s9 = inlined_call_operand.vmem [shape: f32[32,32], index: 9, kind: input, shape index: {}]
  %s10 = inlined_call_operand.vmem [shape: f32[1,32], index: 10, kind: input, shape index: {}]
  %s11 = inlined_call_operand.vmem [shape: f32[64,32], index: 11, kind: output, shape index: {}]
  %s12 = sld [smem:[#allocation0]]
  $region93: #{tpu_custom_call.1} parent=0
    _
  %s14 = ssub.s32 1, %s12
  %s15 = scalar_select 0, %s14, %s12
  $region1: #{tpu_custom_call.1} parent=0
    #allocation2 [shape = 'u8[512]{0}', space=vmem, size = 0x400, scoped, tag = 'input window, operand 5, single buffered']
    #allocation3 [shape = 's32[2]{0}', space=sflag, size = 0x8, scoped, tag = 'scoped memory for tpu_custom_call.1']
    #allocation4 [shape = 'u8[512]{0}', space=vmem, size = 0x400, scoped, tag = 'input window, operand 6, single buffered']
    #allocation5 [shape = 's32[1]{0}', space=sflag, size = 0x4, scoped, tag = 'scoped memory for tpu_custom_call.1']
    #allocation6 [shape = 'u8[16384]{0}', space=vmem, size = 0x4000, scoped, tag = 'input window, operand 7, single buffered']
    #allocation7 [shape = 'u8[512]{0}', space=vmem, size = 0x400, scoped, tag = 'input window, operand 8, single buffered']
    #allocation8 [shape = 's32[1]{0}', space=sflag, size = 0x4, scoped, tag = 'scoped memory for tpu_custom_call.1']
    %16 = vsyncpa [#allocation3], 0
    %17 = vsyncpa [#allocation5], 0
    %18 = vsyncpa [#allocation8], 0
    loop: start=0, step=1, limit=4
    $region2: #{tpu_custom_call.1} parent=1 // loop_pre_header
      _
    $region3: #{tpu_custom_call.1} parent=1 // loop_header
      %s20 = sphi 0, %s24
      %p21 = scmp.ge.s32.totalorder %s20, 4
      %s30 = sphi 0, %s32
      %s33 = sphi 0, %s30
      %s34 = sphi 0, %s33
      %s50 = sphi 0, %s34
      %s56 = sphi 0, %s58
      %s59 = sphi 0, %s56
      %s60 = sphi 0, %s59
      %s76 = sphi 0, %s60
      %s80 = sphi 0, %s80
      %s82 = sphi 0, %s80
      %s83 = sphi 0, %s82
      %s97 = sphi 0, %s83
      %s101 = sphi 0, %s101
      %s103 = sphi 0, %s101
      %s104 = sphi 0, %s103
      %s118 = sphi 0, %s104
      %s122 = sphi 0, %s122
      %s124 = sphi 0, %s122
      %s125 = sphi 0, %s124
      %s139 = sphi 0, %s125
      %s143 = sphi 0, %s143
      %s145 = sphi 0, %s143
      %s146 = sphi 0, %s145
      %s160 = sphi 0, %s146
      %s164 = sphi 0, %s164
      %s166 = sphi 0, %s164
      %s167 = sphi 0, %s166
      %s181 = sphi 0, %s167
      %s185 = sphi 0, %s185
      %s187 = sphi 0, %s185
      %s188 = sphi 0, %s187
      %s202 = sphi 0, %s188
      %s206 = sphi 0, %s206
      %s208 = sphi 0, %s206
      %s209 = sphi 0, %s208
      %s223 = sphi 0, %s209
      %s227 = sphi 0, %s227
      %s229 = sphi 0, %s227
      %s230 = sphi 0, %s229
      %s244 = sphi 0, %s230
      %s248 = sphi 0, %s248
      %s250 = sphi 0, %s248
      %s251 = sphi 0, %s250
      %s265 = sphi 0, %s251
      %s271 = sphi 0, %s273
      %s274 = sphi 0, %s271
      %s275 = sphi 0, %s274
      %s291 = sphi 0, %s275
    $region4: #{tpu_custom_call.1} parent=1 // loop_header_branch
      %23 = sbr.rel (%p21) target = $region8
    $region5: #{tpu_custom_call.1} parent=1 // loop_body
      %s25 = ssub.s32 %s20, 1
      %s26 = ssub.s32 %s20, 2
      %s27 = sadd.s32 %s20, 1
      %s28 = ssub.s32 %s20, %s27
      %p29 = scmp.eq.s32.totalorder %s28, 0
      %s31 = sadd.s32 %s30, 1
      %s32 = scalar_select %p29, %s30, %s31
      %p35 = pneg %p29
      %p36 = scmp.eq.s32.totalorder %s20, 1
      %p37 = por %p35, %p36
      %p38 = scmp.ne.s32.totalorder %s30, %s33
      %p39 = scmp.eq.s32.totalorder %s20, 0
      %p40 = por %p38, %p39
      %p41 = scmp.ne.s32.totalorder %s30, %s33
      %p42 = scmp.eq.s32.totalorder %s25, 1
      %p43 = por %p41, %p42
      %p44 = scmp.ne.s32.totalorder %s33, %s34
      %p45 = scmp.eq.s32.totalorder %s25, 0
      %p46 = por %p44, %p45
      %p47 = scmp.ne.s32.totalorder %s33, %s34
      %p48 = scmp.eq.s32.totalorder %s26, 1
      %p49 = por %p47, %p48
      %p51 = scmp.ne.s32.totalorder %s34, %s50
      %p52 = scmp.eq.s32.totalorder %s26, 0
      %p53 = por %p51, %p52
      %s54 = ssub.s32 %s20, %s27
      %p55 = scmp.eq.s32.totalorder %s54, 0
      %s57 = sadd.s32 %s56, 1
      %s58 = scalar_select %p55, %s56, %s57
      %p61 = pneg %p55
      %p62 = scmp.eq.s32.totalorder %s20, 1
      %p63 = por %p61, %p62
      %p64 = scmp.ne.s32.totalorder %s56, %s59
      %p65 = scmp.eq.s32.totalorder %s20, 0
      %p66 = por %p64, %p65
      %p67 = scmp.ne.s32.totalorder %s56, %s59
      %p68 = scmp.eq.s32.totalorder %s25, 1
      %p69 = por %p67, %p68
      %p70 = scmp.ne.s32.totalorder %s59, %s60
      %p71 = scmp.eq.s32.totalorder %s25, 0
      %p72 = por %p70, %p71
      %p73 = scmp.ne.s32.totalorder %s59, %s60
      %p74 = scmp.eq.s32.totalorder %s26, 1
      %p75 = por %p73, %p74
      %p77 = scmp.ne.s32.totalorder %s60, %s76
      %p78 = scmp.eq.s32.totalorder %s26, 0
      %p79 = por %p77, %p78
      %s81 = sadd.s32 %s80, 1
      %p84 = scmp.eq.s32.totalorder %s20, 1
      %p85 = scmp.ne.s32.totalorder %s80, %s82
      %p86 = scmp.eq.s32.totalorder %s20, 0
      %p87 = por %p85, %p86
      %p88 = scmp.ne.s32.totalorder %s80, %s82
      %p89 = scmp.eq.s32.totalorder %s25, 1
      %p90 = por %p88, %p89
      %p91 = scmp.ne.s32.totalorder %s82, %s83
      %p92 = scmp.eq.s32.totalorder %s25, 0
      %p93 = por %p91, %p92
      %p94 = scmp.ne.s32.totalorder %s82, %s83
      %p95 = scmp.eq.s32.totalorder %s26, 1
      %p96 = por %p94, %p95
      %p98 = scmp.ne.s32.totalorder %s83, %s97
      %p99 = scmp.eq.s32.totalorder %s26, 0
      %p100 = por %p98, %p99
      %s102 = sadd.s32 %s101, 1
      %p105 = scmp.eq.s32.totalorder %s20, 1
      %p106 = scmp.ne.s32.totalorder %s101, %s103
      %p107 = scmp.eq.s32.totalorder %s20, 0
      %p108 = por %p106, %p107
      %p109 = scmp.ne.s32.totalorder %s101, %s103
      %p110 = scmp.eq.s32.totalorder %s25, 1
      %p111 = por %p109, %p110
      %p112 = scmp.ne.s32.totalorder %s103, %s104
      %p113 = scmp.eq.s32.totalorder %s25, 0
      %p114 = por %p112, %p113
      %p115 = scmp.ne.s32.totalorder %s103, %s104
      %p116 = scmp.eq.s32.totalorder %s26, 1
      %p117 = por %p115, %p116
      %p119 = scmp.ne.s32.totalorder %s104, %s118
      %p120 = scmp.eq.s32.totalorder %s26, 0
      %p121 = por %p119, %p120
      %s123 = sadd.s32 %s122, 1
      %p126 = scmp.eq.s32.totalorder %s20, 1
      %p127 = scmp.ne.s32.totalorder %s122, %s124
      %p128 = scmp.eq.s32.totalorder %s20, 0
      %p129 = por %p127, %p128
      %p130 = scmp.ne.s32.totalorder %s122, %s124
      %p131 = scmp.eq.s32.totalorder %s25, 1
      %p132 = por %p130, %p131
      %p133 = scmp.ne.s32.totalorder %s124, %s125
      %p134 = scmp.eq.s32.totalorder %s25, 0
      %p135 = por %p133, %p134
      %p136 = scmp.ne.s32.totalorder %s124, %s125
      %p137 = scmp.eq.s32.totalorder %s26, 1
      %p138 = por %p136, %p137
      %p140 = scmp.ne.s32.totalorder %s125, %s139
      %p141 = scmp.eq.s32.totalorder %s26, 0
      %p142 = por %p140, %p141
      %s144 = sadd.s32 %s143, 1
      %p147 = scmp.eq.s32.totalorder %s20, 1
      %p148 = scmp.ne.s32.totalorder %s143, %s145
      %p149 = scmp.eq.s32.totalorder %s20, 0
      %p150 = por %p148, %p149
      %p151 = scmp.ne.s32.totalorder %s143, %s145
      %p152 = scmp.eq.s32.totalorder %s25, 1
      %p153 = por %p151, %p152
      %p154 = scmp.ne.s32.totalorder %s145, %s146
      %p155 = scmp.eq.s32.totalorder %s25, 0
      %p156 = por %p154, %p155
      %p157 = scmp.ne.s32.totalorder %s145, %s146
      %p158 = scmp.eq.s32.totalorder %s26, 1
      %p159 = por %p157, %p158
      %p161 = scmp.ne.s32.totalorder %s146, %s160
      %p162 = scmp.eq.s32.totalorder %s26, 0
      %p163 = por %p161, %p162
      %s165 = sadd.s32 %s164, 1
      %p168 = scmp.eq.s32.totalorder %s20, 1
      %p169 = scmp.ne.s32.totalorder %s164, %s166
      %p170 = scmp.eq.s32.totalorder %s20, 0
      %p171 = por %p169, %p170
      %p172 = scmp.ne.s32.totalorder %s164, %s166
      %p173 = scmp.eq.s32.totalorder %s25, 1
      %p174 = por %p172, %p173
      %p175 = scmp.ne.s32.totalorder %s166, %s167
      %p176 = scmp.eq.s32.totalorder %s25, 0
      %p177 = por %p175, %p176
      %p178 = scmp.ne.s32.totalorder %s166, %s167
      %p179 = scmp.eq.s32.totalorder %s26, 1
      %p180 = por %p178, %p179
      %p182 = scmp.ne.s32.totalorder %s167, %s181
      %p183 = scmp.eq.s32.totalorder %s26, 0
      %p184 = por %p182, %p183
      %s186 = sadd.s32 %s185, 1
      %p189 = scmp.eq.s32.totalorder %s20, 1
      %p190 = scmp.ne.s32.totalorder %s185, %s187
      %p191 = scmp.eq.s32.totalorder %s20, 0
      %p192 = por %p190, %p191
      %p193 = scmp.ne.s32.totalorder %s185, %s187
      %p194 = scmp.eq.s32.totalorder %s25, 1
      %p195 = por %p193, %p194
      %p196 = scmp.ne.s32.totalorder %s187, %s188
      %p197 = scmp.eq.s32.totalorder %s25, 0
      %p198 = por %p196, %p197
      %p199 = scmp.ne.s32.totalorder %s187, %s188
      %p200 = scmp.eq.s32.totalorder %s26, 1
      %p201 = por %p199, %p200
      %p203 = scmp.ne.s32.totalorder %s188, %s202
      %p204 = scmp.eq.s32.totalorder %s26, 0
      %p205 = por %p203, %p204
      %s207 = sadd.s32 %s206, 1
      %p210 = scmp.eq.s32.totalorder %s20, 1
      %p211 = scmp.ne.s32.totalorder %s206, %s208
      %p212 = scmp.eq.s32.totalorder %s20, 0
      %p213 = por %p211, %p212
      %p214 = scmp.ne.s32.totalorder %s206, %s208
      %p215 = scmp.eq.s32.totalorder %s25, 1
      %p216 = por %p214, %p215
      %p217 = scmp.ne.s32.totalorder %s208, %s209
      %p218 = scmp.eq.s32.totalorder %s25, 0
      %p219 = por %p217, %p218
      %p220 = scmp.ne.s32.totalorder %s208, %s209
      %p221 = scmp.eq.s32.totalorder %s26, 1
      %p222 = por %p220, %p221
      %p224 = scmp.ne.s32.totalorder %s209, %s223
      %p225 = scmp.eq.s32.totalorder %s26, 0
      %p226 = por %p224, %p225
      %s228 = sadd.s32 %s227, 1
      %p231 = scmp.eq.s32.totalorder %s20, 1
      %p232 = scmp.ne.s32.totalorder %s227, %s229
      %p233 = scmp.eq.s32.totalorder %s20, 0
      %p234 = por %p232, %p233
      %p235 = scmp.ne.s32.totalorder %s227, %s229
      %p236 = scmp.eq.s32.totalorder %s25, 1
      %p237 = por %p235, %p236
      %p238 = scmp.ne.s32.totalorder %s229, %s230
      %p239 = scmp.eq.s32.totalorder %s25, 0
      %p240 = por %p238, %p239
      %p241 = scmp.ne.s32.totalorder %s229, %s230
      %p242 = scmp.eq.s32.totalorder %s26, 1
      %p243 = por %p241, %p242
      %p245 = scmp.ne.s32.totalorder %s230, %s244
      %p246 = scmp.eq.s32.totalorder %s26, 0
      %p247 = por %p245, %p246
      %s249 = sadd.s32 %s248, 1
      %p252 = scmp.eq.s32.totalorder %s20, 1
      %p253 = scmp.ne.s32.totalorder %s248, %s250
      %p254 = scmp.eq.s32.totalorder %s20, 0
      %p255 = por %p253, %p254
      %p256 = scmp.ne.s32.totalorder %s248, %s250
      %p257 = scmp.eq.s32.totalorder %s25, 1
      %p258 = por %p256, %p257
      %p259 = scmp.ne.s32.totalorder %s250, %s251
      %p260 = scmp.eq.s32.totalorder %s25, 0
      %p261 = por %p259, %p260
      %p262 = scmp.ne.s32.totalorder %s250, %s251
      %p263 = scmp.eq.s32.totalorder %s26, 1
      %p264 = por %p262, %p263
      %p266 = scmp.ne.s32.totalorder %s251, %s265
      %p267 = scmp.eq.s32.totalorder %s26, 0
      %p268 = por %p266, %p267
      %s269 = ssub.s32 %s20, %s27
      %p270 = scmp.eq.s32.totalorder %s269, 0
      %s272 = sadd.s32 %s271, 1
      %s273 = scalar_select %p270, %s271, %s272
      %p276 = pneg %p270
      %p277 = scmp.eq.s32.totalorder %s20, 1
      %p278 = por %p276, %p277
      %p279 = scmp.ne.s32.totalorder %s271, %s274
      %p280 = scmp.eq.s32.totalorder %s20, 0
      %p281 = por %p279, %p280
      %p282 = scmp.ne.s32.totalorder %s271, %s274
      %p283 = scmp.eq.s32.totalorder %s25, 1
      %p284 = por %p282, %p283
      %p285 = scmp.ne.s32.totalorder %s274, %s275
      %p286 = scmp.eq.s32.totalorder %s25, 0
      %p287 = por %p285, %p286
      %p288 = scmp.ne.s32.totalorder %s274, %s275
      %p289 = scmp.eq.s32.totalorder %s26, 1
      %p290 = por %p288, %p289
      %p292 = scmp.ne.s32.totalorder %s275, %s291
      %p293 = scmp.eq.s32.totalorder %s26, 0
      %p294 = por %p292, %p293
      %p295 = scmp.le.s32.totalorder 1, %s20
      %p296 = scmp.lt.s32.totalorder %s20, 3
      %p297 = pnand %p295, %p296
      %p298 = pneg %p297
      // Predicated region
      $region9: #{tpu_custom_call.1} parent=5 // pred_check
        _
      $region10: #{tpu_custom_call.1} parent=5 // pred_check_branch
        %300 = sbr.rel (%p297) target = $region12
      $region11: #{tpu_custom_call.1} parent=5 // pred_region
        %s301 = ssub.s32 %s20, 1
        // Predicated region
        $region13: #{tpu_custom_call.1} parent=11 // pred_check
          %p302 = pneg %p93
        $region14: #{tpu_custom_call.1} parent=11 // pred_check_branch
          %304 = sbr.rel (%p302) target = $region16
        $region15: #{tpu_custom_call.1} parent=11 // pred_region
          _
        $region16: #{tpu_custom_call.1} parent=11 // pred_fallthru
          _
        // Predicated region
        $region17: #{tpu_custom_call.1} parent=11 // pred_check
          %p305 = pneg %p114
        $region18: #{tpu_custom_call.1} parent=11 // pred_check_branch
          %307 = sbr.rel (%p305) target = $region20
        $region19: #{tpu_custom_call.1} parent=11 // pred_region
          _
        $region20: #{tpu_custom_call.1} parent=11 // pred_fallthru
          _
        // Predicated region
        $region21: #{tpu_custom_call.1} parent=11 // pred_check
          %p308 = pneg %p135
        $region22: #{tpu_custom_call.1} parent=11 // pred_check_branch
          %310 = sbr.rel (%p308) target = $region24
        $region23: #{tpu_custom_call.1} parent=11 // pred_region
          _
        $region24: #{tpu_custom_call.1} parent=11 // pred_fallthru
          _
        // Predicated region
        $region25: #{tpu_custom_call.1} parent=11 // pred_check
          %p311 = pneg %p156
        $region26: #{tpu_custom_call.1} parent=11 // pred_check_branch
          %313 = sbr.rel (%p311) target = $region28
        $region27: #{tpu_custom_call.1} parent=11 // pred_region
          %s315 = ssub.s32 16, 16
          %316 = vsyncadd [#allocation3], %s315
          %s318 = sshll.u32 [#allocation2], 4
          %s319 = int_to_ptr.vmem [resolvable:$true] %s318
          %321 = dma.hbm_to_vmem [thread:$0]  %s5, 16, %s319, [#allocation3]
        $region28: #{tpu_custom_call.1} parent=11 // pred_fallthru
          _
        // Predicated region
        $region29: #{tpu_custom_call.1} parent=11 // pred_check
          %p322 = pneg %p177
        $region30: #{tpu_custom_call.1} parent=11 // pred_check_branch
          %324 = sbr.rel (%p322) target = $region32
        $region31: #{tpu_custom_call.1} parent=11 // pred_region
          %s326 = ssub.s32 16, 16
          %327 = vsyncadd [#allocation5], %s326
          %s329 = sshll.u32 [#allocation4], 4
          %s330 = int_to_ptr.vmem [resolvable:$true] %s329
          %332 = dma.hbm_to_vmem [thread:$0]  %s6, 16, %s330, [#allocation5]
        $region32: #{tpu_custom_call.1} parent=11 // pred_fallthru
          _
        // Predicated region
        $region33: #{tpu_custom_call.1} parent=11 // pred_check
          %p333 = pneg %p198
        $region34: #{tpu_custom_call.1} parent=11 // pred_check_branch
          %335 = sbr.rel (%p333) target = $region36
        $region35: #{tpu_custom_call.1} parent=11 // pred_region
          %s337 = ssub.s32 512, 512
          %338 = vsyncadd [#allocation5], %s337
          %s339 = sshll.u32 [#allocation6], 4
          %s340 = int_to_ptr.vmem [resolvable:$true] %s339
          %345 = dma.hbm_to_vmem [thread:$0]  %s7, 512, %s340, [#allocation5], 128, 128, 8
        $region36: #{tpu_custom_call.1} parent=11 // pred_fallthru
          _
        // Predicated region
        $region37: #{tpu_custom_call.1} parent=11 // pred_check
          %p346 = pneg %p219
        $region38: #{tpu_custom_call.1} parent=11 // pred_check_branch
          %348 = sbr.rel (%p346) target = $region40
        $region39: #{tpu_custom_call.1} parent=11 // pred_region
          %s350 = ssub.s32 16, 16
          %351 = vsyncadd [#allocation8], %s350
          %s353 = sshll.u32 [#allocation7], 4
          %s354 = int_to_ptr.vmem [resolvable:$true] %s353
          %356 = dma.hbm_to_vmem [thread:$0]  %s8, 16, %s354, [#allocation8]
        $region40: #{tpu_custom_call.1} parent=11 // pred_fallthru
          _
        // Predicated region
        $region41: #{tpu_custom_call.1} parent=11 // pred_check
          %p357 = pneg %p240
        $region42: #{tpu_custom_call.1} parent=11 // pred_check_branch
          %359 = sbr.rel (%p357) target = $region44
        $region43: #{tpu_custom_call.1} parent=11 // pred_region
          _
        $region44: #{tpu_custom_call.1} parent=11 // pred_fallthru
          _
        // Predicated region
        $region45: #{tpu_custom_call.1} parent=11 // pred_check
          %p360 = pneg %p261
        $region46: #{tpu_custom_call.1} parent=11 // pred_check_branch
          %362 = sbr.rel (%p360) target = $region48
        $region47: #{tpu_custom_call.1} parent=11 // pred_region
          _
        $region48: #{tpu_custom_call.1} parent=11 // pred_fallthru
          _
      $region12: #{tpu_custom_call.1} parent=5 // pred_fallthru
        _
      %p363 = scmp.lt.s32.totalorder %s20, 2
      // Predicated region
      $region49: #{tpu_custom_call.1} parent=5 // pred_check
        %p364 = pneg %p363
      $region50: #{tpu_custom_call.1} parent=5 // pred_check_branch
        %366 = sbr.rel (%p364) target = $region52
      $region51: #{tpu_custom_call.1} parent=5 // pred_region
        // Predicated region
        $region53: #{tpu_custom_call.1} parent=51 // pred_check
          %p367 = pneg %p40
        $region54: #{tpu_custom_call.1} parent=51 // pred_check_branch
          %369 = sbr.rel (%p367) target = $region56
        $region55: #{tpu_custom_call.1} parent=51 // pred_region
          %s370 = smul.u32 4, %s20
          %p371 = scmp.lt.s32.totalorder %s370, 7
          %s372 = scalar_select %p371, %s370, 7
          %s373 = smul.addr %s372, 8
          %s374 = scalar_lea.vmem %s0, %s373
          %s375 = smul.u32 4, %s20
        $region56: #{tpu_custom_call.1} parent=51 // pred_fallthru
          _
        // Predicated region
        $region57: #{tpu_custom_call.1} parent=51 // pred_check
          %p376 = pneg %p66
        $region58: #{tpu_custom_call.1} parent=51 // pred_check_branch
          %378 = sbr.rel (%p376) target = $region60
        $region59: #{tpu_custom_call.1} parent=51 // pred_region
          %s379 = smul.u32 4, %s20
          %p380 = scmp.lt.s32.totalorder %s379, 7
          %s381 = scalar_select %p380, %s379, 7
          %s382 = smul.addr %s381, 8
          %s383 = scalar_lea.vmem %s1, %s382
          %s384 = smul.u32 4, %s20
        $region60: #{tpu_custom_call.1} parent=51 // pred_fallthru
          _
      $region52: #{tpu_custom_call.1} parent=5 // pred_fallthru
        _
      %p385 = scmp.le.s32.totalorder 1, %s20
      %p386 = scmp.lt.s32.totalorder %s20, 3
      %p387 = pnand %p385, %p386
      %p388 = pneg %p387
      // Predicated region
      $region61: #{tpu_custom_call.1} parent=5 // pred_check
        _
      $region62: #{tpu_custom_call.1} parent=5 // pred_check_branch
        %390 = sbr.rel (%p387) target = $region64
      $region63: #{tpu_custom_call.1} parent=5 // pred_region
        %s391 = ssub.s32 %s20, 1
        // Predicated region
        $region65: #{tpu_custom_call.1} parent=63 // pred_check
          %p392 = pneg %p156
        $region66: #{tpu_custom_call.1} parent=63 // pred_check_branch
          %394 = sbr.rel (%p392) target = $region68
        $region67: #{tpu_custom_call.1} parent=63 // pred_region
          %395 = dma.done [#allocation3], 16
        $region68: #{tpu_custom_call.1} parent=63 // pred_fallthru
          _
        // Predicated region
        $region69: #{tpu_custom_call.1} parent=63 // pred_check
          %p396 = pneg %p177
        $region70: #{tpu_custom_call.1} parent=63 // pred_check_branch
          %398 = sbr.rel (%p396) target = $region72
        $region71: #{tpu_custom_call.1} parent=63 // pred_region
          %399 = dma.done [#allocation5], 16
        $region72: #{tpu_custom_call.1} parent=63 // pred_fallthru
          _
        // Predicated region
        $region73: #{tpu_custom_call.1} parent=63 // pred_check
          %p400 = pneg %p198
        $region74: #{tpu_custom_call.1} parent=63 // pred_check_branch
          %402 = sbr.rel (%p400) target = $region76
        $region75: #{tpu_custom_call.1} parent=63 // pred_region
          %403 = dma.done [#allocation5], 512
        $region76: #{tpu_custom_call.1} parent=63 // pred_fallthru
          _
        // Predicated region
        $region77: #{tpu_custom_call.1} parent=63 // pred_check
          %p404 = pneg %p219
        $region78: #{tpu_custom_call.1} parent=63 // pred_check_branch
          %406 = sbr.rel (%p404) target = $region80
        $region79: #{tpu_custom_call.1} parent=63 // pred_region
          %407 = dma.done [#allocation8], 16
        $region80: #{tpu_custom_call.1} parent=63 // pred_fallthru
          _
        %s408 = smul.u32 4, %s25
        %p409 = scmp.lt.s32.totalorder %s408, 7
        %s410 = scalar_select %p409, %s408, 7
        %s411 = smul.addr %s410, 8
        %s412 = scalar_lea.vmem %s0, %s411
        %p413 = pneg %p46
        %p414 = pneg %p43
        %s415 = smul.u32 4, %s25
        %p416 = scmp.lt.s32.totalorder %s415, 7
        %s417 = scalar_select %p416, %s415, 7
        %s418 = smul.addr %s417, 8
        %s419 = scalar_lea.vmem %s1, %s418
        %p420 = pneg %p72
        %p421 = pneg %p69
        %p422 = pneg %p93
        %p423 = pneg %p90
        %p424 = pneg %p114
        %p425 = pneg %p111
        %p426 = pneg %p135
        %p427 = pneg %p132
        %p428 = pneg %p156
        %p429 = pneg %p153
        %p430 = pneg %p177
        %p431 = pneg %p174
        %p432 = pneg %p198
        %p433 = pneg %p195
        %p434 = pneg %p219
        %p435 = pneg %p216
        %p436 = pneg %p240
        %p437 = pneg %p237
        %p438 = pneg %p261
        %p439 = pneg %p258
        %p440 = pneg %p287
        %p441 = pneg %p284
        %s442 = smul.u32 4, %s25
        %p443 = scmp.lt.s32.totalorder %s442, 7
        %s444 = scalar_select %p443, %s442, 7
        %s445 = smul.addr %s444, 8
        %s446 = scalar_lea.vmem %s11, %s445
        %s447 = smul.u32 4, %s25
        %p448 = scmp.lt.s32.totalorder %s447, 7
        %s449 = scalar_select %p448, %s447, 7
        %s450 = smul.addr %s449, 8
        %s451 = scalar_lea.vmem %s0, %s450
        %s452 = smul.u32 4, %s25
        %s453 = smul.u32 4, %s25
        %p454 = scmp.lt.s32.totalorder %s453, 7
        %s455 = scalar_select %p454, %s453, 7
        %s456 = smul.addr %s455, 8
        %s457 = scalar_lea.vmem %s1, %s456
        %s458 = smul.u32 4, %s25
        %s459 = smul.u32 4, %s25
        %p460 = scmp.lt.s32.totalorder %s459, 7
        %s461 = scalar_select %p460, %s459, 7
        %s462 = smul.addr %s461, 8
        %s463 = scalar_lea.vmem %s11, %s462
        %s464 = smul.u32 4, %s25
        %v465 = vld [vmem:[%s2] sm:$0x1]
        %v466 = vld [vmem:[%s3] sm:$0x1]
        %v467 = vld [vmem:[%s451] sm:$0xff]
        %v468 = vld [vmem:[%s451 + $0x8] sm:$0xff]
        %v469 = vld [vmem:[%s451 + $0x10] sm:$0xff]
        %v470 = vld [vmem:[%s451 + $0x18] sm:$0xff]
        %vm471 = vcmask 261120
        %v472 = vsel %vm471, %v467, 0.0
        %473 = vadd.xlane.f32.xlu0 %v472
        %v474 = vpop.xlane.xlu0 %473
        %v475 = vsel %vm471, %v468, 0.0
        %476 = vadd.xlane.f32.xlu0 %v475
        %v477 = vpop.xlane.xlu0 %476
        %v478 = vsel %vm471, %v469, 0.0
        %479 = vadd.xlane.f32.xlu0 %v478
        %v480 = vpop.xlane.xlu0 %479
        %v481 = vsel %vm471, %v470, 0.0
        %482 = vadd.xlane.f32.xlu0 %v481
        %v483 = vpop.xlane.xlu0 %482
        %v484 = vrcp.pop 32.0
        %v485 = vmul.f32 %v474, %v484
        %v486 = vmul.f32 %v477, %v484
        %v487 = vmul.f32 %v480, %v484
        %v488 = vmul.f32 %v483, %v484
        %v489 = vsub.f32 %v467, %v485
        %v490 = vsub.f32 %v468, %v486
        %v491 = vsub.f32 %v469, %v487
        %v492 = vsub.f32 %v470, %v488
        %v493 = vmul.f32 %v489, %v489
        %v494 = vmul.f32 %v490, %v490
        %v495 = vmul.f32 %v491, %v491
        %v496 = vmul.f32 %v492, %v492
        %v497 = vsel %vm471, %v493, 0.0
        %498 = vadd.xlane.f32.xlu0 %v497
        %v499 = vpop.xlane.xlu0 %498
        %v500 = vsel %vm471, %v494, 0.0
        %501 = vadd.xlane.f32.xlu0 %v500
        %v502 = vpop.xlane.xlu0 %501
        %v503 = vsel %vm471, %v495, 0.0
        %504 = vadd.xlane.f32.xlu0 %v503
        %v505 = vpop.xlane.xlu0 %504
        %v506 = vsel %vm471, %v496, 0.0
        %507 = vadd.xlane.f32.xlu0 %v506
        %v508 = vpop.xlane.xlu0 %507
        %v509 = vmul.f32 %v499, %v484
        %v510 = vmul.f32 %v502, %v484
        %v511 = vmul.f32 %v505, %v484
        %v512 = vmul.f32 %v508, %v484
        %v513 = vadd.f32 %v509, 1e-05
        %v514 = vadd.f32 %v510, 1e-05
        %v515 = vadd.f32 %v511, 1e-05
        %v516 = vadd.f32 %v512, 1e-05
        %v517 = vrsqrt.pop %v513
        %v518 = vrsqrt.pop %v514
        %v519 = vrsqrt.pop %v515
        %v520 = vrsqrt.pop %v516
        %v521 = vmul.f32 %v489, %v517
        %v522 = vmul.f32 %v490, %v518
        %v523 = vmul.f32 %v491, %v519
        %v524 = vmul.f32 %v492, %v520
        %v526 = vlaneseq
        %v527 = vshrl.u32 %v526, 7
        %v528 = vsub.s32 0, %v527
        %v529 = vrot.slane %v465, %v528
        %v531 = vmul.f32 %v521, %v529
        %v532 = vmul.f32 %v522, %v529
        %v533 = vmul.f32 %v523, %v529
        %v534 = vmul.f32 %v524, %v529
        %v536 = vlaneseq
        %v537 = vshrl.u32 %v536, 7
        %v538 = vsub.s32 0, %v537
        %v539 = vrot.slane %v466, %v538
        %v541 = vadd.f32 %v531, %v539
        %v542 = vadd.f32 %v532, %v539
        %v543 = vadd.f32 %v533, %v539
        %v544 = vadd.f32 %v534, %v539
        %v545 = vld [vmem:[%s4] sm:$0xff]
        %v546 = vld [vmem:[%s4 + $0x8] sm:$0xff]
        %v547 = vld [vmem:[%s4 + $0x10] sm:$0xff]
        %v548 = vld [vmem:[%s4 + $0x18] sm:$0xff]
        %v550 = vsel %vm471, %v541, 0
        %v553 = vsel %vm471, %v542, 0
        %v556 = vsel %vm471, %v543, 0
        %v559 = vsel %vm471, %v544, 0
        %561 = vmatprep.subr.mxu0 0.0
        %562 = vmatpush1.msra.mxu0 %v545
        %563 = vmatprep.subr.mxu0 0.0
        %564 = vmatpush1.msra.mxu0 %v546
        %565 = vmatprep.subr.mxu0 0.0
        %566 = vmatpush1.msra.mxu0 %v547
        %567 = vmatprep.subr.mxu0 0.0
        %568 = vmatpush1.msra.mxu0 %v548
        %569 = vmatprep.subr.mxu0 0.0
        %570 = vmatpush1.msra.mxu0 0.0
        %571 = vmatprep.subr.mxu0 0.0
        %572 = vmatpush1.msra.mxu0 0.0
        %573 = vmatprep.subr.mxu0 0.0
        %574 = vmatpush1.msra.mxu0 0.0
        %575 = vmatprep.subr.mxu0 0.0
        %576 = vmatpush1.msra.mxu0 0.0
        %577 = vmatprep.subr.mxu0 0.0
        %578 = vmatpush1.msra.mxu0 0.0
        %579 = vmatprep.subr.mxu0 0.0
        %580 = vmatpush1.msra.mxu0 0.0
        %581 = vmatprep.subr.mxu0 0.0
        %582 = vmatpush1.msra.mxu0 0.0
        %583 = vmatprep.subr.mxu0 0.0
        %584 = vmatpush1.msra.mxu0 0.0
        %585 = vmatprep.subr.mxu0 0.0
        %586 = vmatpush1.msra.mxu0 0.0
        %587 = vmatprep.subr.mxu0 0.0
        %588 = vmatpush1.msra.mxu0 0.0
        %589 = vmatprep.subr.mxu0 0.0
        %590 = vmatpush1.msra.mxu0 0.0
        %591 = vmatprep.subr.mxu0 0.0
        %592 = vmatpush1.msra.mxu0 0.0
        %593 = vmatprep.subr.mxu0 0.0
        %594 = vmatpush1.msra.mxu0 0.0
        %595 = vmatprep.subr.mxu0 0.0
        %596 = vmatpush1.msra.mxu0 0.0
        %597 = vmatprep.subr.mxu0 0.0
        %598 = vmatpush1.msra.mxu0 0.0
        %599 = vmatprep.subr.mxu0 0.0
        %600 = vmatpush1.msra.mxu0 0.0
        %601 = vmatprep.subr.mxu0 0.0
        %602 = vmatpush1.msra.mxu0 0.0
        %603 = vmatprep.subr.mxu0 0.0
        %604 = vmatpush1.msra.mxu0 0.0
        %605 = vmatprep.subr.mxu0 0.0
        %606 = vmatpush1.msra.mxu0 0.0
        %607 = vmatprep.subr.mxu0 0.0
        %608 = vmatpush1.msra.mxu0 0.0
        %609 = vmatprep.subr.mxu0 0.0
        %610 = vmatpush1.msra.mxu0 0.0
        %611 = vmatprep.subr.mxu0 0.0
        %612 = vmatpush1.msra.mxu0 0.0
        %613 = vmatprep.subr.mxu0 0.0
        %614 = vmatpush1.msra.mxu0 0.0
        %615 = vmatprep.subr.mxu0 0.0
        %616 = vmatpush1.msra.mxu0 0.0
        %617 = vmatprep.subr.mxu0 0.0
        %618 = vmatpush1.msra.mxu0 0.0
        %619 = vmatprep.subr.mxu0 0.0
        %620 = vmatpush1.msra.mxu0 0.0
        %621 = vmatprep.subr.mxu0 0.0
        %622 = vmatpush1.msra.mxu0 0.0
        %623 = vmatprep.subr.mxu0 0.0
        %624 = vmatpush1.msra.mxu0 0.0
        %625 = vmatprep.mubr.f32.mxu0 0.0
        %626 = vmatmul.mubr.f32.gmra.mrb[0].mxu0 %v550
        %v627 = vpop.f32.mrb[0].mxu0
        %v628 = vadd.f32 0.0, %v627
        %v629 = vpop.f32.mrb[0].mxu0
        %630 = vmatprep.mubr.f32.mxu0 0.0
        %631 = vmatmul.mubr.f32.gmra.mrb[0].mxu0 %v553
        %v632 = vpop.f32.mrb[0].mxu0
        %v633 = vadd.f32 0.0, %v632
        %v634 = vpop.f32.mrb[0].mxu0
        %635 = vmatprep.mubr.f32.mxu0 0.0
        %636 = vmatmul.mubr.f32.gmra.mrb[0].mxu0 %v556
        %v637 = vpop.f32.mrb[0].mxu0
        %v638 = vadd.f32 0.0, %v637
        %v639 = vpop.f32.mrb[0].mxu0
        %640 = vmatprep.mubr.f32.mxu0 0.0
        %641 = vmatmul.mubr.f32.gmra.mrb[0].mxu0 %v559
        %v642 = vpop.f32.mrb[0].mxu0
        %v643 = vadd.f32 0.0, %v642
        %v644 = vpop.f32.mrb[0].mxu0
        %645 = vdwg.mxu0
        %v646 = vld [vmem:[%s457] sm:$0xff]
        %v647 = vld [vmem:[%s457 + $0x8] sm:$0xff]
        %v648 = vld [vmem:[%s457 + $0x10] sm:$0xff]
        %v649 = vld [vmem:[%s457 + $0x18] sm:$0xff]
        %651 = vrot.lane.b32.xlu0 %v628, 96
        %v652 = vpop.permute.xlu0 %651
        %vm653 = vcmask 64512
        %v654 = vsel %vm653, %v628, 0
        %v656 = vsel %vm653, %v652, 0
        %658 = vmatprep.subr.mxu0 0.0
        %659 = vmatpush1.xpose.msra.mxu0 %v656
        %660 = vmatprep.subr.mxu0 0.0
        %661 = vmatpush1.xpose.msra.mxu0 0.0
        %662 = vmatprep.subr.mxu0 0.0
        %663 = vmatpush1.xpose.msra.mxu0 0.0
        %664 = vmatprep.subr.mxu0 0.0
        %665 = vmatpush1.xpose.msra.mxu0 0.0
        %666 = vmatprep.subr.mxu0 0.0
        %667 = vmatpush1.xpose.msra.mxu0 0.0
        %668 = vmatprep.subr.mxu0 0.0
        %669 = vmatpush1.xpose.msra.mxu0 0.0
        %670 = vmatprep.subr.mxu0 0.0
        %671 = vmatpush1.xpose.msra.mxu0 0.0
        %672 = vmatprep.subr.mxu0 0.0
        %673 = vmatpush1.xpose.msra.mxu0 0.0
        %674 = vmatprep.subr.mxu0 0.0
        %675 = vmatpush1.xpose.msra.mxu0 0.0
        %676 = vmatprep.subr.mxu0 0.0
        %677 = vmatpush1.xpose.msra.mxu0 0.0
        %678 = vmatprep.subr.mxu0 0.0
        %679 = vmatpush1.xpose.msra.mxu0 0.0
        %680 = vmatprep.subr.mxu0 0.0
        %681 = vmatpush1.xpose.msra.mxu0 0.0
        %682 = vmatprep.subr.mxu0 0.0
        %683 = vmatpush1.xpose.msra.mxu0 0.0
        %684 = vmatprep.subr.mxu0 0.0
        %685 = vmatpush1.xpose.msra.mxu0 0.0
        %686 = vmatprep.subr.mxu0 0.0
        %687 = vmatpush1.xpose.msra.mxu0 0.0
        %688 = vmatprep.subr.mxu0 0.0
        %689 = vmatpush1.xpose.msra.mxu0 0.0
        %690 = vmatprep.subr.mxu0 0.0
        %691 = vmatpush1.xpose.msra.mxu0 0.0
        %692 = vmatprep.subr.mxu0 0.0
        %693 = vmatpush1.xpose.msra.mxu0 0.0
        %694 = vmatprep.subr.mxu0 0.0
        %695 = vmatpush1.xpose.msra.mxu0 0.0
        %696 = vmatprep.subr.mxu0 0.0
        %697 = vmatpush1.xpose.msra.mxu0 0.0
        %698 = vmatprep.subr.mxu0 0.0
        %699 = vmatpush1.xpose.msra.mxu0 0.0
        %700 = vmatprep.subr.mxu0 0.0
        %701 = vmatpush1.xpose.msra.mxu0 0.0
        %702 = vmatprep.subr.mxu0 0.0
        %703 = vmatpush1.xpose.msra.mxu0 0.0
        %704 = vmatprep.subr.mxu0 0.0
        %705 = vmatpush1.xpose.msra.mxu0 0.0
        %706 = vmatprep.subr.mxu0 0.0
        %707 = vmatpush1.xpose.msra.mxu0 0.0
        %708 = vmatprep.subr.mxu0 0.0
        %709 = vmatpush1.xpose.msra.mxu0 0.0
        %710 = vmatprep.subr.mxu0 0.0
        %711 = vmatpush1.xpose.msra.mxu0 0.0
        %712 = vmatprep.subr.mxu0 0.0
        %713 = vmatpush1.xpose.msra.mxu0 0.0
        %714 = vmatprep.subr.mxu0 0.0
        %715 = vmatpush1.xpose.msra.mxu0 0.0
        %716 = vmatprep.subr.mxu0 0.0
        %717 = vmatpush1.xpose.msra.mxu0 0.0
        %718 = vmatprep.subr.mxu0 0.0
        %719 = vmatpush1.xpose.msra.mxu0 0.0
        %720 = vmatprep.subr.mxu0 0.0
        %721 = vmatpush1.xpose.msra.mxu0 0.0
        %722 = vmatprep.mubr.f32.mxu0 0.0
        %723 = vmatmul.mubr.f32.gmra.mrb[0].mxu0 %v654
        %v724 = vpop.f32.mrb[0].mxu0
        %v725 = vadd.f32 %v646, %v724
        %v726 = vpop.f32.mrb[0].mxu0
        %727 = vdwg.mxu0
        %729 = vrot.lane.b32.xlu0 %v633, 96
        %v730 = vpop.permute.xlu0 %729
        %v731 = vsel %vm653, %v633, 0
        %v733 = vsel %vm653, %v730, 0
        %735 = vmatprep.subr.mxu0 0.0
        %736 = vmatpush1.xpose.msra.mxu0 %v733
        %737 = vmatprep.subr.mxu0 0.0
        %738 = vmatpush1.xpose.msra.mxu0 0.0
        %739 = vmatprep.subr.mxu0 0.0
        %740 = vmatpush1.xpose.msra.mxu0 0.0
        %741 = vmatprep.subr.mxu0 0.0
        %742 = vmatpush1.xpose.msra.mxu0 0.0
        %743 = vmatprep.subr.mxu0 0.0
        %744 = vmatpush1.xpose.msra.mxu0 0.0
        %745 = vmatprep.subr.mxu0 0.0
        %746 = vmatpush1.xpose.msra.mxu0 0.0
        %747 = vmatprep.subr.mxu0 0.0
        %748 = vmatpush1.xpose.msra.mxu0 0.0
        %749 = vmatprep.subr.mxu0 0.0
        %750 = vmatpush1.xpose.msra.mxu0 0.0
        %751 = vmatprep.subr.mxu0 0.0
        %752 = vmatpush1.xpose.msra.mxu0 0.0
        %753 = vmatprep.subr.mxu0 0.0
        %754 = vmatpush1.xpose.msra.mxu0 0.0
        %755 = vmatprep.subr.mxu0 0.0
        %756 = vmatpush1.xpose.msra.mxu0 0.0
        %757 = vmatprep.subr.mxu0 0.0
        %758 = vmatpush1.xpose.msra.mxu0 0.0
        %759 = vmatprep.subr.mxu0 0.0
        %760 = vmatpush1.xpose.msra.mxu0 0.0
        %761 = vmatprep.subr.mxu0 0.0
        %762 = vmatpush1.xpose.msra.mxu0 0.0
        %763 = vmatprep.subr.mxu0 0.0
        %764 = vmatpush1.xpose.msra.mxu0 0.0
        %765 = vmatprep.subr.mxu0 0.0
        %766 = vmatpush1.xpose.msra.mxu0 0.0
        %767 = vmatprep.subr.mxu0 0.0
        %768 = vmatpush1.xpose.msra.mxu0 0.0
        %769 = vmatprep.subr.mxu0 0.0
        %770 = vmatpush1.xpose.msra.mxu0 0.0
        %771 = vmatprep.subr.mxu0 0.0
        %772 = vmatpush1.xpose.msra.mxu0 0.0
        %773 = vmatprep.subr.mxu0 0.0
        %774 = vmatpush1.xpose.msra.mxu0 0.0
        %775 = vmatprep.subr.mxu0 0.0
        %776 = vmatpush1.xpose.msra.mxu0 0.0
        %777 = vmatprep.subr.mxu0 0.0
        %778 = vmatpush1.xpose.msra.mxu0 0.0
        %779 = vmatprep.subr.mxu0 0.0
        %780 = vmatpush1.xpose.msra.mxu0 0.0
        %781 = vmatprep.subr.mxu0 0.0
        %782 = vmatpush1.xpose.msra.mxu0 0.0
        %783 = vmatprep.subr.mxu0 0.0
        %784 = vmatpush1.xpose.msra.mxu0 0.0
        %785 = vmatprep.subr.mxu0 0.0
        %786 = vmatpush1.xpose.msra.mxu0 0.0
        %787 = vmatprep.subr.mxu0 0.0
        %788 = vmatpush1.xpose.msra.mxu0 0.0
        %789 = vmatprep.subr.mxu0 0.0
        %790 = vmatpush1.xpose.msra.mxu0 0.0
        %791 = vmatprep.subr.mxu0 0.0
        %792 = vmatpush1.xpose.msra.mxu0 0.0
        %793 = vmatprep.subr.mxu0 0.0
        %794 = vmatpush1.xpose.msra.mxu0 0.0
        %795 = vmatprep.subr.mxu0 0.0
        %796 = vmatpush1.xpose.msra.mxu0 0.0
        %797 = vmatprep.subr.mxu0 0.0
        %798 = vmatpush1.xpose.msra.mxu0 0.0
        %799 = vmatprep.mubr.f32.mxu0 0.0
        %800 = vmatmul.mubr.f32.gmra.mrb[0].mxu0 %v731
        %v801 = vpop.f32.mrb[0].mxu0
        %v802 = vadd.f32 %v647, %v801
        %v803 = vpop.f32.mrb[0].mxu0
        %804 = vdwg.mxu0
        %806 = vrot.lane.b32.xlu0 %v638, 96
        %v807 = vpop.permute.xlu0 %806
        %v808 = vsel %vm653, %v638, 0
        %v810 = vsel %vm653, %v807, 0
        %812 = vmatprep.subr.mxu0 0.0
        %813 = vmatpush1.xpose.msra.mxu0 %v810
        %814 = vmatprep.subr.mxu0 0.0
        %815 = vmatpush1.xpose.msra.mxu0 0.0
        %816 = vmatprep.subr.mxu0 0.0
        %817 = vmatpush1.xpose.msra.mxu0 0.0
        %818 = vmatprep.subr.mxu0 0.0
        %819 = vmatpush1.xpose.msra.mxu0 0.0
        %820 = vmatprep.subr.mxu0 0.0
        %821 = vmatpush1.xpose.msra.mxu0 0.0
        %822 = vmatprep.subr.mxu0 0.0
        %823 = vmatpush1.xpose.msra.mxu0 0.0
        %824 = vmatprep.subr.mxu0 0.0
        %825 = vmatpush1.xpose.msra.mxu0 0.0
        %826 = vmatprep.subr.mxu0 0.0
        %827 = vmatpush1.xpose.msra.mxu0 0.0
        %828 = vmatprep.subr.mxu0 0.0
        %829 = vmatpush1.xpose.msra.mxu0 0.0
        %830 = vmatprep.subr.mxu0 0.0
        %831 = vmatpush1.xpose.msra.mxu0 0.0
        %832 = vmatprep.subr.mxu0 0.0
        %833 = vmatpush1.xpose.msra.mxu0 0.0
        %834 = vmatprep.subr.mxu0 0.0
        %835 = vmatpush1.xpose.msra.mxu0 0.0
        %836 = vmatprep.subr.mxu0 0.0
        %837 = vmatpush1.xpose.msra.mxu0 0.0
        %838 = vmatprep.subr.mxu0 0.0
        %839 = vmatpush1.xpose.msra.mxu0 0.0
        %840 = vmatprep.subr.mxu0 0.0
        %841 = vmatpush1.xpose.msra.mxu0 0.0
        %842 = vmatprep.subr.mxu0 0.0
        %843 = vmatpush1.xpose.msra.mxu0 0.0
        %844 = vmatprep.subr.mxu0 0.0
        %845 = vmatpush1.xpose.msra.mxu0 0.0
        %846 = vmatprep.subr.mxu0 0.0
        %847 = vmatpush1.xpose.msra.mxu0 0.0
        %848 = vmatprep.subr.mxu0 0.0
        %849 = vmatpush1.xpose.msra.mxu0 0.0
        %850 = vmatprep.subr.mxu0 0.0
        %851 = vmatpush1.xpose.msra.mxu0 0.0
        %852 = vmatprep.subr.mxu0 0.0
        %853 = vmatpush1.xpose.msra.mxu0 0.0
        %854 = vmatprep.subr.mxu0 0.0
        %855 = vmatpush1.xpose.msra.mxu0 0.0
        %856 = vmatprep.subr.mxu0 0.0
        %857 = vmatpush1.xpose.msra.mxu0 0.0
        %858 = vmatprep.subr.mxu0 0.0
        %859 = vmatpush1.xpose.msra.mxu0 0.0
        %860 = vmatprep.subr.mxu0 0.0
        %861 = vmatpush1.xpose.msra.mxu0 0.0
        %862 = vmatprep.subr.mxu0 0.0
        %863 = vmatpush1.xpose.msra.mxu0 0.0
        %864 = vmatprep.subr.mxu0 0.0
        %865 = vmatpush1.xpose.msra.mxu0 0.0
        %866 = vmatprep.subr.mxu0 0.0
        %867 = vmatpush1.xpose.msra.mxu0 0.0
        %868 = vmatprep.subr.mxu0 0.0
        %869 = vmatpush1.xpose.msra.mxu0 0.0
        %870 = vmatprep.subr.mxu0 0.0
        %871 = vmatpush1.xpose.msra.mxu0 0.0
        %872 = vmatprep.subr.mxu0 0.0
        %873 = vmatpush1.xpose.msra.mxu0 0.0
        %874 = vmatprep.subr.mxu0 0.0
        %875 = vmatpush1.xpose.msra.mxu0 0.0
        %876 = vmatprep.mubr.f32.mxu0 0.0
        %877 = vmatmul.mubr.f32.gmra.mrb[0].mxu0 %v808
        %v878 = vpop.f32.mrb[0].mxu0
        %v879 = vadd.f32 %v648, %v878
        %v880 = vpop.f32.mrb[0].mxu0
        %881 = vdwg.mxu0
        %883 = vrot.lane.b32.xlu0 %v643, 96
        %v884 = vpop.permute.xlu0 %883
        %v885 = vsel %vm653, %v643, 0
        %v887 = vsel %vm653, %v884, 0
        %889 = vmatprep.subr.mxu0 0.0
        %890 = vmatpush1.xpose.msra.mxu0 %v887
        %891 = vmatprep.subr.mxu0 0.0
        %892 = vmatpush1.xpose.msra.mxu0 0.0
        %893 = vmatprep.subr.mxu0 0.0
        %894 = vmatpush1.xpose.msra.mxu0 0.0
        %895 = vmatprep.subr.mxu0 0.0
        %896 = vmatpush1.xpose.msra.mxu0 0.0
        %897 = vmatprep.subr.mxu0 0.0
        %898 = vmatpush1.xpose.msra.mxu0 0.0
        %899 = vmatprep.subr.mxu0 0.0
        %900 = vmatpush1.xpose.msra.mxu0 0.0
        %901 = vmatprep.subr.mxu0 0.0
        %902 = vmatpush1.xpose.msra.mxu0 0.0
        %903 = vmatprep.subr.mxu0 0.0
        %904 = vmatpush1.xpose.msra.mxu0 0.0
        %905 = vmatprep.subr.mxu0 0.0
        %906 = vmatpush1.xpose.msra.mxu0 0.0
        %907 = vmatprep.subr.mxu0 0.0
        %908 = vmatpush1.xpose.msra.mxu0 0.0
        %909 = vmatprep.subr.mxu0 0.0
        %910 = vmatpush1.xpose.msra.mxu0 0.0
        %911 = vmatprep.subr.mxu0 0.0
        %912 = vmatpush1.xpose.msra.mxu0 0.0
        %913 = vmatprep.subr.mxu0 0.0
        %914 = vmatpush1.xpose.msra.mxu0 0.0
        %915 = vmatprep.subr.mxu0 0.0
        %916 = vmatpush1.xpose.msra.mxu0 0.0
        %917 = vmatprep.subr.mxu0 0.0
        %918 = vmatpush1.xpose.msra.mxu0 0.0
        %919 = vmatprep.subr.mxu0 0.0
        %920 = vmatpush1.xpose.msra.mxu0 0.0
        %921 = vmatprep.subr.mxu0 0.0
        %922 = vmatpush1.xpose.msra.mxu0 0.0
        %923 = vmatprep.subr.mxu0 0.0
        %924 = vmatpush1.xpose.msra.mxu0 0.0
        %925 = vmatprep.subr.mxu0 0.0
        %926 = vmatpush1.xpose.msra.mxu0 0.0
        %927 = vmatprep.subr.mxu0 0.0
        %928 = vmatpush1.xpose.msra.mxu0 0.0
        %929 = vmatprep.subr.mxu0 0.0
        %930 = vmatpush1.xpose.msra.mxu0 0.0
        %931 = vmatprep.subr.mxu0 0.0
        %932 = vmatpush1.xpose.msra.mxu0 0.0
        %933 = vmatprep.subr.mxu0 0.0
        %934 = vmatpush1.xpose.msra.mxu0 0.0
        %935 = vmatprep.subr.mxu0 0.0
        %936 = vmatpush1.xpose.msra.mxu0 0.0
        %937 = vmatprep.subr.mxu0 0.0
        %938 = vmatpush1.xpose.msra.mxu0 0.0
        %939 = vmatprep.subr.mxu0 0.0
        %940 = vmatpush1.xpose.msra.mxu0 0.0
        %941 = vmatprep.subr.mxu0 0.0
        %942 = vmatpush1.xpose.msra.mxu0 0.0
        %943 = vmatprep.subr.mxu0 0.0
        %944 = vmatpush1.xpose.msra.mxu0 0.0
        %945 = vmatprep.subr.mxu0 0.0
        %946 = vmatpush1.xpose.msra.mxu0 0.0
        %947 = vmatprep.subr.mxu0 0.0
        %948 = vmatpush1.xpose.msra.mxu0 0.0
        %949 = vmatprep.subr.mxu0 0.0
        %950 = vmatpush1.xpose.msra.mxu0 0.0
        %951 = vmatprep.subr.mxu0 0.0
        %952 = vmatpush1.xpose.msra.mxu0 0.0
        %953 = vmatprep.mubr.f32.mxu0 0.0
        %954 = vmatmul.mubr.f32.gmra.mrb[0].mxu0 %v885
        %v955 = vpop.f32.mrb[0].mxu0
        %v956 = vadd.f32 %v649, %v955
        %v957 = vpop.f32.mrb[0].mxu0
        %958 = vdwg.mxu0
        %v959 = vsel %vm653, %v725, -inf
        %960 = vmax.xlane.f32.xlu0 %v959
        %v961 = vpop.xlane.xlu0 %960
        %v962 = vsel %vm653, %v802, -inf
        %963 = vmax.xlane.f32.xlu0 %v962
        %v964 = vpop.xlane.xlu0 %963
        %v965 = vsel %vm653, %v879, -inf
        %966 = vmax.xlane.f32.xlu0 %v965
        %v967 = vpop.xlane.xlu0 %966
        %v968 = vsel %vm653, %v956, -inf
        %969 = vmax.xlane.f32.xlu0 %v968
        %v970 = vpop.xlane.xlu0 %969
        %v971 = vsub.f32 %v725, %v961
        %v972 = vsub.f32 %v802, %v964
        %v973 = vsub.f32 %v879, %v967
        %v974 = vsub.f32 %v956, %v970
        %v975 = vmul.f32 %v971, 1.442695
        %v976 = vpow.pop %v975
        %v977 = vmul.f32 %v972, 1.442695
        %v978 = vpow.pop %v977
        %v979 = vmul.f32 %v973, 1.442695
        %v980 = vpow.pop %v979
        %v981 = vmul.f32 %v974, 1.442695
        %v982 = vpow.pop %v981
        %v983 = vsel %vm653, %v976, 0.0
        %984 = vadd.xlane.f32.xlu0 %v983
        %v985 = vpop.xlane.xlu0 %984
        %v986 = vsel %vm653, %v978, 0.0
        %987 = vadd.xlane.f32.xlu0 %v986
        %v988 = vpop.xlane.xlu0 %987
        %v989 = vsel %vm653, %v980, 0.0
        %990 = vadd.xlane.f32.xlu0 %v989
        %v991 = vpop.xlane.xlu0 %990
        %v992 = vsel %vm653, %v982, 0.0
        %993 = vadd.xlane.f32.xlu0 %v992
        %v994 = vpop.xlane.xlu0 %993
        %v995 = vrcp.pop %v985
        %v996 = vmul.f32 %v976, %v995
        %v997 = vrcp.pop %v988
        %v998 = vmul.f32 %v978, %v997
        %v999 = vrcp.pop %v991
        %v1000 = vmul.f32 %v980, %v999
        %v1001 = vrcp.pop %v994
        %v1002 = vmul.f32 %v982, %v1001
        %1003 = vrot.lane.b32.xlu0 %v628, 64
        %v1004 = vpop.permute.xlu0 %1003
        %v1007 = vsel %vm653, %v996, 0
        %1009 = vmatprep.subr.mxu0 0.0
        %1010 = vmatpush1.msra.mxu0 %v1004
        %1011 = vmatprep.subr.mxu0 0.0
        %1012 = vmatpush1.msra.mxu0 0.0
        %1013 = vmatprep.subr.mxu0 0.0
        %1014 = vmatpush1.msra.mxu0 0.0
        %1015 = vmatprep.subr.mxu0 0.0
        %1016 = vmatpush1.msra.mxu0 0.0
        %1017 = vmatprep.subr.mxu0 0.0
        %1018 = vmatpush1.msra.mxu0 0.0
        %1019 = vmatprep.subr.mxu0 0.0
        %1020 = vmatpush1.msra.mxu0 0.0
        %1021 = vmatprep.subr.mxu0 0.0
        %1022 = vmatpush1.msra.mxu0 0.0
        %1023 = vmatprep.subr.mxu0 0.0
        %1024 = vmatpush1.msra.mxu0 0.0
        %1025 = vmatprep.subr.mxu0 0.0
        %1026 = vmatpush1.msra.mxu0 0.0
        %1027 = vmatprep.subr.mxu0 0.0
        %1028 = vmatpush1.msra.mxu0 0.0
        %1029 = vmatprep.subr.mxu0 0.0
        %1030 = vmatpush1.msra.mxu0 0.0
        %1031 = vmatprep.subr.mxu0 0.0
        %1032 = vmatpush1.msra.mxu0 0.0
        %1033 = vmatprep.subr.mxu0 0.0
        %1034 = vmatpush1.msra.mxu0 0.0
        %1035 = vmatprep.subr.mxu0 0.0
        %1036 = vmatpush1.msra.mxu0 0.0
        %1037 = vmatprep.subr.mxu0 0.0
        %1038 = vmatpush1.msra.mxu0 0.0
        %1039 = vmatprep.subr.mxu0 0.0
        %1040 = vmatpush1.msra.mxu0 0.0
        %1041 = vmatprep.subr.mxu0 0.0
        %1042 = vmatpush1.msra.mxu0 0.0
        %1043 = vmatprep.subr.mxu0 0.0
        %1044 = vmatpush1.msra.mxu0 0.0
        %1045 = vmatprep.subr.mxu0 0.0
        %1046 = vmatpush1.msra.mxu0 0.0
        %1047 = vmatprep.subr.mxu0 0.0
        %1048 = vmatpush1.msra.mxu0 0.0
        %1049 = vmatprep.subr.mxu0 0.0
        %1050 = vmatpush1.msra.mxu0 0.0
        %1051 = vmatprep.subr.mxu0 0.0
        %1052 = vmatpush1.msra.mxu0 0.0
        %1053 = vmatprep.subr.mxu0 0.0
        %1054 = vmatpush1.msra.mxu0 0.0
        %1055 = vmatprep.subr.mxu0 0.0
        %1056 = vmatpush1.msra.mxu0 0.0
        %1057 = vmatprep.subr.mxu0 0.0
        %1058 = vmatpush1.msra.mxu0 0.0
        %1059 = vmatprep.subr.mxu0 0.0
        %1060 = vmatpush1.msra.mxu0 0.0
        %1061 = vmatprep.subr.mxu0 0.0
        %1062 = vmatpush1.msra.mxu0 0.0
        %1063 = vmatprep.subr.mxu0 0.0
        %1064 = vmatpush1.msra.mxu0 0.0
        %1065 = vmatprep.subr.mxu0 0.0
        %1066 = vmatpush1.msra.mxu0 0.0
        %1067 = vmatprep.subr.mxu0 0.0
        %1068 = vmatpush1.msra.mxu0 0.0
        %1069 = vmatprep.subr.mxu0 0.0
        %1070 = vmatpush1.msra.mxu0 0.0
        %1071 = vmatprep.subr.mxu0 0.0
        %1072 = vmatpush1.msra.mxu0 0.0
        %1073 = vmatprep.mubr.f32.mxu0 0.0
        %1074 = vmatmul.mubr.f32.gmra.mrb[0].mxu0 %v1007
        %v1075 = vpop.f32.mrb[0].mxu0
        %v1076 = vadd.f32 0.0, %v1075
        %v1077 = vpop.f32.mrb[0].mxu0
        %1078 = vdwg.mxu0
        %1079 = vrot.lane.b32.xlu0 %v633, 64
        %v1080 = vpop.permute.xlu0 %1079
        %v1083 = vsel %vm653, %v998, 0
        %1085 = vmatprep.subr.mxu0 0.0
        %1086 = vmatpush1.msra.mxu0 %v1080
        %1087 = vmatprep.subr.mxu0 0.0
        %1088 = vmatpush1.msra.mxu0 0.0
        %1089 = vmatprep.subr.mxu0 0.0
        %1090 = vmatpush1.msra.mxu0 0.0
        %1091 = vmatprep.subr.mxu0 0.0
        %1092 = vmatpush1.msra.mxu0 0.0
        %1093 = vmatprep.subr.mxu0 0.0
        %1094 = vmatpush1.msra.mxu0 0.0
        %1095 = vmatprep.subr.mxu0 0.0
        %1096 = vmatpush1.msra.mxu0 0.0
        %1097 = vmatprep.subr.mxu0 0.0
        %1098 = vmatpush1.msra.mxu0 0.0
        %1099 = vmatprep.subr.mxu0 0.0
        %1100 = vmatpush1.msra.mxu0 0.0
        %1101 = vmatprep.subr.mxu0 0.0
        %1102 = vmatpush1.msra.mxu0 0.0
        %1103 = vmatprep.subr.mxu0 0.0
        %1104 = vmatpush1.msra.mxu0 0.0
        %1105 = vmatprep.subr.mxu0 0.0
        %1106 = vmatpush1.msra.mxu0 0.0
        %1107 = vmatprep.subr.mxu0 0.0
        %1108 = vmatpush1.msra.mxu0 0.0
        %1109 = vmatprep.subr.mxu0 0.0
        %1110 = vmatpush1.msra.mxu0 0.0
        %1111 = vmatprep.subr.mxu0 0.0
        %1112 = vmatpush1.msra.mxu0 0.0
        %1113 = vmatprep.subr.mxu0 0.0
        %1114 = vmatpush1.msra.mxu0 0.0
        %1115 = vmatprep.subr.mxu0 0.0
        %1116 = vmatpush1.msra.mxu0 0.0
        %1117 = vmatprep.subr.mxu0 0.0
        %1118 = vmatpush1.msra.mxu0 0.0
        %1119 = vmatprep.subr.mxu0 0.0
        %1120 = vmatpush1.msra.mxu0 0.0
        %1121 = vmatprep.subr.mxu0 0.0
        %1122 = vmatpush1.msra.mxu0 0.0
        %1123 = vmatprep.subr.mxu0 0.0
        %1124 = vmatpush1.msra.mxu0 0.0
        %1125 = vmatprep.subr.mxu0 0.0
        %1126 = vmatpush1.msra.mxu0 0.0
        %1127 = vmatprep.subr.mxu0 0.0
        %1128 = vmatpush1.msra.mxu0 0.0
        %1129 = vmatprep.subr.mxu0 0.0
        %1130 = vmatpush1.msra.mxu0 0.0
        %1131 = vmatprep.subr.mxu0 0.0
        %1132 = vmatpush1.msra.mxu0 0.0
        %1133 = vmatprep.subr.mxu0 0.0
        %1134 = vmatpush1.msra.mxu0 0.0
        %1135 = vmatprep.subr.mxu0 0.0
        %1136 = vmatpush1.msra.mxu0 0.0
        %1137 = vmatprep.subr.mxu0 0.0
        %1138 = vmatpush1.msra.mxu0 0.0
        %1139 = vmatprep.subr.mxu0 0.0
        %1140 = vmatpush1.msra.mxu0 0.0
        %1141 = vmatprep.subr.mxu0 0.0
        %1142 = vmatpush1.msra.mxu0 0.0
        %1143 = vmatprep.subr.mxu0 0.0
        %1144 = vmatpush1.msra.mxu0 0.0
        %1145 = vmatprep.subr.mxu0 0.0
        %1146 = vmatpush1.msra.mxu0 0.0
        %1147 = vmatprep.subr.mxu0 0.0
        %1148 = vmatpush1.msra.mxu0 0.0
        %1149 = vmatprep.mubr.f32.mxu0 0.0
        %1150 = vmatmul.mubr.f32.gmra.mrb[0].mxu0 %v1083
        %v1151 = vpop.f32.mrb[0].mxu0
        %v1152 = vadd.f32 0.0, %v1151
        %v1153 = vpop.f32.mrb[0].mxu0
        %1154 = vdwg.mxu0
        %1155 = vrot.lane.b32.xlu0 %v638, 64
        %v1156 = vpop.permute.xlu0 %1155
        %v1159 = vsel %vm653, %v1000, 0
        %1161 = vmatprep.subr.mxu0 0.0
        %1162 = vmatpush1.msra.mxu0 %v1156
        %1163 = vmatprep.subr.mxu0 0.0
        %1164 = vmatpush1.msra.mxu0 0.0
        %1165 = vmatprep.subr.mxu0 0.0
        %1166 = vmatpush1.msra.mxu0 0.0
        %1167 = vmatprep.subr.mxu0 0.0
        %1168 = vmatpush1.msra.mxu0 0.0
        %1169 = vmatprep.subr.mxu0 0.0
        %1170 = vmatpush1.msra.mxu0 0.0
        %1171 = vmatprep.subr.mxu0 0.0
        %1172 = vmatpush1.msra.mxu0 0.0
        %1173 = vmatprep.subr.mxu0 0.0
        %1174 = vmatpush1.msra.mxu0 0.0
        %1175 = vmatprep.subr.mxu0 0.0
        %1176 = vmatpush1.msra.mxu0 0.0
        %1177 = vmatprep.subr.mxu0 0.0
        %1178 = vmatpush1.msra.mxu0 0.0
        %1179 = vmatprep.subr.mxu0 0.0
        %1180 = vmatpush1.msra.mxu0 0.0
        %1181 = vmatprep.subr.mxu0 0.0
        %1182 = vmatpush1.msra.mxu0 0.0
        %1183 = vmatprep.subr.mxu0 0.0
        %1184 = vmatpush1.msra.mxu0 0.0
        %1185 = vmatprep.subr.mxu0 0.0
        %1186 = vmatpush1.msra.mxu0 0.0
        %1187 = vmatprep.subr.mxu0 0.0
        %1188 = vmatpush1.msra.mxu0 0.0
        %1189 = vmatprep.subr.mxu0 0.0
        %1190 = vmatpush1.msra.mxu0 0.0
        %1191 = vmatprep.subr.mxu0 0.0
        %1192 = vmatpush1.msra.mxu0 0.0
        %1193 = vmatprep.subr.mxu0 0.0
        %1194 = vmatpush1.msra.mxu0 0.0
        %1195 = vmatprep.subr.mxu0 0.0
        %1196 = vmatpush1.msra.mxu0 0.0
        %1197 = vmatprep.subr.mxu0 0.0
        %1198 = vmatpush1.msra.mxu0 0.0
        %1199 = vmatprep.subr.mxu0 0.0
        %1200 = vmatpush1.msra.mxu0 0.0
        %1201 = vmatprep.subr.mxu0 0.0
        %1202 = vmatpush1.msra.mxu0 0.0
        %1203 = vmatprep.subr.mxu0 0.0
        %1204 = vmatpush1.msra.mxu0 0.0
        %1205 = vmatprep.subr.mxu0 0.0
        %1206 = vmatpush1.msra.mxu0 0.0
        %1207 = vmatprep.subr.mxu0 0.0
        %1208 = vmatpush1.msra.mxu0 0.0
        %1209 = vmatprep.subr.mxu0 0.0
        %1210 = vmatpush1.msra.mxu0 0.0
        %1211 = vmatprep.subr.mxu0 0.0
        %1212 = vmatpush1.msra.mxu0 0.0
        %1213 = vmatprep.subr.mxu0 0.0
        %1214 = vmatpush1.msra.mxu0 0.0
        %1215 = vmatprep.subr.mxu0 0.0
        %1216 = vmatpush1.msra.mxu0 0.0
        %1217 = vmatprep.subr.mxu0 0.0
        %1218 = vmatpush1.msra.mxu0 0.0
        %1219 = vmatprep.subr.mxu0 0.0
        %1220 = vmatpush1.msra.mxu0 0.0
        %1221 = vmatprep.subr.mxu0 0.0
        %1222 = vmatpush1.msra.mxu0 0.0
        %1223 = vmatprep.subr.mxu0 0.0
        %1224 = vmatpush1.msra.mxu0 0.0
        %1225 = vmatprep.mubr.f32.mxu0 0.0
        %1226 = vmatmul.mubr.f32.gmra.mrb[0].mxu0 %v1159
        %v1227 = vpop.f32.mrb[0].mxu0
        %v1228 = vadd.f32 0.0, %v1227
        %v1229 = vpop.f32.mrb[0].mxu0
        %1230 = vdwg.mxu0
        %1231 = vrot.lane.b32.xlu0 %v643, 64
        %v1232 = vpop.permute.xlu0 %1231
        %v1235 = vsel %vm653, %v1002, 0
        %1237 = vmatprep.subr.mxu0 0.0
        %1238 = vmatpush1.msra.mxu0 %v1232
        %1239 = vmatprep.subr.mxu0 0.0
        %1240 = vmatpush1.msra.mxu0 0.0
        %1241 = vmatprep.subr.mxu0 0.0
        %1242 = vmatpush1.msra.mxu0 0.0
        %1243 = vmatprep.subr.mxu0 0.0
        %1244 = vmatpush1.msra.mxu0 0.0
        %1245 = vmatprep.subr.mxu0 0.0
        %1246 = vmatpush1.msra.mxu0 0.0
        %1247 = vmatprep.subr.mxu0 0.0
        %1248 = vmatpush1.msra.mxu0 0.0
        %1249 = vmatprep.subr.mxu0 0.0
        %1250 = vmatpush1.msra.mxu0 0.0
        %1251 = vmatprep.subr.mxu0 0.0
        %1252 = vmatpush1.msra.mxu0 0.0
        %1253 = vmatprep.subr.mxu0 0.0
        %1254 = vmatpush1.msra.mxu0 0.0
        %1255 = vmatprep.subr.mxu0 0.0
        %1256 = vmatpush1.msra.mxu0 0.0
        %1257 = vmatprep.subr.mxu0 0.0
        %1258 = vmatpush1.msra.mxu0 0.0
        %1259 = vmatprep.subr.mxu0 0.0
        %1260 = vmatpush1.msra.mxu0 0.0
        %1261 = vmatprep.subr.mxu0 0.0
        %1262 = vmatpush1.msra.mxu0 0.0
        %1263 = vmatprep.subr.mxu0 0.0
        %1264 = vmatpush1.msra.mxu0 0.0
        %1265 = vmatprep.subr.mxu0 0.0
        %1266 = vmatpush1.msra.mxu0 0.0
        %1267 = vmatprep.subr.mxu0 0.0
        %1268 = vmatpush1.msra.mxu0 0.0
        %1269 = vmatprep.subr.mxu0 0.0
        %1270 = vmatpush1.msra.mxu0 0.0
        %1271 = vmatprep.subr.mxu0 0.0
        %1272 = vmatpush1.msra.mxu0 0.0
        %1273 = vmatprep.subr.mxu0 0.0
        %1274 = vmatpush1.msra.mxu0 0.0
        %1275 = vmatprep.subr.mxu0 0.0
        %1276 = vmatpush1.msra.mxu0 0.0
        %1277 = vmatprep.subr.mxu0 0.0
        %1278 = vmatpush1.msra.mxu0 0.0
        %1279 = vmatprep.subr.mxu0 0.0
        %1280 = vmatpush1.msra.mxu0 0.0
        %1281 = vmatprep.subr.mxu0 0.0
        %1282 = vmatpush1.msra.mxu0 0.0
        %1283 = vmatprep.subr.mxu0 0.0
        %1284 = vmatpush1.msra.mxu0 0.0
        %1285 = vmatprep.subr.mxu0 0.0
        %1286 = vmatpush1.msra.mxu0 0.0
        %1287 = vmatprep.subr.mxu0 0.0
        %1288 = vmatpush1.msra.mxu0 0.0
        %1289 = vmatprep.subr.mxu0 0.0
        %1290 = vmatpush1.msra.mxu0 0.0
        %1291 = vmatprep.subr.mxu0 0.0
        %1292 = vmatpush1.msra.mxu0 0.0
        %1293 = vmatprep.subr.mxu0 0.0
        %1294 = vmatpush1.msra.mxu0 0.0
        %1295 = vmatprep.subr.mxu0 0.0
        %1296 = vmatpush1.msra.mxu0 0.0
        %1297 = vmatprep.subr.mxu0 0.0
        %1298 = vmatpush1.msra.mxu0 0.0
        %1299 = vmatprep.subr.mxu0 0.0
        %1300 = vmatpush1.msra.mxu0 0.0
        %1301 = vmatprep.mubr.f32.mxu0 0.0
        %1302 = vmatmul.mubr.f32.gmra.mrb[0].mxu0 %v1235
        %v1303 = vpop.f32.mrb[0].mxu0
        %v1304 = vadd.f32 0.0, %v1303
        %v1305 = vpop.f32.mrb[0].mxu0
        %1306 = vdwg.mxu0
        %1307 = vrot.lane.b32.xlu0 %v628, 120
        %v1308 = vpop.permute.xlu0 %1307
        %1309 = vrot.lane.b32.xlu0 %v628, 88
        %v1310 = vpop.permute.xlu0 %1309
        %v1311 = vsel %vm653, %v1308, 0
        %v1313 = vsel %vm653, %v1310, 0
        %1315 = vmatprep.subr.mxu0 0.0
        %1316 = vmatpush1.xpose.msra.mxu0 %v1313
        %1317 = vmatprep.subr.mxu0 0.0
        %1318 = vmatpush1.xpose.msra.mxu0 0.0
        %1319 = vmatprep.subr.mxu0 0.0
        %1320 = vmatpush1.xpose.msra.mxu0 0.0
        %1321 = vmatprep.subr.mxu0 0.0
        %1322 = vmatpush1.xpose.msra.mxu0 0.0
        %1323 = vmatprep.subr.mxu0 0.0
        %1324 = vmatpush1.xpose.msra.mxu0 0.0
        %1325 = vmatprep.subr.mxu0 0.0
        %1326 = vmatpush1.xpose.msra.mxu0 0.0
        %1327 = vmatprep.subr.mxu0 0.0
        %1328 = vmatpush1.xpose.msra.mxu0 0.0
        %1329 = vmatprep.subr.mxu0 0.0
        %1330 = vmatpush1.xpose.msra.mxu0 0.0
        %1331 = vmatprep.subr.mxu0 0.0
        %1332 = vmatpush1.xpose.msra.mxu0 0.0
        %1333 = vmatprep.subr.mxu0 0.0
        %1334 = vmatpush1.xpose.msra.mxu0 0.0
        %1335 = vmatprep.subr.mxu0 0.0
        %1336 = vmatpush1.xpose.msra.mxu0 0.0
        %1337 = vmatprep.subr.mxu0 0.0
        %1338 = vmatpush1.xpose.msra.mxu0 0.0
        %1339 = vmatprep.subr.mxu0 0.0
        %1340 = vmatpush1.xpose.msra.mxu0 0.0
        %1341 = vmatprep.subr.mxu0 0.0
        %1342 = vmatpush1.xpose.msra.mxu0 0.0
        %1343 = vmatprep.subr.mxu0 0.0
        %1344 = vmatpush1.xpose.msra.mxu0 0.0
        %1345 = vmatprep.subr.mxu0 0.0
        %1346 = vmatpush1.xpose.msra.mxu0 0.0
        %1347 = vmatprep.subr.mxu0 0.0
        %1348 = vmatpush1.xpose.msra.mxu0 0.0
        %1349 = vmatprep.subr.mxu0 0.0
        %1350 = vmatpush1.xpose.msra.mxu0 0.0
        %1351 = vmatprep.subr.mxu0 0.0
        %1352 = vmatpush1.xpose.msra.mxu0 0.0
        %1353 = vmatprep.subr.mxu0 0.0
        %1354 = vmatpush1.xpose.msra.mxu0 0.0
        %1355 = vmatprep.subr.mxu0 0.0
        %1356 = vmatpush1.xpose.msra.mxu0 0.0
        %1357 = vmatprep.subr.mxu0 0.0
        %1358 = vmatpush1.xpose.msra.mxu0 0.0
        %1359 = vmatprep.subr.mxu0 0.0
        %1360 = vmatpush1.xpose.msra.mxu0 0.0
        %1361 = vmatprep.subr.mxu0 0.0
        %1362 = vmatpush1.xpose.msra.mxu0 0.0
        %1363 = vmatprep.subr.mxu0 0.0
        %1364 = vmatpush1.xpose.msra.mxu0 0.0
        %1365 = vmatprep.subr.mxu0 0.0
        %1366 = vmatpush1.xpose.msra.mxu0 0.0
        %1367 = vmatprep.subr.mxu0 0.0
        %1368 = vmatpush1.xpose.msra.mxu0 0.0
        %1369 = vmatprep.subr.mxu0 0.0
        %1370 = vmatpush1.xpose.msra.mxu0 0.0
        %1371 = vmatprep.subr.mxu0 0.0
        %1372 = vmatpush1.xpose.msra.mxu0 0.0
        %1373 = vmatprep.subr.mxu0 0.0
        %1374 = vmatpush1.xpose.msra.mxu0 0.0
        %1375 = vmatprep.subr.mxu0 0.0
        %1376 = vmatpush1.xpose.msra.mxu0 0.0
        %1377 = vmatprep.subr.mxu0 0.0
        %1378 = vmatpush1.xpose.msra.mxu0 0.0
        %1379 = vmatprep.mubr.f32.mxu0 0.0
        %1380 = vmatmul.mubr.f32.gmra.mrb[0].mxu0 %v1311
        %v1381 = vpop.f32.mrb[0].mxu0
        %v1382 = vadd.f32 %v646, %v1381
        %v1383 = vpop.f32.mrb[0].mxu0
        %1384 = vdwg.mxu0
        %1385 = vrot.lane.b32.xlu0 %v633, 120
        %v1386 = vpop.permute.xlu0 %1385
        %1387 = vrot.lane.b32.xlu0 %v633, 88
        %v1388 = vpop.permute.xlu0 %1387
        %v1389 = vsel %vm653, %v1386, 0
        %v1391 = vsel %vm653, %v1388, 0
        %1393 = vmatprep.subr.mxu0 0.0
        %1394 = vmatpush1.xpose.msra.mxu0 %v1391
        %1395 = vmatprep.subr.mxu0 0.0
        %1396 = vmatpush1.xpose.msra.mxu0 0.0
        %1397 = vmatprep.subr.mxu0 0.0
        %1398 = vmatpush1.xpose.msra.mxu0 0.0
        %1399 = vmatprep.subr.mxu0 0.0
        %1400 = vmatpush1.xpose.msra.mxu0 0.0
        %1401 = vmatprep.subr.mxu0 0.0
        %1402 = vmatpush1.xpose.msra.mxu0 0.0
        %1403 = vmatprep.subr.mxu0 0.0
        %1404 = vmatpush1.xpose.msra.mxu0 0.0
        %1405 = vmatprep.subr.mxu0 0.0
        %1406 = vmatpush1.xpose.msra.mxu0 0.0
        %1407 = vmatprep.subr.mxu0 0.0
        %1408 = vmatpush1.xpose.msra.mxu0 0.0
        %1409 = vmatprep.subr.mxu0 0.0
        %1410 = vmatpush1.xpose.msra.mxu0 0.0
        %1411 = vmatprep.subr.mxu0 0.0
        %1412 = vmatpush1.xpose.msra.mxu0 0.0
        %1413 = vmatprep.subr.mxu0 0.0
        %1414 = vmatpush1.xpose.msra.mxu0 0.0
        %1415 = vmatprep.subr.mxu0 0.0
        %1416 = vmatpush1.xpose.msra.mxu0 0.0
        %1417 = vmatprep.subr.mxu0 0.0
        %1418 = vmatpush1.xpose.msra.mxu0 0.0
        %1419 = vmatprep.subr.mxu0 0.0
        %1420 = vmatpush1.xpose.msra.mxu0 0.0
        %1421 = vmatprep.subr.mxu0 0.0
        %1422 = vmatpush1.xpose.msra.mxu0 0.0
        %1423 = vmatprep.subr.mxu0 0.0
        %1424 = vmatpush1.xpose.msra.mxu0 0.0
        %1425 = vmatprep.subr.mxu0 0.0
        %1426 = vmatpush1.xpose.msra.mxu0 0.0
        %1427 = vmatprep.subr.mxu0 0.0
        %1428 = vmatpush1.xpose.msra.mxu0 0.0
        %1429 = vmatprep.subr.mxu0 0.0
        %1430 = vmatpush1.xpose.msra.mxu0 0.0
        %1431 = vmatprep.subr.mxu0 0.0
        %1432 = vmatpush1.xpose.msra.mxu0 0.0
        %1433 = vmatprep.subr.mxu0 0.0
        %1434 = vmatpush1.xpose.msra.mxu0 0.0
        %1435 = vmatprep.subr.mxu0 0.0
        %1436 = vmatpush1.xpose.msra.mxu0 0.0
        %1437 = vmatprep.subr.mxu0 0.0
        %1438 = vmatpush1.xpose.msra.mxu0 0.0
        %1439 = vmatprep.subr.mxu0 0.0
        %1440 = vmatpush1.xpose.msra.mxu0 0.0
        %1441 = vmatprep.subr.mxu0 0.0
        %1442 = vmatpush1.xpose.msra.mxu0 0.0
        %1443 = vmatprep.subr.mxu0 0.0
        %1444 = vmatpush1.xpose.msra.mxu0 0.0
        %1445 = vmatprep.subr.mxu0 0.0
        %1446 = vmatpush1.xpose.msra.mxu0 0.0
        %1447 = vmatprep.subr.mxu0 0.0
        %1448 = vmatpush1.xpose.msra.mxu0 0.0
        %1449 = vmatprep.subr.mxu0 0.0
        %1450 = vmatpush1.xpose.msra.mxu0 0.0
        %1451 = vmatprep.subr.mxu0 0.0
        %1452 = vmatpush1.xpose.msra.mxu0 0.0
        %1453 = vmatprep.subr.mxu0 0.0
        %1454 = vmatpush1.xpose.msra.mxu0 0.0
        %1455 = vmatprep.subr.mxu0 0.0
        %1456 = vmatpush1.xpose.msra.mxu0 0.0
        %1457 = vmatprep.mubr.f32.mxu0 0.0
        %1458 = vmatmul.mubr.f32.gmra.mrb[0].mxu0 %v1389
        %v1459 = vpop.f32.mrb[0].mxu0
        %v1460 = vadd.f32 %v647, %v1459
        %v1461 = vpop.f32.mrb[0].mxu0
        %1462 = vdwg.mxu0
        %1463 = vrot.lane.b32.xlu0 %v638, 120
        %v1464 = vpop.permute.xlu0 %1463
        %1465 = vrot.lane.b32.xlu0 %v638, 88
        %v1466 = vpop.permute.xlu0 %1465
        %v1467 = vsel %vm653, %v1464, 0
        %v1469 = vsel %vm653, %v1466, 0
        %1471 = vmatprep.subr.mxu0 0.0
        %1472 = vmatpush1.xpose.msra.mxu0 %v1469
        %1473 = vmatprep.subr.mxu0 0.0
        %1474 = vmatpush1.xpose.msra.mxu0 0.0
        %1475 = vmatprep.subr.mxu0 0.0
        %1476 = vmatpush1.xpose.msra.mxu0 0.0
        %1477 = vmatprep.subr.mxu0 0.0
        %1478 = vmatpush1.xpose.msra.mxu0 0.0
        %1479 = vmatprep.subr.mxu0 0.0
        %1480 = vmatpush1.xpose.msra.mxu0 0.0
        %1481 = vmatprep.subr.mxu0 0.0
        %1482 = vmatpush1.xpose.msra.mxu0 0.0
        %1483 = vmatprep.subr.mxu0 0.0
        %1484 = vmatpush1.xpose.msra.mxu0 0.0
        %1485 = vmatprep.subr.mxu0 0.0
        %1486 = vmatpush1.xpose.msra.mxu0 0.0
        %1487 = vmatprep.subr.mxu0 0.0
        %1488 = vmatpush1.xpose.msra.mxu0 0.0
        %1489 = vmatprep.subr.mxu0 0.0
        %1490 = vmatpush1.xpose.msra.mxu0 0.0
        %1491 = vmatprep.subr.mxu0 0.0
        %1492 = vmatpush1.xpose.msra.mxu0 0.0
        %1493 = vmatprep.subr.mxu0 0.0
        %1494 = vmatpush1.xpose.msra.mxu0 0.0
        %1495 = vmatprep.subr.mxu0 0.0
        %1496 = vmatpush1.xpose.msra.mxu0 0.0
        %1497 = vmatprep.subr.mxu0 0.0
        %1498 = vmatpush1.xpose.msra.mxu0 0.0
        %1499 = vmatprep.subr.mxu0 0.0
        %1500 = vmatpush1.xpose.msra.mxu0 0.0
        %1501 = vmatprep.subr.mxu0 0.0
        %1502 = vmatpush1.xpose.msra.mxu0 0.0
        %1503 = vmatprep.subr.mxu0 0.0
        %1504 = vmatpush1.xpose.msra.mxu0 0.0
        %1505 = vmatprep.subr.mxu0 0.0
        %1506 = vmatpush1.xpose.msra.mxu0 0.0
        %1507 = vmatprep.subr.mxu0 0.0
        %1508 = vmatpush1.xpose.msra.mxu0 0.0
        %1509 = vmatprep.subr.mxu0 0.0
        %1510 = vmatpush1.xpose.msra.mxu0 0.0
        %1511 = vmatprep.subr.mxu0 0.0
        %1512 = vmatpush1.xpose.msra.mxu0 0.0
        %1513 = vmatprep.subr.mxu0 0.0
        %1514 = vmatpush1.xpose.msra.mxu0 0.0
        %1515 = vmatprep.subr.mxu0 0.0
        %1516 = vmatpush1.xpose.msra.mxu0 0.0
        %1517 = vmatprep.subr.mxu0 0.0
        %1518 = vmatpush1.xpose.msra.mxu0 0.0
        %1519 = vmatprep.subr.mxu0 0.0
        %1520 = vmatpush1.xpose.msra.mxu0 0.0
        %1521 = vmatprep.subr.mxu0 0.0
        %1522 = vmatpush1.xpose.msra.mxu0 0.0
        %1523 = vmatprep.subr.mxu0 0.0
        %1524 = vmatpush1.xpose.msra.mxu0 0.0
        %1525 = vmatprep.subr.mxu0 0.0
        %1526 = vmatpush1.xpose.msra.mxu0 0.0
        %1527 = vmatprep.subr.mxu0 0.0
        %1528 = vmatpush1.xpose.msra.mxu0 0.0
        %1529 = vmatprep.subr.mxu0 0.0
        %1530 = vmatpush1.xpose.msra.mxu0 0.0
        %1531 = vmatprep.subr.mxu0 0.0
        %1532 = vmatpush1.xpose.msra.mxu0 0.0
        %1533 = vmatprep.subr.mxu0 0.0
        %1534 = vmatpush1.xpose.msra.mxu0 0.0
        %1535 = vmatprep.mubr.f32.mxu0 0.0
        %1536 = vmatmul.mubr.f32.gmra.mrb[0].mxu0 %v1467
        %v1537 = vpop.f32.mrb[0].mxu0
        %v1538 = vadd.f32 %v648, %v1537
        %v1539 = vpop.f32.mrb[0].mxu0
        %1540 = vdwg.mxu0
        %1541 = vrot.lane.b32.xlu0 %v643, 120
        %v1542 = vpop.permute.xlu0 %1541
        %1543 = vrot.lane.b32.xlu0 %v643, 88
        %v1544 = vpop.permute.xlu0 %1543
        %v1545 = vsel %vm653, %v1542, 0
        %v1547 = vsel %vm653, %v1544, 0
        %1549 = vmatprep.subr.mxu0 0.0
        %1550 = vmatpush1.xpose.msra.mxu0 %v1547
        %1551 = vmatprep.subr.mxu0 0.0
        %1552 = vmatpush1.xpose.msra.mxu0 0.0
        %1553 = vmatprep.subr.mxu0 0.0
        %1554 = vmatpush1.xpose.msra.mxu0 0.0
        %1555 = vmatprep.subr.mxu0 0.0
        %1556 = vmatpush1.xpose.msra.mxu0 0.0
        %1557 = vmatprep.subr.mxu0 0.0
        %1558 = vmatpush1.xpose.msra.mxu0 0.0
        %1559 = vmatprep.subr.mxu0 0.0
        %1560 = vmatpush1.xpose.msra.mxu0 0.0
        %1561 = vmatprep.subr.mxu0 0.0
        %1562 = vmatpush1.xpose.msra.mxu0 0.0
        %1563 = vmatprep.subr.mxu0 0.0
        %1564 = vmatpush1.xpose.msra.mxu0 0.0
        %1565 = vmatprep.subr.mxu0 0.0
        %1566 = vmatpush1.xpose.msra.mxu0 0.0
        %1567 = vmatprep.subr.mxu0 0.0
        %1568 = vmatpush1.xpose.msra.mxu0 0.0
        %1569 = vmatprep.subr.mxu0 0.0
        %1570 = vmatpush1.xpose.msra.mxu0 0.0
        %1571 = vmatprep.subr.mxu0 0.0
        %1572 = vmatpush1.xpose.msra.mxu0 0.0
        %1573 = vmatprep.subr.mxu0 0.0
        %1574 = vmatpush1.xpose.msra.mxu0 0.0
        %1575 = vmatprep.subr.mxu0 0.0
        %1576 = vmatpush1.xpose.msra.mxu0 0.0
        %1577 = vmatprep.subr.mxu0 0.0
        %1578 = vmatpush1.xpose.msra.mxu0 0.0
        %1579 = vmatprep.subr.mxu0 0.0
        %1580 = vmatpush1.xpose.msra.mxu0 0.0
        %1581 = vmatprep.subr.mxu0 0.0
        %1582 = vmatpush1.xpose.msra.mxu0 0.0
        %1583 = vmatprep.subr.mxu0 0.0
        %1584 = vmatpush1.xpose.msra.mxu0 0.0
        %1585 = vmatprep.subr.mxu0 0.0
        %1586 = vmatpush1.xpose.msra.mxu0 0.0
        %1587 = vmatprep.subr.mxu0 0.0
        %1588 = vmatpush1.xpose.msra.mxu0 0.0
        %1589 = vmatprep.subr.mxu0 0.0
        %1590 = vmatpush1.xpose.msra.mxu0 0.0
        %1591 = vmatprep.subr.mxu0 0.0
        %1592 = vmatpush1.xpose.msra.mxu0 0.0
        %1593 = vmatprep.subr.mxu0 0.0
        %1594 = vmatpush1.xpose.msra.mxu0 0.0
        %1595 = vmatprep.subr.mxu0 0.0
        %1596 = vmatpush1.xpose.msra.mxu0 0.0
        %1597 = vmatprep.subr.mxu0 0.0
        %1598 = vmatpush1.xpose.msra.mxu0 0.0
        %1599 = vmatprep.subr.mxu0 0.0
        %1600 = vmatpush1.xpose.msra.mxu0 0.0
        %1601 = vmatprep.subr.mxu0 0.0
        %1602 = vmatpush1.xpose.msra.mxu0 0.0
        %1603 = vmatprep.subr.mxu0 0.0
        %1604 = vmatpush1.xpose.msra.mxu0 0.0
        %1605 = vmatprep.subr.mxu0 0.0
        %1606 = vmatpush1.xpose.msra.mxu0 0.0
        %1607 = vmatprep.subr.mxu0 0.0
        %1608 = vmatpush1.xpose.msra.mxu0 0.0
        %1609 = vmatprep.subr.mxu0 0.0
        %1610 = vmatpush1.xpose.msra.mxu0 0.0
        %1611 = vmatprep.subr.mxu0 0.0
        %1612 = vmatpush1.xpose.msra.mxu0 0.0
        %1613 = vmatprep.mubr.f32.mxu0 0.0
        %1614 = vmatmul.mubr.f32.gmra.mrb[0].mxu0 %v1545
        %v1615 = vpop.f32.mrb[0].mxu0
        %v1616 = vadd.f32 %v649, %v1615
        %v1617 = vpop.f32.mrb[0].mxu0
        %1618 = vdwg.mxu0
        %v1619 = vsel %vm653, %v1382, -inf
        %1620 = vmax.xlane.f32.xlu0 %v1619
        %v1621 = vpop.xlane.xlu0 %1620
        %v1622 = vsel %vm653, %v1460, -inf
        %1623 = vmax.xlane.f32.xlu0 %v1622
        %v1624 = vpop.xlane.xlu0 %1623
        %v1625 = vsel %vm653, %v1538, -inf
        %1626 = vmax.xlane.f32.xlu0 %v1625
        %v1627 = vpop.xlane.xlu0 %1626
        %v1628 = vsel %vm653, %v1616, -inf
        %1629 = vmax.xlane.f32.xlu0 %v1628
        %v1630 = vpop.xlane.xlu0 %1629
        %v1631 = vsub.f32 %v1382, %v1621
        %v1632 = vsub.f32 %v1460, %v1624
        %v1633 = vsub.f32 %v1538, %v1627
        %v1634 = vsub.f32 %v1616, %v1630
        %v1635 = vmul.f32 %v1631, 1.442695
        %v1636 = vpow.pop %v1635
        %v1637 = vmul.f32 %v1632, 1.442695
        %v1638 = vpow.pop %v1637
        %v1639 = vmul.f32 %v1633, 1.442695
        %v1640 = vpow.pop %v1639
        %v1641 = vmul.f32 %v1634, 1.442695
        %v1642 = vpow.pop %v1641
        %v1643 = vsel %vm653, %v1636, 0.0
        %1644 = vadd.xlane.f32.xlu0 %v1643
        %v1645 = vpop.xlane.xlu0 %1644
        %v1646 = vsel %vm653, %v1638, 0.0
        %1647 = vadd.xlane.f32.xlu0 %v1646
        %v1648 = vpop.xlane.xlu0 %1647
        %v1649 = vsel %vm653, %v1640, 0.0
        %1650 = vadd.xlane.f32.xlu0 %v1649
        %v1651 = vpop.xlane.xlu0 %1650
        %v1652 = vsel %vm653, %v1642, 0.0
        %1653 = vadd.xlane.f32.xlu0 %v1652
        %v1654 = vpop.xlane.xlu0 %1653
        %v1655 = vrcp.pop %v1645
        %v1656 = vmul.f32 %v1636, %v1655
        %v1657 = vrcp.pop %v1648
        %v1658 = vmul.f32 %v1638, %v1657
        %v1659 = vrcp.pop %v1651
        %v1660 = vmul.f32 %v1640, %v1659
        %v1661 = vrcp.pop %v1654
        %v1662 = vmul.f32 %v1642, %v1661
        %1663 = vrot.lane.b32.xlu0 %v628, 56
        %v1664 = vpop.permute.xlu0 %1663
        %v1667 = vsel %vm653, %v1656, 0
        %1669 = vmatprep.subr.mxu0 0.0
        %1670 = vmatpush1.msra.mxu0 %v1664
        %1671 = vmatprep.subr.mxu0 0.0
        %1672 = vmatpush1.msra.mxu0 0.0
        %1673 = vmatprep.subr.mxu0 0.0
        %1674 = vmatpush1.msra.mxu0 0.0
        %1675 = vmatprep.subr.mxu0 0.0
        %1676 = vmatpush1.msra.mxu0 0.0
        %1677 = vmatprep.subr.mxu0 0.0
        %1678 = vmatpush1.msra.mxu0 0.0
        %1679 = vmatprep.subr.mxu0 0.0
        %1680 = vmatpush1.msra.mxu0 0.0
        %1681 = vmatprep.subr.mxu0 0.0
        %1682 = vmatpush1.msra.mxu0 0.0
        %1683 = vmatprep.subr.mxu0 0.0
        %1684 = vmatpush1.msra.mxu0 0.0
        %1685 = vmatprep.subr.mxu0 0.0
        %1686 = vmatpush1.msra.mxu0 0.0
        %1687 = vmatprep.subr.mxu0 0.0
        %1688 = vmatpush1.msra.mxu0 0.0
        %1689 = vmatprep.subr.mxu0 0.0
        %1690 = vmatpush1.msra.mxu0 0.0
        %1691 = vmatprep.subr.mxu0 0.0
        %1692 = vmatpush1.msra.mxu0 0.0
        %1693 = vmatprep.subr.mxu0 0.0
        %1694 = vmatpush1.msra.mxu0 0.0
        %1695 = vmatprep.subr.mxu0 0.0
        %1696 = vmatpush1.msra.mxu0 0.0
        %1697 = vmatprep.subr.mxu0 0.0
        %1698 = vmatpush1.msra.mxu0 0.0
        %1699 = vmatprep.subr.mxu0 0.0
        %1700 = vmatpush1.msra.mxu0 0.0
        %1701 = vmatprep.subr.mxu0 0.0
        %1702 = vmatpush1.msra.mxu0 0.0
        %1703 = vmatprep.subr.mxu0 0.0
        %1704 = vmatpush1.msra.mxu0 0.0
        %1705 = vmatprep.subr.mxu0 0.0
        %1706 = vmatpush1.msra.mxu0 0.0
        %1707 = vmatprep.subr.mxu0 0.0
        %1708 = vmatpush1.msra.mxu0 0.0
        %1709 = vmatprep.subr.mxu0 0.0
        %1710 = vmatpush1.msra.mxu0 0.0
        %1711 = vmatprep.subr.mxu0 0.0
        %1712 = vmatpush1.msra.mxu0 0.0
        %1713 = vmatprep.subr.mxu0 0.0
        %1714 = vmatpush1.msra.mxu0 0.0
        %1715 = vmatprep.subr.mxu0 0.0
        %1716 = vmatpush1.msra.mxu0 0.0
        %1717 = vmatprep.subr.mxu0 0.0
        %1718 = vmatpush1.msra.mxu0 0.0
        %1719 = vmatprep.subr.mxu0 0.0
        %1720 = vmatpush1.msra.mxu0 0.0
        %1721 = vmatprep.subr.mxu0 0.0
        %1722 = vmatpush1.msra.mxu0 0.0
        %1723 = vmatprep.subr.mxu0 0.0
        %1724 = vmatpush1.msra.mxu0 0.0
        %1725 = vmatprep.subr.mxu0 0.0
        %1726 = vmatpush1.msra.mxu0 0.0
        %1727 = vmatprep.subr.mxu0 0.0
        %1728 = vmatpush1.msra.mxu0 0.0
        %1729 = vmatprep.subr.mxu0 0.0
        %1730 = vmatpush1.msra.mxu0 0.0
        %1731 = vmatprep.subr.mxu0 0.0
        %1732 = vmatpush1.msra.mxu0 0.0
        %1733 = vmatprep.mubr.f32.mxu0 0.0
        %1734 = vmatmul.mubr.f32.gmra.mrb[0].mxu0 %v1667
        %v1735 = vpop.f32.mrb[0].mxu0
        %v1736 = vadd.f32 0.0, %v1735
        %v1737 = vpop.f32.mrb[0].mxu0
        %1738 = vdwg.mxu0
        %1739 = vrot.lane.b32.xlu0 %v633, 56
        %v1740 = vpop.permute.xlu0 %1739
        %v1743 = vsel %vm653, %v1658, 0
        %1745 = vmatprep.subr.mxu0 0.0
        %1746 = vmatpush1.msra.mxu0 %v1740
        %1747 = vmatprep.subr.mxu0 0.0
        %1748 = vmatpush1.msra.mxu0 0.0
        %1749 = vmatprep.subr.mxu0 0.0
        %1750 = vmatpush1.msra.mxu0 0.0
        %1751 = vmatprep.subr.mxu0 0.0
        %1752 = vmatpush1.msra.mxu0 0.0
        %1753 = vmatprep.subr.mxu0 0.0
        %1754 = vmatpush1.msra.mxu0 0.0
        %1755 = vmatprep.subr.mxu0 0.0
        %1756 = vmatpush1.msra.mxu0 0.0
        %1757 = vmatprep.subr.mxu0 0.0
        %1758 = vmatpush1.msra.mxu0 0.0
        %1759 = vmatprep.subr.mxu0 0.0
        %1760 = vmatpush1.msra.mxu0 0.0
        %1761 = vmatprep.subr.mxu0 0.0
        %1762 = vmatpush1.msra.mxu0 0.0
        %1763 = vmatprep.subr.mxu0 0.0
        %1764 = vmatpush1.msra.mxu0 0.0
        %1765 = vmatprep.subr.mxu0 0.0
        %1766 = vmatpush1.msra.mxu0 0.0
        %1767 = vmatprep.subr.mxu0 0.0
        %1768 = vmatpush1.msra.mxu0 0.0
        %1769 = vmatprep.subr.mxu0 0.0
        %1770 = vmatpush1.msra.mxu0 0.0
        %1771 = vmatprep.subr.mxu0 0.0
        %1772 = vmatpush1.msra.mxu0 0.0
        %1773 = vmatprep.subr.mxu0 0.0
        %1774 = vmatpush1.msra.mxu0 0.0
        %1775 = vmatprep.subr.mxu0 0.0
        %1776 = vmatpush1.msra.mxu0 0.0
        %1777 = vmatprep.subr.mxu0 0.0
        %1778 = vmatpush1.msra.mxu0 0.0
        %1779 = vmatprep.subr.mxu0 0.0
        %1780 = vmatpush1.msra.mxu0 0.0
        %1781 = vmatprep.subr.mxu0 0.0
        %1782 = vmatpush1.msra.mxu0 0.0
        %1783 = vmatprep.subr.mxu0 0.0
        %1784 = vmatpush1.msra.mxu0 0.0
        %1785 = vmatprep.subr.mxu0 0.0
        %1786 = vmatpush1.msra.mxu0 0.0
        %1787 = vmatprep.subr.mxu0 0.0
        %1788 = vmatpush1.msra.mxu0 0.0
        %1789 = vmatprep.subr.mxu0 0.0
        %1790 = vmatpush1.msra.mxu0 0.0
        %1791 = vmatprep.subr.mxu0 0.0
        %1792 = vmatpush1.msra.mxu0 0.0
        %1793 = vmatprep.subr.mxu0 0.0
        %1794 = vmatpush1.msra.mxu0 0.0
        %1795 = vmatprep.subr.mxu0 0.0
        %1796 = vmatpush1.msra.mxu0 0.0
        %1797 = vmatprep.subr.mxu0 0.0
        %1798 = vmatpush1.msra.mxu0 0.0
        %1799 = vmatprep.subr.mxu0 0.0
        %1800 = vmatpush1.msra.mxu0 0.0
        %1801 = vmatprep.subr.mxu0 0.0
        %1802 = vmatpush1.msra.mxu0 0.0
        %1803 = vmatprep.subr.mxu0 0.0
        %1804 = vmatpush1.msra.mxu0 0.0
        %1805 = vmatprep.subr.mxu0 0.0
        %1806 = vmatpush1.msra.mxu0 0.0
        %1807 = vmatprep.subr.mxu0 0.0
        %1808 = vmatpush1.msra.mxu0 0.0
        %1809 = vmatprep.mubr.f32.mxu0 0.0
        %1810 = vmatmul.mubr.f32.gmra.mrb[0].mxu0 %v1743
        %v1811 = vpop.f32.mrb[0].mxu0
        %v1812 = vadd.f32 0.0, %v1811
        %v1813 = vpop.f32.mrb[0].mxu0
        %1814 = vdwg.mxu0
        %1815 = vrot.lane.b32.xlu0 %v638, 56
        %v1816 = vpop.permute.xlu0 %1815
        %v1819 = vsel %vm653, %v1660, 0
        %1821 = vmatprep.subr.mxu0 0.0
        %1822 = vmatpush1.msra.mxu0 %v1816
        %1823 = vmatprep.subr.mxu0 0.0
        %1824 = vmatpush1.msra.mxu0 0.0
        %1825 = vmatprep.subr.mxu0 0.0
        %1826 = vmatpush1.msra.mxu0 0.0
        %1827 = vmatprep.subr.mxu0 0.0
        %1828 = vmatpush1.msra.mxu0 0.0
        %1829 = vmatprep.subr.mxu0 0.0
        %1830 = vmatpush1.msra.mxu0 0.0
        %1831 = vmatprep.subr.mxu0 0.0
        %1832 = vmatpush1.msra.mxu0 0.0
        %1833 = vmatprep.subr.mxu0 0.0
        %1834 = vmatpush1.msra.mxu0 0.0
        %1835 = vmatprep.subr.mxu0 0.0
        %1836 = vmatpush1.msra.mxu0 0.0
        %1837 = vmatprep.subr.mxu0 0.0
        %1838 = vmatpush1.msra.mxu0 0.0
        %1839 = vmatprep.subr.mxu0 0.0
        %1840 = vmatpush1.msra.mxu0 0.0
        %1841 = vmatprep.subr.mxu0 0.0
        %1842 = vmatpush1.msra.mxu0 0.0
        %1843 = vmatprep.subr.mxu0 0.0
        %1844 = vmatpush1.msra.mxu0 0.0
        %1845 = vmatprep.subr.mxu0 0.0
        %1846 = vmatpush1.msra.mxu0 0.0
        %1847 = vmatprep.subr.mxu0 0.0
        %1848 = vmatpush1.msra.mxu0 0.0
        %1849 = vmatprep.subr.mxu0 0.0
        %1850 = vmatpush1.msra.mxu0 0.0
        %1851 = vmatprep.subr.mxu0 0.0
        %1852 = vmatpush1.msra.mxu0 0.0
        %1853 = vmatprep.subr.mxu0 0.0
        %1854 = vmatpush1.msra.mxu0 0.0
        %1855 = vmatprep.subr.mxu0 0.0
        %1856 = vmatpush1.msra.mxu0 0.0
        %1857 = vmatprep.subr.mxu0 0.0
        %1858 = vmatpush1.msra.mxu0 0.0
        %1859 = vmatprep.subr.mxu0 0.0
        %1860 = vmatpush1.msra.mxu0 0.0
        %1861 = vmatprep.subr.mxu0 0.0
        %1862 = vmatpush1.msra.mxu0 0.0
        %1863 = vmatprep.subr.mxu0 0.0
        %1864 = vmatpush1.msra.mxu0 0.0
        %1865 = vmatprep.subr.mxu0 0.0
        %1866 = vmatpush1.msra.mxu0 0.0
        %1867 = vmatprep.subr.mxu0 0.0
        %1868 = vmatpush1.msra.mxu0 0.0
        %1869 = vmatprep.subr.mxu0 0.0
        %1870 = vmatpush1.msra.mxu0 0.0
        %1871 = vmatprep.subr.mxu0 0.0
        %1872 = vmatpush1.msra.mxu0 0.0
        %1873 = vmatprep.subr.mxu0 0.0
        %1874 = vmatpush1.msra.mxu0 0.0
        %1875 = vmatprep.subr.mxu0 0.0
        %1876 = vmatpush1.msra.mxu0 0.0
        %1877 = vmatprep.subr.mxu0 0.0
        %1878 = vmatpush1.msra.mxu0 0.0
        %1879 = vmatprep.subr.mxu0 0.0
        %1880 = vmatpush1.msra.mxu0 0.0
        %1881 = vmatprep.subr.mxu0 0.0
        %1882 = vmatpush1.msra.mxu0 0.0
        %1883 = vmatprep.subr.mxu0 0.0
        %1884 = vmatpush1.msra.mxu0 0.0
        %1885 = vmatprep.mubr.f32.mxu0 0.0
        %1886 = vmatmul.mubr.f32.gmra.mrb[0].mxu0 %v1819
        %v1887 = vpop.f32.mrb[0].mxu0
        %v1888 = vadd.f32 0.0, %v1887
        %v1889 = vpop.f32.mrb[0].mxu0
        %1890 = vdwg.mxu0
        %1891 = vrot.lane.b32.xlu0 %v643, 56
        %v1892 = vpop.permute.xlu0 %1891
        %v1895 = vsel %vm653, %v1662, 0
        %1897 = vmatprep.subr.mxu0 0.0
        %1898 = vmatpush1.msra.mxu0 %v1892
        %1899 = vmatprep.subr.mxu0 0.0
        %1900 = vmatpush1.msra.mxu0 0.0
        %1901 = vmatprep.subr.mxu0 0.0
        %1902 = vmatpush1.msra.mxu0 0.0
        %1903 = vmatprep.subr.mxu0 0.0
        %1904 = vmatpush1.msra.mxu0 0.0
        %1905 = vmatprep.subr.mxu0 0.0
        %1906 = vmatpush1.msra.mxu0 0.0
        %1907 = vmatprep.subr.mxu0 0.0
        %1908 = vmatpush1.msra.mxu0 0.0
        %1909 = vmatprep.subr.mxu0 0.0
        %1910 = vmatpush1.msra.mxu0 0.0
        %1911 = vmatprep.subr.mxu0 0.0
        %1912 = vmatpush1.msra.mxu0 0.0
        %1913 = vmatprep.subr.mxu0 0.0
        %1914 = vmatpush1.msra.mxu0 0.0
        %1915 = vmatprep.subr.mxu0 0.0
        %1916 = vmatpush1.msra.mxu0 0.0
        %1917 = vmatprep.subr.mxu0 0.0
        %1918 = vmatpush1.msra.mxu0 0.0
        %1919 = vmatprep.subr.mxu0 0.0
        %1920 = vmatpush1.msra.mxu0 0.0
        %1921 = vmatprep.subr.mxu0 0.0
        %1922 = vmatpush1.msra.mxu0 0.0
        %1923 = vmatprep.subr.mxu0 0.0
        %1924 = vmatpush1.msra.mxu0 0.0
        %1925 = vmatprep.subr.mxu0 0.0
        %1926 = vmatpush1.msra.mxu0 0.0
        %1927 = vmatprep.subr.mxu0 0.0
        %1928 = vmatpush1.msra.mxu0 0.0
        %1929 = vmatprep.subr.mxu0 0.0
        %1930 = vmatpush1.msra.mxu0 0.0
        %1931 = vmatprep.subr.mxu0 0.0
        %1932 = vmatpush1.msra.mxu0 0.0
        %1933 = vmatprep.subr.mxu0 0.0
        %1934 = vmatpush1.msra.mxu0 0.0
        %1935 = vmatprep.subr.mxu0 0.0
        %1936 = vmatpush1.msra.mxu0 0.0
        %1937 = vmatprep.subr.mxu0 0.0
        %1938 = vmatpush1.msra.mxu0 0.0
        %1939 = vmatprep.subr.mxu0 0.0
        %1940 = vmatpush1.msra.mxu0 0.0
        %1941 = vmatprep.subr.mxu0 0.0
        %1942 = vmatpush1.msra.mxu0 0.0
        %1943 = vmatprep.subr.mxu0 0.0
        %1944 = vmatpush1.msra.mxu0 0.0
        %1945 = vmatprep.subr.mxu0 0.0
        %1946 = vmatpush1.msra.mxu0 0.0
        %1947 = vmatprep.subr.mxu0 0.0
        %1948 = vmatpush1.msra.mxu0 0.0
        %1949 = vmatprep.subr.mxu0 0.0
        %1950 = vmatpush1.msra.mxu0 0.0
        %1951 = vmatprep.subr.mxu0 0.0
        %1952 = vmatpush1.msra.mxu0 0.0
        %1953 = vmatprep.subr.mxu0 0.0
        %1954 = vmatpush1.msra.mxu0 0.0
        %1955 = vmatprep.subr.mxu0 0.0
        %1956 = vmatpush1.msra.mxu0 0.0
        %1957 = vmatprep.subr.mxu0 0.0
        %1958 = vmatpush1.msra.mxu0 0.0
        %1959 = vmatprep.subr.mxu0 0.0
        %1960 = vmatpush1.msra.mxu0 0.0
        %1961 = vmatprep.mubr.f32.mxu0 0.0
        %1962 = vmatmul.mubr.f32.gmra.mrb[0].mxu0 %v1895
        %v1963 = vpop.f32.mrb[0].mxu0
        %v1964 = vadd.f32 0.0, %v1963
        %v1965 = vpop.f32.mrb[0].mxu0
        %1966 = vdwg.mxu0
        %1967 = vrot.lane.b32.xlu0 %v628, 112
        %v1968 = vpop.permute.xlu0 %1967
        %1969 = vrot.lane.b32.xlu0 %v628, 80
        %v1970 = vpop.permute.xlu0 %1969
        %v1971 = vsel %vm653, %v1968, 0
        %v1973 = vsel %vm653, %v1970, 0
        %1975 = vmatprep.subr.mxu0 0.0
        %1976 = vmatpush1.xpose.msra.mxu0 %v1973
        %1977 = vmatprep.subr.mxu0 0.0
        %1978 = vmatpush1.xpose.msra.mxu0 0.0
        %1979 = vmatprep.subr.mxu0 0.0
        %1980 = vmatpush1.xpose.msra.mxu0 0.0
        %1981 = vmatprep.subr.mxu0 0.0
        %1982 = vmatpush1.xpose.msra.mxu0 0.0
        %1983 = vmatprep.subr.mxu0 0.0
        %1984 = vmatpush1.xpose.msra.mxu0 0.0
        %1985 = vmatprep.subr.mxu0 0.0
        %1986 = vmatpush1.xpose.msra.mxu0 0.0
        %1987 = vmatprep.subr.mxu0 0.0
        %1988 = vmatpush1.xpose.msra.mxu0 0.0
        %1989 = vmatprep.subr.mxu0 0.0
        %1990 = vmatpush1.xpose.msra.mxu0 0.0
        %1991 = vmatprep.subr.mxu0 0.0
        %1992 = vmatpush1.xpose.msra.mxu0 0.0
        %1993 = vmatprep.subr.mxu0 0.0
        %1994 = vmatpush1.xpose.msra.mxu0 0.0
        %1995 = vmatprep.subr.mxu0 0.0
        %1996 = vmatpush1.xpose.msra.mxu0 0.0
        %1997 = vmatprep.subr.mxu0 0.0
        %1998 = vmatpush1.xpose.msra.mxu0 0.0
        %1999 = vmatprep.subr.mxu0 0.0
        %2000 = vmatpush1.xpose.msra.mxu0 0.0
        %2001 = vmatprep.subr.mxu0 0.0
        %2002 = vmatpush1.xpose.msra.mxu0 0.0
        %2003 = vmatprep.subr.mxu0 0.0
        %2004 = vmatpush1.xpose.msra.mxu0 0.0
        %2005 = vmatprep.subr.mxu0 0.0
        %2006 = vmatpush1.xpose.msra.mxu0 0.0
        %2007 = vmatprep.subr.mxu0 0.0
        %2008 = vmatpush1.xpose.msra.mxu0 0.0
        %2009 = vmatprep.subr.mxu0 0.0
        %2010 = vmatpush1.xpose.msra.mxu0 0.0
        %2011 = vmatprep.subr.mxu0 0.0
        %2012 = vmatpush1.xpose.msra.mxu0 0.0
        %2013 = vmatprep.subr.mxu0 0.0
        %2014 = vmatpush1.xpose.msra.mxu0 0.0
        %2015 = vmatprep.subr.mxu0 0.0
        %2016 = vmatpush1.xpose.msra.mxu0 0.0
        %2017 = vmatprep.subr.mxu0 0.0
        %2018 = vmatpush1.xpose.msra.mxu0 0.0
        %2019 = vmatprep.subr.mxu0 0.0
        %2020 = vmatpush1.xpose.msra.mxu0 0.0
        %2021 = vmatprep.subr.mxu0 0.0
        %2022 = vmatpush1.xpose.msra.mxu0 0.0
        %2023 = vmatprep.subr.mxu0 0.0
        %2024 = vmatpush1.xpose.msra.mxu0 0.0
        %2025 = vmatprep.subr.mxu0 0.0
        %2026 = vmatpush1.xpose.msra.mxu0 0.0
        %2027 = vmatprep.subr.mxu0 0.0
        %2028 = vmatpush1.xpose.msra.mxu0 0.0
        %2029 = vmatprep.subr.mxu0 0.0
        %2030 = vmatpush1.xpose.msra.mxu0 0.0
        %2031 = vmatprep.subr.mxu0 0.0
        %2032 = vmatpush1.xpose.msra.mxu0 0.0
        %2033 = vmatprep.subr.mxu0 0.0
        %2034 = vmatpush1.xpose.msra.mxu0 0.0
        %2035 = vmatprep.subr.mxu0 0.0
        %2036 = vmatpush1.xpose.msra.mxu0 0.0
        %2037 = vmatprep.subr.mxu0 0.0
        %2038 = vmatpush1.xpose.msra.mxu0 0.0
        %2039 = vmatprep.mubr.f32.mxu0 0.0
        %2040 = vmatmul.mubr.f32.gmra.mrb[0].mxu0 %v1971
        %v2041 = vpop.f32.mrb[0].mxu0
        %v2042 = vadd.f32 %v646, %v2041
        %v2043 = vpop.f32.mrb[0].mxu0
        %2044 = vdwg.mxu0
        %2045 = vrot.lane.b32.xlu0 %v633, 112
        %v2046 = vpop.permute.xlu0 %2045
        %2047 = vrot.lane.b32.xlu0 %v633, 80
        %v2048 = vpop.permute.xlu0 %2047
        %v2049 = vsel %vm653, %v2046, 0
        %v2051 = vsel %vm653, %v2048, 0
        %2053 = vmatprep.subr.mxu0 0.0
        %2054 = vmatpush1.xpose.msra.mxu0 %v2051
        %2055 = vmatprep.subr.mxu0 0.0
        %2056 = vmatpush1.xpose.msra.mxu0 0.0
        %2057 = vmatprep.subr.mxu0 0.0
        %2058 = vmatpush1.xpose.msra.mxu0 0.0
        %2059 = vmatprep.subr.mxu0 0.0
        %2060 = vmatpush1.xpose.msra.mxu0 0.0
        %2061 = vmatprep.subr.mxu0 0.0
        %2062 = vmatpush1.xpose.msra.mxu0 0.0
        %2063 = vmatprep.subr.mxu0 0.0
        %2064 = vmatpush1.xpose.msra.mxu0 0.0
        %2065 = vmatprep.subr.mxu0 0.0
        %2066 = vmatpush1.xpose.msra.mxu0 0.0
        %2067 = vmatprep.subr.mxu0 0.0
        %2068 = vmatpush1.xpose.msra.mxu0 0.0
        %2069 = vmatprep.subr.mxu0 0.0
        %2070 = vmatpush1.xpose.msra.mxu0 0.0
        %2071 = vmatprep.subr.mxu0 0.0
        %2072 = vmatpush1.xpose.msra.mxu0 0.0
        %2073 = vmatprep.subr.mxu0 0.0
        %2074 = vmatpush1.xpose.msra.mxu0 0.0
        %2075 = vmatprep.subr.mxu0 0.0
        %2076 = vmatpush1.xpose.msra.mxu0 0.0
        %2077 = vmatprep.subr.mxu0 0.0
        %2078 = vmatpush1.xpose.msra.mxu0 0.0
        %2079 = vmatprep.subr.mxu0 0.0
        %2080 = vmatpush1.xpose.msra.mxu0 0.0
        %2081 = vmatprep.subr.mxu0 0.0
        %2082 = vmatpush1.xpose.msra.mxu0 0.0
        %2083 = vmatprep.subr.mxu0 0.0
        %2084 = vmatpush1.xpose.msra.mxu0 0.0
        %2085 = vmatprep.subr.mxu0 0.0
        %2086 = vmatpush1.xpose.msra.mxu0 0.0
        %2087 = vmatprep.subr.mxu0 0.0
        %2088 = vmatpush1.xpose.msra.mxu0 0.0
        %2089 = vmatprep.subr.mxu0 0.0
        %2090 = vmatpush1.xpose.msra.mxu0 0.0
        %2091 = vmatprep.subr.mxu0 0.0
        %2092 = vmatpush1.xpose.msra.mxu0 0.0
        %2093 = vmatprep.subr.mxu0 0.0
        %2094 = vmatpush1.xpose.msra.mxu0 0.0
        %2095 = vmatprep.subr.mxu0 0.0
        %2096 = vmatpush1.xpose.msra.mxu0 0.0
        %2097 = vmatprep.subr.mxu0 0.0
        %2098 = vmatpush1.xpose.msra.mxu0 0.0
        %2099 = vmatprep.subr.mxu0 0.0
        %2100 = vmatpush1.xpose.msra.mxu0 0.0
        %2101 = vmatprep.subr.mxu0 0.0
        %2102 = vmatpush1.xpose.msra.mxu0 0.0
        %2103 = vmatprep.subr.mxu0 0.0
        %2104 = vmatpush1.xpose.msra.mxu0 0.0
        %2105 = vmatprep.subr.mxu0 0.0
        %2106 = vmatpush1.xpose.msra.mxu0 0.0
        %2107 = vmatprep.subr.mxu0 0.0
        %2108 = vmatpush1.xpose.msra.mxu0 0.0
        %2109 = vmatprep.subr.mxu0 0.0
        %2110 = vmatpush1.xpose.msra.mxu0 0.0
        %2111 = vmatprep.subr.mxu0 0.0
        %2112 = vmatpush1.xpose.msra.mxu0 0.0
        %2113 = vmatprep.subr.mxu0 0.0
        %2114 = vmatpush1.xpose.msra.mxu0 0.0
        %2115 = vmatprep.subr.mxu0 0.0
        %2116 = vmatpush1.xpose.msra.mxu0 0.0
        %2117 = vmatprep.mubr.f32.mxu0 0.0
        %2118 = vmatmul.mubr.f32.gmra.mrb[0].mxu0 %v2049
        %v2119 = vpop.f32.mrb[0].mxu0
        %v2120 = vadd.f32 %v647, %v2119
        %v2121 = vpop.f32.mrb[0].mxu0
        %2122 = vdwg.mxu0
        %2123 = vrot.lane.b32.xlu0 %v638, 112
        %v2124 = vpop.permute.xlu0 %2123
        %2125 = vrot.lane.b32.xlu0 %v638, 80
        %v2126 = vpop.permute.xlu0 %2125
        %v2127 = vsel %vm653, %v2124, 0
        %v2129 = vsel %vm653, %v2126, 0
        %2131 = vmatprep.subr.mxu0 0.0
        %2132 = vmatpush1.xpose.msra.mxu0 %v2129
        %2133 = vmatprep.subr.mxu0 0.0
        %2134 = vmatpush1.xpose.msra.mxu0 0.0
        %2135 = vmatprep.subr.mxu0 0.0
        %2136 = vmatpush1.xpose.msra.mxu0 0.0
        %2137 = vmatprep.subr.mxu0 0.0
        %2138 = vmatpush1.xpose.msra.mxu0 0.0
        %2139 = vmatprep.subr.mxu0 0.0
        %2140 = vmatpush1.xpose.msra.mxu0 0.0
        %2141 = vmatprep.subr.mxu0 0.0
        %2142 = vmatpush1.xpose.msra.mxu0 0.0
        %2143 = vmatprep.subr.mxu0 0.0
        %2144 = vmatpush1.xpose.msra.mxu0 0.0
        %2145 = vmatprep.subr.mxu0 0.0
        %2146 = vmatpush1.xpose.msra.mxu0 0.0
        %2147 = vmatprep.subr.mxu0 0.0
        %2148 = vmatpush1.xpose.msra.mxu0 0.0
        %2149 = vmatprep.subr.mxu0 0.0
        %2150 = vmatpush1.xpose.msra.mxu0 0.0
        %2151 = vmatprep.subr.mxu0 0.0
        %2152 = vmatpush1.xpose.msra.mxu0 0.0
        %2153 = vmatprep.subr.mxu0 0.0
        %2154 = vmatpush1.xpose.msra.mxu0 0.0
        %2155 = vmatprep.subr.mxu0 0.0
        %2156 = vmatpush1.xpose.msra.mxu0 0.0
        %2157 = vmatprep.subr.mxu0 0.0
        %2158 = vmatpush1.xpose.msra.mxu0 0.0
        %2159 = vmatprep.subr.mxu0 0.0
        %2160 = vmatpush1.xpose.msra.mxu0 0.0
        %2161 = vmatprep.subr.mxu0 0.0
        %2162 = vmatpush1.xpose.msra.mxu0 0.0
        %2163 = vmatprep.subr.mxu0 0.0
        %2164 = vmatpush1.xpose.msra.mxu0 0.0
        %2165 = vmatprep.subr.mxu0 0.0
        %2166 = vmatpush1.xpose.msra.mxu0 0.0
        %2167 = vmatprep.subr.mxu0 0.0
        %2168 = vmatpush1.xpose.msra.mxu0 0.0
        %2169 = vmatprep.subr.mxu0 0.0
        %2170 = vmatpush1.xpose.msra.mxu0 0.0
        %2171 = vmatprep.subr.mxu0 0.0
        %2172 = vmatpush1.xpose.msra.mxu0 0.0
        %2173 = vmatprep.subr.mxu0 0.0
        %2174 = vmatpush1.xpose.msra.mxu0 0.0
        %2175 = vmatprep.subr.mxu0 0.0
        %2176 = vmatpush1.xpose.msra.mxu0 0.0
        %2177 = vmatprep.subr.mxu0 0.0
        %2178 = vmatpush1.xpose.msra.mxu0 0.0
        %2179 = vmatprep.subr.mxu0 0.0
        %2180 = vmatpush1.xpose.msra.mxu0 0.0
        %2181 = vmatprep.subr.mxu0 0.0
        %2182 = vmatpush1.xpose.msra.mxu0 0.0
        %2183 = vmatprep.subr.mxu0 0.0
        %2184 = vmatpush1.xpose.msra.mxu0 0.0
        %2185 = vmatprep.subr.mxu0 0.0
        %2186 = vmatpush1.xpose.msra.mxu0 0.0
        %2187 = vmatprep.subr.mxu0 0.0
        %2188 = vmatpush1.xpose.msra.mxu0 0.0
        %2189 = vmatprep.subr.mxu0 0.0
        %2190 = vmatpush1.xpose.msra.mxu0 0.0
        %2191 = vmatprep.subr.mxu0 0.0
        %2192 = vmatpush1.xpose.msra.mxu0 0.0
        %2193 = vmatprep.subr.mxu0 0.0
        %2194 = vmatpush1.xpose.msra.mxu0 0.0
        %2195 = vmatprep.mubr.f32.mxu0 0.0
        %2196 = vmatmul.mubr.f32.gmra.mrb[0].mxu0 %v2127
        %v2197 = vpop.f32.mrb[0].mxu0
        %v2198 = vadd.f32 %v648, %v2197
        %v2199 = vpop.f32.mrb[0].mxu0
        %2200 = vdwg.mxu0
        %2201 = vrot.lane.b32.xlu0 %v643, 112
        %v2202 = vpop.permute.xlu0 %2201
        %2203 = vrot.lane.b32.xlu0 %v643, 80
        %v2204 = vpop.permute.xlu0 %2203
        %v2205 = vsel %vm653, %v2202, 0
        %v2207 = vsel %vm653, %v2204, 0
        %2209 = vmatprep.subr.mxu0 0.0
        %2210 = vmatpush1.xpose.msra.mxu0 %v2207
        %2211 = vmatprep.subr.mxu0 0.0
        %2212 = vmatpush1.xpose.msra.mxu0 0.0
        %2213 = vmatprep.subr.mxu0 0.0
        %2214 = vmatpush1.xpose.msra.mxu0 0.0
        %2215 = vmatprep.subr.mxu0 0.0
        %2216 = vmatpush1.xpose.msra.mxu0 0.0
        %2217 = vmatprep.subr.mxu0 0.0
        %2218 = vmatpush1.xpose.msra.mxu0 0.0
        %2219 = vmatprep.subr.mxu0 0.0
        %2220 = vmatpush1.xpose.msra.mxu0 0.0
        %2221 = vmatprep.subr.mxu0 0.0
        %2222 = vmatpush1.xpose.msra.mxu0 0.0
        %2223 = vmatprep.subr.mxu0 0.0
        %2224 = vmatpush1.xpose.msra.mxu0 0.0
        %2225 = vmatprep.subr.mxu0 0.0
        %2226 = vmatpush1.xpose.msra.mxu0 0.0
        %2227 = vmatprep.subr.mxu0 0.0
        %2228 = vmatpush1.xpose.msra.mxu0 0.0
        %2229 = vmatprep.subr.mxu0 0.0
        %2230 = vmatpush1.xpose.msra.mxu0 0.0
        %2231 = vmatprep.subr.mxu0 0.0
        %2232 = vmatpush1.xpose.msra.mxu0 0.0
        %2233 = vmatprep.subr.mxu0 0.0
        %2234 = vmatpush1.xpose.msra.mxu0 0.0
        %2235 = vmatprep.subr.mxu0 0.0
        %2236 = vmatpush1.xpose.msra.mxu0 0.0
        %2237 = vmatprep.subr.mxu0 0.0
        %2238 = vmatpush1.xpose.msra.mxu0 0.0
        %2239 = vmatprep.subr.mxu0 0.0
        %2240 = vmatpush1.xpose.msra.mxu0 0.0
        %2241 = vmatprep.subr.mxu0 0.0
        %2242 = vmatpush1.xpose.msra.mxu0 0.0
        %2243 = vmatprep.subr.mxu0 0.0
        %2244 = vmatpush1.xpose.msra.mxu0 0.0
        %2245 = vmatprep.subr.mxu0 0.0
        %2246 = vmatpush1.xpose.msra.mxu0 0.0
        %2247 = vmatprep.subr.mxu0 0.0
        %2248 = vmatpush1.xpose.msra.mxu0 0.0
        %2249 = vmatprep.subr.mxu0 0.0
        %2250 = vmatpush1.xpose.msra.mxu0 0.0
        %2251 = vmatprep.subr.mxu0 0.0
        %2252 = vmatpush1.xpose.msra.mxu0 0.0
        %2253 = vmatprep.subr.mxu0 0.0
        %2254 = vmatpush1.xpose.msra.mxu0 0.0
        %2255 = vmatprep.subr.mxu0 0.0
        %2256 = vmatpush1.xpose.msra.mxu0 0.0
        %2257 = vmatprep.subr.mxu0 0.0
        %2258 = vmatpush1.xpose.msra.mxu0 0.0
        %2259 = vmatprep.subr.mxu0 0.0
        %2260 = vmatpush1.xpose.msra.mxu0 0.0
        %2261 = vmatprep.subr.mxu0 0.0
        %2262 = vmatpush1.xpose.msra.mxu0 0.0
        %2263 = vmatprep.subr.mxu0 0.0
        %2264 = vmatpush1.xpose.msra.mxu0 0.0
        %2265 = vmatprep.subr.mxu0 0.0
        %2266 = vmatpush1.xpose.msra.mxu0 0.0
        %2267 = vmatprep.subr.mxu0 0.0
        %2268 = vmatpush1.xpose.msra.mxu0 0.0
        %2269 = vmatprep.subr.mxu0 0.0
        %2270 = vmatpush1.xpose.msra.mxu0 0.0
        %2271 = vmatprep.subr.mxu0 0.0
        %2272 = vmatpush1.xpose.msra.mxu0 0.0
        %2273 = vmatprep.mubr.f32.mxu0 0.0
        %2274 = vmatmul.mubr.f32.gmra.mrb[0].mxu0 %v2205
        %v2275 = vpop.f32.mrb[0].mxu0
        %v2276 = vadd.f32 %v649, %v2275
        %v2277 = vpop.f32.mrb[0].mxu0
        %2278 = vdwg.mxu0
        %v2279 = vsel %vm653, %v2042, -inf
        %2280 = vmax.xlane.f32.xlu0 %v2279
        %v2281 = vpop.xlane.xlu0 %2280
        %v2282 = vsel %vm653, %v2120, -inf
        %2283 = vmax.xlane.f32.xlu0 %v2282
        %v2284 = vpop.xlane.xlu0 %2283
        %v2285 = vsel %vm653, %v2198, -inf
        %2286 = vmax.xlane.f32.xlu0 %v2285
        %v2287 = vpop.xlane.xlu0 %2286
        %v2288 = vsel %vm653, %v2276, -inf
        %2289 = vmax.xlane.f32.xlu0 %v2288
        %v2290 = vpop.xlane.xlu0 %2289
        %v2291 = vsub.f32 %v2042, %v2281
        %v2292 = vsub.f32 %v2120, %v2284
        %v2293 = vsub.f32 %v2198, %v2287
        %v2294 = vsub.f32 %v2276, %v2290
        %v2295 = vmul.f32 %v2291, 1.442695
        %v2296 = vpow.pop %v2295
        %v2297 = vmul.f32 %v2292, 1.442695
        %v2298 = vpow.pop %v2297
        %v2299 = vmul.f32 %v2293, 1.442695
        %v2300 = vpow.pop %v2299
        %v2301 = vmul.f32 %v2294, 1.442695
        %v2302 = vpow.pop %v2301
        %v2303 = vsel %vm653, %v2296, 0.0
        %2304 = vadd.xlane.f32.xlu0 %v2303
        %v2305 = vpop.xlane.xlu0 %2304
        %v2306 = vsel %vm653, %v2298, 0.0
        %2307 = vadd.xlane.f32.xlu0 %v2306
        %v2308 = vpop.xlane.xlu0 %2307
        %v2309 = vsel %vm653, %v2300, 0.0
        %2310 = vadd.xlane.f32.xlu0 %v2309
        %v2311 = vpop.xlane.xlu0 %2310
        %v2312 = vsel %vm653, %v2302, 0.0
        %2313 = vadd.xlane.f32.xlu0 %v2312
        %v2314 = vpop.xlane.xlu0 %2313
        %v2315 = vrcp.pop %v2305
        %v2316 = vmul.f32 %v2296, %v2315
        %v2317 = vrcp.pop %v2308
        %v2318 = vmul.f32 %v2298, %v2317
        %v2319 = vrcp.pop %v2311
        %v2320 = vmul.f32 %v2300, %v2319
        %v2321 = vrcp.pop %v2314
        %v2322 = vmul.f32 %v2302, %v2321
        %2323 = vrot.lane.b32.xlu0 %v628, 48
        %v2324 = vpop.permute.xlu0 %2323
        %v2327 = vsel %vm653, %v2316, 0
        %2329 = vmatprep.subr.mxu0 0.0
        %2330 = vmatpush1.msra.mxu0 %v2324
        %2331 = vmatprep.subr.mxu0 0.0
        %2332 = vmatpush1.msra.mxu0 0.0
        %2333 = vmatprep.subr.mxu0 0.0
        %2334 = vmatpush1.msra.mxu0 0.0
        %2335 = vmatprep.subr.mxu0 0.0
        %2336 = vmatpush1.msra.mxu0 0.0
        %2337 = vmatprep.subr.mxu0 0.0
        %2338 = vmatpush1.msra.mxu0 0.0
        %2339 = vmatprep.subr.mxu0 0.0
        %2340 = vmatpush1.msra.mxu0 0.0
        %2341 = vmatprep.subr.mxu0 0.0
        %2342 = vmatpush1.msra.mxu0 0.0
        %2343 = vmatprep.subr.mxu0 0.0
        %2344 = vmatpush1.msra.mxu0 0.0
        %2345 = vmatprep.subr.mxu0 0.0
        %2346 = vmatpush1.msra.mxu0 0.0
        %2347 = vmatprep.subr.mxu0 0.0
        %2348 = vmatpush1.msra.mxu0 0.0
        %2349 = vmatprep.subr.mxu0 0.0
        %2350 = vmatpush1.msra.mxu0 0.0
        %2351 = vmatprep.subr.mxu0 0.0
        %2352 = vmatpush1.msra.mxu0 0.0
        %2353 = vmatprep.subr.mxu0 0.0
        %2354 = vmatpush1.msra.mxu0 0.0
        %2355 = vmatprep.subr.mxu0 0.0
        %2356 = vmatpush1.msra.mxu0 0.0
        %2357 = vmatprep.subr.mxu0 0.0
        %2358 = vmatpush1.msra.mxu0 0.0
        %2359 = vmatprep.subr.mxu0 0.0
        %2360 = vmatpush1.msra.mxu0 0.0
        %2361 = vmatprep.subr.mxu0 0.0
        %2362 = vmatpush1.msra.mxu0 0.0
        %2363 = vmatprep.subr.mxu0 0.0
        %2364 = vmatpush1.msra.mxu0 0.0
        %2365 = vmatprep.subr.mxu0 0.0
        %2366 = vmatpush1.msra.mxu0 0.0
        %2367 = vmatprep.subr.mxu0 0.0
        %2368 = vmatpush1.msra.mxu0 0.0
        %2369 = vmatprep.subr.mxu0 0.0
        %2370 = vmatpush1.msra.mxu0 0.0
        %2371 = vmatprep.subr.mxu0 0.0
        %2372 = vmatpush1.msra.mxu0 0.0
        %2373 = vmatprep.subr.mxu0 0.0
        %2374 = vmatpush1.msra.mxu0 0.0
        %2375 = vmatprep.subr.mxu0 0.0
        %2376 = vmatpush1.msra.mxu0 0.0
        %2377 = vmatprep.subr.mxu0 0.0
        %2378 = vmatpush1.msra.mxu0 0.0
        %2379 = vmatprep.subr.mxu0 0.0
        %2380 = vmatpush1.msra.mxu0 0.0
        %2381 = vmatprep.subr.mxu0 0.0
        %2382 = vmatpush1.msra.mxu0 0.0
        %2383 = vmatprep.subr.mxu0 0.0
        %2384 = vmatpush1.msra.mxu0 0.0
        %2385 = vmatprep.subr.mxu0 0.0
        %2386 = vmatpush1.msra.mxu0 0.0
        %2387 = vmatprep.subr.mxu0 0.0
        %2388 = vmatpush1.msra.mxu0 0.0
        %2389 = vmatprep.subr.mxu0 0.0
        %2390 = vmatpush1.msra.mxu0 0.0
        %2391 = vmatprep.subr.mxu0 0.0
        %2392 = vmatpush1.msra.mxu0 0.0
        %2393 = vmatprep.mubr.f32.mxu0 0.0
        %2394 = vmatmul.mubr.f32.gmra.mrb[0].mxu0 %v2327
        %v2395 = vpop.f32.mrb[0].mxu0
        %v2396 = vadd.f32 0.0, %v2395
        %v2397 = vpop.f32.mrb[0].mxu0
        %2398 = vdwg.mxu0
        %2399 = vrot.lane.b32.xlu0 %v633, 48
        %v2400 = vpop.permute.xlu0 %2399
        %v2403 = vsel %vm653, %v2318, 0
        %2405 = vmatprep.subr.mxu0 0.0
        %2406 = vmatpush1.msra.mxu0 %v2400
        %2407 = vmatprep.subr.mxu0 0.0
        %2408 = vmatpush1.msra.mxu0 0.0
        %2409 = vmatprep.subr.mxu0 0.0
        %2410 = vmatpush1.msra.mxu0 0.0
        %2411 = vmatprep.subr.mxu0 0.0
        %2412 = vmatpush1.msra.mxu0 0.0
        %2413 = vmatprep.subr.mxu0 0.0
        %2414 = vmatpush1.msra.mxu0 0.0
        %2415 = vmatprep.subr.mxu0 0.0
        %2416 = vmatpush1.msra.mxu0 0.0
        %2417 = vmatprep.subr.mxu0 0.0
        %2418 = vmatpush1.msra.mxu0 0.0
        %2419 = vmatprep.subr.mxu0 0.0
        %2420 = vmatpush1.msra.mxu0 0.0
        %2421 = vmatprep.subr.mxu0 0.0
        %2422 = vmatpush1.msra.mxu0 0.0
        %2423 = vmatprep.subr.mxu0 0.0
        %2424 = vmatpush1.msra.mxu0 0.0
        %2425 = vmatprep.subr.mxu0 0.0
        %2426 = vmatpush1.msra.mxu0 0.0
        %2427 = vmatprep.subr.mxu0 0.0
        %2428 = vmatpush1.msra.mxu0 0.0
        %2429 = vmatprep.subr.mxu0 0.0
        %2430 = vmatpush1.msra.mxu0 0.0
        %2431 = vmatprep.subr.mxu0 0.0
        %2432 = vmatpush1.msra.mxu0 0.0
        %2433 = vmatprep.subr.mxu0 0.0
        %2434 = vmatpush1.msra.mxu0 0.0
        %2435 = vmatprep.subr.mxu0 0.0
        %2436 = vmatpush1.msra.mxu0 0.0
        %2437 = vmatprep.subr.mxu0 0.0
        %2438 = vmatpush1.msra.mxu0 0.0
        %2439 = vmatprep.subr.mxu0 0.0
        %2440 = vmatpush1.msra.mxu0 0.0
        %2441 = vmatprep.subr.mxu0 0.0
        %2442 = vmatpush1.msra.mxu0 0.0
        %2443 = vmatprep.subr.mxu0 0.0
        %2444 = vmatpush1.msra.mxu0 0.0
        %2445 = vmatprep.subr.mxu0 0.0
        %2446 = vmatpush1.msra.mxu0 0.0
        %2447 = vmatprep.subr.mxu0 0.0
        %2448 = vmatpush1.msra.mxu0 0.0
        %2449 = vmatprep.subr.mxu0 0.0
        %2450 = vmatpush1.msra.mxu0 0.0
        %2451 = vmatprep.subr.mxu0 0.0
        %2452 = vmatpush1.msra.mxu0 0.0
        %2453 = vmatprep.subr.mxu0 0.0
        %2454 = vmatpush1.msra.mxu0 0.0
        %2455 = vmatprep.subr.mxu0 0.0
        %2456 = vmatpush1.msra.mxu0 0.0
        %2457 = vmatprep.subr.mxu0 0.0
        %2458 = vmatpush1.msra.mxu0 0.0
        %2459 = vmatprep.subr.mxu0 0.0
        %2460 = vmatpush1.msra.mxu0 0.0
        %2461 = vmatprep.subr.mxu0 0.0
        %2462 = vmatpush1.msra.mxu0 0.0
        %2463 = vmatprep.subr.mxu0 0.0
        %2464 = vmatpush1.msra.mxu0 0.0
        %2465 = vmatprep.subr.mxu0 0.0
        %2466 = vmatpush1.msra.mxu0 0.0
        %2467 = vmatprep.subr.mxu0 0.0
        %2468 = vmatpush1.msra.mxu0 0.0
        %2469 = vmatprep.mubr.f32.mxu0 0.0
        %2470 = vmatmul.mubr.f32.gmra.mrb[0].mxu0 %v2403
        %v2471 = vpop.f32.mrb[0].mxu0
        %v2472 = vadd.f32 0.0, %v2471
        %v2473 = vpop.f32.mrb[0].mxu0
        %2474 = vdwg.mxu0
        %2475 = vrot.lane.b32.xlu0 %v638, 48
        %v2476 = vpop.permute.xlu0 %2475
        %v2479 = vsel %vm653, %v2320, 0
        %2481 = vmatprep.subr.mxu0 0.0
        %2482 = vmatpush1.msra.mxu0 %v2476
        %2483 = vmatprep.subr.mxu0 0.0
        %2484 = vmatpush1.msra.mxu0 0.0
        %2485 = vmatprep.subr.mxu0 0.0
        %2486 = vmatpush1.msra.mxu0 0.0
        %2487 = vmatprep.subr.mxu0 0.0
        %2488 = vmatpush1.msra.mxu0 0.0
        %2489 = vmatprep.subr.mxu0 0.0
        %2490 = vmatpush1.msra.mxu0 0.0
        %2491 = vmatprep.subr.mxu0 0.0
        %2492 = vmatpush1.msra.mxu0 0.0
        %2493 = vmatprep.subr.mxu0 0.0
        %2494 = vmatpush1.msra.mxu0 0.0
        %2495 = vmatprep.subr.mxu0 0.0
        %2496 = vmatpush1.msra.mxu0 0.0
        %2497 = vmatprep.subr.mxu0 0.0
        %2498 = vmatpush1.msra.mxu0 0.0
        %2499 = vmatprep.subr.mxu0 0.0
        %2500 = vmatpush1.msra.mxu0 0.0
        %2501 = vmatprep.subr.mxu0 0.0
        %2502 = vmatpush1.msra.mxu0 0.0
        %2503 = vmatprep.subr.mxu0 0.0
        %2504 = vmatpush1.msra.mxu0 0.0
        %2505 = vmatprep.subr.mxu0 0.0
        %2506 = vmatpush1.msra.mxu0 0.0
        %2507 = vmatprep.subr.mxu0 0.0
        %2508 = vmatpush1.msra.mxu0 0.0
        %2509 = vmatprep.subr.mxu0 0.0
        %2510 = vmatpush1.msra.mxu0 0.0
        %2511 = vmatprep.subr.mxu0 0.0
        %2512 = vmatpush1.msra.mxu0 0.0
        %2513 = vmatprep.subr.mxu0 0.0
        %2514 = vmatpush1.msra.mxu0 0.0
        %2515 = vmatprep.subr.mxu0 0.0
        %2516 = vmatpush1.msra.mxu0 0.0
        %2517 = vmatprep.subr.mxu0 0.0
        %2518 = vmatpush1.msra.mxu0 0.0
        %2519 = vmatprep.subr.mxu0 0.0
        %2520 = vmatpush1.msra.mxu0 0.0
        %2521 = vmatprep.subr.mxu0 0.0
        %2522 = vmatpush1.msra.mxu0 0.0
        %2523 = vmatprep.subr.mxu0 0.0
        %2524 = vmatpush1.msra.mxu0 0.0
        %2525 = vmatprep.subr.mxu0 0.0
        %2526 = vmatpush1.msra.mxu0 0.0
        %2527 = vmatprep.subr.mxu0 0.0
        %2528 = vmatpush1.msra.mxu0 0.0
        %2529 = vmatprep.subr.mxu0 0.0
        %2530 = vmatpush1.msra.mxu0 0.0
        %2531 = vmatprep.subr.mxu0 0.0
        %2532 = vmatpush1.msra.mxu0 0.0
        %2533 = vmatprep.subr.mxu0 0.0
        %2534 = vmatpush1.msra.mxu0 0.0
        %2535 = vmatprep.subr.mxu0 0.0
        %2536 = vmatpush1.msra.mxu0 0.0
        %2537 = vmatprep.subr.mxu0 0.0
        %2538 = vmatpush1.msra.mxu0 0.0
        %2539 = vmatprep.subr.mxu0 0.0
        %2540 = vmatpush1.msra.mxu0 0.0
        %2541 = vmatprep.subr.mxu0 0.0
        %2542 = vmatpush1.msra.mxu0 0.0
        %2543 = vmatprep.subr.mxu0 0.0
        %2544 = vmatpush1.msra.mxu0 0.0
        %2545 = vmatprep.mubr.f32.mxu0 0.0
        %2546 = vmatmul.mubr.f32.gmra.mrb[0].mxu0 %v2479
        %v2547 = vpop.f32.mrb[0].mxu0
        %v2548 = vadd.f32 0.0, %v2547
        %v2549 = vpop.f32.mrb[0].mxu0
        %2550 = vdwg.mxu0
        %2551 = vrot.lane.b32.xlu0 %v643, 48
        %v2552 = vpop.permute.xlu0 %2551
        %v2555 = vsel %vm653, %v2322, 0
        %2557 = vmatprep.subr.mxu0 0.0
        %2558 = vmatpush1.msra.mxu0 %v2552
        %2559 = vmatprep.subr.mxu0 0.0
        %2560 = vmatpush1.msra.mxu0 0.0
        %2561 = vmatprep.subr.mxu0 0.0
        %2562 = vmatpush1.msra.mxu0 0.0
        %2563 = vmatprep.subr.mxu0 0.0
        %2564 = vmatpush1.msra.mxu0 0.0
        %2565 = vmatprep.subr.mxu0 0.0
        %2566 = vmatpush1.msra.mxu0 0.0
        %2567 = vmatprep.subr.mxu0 0.0
        %2568 = vmatpush1.msra.mxu0 0.0
        %2569 = vmatprep.subr.mxu0 0.0
        %2570 = vmatpush1.msra.mxu0 0.0
        %2571 = vmatprep.subr.mxu0 0.0
        %2572 = vmatpush1.msra.mxu0 0.0
        %2573 = vmatprep.subr.mxu0 0.0
        %2574 = vmatpush1.msra.mxu0 0.0
        %2575 = vmatprep.subr.mxu0 0.0
        %2576 = vmatpush1.msra.mxu0 0.0
        %2577 = vmatprep.subr.mxu0 0.0
        %2578 = vmatpush1.msra.mxu0 0.0
        %2579 = vmatprep.subr.mxu0 0.0
        %2580 = vmatpush1.msra.mxu0 0.0
        %2581 = vmatprep.subr.mxu0 0.0
        %2582 = vmatpush1.msra.mxu0 0.0
        %2583 = vmatprep.subr.mxu0 0.0
        %2584 = vmatpush1.msra.mxu0 0.0
        %2585 = vmatprep.subr.mxu0 0.0
        %2586 = vmatpush1.msra.mxu0 0.0
        %2587 = vmatprep.subr.mxu0 0.0
        %2588 = vmatpush1.msra.mxu0 0.0
        %2589 = vmatprep.subr.mxu0 0.0
        %2590 = vmatpush1.msra.mxu0 0.0
        %2591 = vmatprep.subr.mxu0 0.0
        %2592 = vmatpush1.msra.mxu0 0.0
        %2593 = vmatprep.subr.mxu0 0.0
        %2594 = vmatpush1.msra.mxu0 0.0
        %2595 = vmatprep.subr.mxu0 0.0
        %2596 = vmatpush1.msra.mxu0 0.0
        %2597 = vmatprep.subr.mxu0 0.0
        %2598 = vmatpush1.msra.mxu0 0.0
        %2599 = vmatprep.subr.mxu0 0.0
        %2600 = vmatpush1.msra.mxu0 0.0
        %2601 = vmatprep.subr.mxu0 0.0
        %2602 = vmatpush1.msra.mxu0 0.0
        %2603 = vmatprep.subr.mxu0 0.0
        %2604 = vmatpush1.msra.mxu0 0.0
        %2605 = vmatprep.subr.mxu0 0.0
        %2606 = vmatpush1.msra.mxu0 0.0
        %2607 = vmatprep.subr.mxu0 0.0
        %2608 = vmatpush1.msra.mxu0 0.0
        %2609 = vmatprep.subr.mxu0 0.0
        %2610 = vmatpush1.msra.mxu0 0.0
        %2611 = vmatprep.subr.mxu0 0.0
        %2612 = vmatpush1.msra.mxu0 0.0
        %2613 = vmatprep.subr.mxu0 0.0
        %2614 = vmatpush1.msra.mxu0 0.0
        %2615 = vmatprep.subr.mxu0 0.0
        %2616 = vmatpush1.msra.mxu0 0.0
        %2617 = vmatprep.subr.mxu0 0.0
        %2618 = vmatpush1.msra.mxu0 0.0
        %2619 = vmatprep.subr.mxu0 0.0
        %2620 = vmatpush1.msra.mxu0 0.0
        %2621 = vmatprep.mubr.f32.mxu0 0.0
        %2622 = vmatmul.mubr.f32.gmra.mrb[0].mxu0 %v2555
        %v2623 = vpop.f32.mrb[0].mxu0
        %v2624 = vadd.f32 0.0, %v2623
        %v2625 = vpop.f32.mrb[0].mxu0
        %2626 = vdwg.mxu0
        %2627 = vrot.lane.b32.xlu0 %v628, 104
        %v2628 = vpop.permute.xlu0 %2627
        %2629 = vrot.lane.b32.xlu0 %v628, 72
        %v2630 = vpop.permute.xlu0 %2629
        %v2631 = vsel %vm653, %v2628, 0
        %v2633 = vsel %vm653, %v2630, 0
        %2635 = vmatprep.subr.mxu0 0.0
        %2636 = vmatpush1.xpose.msra.mxu0 %v2633
        %2637 = vmatprep.subr.mxu0 0.0
        %2638 = vmatpush1.xpose.msra.mxu0 0.0
        %2639 = vmatprep.subr.mxu0 0.0
        %2640 = vmatpush1.xpose.msra.mxu0 0.0
        %2641 = vmatprep.subr.mxu0 0.0
        %2642 = vmatpush1.xpose.msra.mxu0 0.0
        %2643 = vmatprep.subr.mxu0 0.0
        %2644 = vmatpush1.xpose.msra.mxu0 0.0
        %2645 = vmatprep.subr.mxu0 0.0
        %2646 = vmatpush1.xpose.msra.mxu0 0.0
        %2647 = vmatprep.subr.mxu0 0.0
        %2648 = vmatpush1.xpose.msra.mxu0 0.0
        %2649 = vmatprep.subr.mxu0 0.0
        %2650 = vmatpush1.xpose.msra.mxu0 0.0
        %2651 = vmatprep.subr.mxu0 0.0
        %2652 = vmatpush1.xpose.msra.mxu0 0.0
        %2653 = vmatprep.subr.mxu0 0.0
        %2654 = vmatpush1.xpose.msra.mxu0 0.0
        %2655 = vmatprep.subr.mxu0 0.0
        %2656 = vmatpush1.xpose.msra.mxu0 0.0
        %2657 = vmatprep.subr.mxu0 0.0
        %2658 = vmatpush1.xpose.msra.mxu0 0.0
        %2659 = vmatprep.subr.mxu0 0.0
        %2660 = vmatpush1.xpose.msra.mxu0 0.0
        %2661 = vmatprep.subr.mxu0 0.0
        %2662 = vmatpush1.xpose.msra.mxu0 0.0
        %2663 = vmatprep.subr.mxu0 0.0
        %2664 = vmatpush1.xpose.msra.mxu0 0.0
        %2665 = vmatprep.subr.mxu0 0.0
        %2666 = vmatpush1.xpose.msra.mxu0 0.0
        %2667 = vmatprep.subr.mxu0 0.0
        %2668 = vmatpush1.xpose.msra.mxu0 0.0
        %2669 = vmatprep.subr.mxu0 0.0
        %2670 = vmatpush1.xpose.msra.mxu0 0.0
        %2671 = vmatprep.subr.mxu0 0.0
        %2672 = vmatpush1.xpose.msra.mxu0 0.0
        %2673 = vmatprep.subr.mxu0 0.0
        %2674 = vmatpush1.xpose.msra.mxu0 0.0
        %2675 = vmatprep.subr.mxu0 0.0
        %2676 = vmatpush1.xpose.msra.mxu0 0.0
        %2677 = vmatprep.subr.mxu0 0.0
        %2678 = vmatpush1.xpose.msra.mxu0 0.0
        %2679 = vmatprep.subr.mxu0 0.0
        %2680 = vmatpush1.xpose.msra.mxu0 0.0
        %2681 = vmatprep.subr.mxu0 0.0
        %2682 = vmatpush1.xpose.msra.mxu0 0.0
        %2683 = vmatprep.subr.mxu0 0.0
        %2684 = vmatpush1.xpose.msra.mxu0 0.0
        %2685 = vmatprep.subr.mxu0 0.0
        %2686 = vmatpush1.xpose.msra.mxu0 0.0
        %2687 = vmatprep.subr.mxu0 0.0
        %2688 = vmatpush1.xpose.msra.mxu0 0.0
        %2689 = vmatprep.subr.mxu0 0.0
        %2690 = vmatpush1.xpose.msra.mxu0 0.0
        %2691 = vmatprep.subr.mxu0 0.0
        %2692 = vmatpush1.xpose.msra.mxu0 0.0
        %2693 = vmatprep.subr.mxu0 0.0
        %2694 = vmatpush1.xpose.msra.mxu0 0.0
        %2695 = vmatprep.subr.mxu0 0.0
        %2696 = vmatpush1.xpose.msra.mxu0 0.0
        %2697 = vmatprep.subr.mxu0 0.0
        %2698 = vmatpush1.xpose.msra.mxu0 0.0
        %2699 = vmatprep.mubr.f32.mxu0 0.0
        %2700 = vmatmul.mubr.f32.gmra.mrb[0].mxu0 %v2631
        %v2701 = vpop.f32.mrb[0].mxu0
        %v2702 = vadd.f32 %v646, %v2701
        %v2703 = vpop.f32.mrb[0].mxu0
        %2704 = vdwg.mxu0
        %2705 = vrot.lane.b32.xlu0 %v633, 104
        %v2706 = vpop.permute.xlu0 %2705
        %2707 = vrot.lane.b32.xlu0 %v633, 72
        %v2708 = vpop.permute.xlu0 %2707
        %v2709 = vsel %vm653, %v2706, 0
        %v2711 = vsel %vm653, %v2708, 0
        %2713 = vmatprep.subr.mxu0 0.0
        %2714 = vmatpush1.xpose.msra.mxu0 %v2711
        %2715 = vmatprep.subr.mxu0 0.0
        %2716 = vmatpush1.xpose.msra.mxu0 0.0
        %2717 = vmatprep.subr.mxu0 0.0
        %2718 = vmatpush1.xpose.msra.mxu0 0.0
        %2719 = vmatprep.subr.mxu0 0.0
        %2720 = vmatpush1.xpose.msra.mxu0 0.0
        %2721 = vmatprep.subr.mxu0 0.0
        %2722 = vmatpush1.xpose.msra.mxu0 0.0
        %2723 = vmatprep.subr.mxu0 0.0
        %2724 = vmatpush1.xpose.msra.mxu0 0.0
        %2725 = vmatprep.subr.mxu0 0.0
        %2726 = vmatpush1.xpose.msra.mxu0 0.0
        %2727 = vmatprep.subr.mxu0 0.0
        %2728 = vmatpush1.xpose.msra.mxu0 0.0
        %2729 = vmatprep.subr.mxu0 0.0
        %2730 = vmatpush1.xpose.msra.mxu0 0.0
        %2731 = vmatprep.subr.mxu0 0.0
        %2732 = vmatpush1.xpose.msra.mxu0 0.0
        %2733 = vmatprep.subr.mxu0 0.0
        %2734 = vmatpush1.xpose.msra.mxu0 0.0
        %2735 = vmatprep.subr.mxu0 0.0
        %2736 = vmatpush1.xpose.msra.mxu0 0.0
        %2737 = vmatprep.subr.mxu0 0.0
        %2738 = vmatpush1.xpose.msra.mxu0 0.0
        %2739 = vmatprep.subr.mxu0 0.0
        %2740 = vmatpush1.xpose.msra.mxu0 0.0
        %2741 = vmatprep.subr.mxu0 0.0
        %2742 = vmatpush1.xpose.msra.mxu0 0.0
        %2743 = vmatprep.subr.mxu0 0.0
        %2744 = vmatpush1.xpose.msra.mxu0 0.0
        %2745 = vmatprep.subr.mxu0 0.0
        %2746 = vmatpush1.xpose.msra.mxu0 0.0
        %2747 = vmatprep.subr.mxu0 0.0
        %2748 = vmatpush1.xpose.msra.mxu0 0.0
        %2749 = vmatprep.subr.mxu0 0.0
        %2750 = vmatpush1.xpose.msra.mxu0 0.0
        %2751 = vmatprep.subr.mxu0 0.0
        %2752 = vmatpush1.xpose.msra.mxu0 0.0
        %2753 = vmatprep.subr.mxu0 0.0
        %2754 = vmatpush1.xpose.msra.mxu0 0.0
        %2755 = vmatprep.subr.mxu0 0.0
        %2756 = vmatpush1.xpose.msra.mxu0 0.0
        %2757 = vmatprep.subr.mxu0 0.0
        %2758 = vmatpush1.xpose.msra.mxu0 0.0
        %2759 = vmatprep.subr.mxu0 0.0
        %2760 = vmatpush1.xpose.msra.mxu0 0.0
        %2761 = vmatprep.subr.mxu0 0.0
        %2762 = vmatpush1.xpose.msra.mxu0 0.0
        %2763 = vmatprep.subr.mxu0 0.0
        %2764 = vmatpush1.xpose.msra.mxu0 0.0
        %2765 = vmatprep.subr.mxu0 0.0
        %2766 = vmatpush1.xpose.msra.mxu0 0.0
        %2767 = vmatprep.subr.mxu0 0.0
        %2768 = vmatpush1.xpose.msra.mxu0 0.0
        %2769 = vmatprep.subr.mxu0 0.0
        %2770 = vmatpush1.xpose.msra.mxu0 0.0
        %2771 = vmatprep.subr.mxu0 0.0
        %2772 = vmatpush1.xpose.msra.mxu0 0.0
        %2773 = vmatprep.subr.mxu0 0.0
        %2774 = vmatpush1.xpose.msra.mxu0 0.0
        %2775 = vmatprep.subr.mxu0 0.0
        %2776 = vmatpush1.xpose.msra.mxu0 0.0
        %2777 = vmatprep.mubr.f32.mxu0 0.0
        %2778 = vmatmul.mubr.f32.gmra.mrb[0].mxu0 %v2709
        %v2779 = vpop.f32.mrb[0].mxu0
        %v2780 = vadd.f32 %v647, %v2779
        %v2781 = vpop.f32.mrb[0].mxu0
        %2782 = vdwg.mxu0
        %2783 = vrot.lane.b32.xlu0 %v638, 104
        %v2784 = vpop.permute.xlu0 %2783
        %2785 = vrot.lane.b32.xlu0 %v638, 72
        %v2786 = vpop.permute.xlu0 %2785
        %v2787 = vsel %vm653, %v2784, 0
        %v2789 = vsel %vm653, %v2786, 0
        %2791 = vmatprep.subr.mxu0 0.0
        %2792 = vmatpush1.xpose.msra.mxu0 %v2789
        %2793 = vmatprep.subr.mxu0 0.0
        %2794 = vmatpush1.xpose.msra.mxu0 0.0
        %2795 = vmatprep.subr.mxu0 0.0
        %2796 = vmatpush1.xpose.msra.mxu0 0.0
        %2797 = vmatprep.subr.mxu0 0.0
        %2798 = vmatpush1.xpose.msra.mxu0 0.0
        %2799 = vmatprep.subr.mxu0 0.0
        %2800 = vmatpush1.xpose.msra.mxu0 0.0
        %2801 = vmatprep.subr.mxu0 0.0
        %2802 = vmatpush1.xpose.msra.mxu0 0.0
        %2803 = vmatprep.subr.mxu0 0.0
        %2804 = vmatpush1.xpose.msra.mxu0 0.0
        %2805 = vmatprep.subr.mxu0 0.0
        %2806 = vmatpush1.xpose.msra.mxu0 0.0
        %2807 = vmatprep.subr.mxu0 0.0
        %2808 = vmatpush1.xpose.msra.mxu0 0.0
        %2809 = vmatprep.subr.mxu0 0.0
        %2810 = vmatpush1.xpose.msra.mxu0 0.0
        %2811 = vmatprep.subr.mxu0 0.0
        %2812 = vmatpush1.xpose.msra.mxu0 0.0
        %2813 = vmatprep.subr.mxu0 0.0
        %2814 = vmatpush1.xpose.msra.mxu0 0.0
        %2815 = vmatprep.subr.mxu0 0.0
        %2816 = vmatpush1.xpose.msra.mxu0 0.0
        %2817 = vmatprep.subr.mxu0 0.0
        %2818 = vmatpush1.xpose.msra.mxu0 0.0
        %2819 = vmatprep.subr.mxu0 0.0
        %2820 = vmatpush1.xpose.msra.mxu0 0.0
        %2821 = vmatprep.subr.mxu0 0.0
        %2822 = vmatpush1.xpose.msra.mxu0 0.0
        %2823 = vmatprep.subr.mxu0 0.0
        %2824 = vmatpush1.xpose.msra.mxu0 0.0
        %2825 = vmatprep.subr.mxu0 0.0
        %2826 = vmatpush1.xpose.msra.mxu0 0.0
        %2827 = vmatprep.subr.mxu0 0.0
        %2828 = vmatpush1.xpose.msra.mxu0 0.0
        %2829 = vmatprep.subr.mxu0 0.0
        %2830 = vmatpush1.xpose.msra.mxu0 0.0
        %2831 = vmatprep.subr.mxu0 0.0
        %2832 = vmatpush1.xpose.msra.mxu0 0.0
        %2833 = vmatprep.subr.mxu0 0.0
        %2834 = vmatpush1.xpose.msra.mxu0 0.0
        %2835 = vmatprep.subr.mxu0 0.0
        %2836 = vmatpush1.xpose.msra.mxu0 0.0
        %2837 = vmatprep.subr.mxu0 0.0
        %2838 = vmatpush1.xpose.msra.mxu0 0.0
        %2839 = vmatprep.subr.mxu0 0.0
        %2840 = vmatpush1.xpose.msra.mxu0 0.0
        %2841 = vmatprep.subr.mxu0 0.0
        %2842 = vmatpush1.xpose.msra.mxu0 0.0
        %2843 = vmatprep.subr.mxu0 0.0
        %2844 = vmatpush1.xpose.msra.mxu0 0.0
        %2845 = vmatprep.subr.mxu0 0.0
        %2846 = vmatpush1.xpose.msra.mxu0 0.0
        %2847 = vmatprep.subr.mxu0 0.0
        %2848 = vmatpush1.xpose.msra.mxu0 0.0
        %2849 = vmatprep.subr.mxu0 0.0
        %2850 = vmatpush1.xpose.msra.mxu0 0.0
        %2851 = vmatprep.subr.mxu0 0.0
        %2852 = vmatpush1.xpose.msra.mxu0 0.0
        %2853 = vmatprep.subr.mxu0 0.0
        %2854 = vmatpush1.xpose.msra.mxu0 0.0
        %2855 = vmatprep.mubr.f32.mxu0 0.0
        %2856 = vmatmul.mubr.f32.gmra.mrb[0].mxu0 %v2787
        %v2857 = vpop.f32.mrb[0].mxu0
        %v2858 = vadd.f32 %v648, %v2857
        %v2859 = vpop.f32.mrb[0].mxu0
        %2860 = vdwg.mxu0
        %2861 = vrot.lane.b32.xlu0 %v643, 104
        %v2862 = vpop.permute.xlu0 %2861
        %2863 = vrot.lane.b32.xlu0 %v643, 72
        %v2864 = vpop.permute.xlu0 %2863
        %v2865 = vsel %vm653, %v2862, 0
        %v2867 = vsel %vm653, %v2864, 0
        %2869 = vmatprep.subr.mxu0 0.0
        %2870 = vmatpush1.xpose.msra.mxu0 %v2867
        %2871 = vmatprep.subr.mxu0 0.0
        %2872 = vmatpush1.xpose.msra.mxu0 0.0
        %2873 = vmatprep.subr.mxu0 0.0
        %2874 = vmatpush1.xpose.msra.mxu0 0.0
        %2875 = vmatprep.subr.mxu0 0.0
        %2876 = vmatpush1.xpose.msra.mxu0 0.0
        %2877 = vmatprep.subr.mxu0 0.0
        %2878 = vmatpush1.xpose.msra.mxu0 0.0
        %2879 = vmatprep.subr.mxu0 0.0
        %2880 = vmatpush1.xpose.msra.mxu0 0.0
        %2881 = vmatprep.subr.mxu0 0.0
        %2882 = vmatpush1.xpose.msra.mxu0 0.0
        %2883 = vmatprep.subr.mxu0 0.0
        %2884 = vmatpush1.xpose.msra.mxu0 0.0
        %2885 = vmatprep.subr.mxu0 0.0
        %2886 = vmatpush1.xpose.msra.mxu0 0.0
        %2887 = vmatprep.subr.mxu0 0.0
        %2888 = vmatpush1.xpose.msra.mxu0 0.0
        %2889 = vmatprep.subr.mxu0 0.0
        %2890 = vmatpush1.xpose.msra.mxu0 0.0
        %2891 = vmatprep.subr.mxu0 0.0
        %2892 = vmatpush1.xpose.msra.mxu0 0.0
        %2893 = vmatprep.subr.mxu0 0.0
        %2894 = vmatpush1.xpose.msra.mxu0 0.0
        %2895 = vmatprep.subr.mxu0 0.0
        %2896 = vmatpush1.xpose.msra.mxu0 0.0
        %2897 = vmatprep.subr.mxu0 0.0
        %2898 = vmatpush1.xpose.msra.mxu0 0.0
        %2899 = vmatprep.subr.mxu0 0.0
        %2900 = vmatpush1.xpose.msra.mxu0 0.0
        %2901 = vmatprep.subr.mxu0 0.0
        %2902 = vmatpush1.xpose.msra.mxu0 0.0
        %2903 = vmatprep.subr.mxu0 0.0
        %2904 = vmatpush1.xpose.msra.mxu0 0.0
        %2905 = vmatprep.subr.mxu0 0.0
        %2906 = vmatpush1.xpose.msra.mxu0 0.0
        %2907 = vmatprep.subr.mxu0 0.0
        %2908 = vmatpush1.xpose.msra.mxu0 0.0
        %2909 = vmatprep.subr.mxu0 0.0
        %2910 = vmatpush1.xpose.msra.mxu0 0.0
        %2911 = vmatprep.subr.mxu0 0.0
        %2912 = vmatpush1.xpose.msra.mxu0 0.0
        %2913 = vmatprep.subr.mxu0 0.0
        %2914 = vmatpush1.xpose.msra.mxu0 0.0
        %2915 = vmatprep.subr.mxu0 0.0
        %2916 = vmatpush1.xpose.msra.mxu0 0.0
        %2917 = vmatprep.subr.mxu0 0.0
        %2918 = vmatpush1.xpose.msra.mxu0 0.0
        %2919 = vmatprep.subr.mxu0 0.0
        %2920 = vmatpush1.xpose.msra.mxu0 0.0
        %2921 = vmatprep.subr.mxu0 0.0
        %2922 = vmatpush1.xpose.msra.mxu0 0.0
        %2923 = vmatprep.subr.mxu0 0.0
        %2924 = vmatpush1.xpose.msra.mxu0 0.0
        %2925 = vmatprep.subr.mxu0 0.0
        %2926 = vmatpush1.xpose.msra.mxu0 0.0
        %2927 = vmatprep.subr.mxu0 0.0
        %2928 = vmatpush1.xpose.msra.mxu0 0.0
        %2929 = vmatprep.subr.mxu0 0.0
        %2930 = vmatpush1.xpose.msra.mxu0 0.0
        %2931 = vmatprep.subr.mxu0 0.0
        %2932 = vmatpush1.xpose.msra.mxu0 0.0
        %2933 = vmatprep.mubr.f32.mxu0 0.0
        %2934 = vmatmul.mubr.f32.gmra.mrb[0].mxu0 %v2865
        %v2935 = vpop.f32.mrb[0].mxu0
        %v2936 = vadd.f32 %v649, %v2935
        %v2937 = vpop.f32.mrb[0].mxu0
        %2938 = vdwg.mxu0
        %v2939 = vsel %vm653, %v2702, -inf
        %2940 = vmax.xlane.f32.xlu0 %v2939
        %v2941 = vpop.xlane.xlu0 %2940
        %v2942 = vsel %vm653, %v2780, -inf
        %2943 = vmax.xlane.f32.xlu0 %v2942
        %v2944 = vpop.xlane.xlu0 %2943
        %v2945 = vsel %vm653, %v2858, -inf
        %2946 = vmax.xlane.f32.xlu0 %v2945
        %v2947 = vpop.xlane.xlu0 %2946
        %v2948 = vsel %vm653, %v2936, -inf
        %2949 = vmax.xlane.f32.xlu0 %v2948
        %v2950 = vpop.xlane.xlu0 %2949
        %v2951 = vsub.f32 %v2702, %v2941
        %v2952 = vsub.f32 %v2780, %v2944
        %v2953 = vsub.f32 %v2858, %v2947
        %v2954 = vsub.f32 %v2936, %v2950
        %v2955 = vmul.f32 %v2951, 1.442695
        %v2956 = vpow.pop %v2955
        %v2957 = vmul.f32 %v2952, 1.442695
        %v2958 = vpow.pop %v2957
        %v2959 = vmul.f32 %v2953, 1.442695
        %v2960 = vpow.pop %v2959
        %v2961 = vmul.f32 %v2954, 1.442695
        %v2962 = vpow.pop %v2961
        %v2963 = vsel %vm653, %v2956, 0.0
        %2964 = vadd.xlane.f32.xlu0 %v2963
        %v2965 = vpop.xlane.xlu0 %2964
        %v2966 = vsel %vm653, %v2958, 0.0
        %2967 = vadd.xlane.f32.xlu0 %v2966
        %v2968 = vpop.xlane.xlu0 %2967
        %v2969 = vsel %vm653, %v2960, 0.0
        %2970 = vadd.xlane.f32.xlu0 %v2969
        %v2971 = vpop.xlane.xlu0 %2970
        %v2972 = vsel %vm653, %v2962, 0.0
        %2973 = vadd.xlane.f32.xlu0 %v2972
        %v2974 = vpop.xlane.xlu0 %2973
        %v2975 = vrcp.pop %v2965
        %v2976 = vmul.f32 %v2956, %v2975
        %v2977 = vrcp.pop %v2968
        %v2978 = vmul.f32 %v2958, %v2977
        %v2979 = vrcp.pop %v2971
        %v2980 = vmul.f32 %v2960, %v2979
        %v2981 = vrcp.pop %v2974
        %v2982 = vmul.f32 %v2962, %v2981
        %2983 = vrot.lane.b32.xlu0 %v628, 40
        %v2984 = vpop.permute.xlu0 %2983
        %v2987 = vsel %vm653, %v2976, 0
        %2989 = vmatprep.subr.mxu0 0.0
        %2990 = vmatpush1.msra.mxu0 %v2984
        %2991 = vmatprep.subr.mxu0 0.0
        %2992 = vmatpush1.msra.mxu0 0.0
        %2993 = vmatprep.subr.mxu0 0.0
        %2994 = vmatpush1.msra.mxu0 0.0
        %2995 = vmatprep.subr.mxu0 0.0
        %2996 = vmatpush1.msra.mxu0 0.0
        %2997 = vmatprep.subr.mxu0 0.0
        %2998 = vmatpush1.msra.mxu0 0.0
        %2999 = vmatprep.subr.mxu0 0.0
        %3000 = vmatpush1.msra.mxu0 0.0
        %3001 = vmatprep.subr.mxu0 0.0
        %3002 = vmatpush1.msra.mxu0 0.0
        %3003 = vmatprep.subr.mxu0 0.0
        %3004 = vmatpush1.msra.mxu0 0.0
        %3005 = vmatprep.subr.mxu0 0.0
        %3006 = vmatpush1.msra.mxu0 0.0
        %3007 = vmatprep.subr.mxu0 0.0
        %3008 = vmatpush1.msra.mxu0 0.0
        %3009 = vmatprep.subr.mxu0 0.0
        %3010 = vmatpush1.msra.mxu0 0.0
        %3011 = vmatprep.subr.mxu0 0.0
        %3012 = vmatpush1.msra.mxu0 0.0
        %3013 = vmatprep.subr.mxu0 0.0
        %3014 = vmatpush1.msra.mxu0 0.0
        %3015 = vmatprep.subr.mxu0 0.0
        %3016 = vmatpush1.msra.mxu0 0.0
        %3017 = vmatprep.subr.mxu0 0.0
        %3018 = vmatpush1.msra.mxu0 0.0
        %3019 = vmatprep.subr.mxu0 0.0
        %3020 = vmatpush1.msra.mxu0 0.0
        %3021 = vmatprep.subr.mxu0 0.0
        %3022 = vmatpush1.msra.mxu0 0.0
        %3023 = vmatprep.subr.mxu0 0.0
        %3024 = vmatpush1.msra.mxu0 0.0
        %3025 = vmatprep.subr.mxu0 0.0
        %3026 = vmatpush1.msra.mxu0 0.0
        %3027 = vmatprep.subr.mxu0 0.0
        %3028 = vmatpush1.msra.mxu0 0.0
        %3029 = vmatprep.subr.mxu0 0.0
        %3030 = vmatpush1.msra.mxu0 0.0
        %3031 = vmatprep.subr.mxu0 0.0
        %3032 = vmatpush1.msra.mxu0 0.0
        %3033 = vmatprep.subr.mxu0 0.0
        %3034 = vmatpush1.msra.mxu0 0.0
        %3035 = vmatprep.subr.mxu0 0.0
        %3036 = vmatpush1.msra.mxu0 0.0
        %3037 = vmatprep.subr.mxu0 0.0
        %3038 = vmatpush1.msra.mxu0 0.0
        %3039 = vmatprep.subr.mxu0 0.0
        %3040 = vmatpush1.msra.mxu0 0.0
        %3041 = vmatprep.subr.mxu0 0.0
        %3042 = vmatpush1.msra.mxu0 0.0
        %3043 = vmatprep.subr.mxu0 0.0
        %3044 = vmatpush1.msra.mxu0 0.0
        %3045 = vmatprep.subr.mxu0 0.0
        %3046 = vmatpush1.msra.mxu0 0.0
        %3047 = vmatprep.subr.mxu0 0.0
        %3048 = vmatpush1.msra.mxu0 0.0
        %3049 = vmatprep.subr.mxu0 0.0
        %3050 = vmatpush1.msra.mxu0 0.0
        %3051 = vmatprep.subr.mxu0 0.0
        %3052 = vmatpush1.msra.mxu0 0.0
        %3053 = vmatprep.mubr.f32.mxu0 0.0
        %3054 = vmatmul.mubr.f32.gmra.mrb[0].mxu0 %v2987
        %v3055 = vpop.f32.mrb[0].mxu0
        %v3056 = vadd.f32 0.0, %v3055
        %v3057 = vpop.f32.mrb[0].mxu0
        %3058 = vdwg.mxu0
        %3059 = vrot.lane.b32.xlu0 %v633, 40
        %v3060 = vpop.permute.xlu0 %3059
        %v3063 = vsel %vm653, %v2978, 0
        %3065 = vmatprep.subr.mxu0 0.0
        %3066 = vmatpush1.msra.mxu0 %v3060
        %3067 = vmatprep.subr.mxu0 0.0
        %3068 = vmatpush1.msra.mxu0 0.0
        %3069 = vmatprep.subr.mxu0 0.0
        %3070 = vmatpush1.msra.mxu0 0.0
        %3071 = vmatprep.subr.mxu0 0.0
        %3072 = vmatpush1.msra.mxu0 0.0
        %3073 = vmatprep.subr.mxu0 0.0
        %3074 = vmatpush1.msra.mxu0 0.0
        %3075 = vmatprep.subr.mxu0 0.0
        %3076 = vmatpush1.msra.mxu0 0.0
        %3077 = vmatprep.subr.mxu0 0.0
        %3078 = vmatpush1.msra.mxu0 0.0
        %3079 = vmatprep.subr.mxu0 0.0
        %3080 = vmatpush1.msra.mxu0 0.0
        %3081 = vmatprep.subr.mxu0 0.0
        %3082 = vmatpush1.msra.mxu0 0.0
        %3083 = vmatprep.subr.mxu0 0.0
        %3084 = vmatpush1.msra.mxu0 0.0
        %3085 = vmatprep.subr.mxu0 0.0
        %3086 = vmatpush1.msra.mxu0 0.0
        %3087 = vmatprep.subr.mxu0 0.0
        %3088 = vmatpush1.msra.mxu0 0.0
        %3089 = vmatprep.subr.mxu0 0.0
        %3090 = vmatpush1.msra.mxu0 0.0
        %3091 = vmatprep.subr.mxu0 0.0
        %3092 = vmatpush1.msra.mxu0 0.0
        %3093 = vmatprep.subr.mxu0 0.0
        %3094 = vmatpush1.msra.mxu0 0.0
        %3095 = vmatprep.subr.mxu0 0.0
        %3096 = vmatpush1.msra.mxu0 0.0
        %3097 = vmatprep.subr.mxu0 0.0
        %3098 = vmatpush1.msra.mxu0 0.0
        %3099 = vmatprep.subr.mxu0 0.0
        %3100 = vmatpush1.msra.mxu0 0.0
        %3101 = vmatprep.subr.mxu0 0.0
        %3102 = vmatpush1.msra.mxu0 0.0
        %3103 = vmatprep.subr.mxu0 0.0
        %3104 = vmatpush1.msra.mxu0 0.0
        %3105 = vmatprep.subr.mxu0 0.0
        %3106 = vmatpush1.msra.mxu0 0.0
        %3107 = vmatprep.subr.mxu0 0.0
        %3108 = vmatpush1.msra.mxu0 0.0
        %3109 = vmatprep.subr.mxu0 0.0
        %3110 = vmatpush1.msra.mxu0 0.0
        %3111 = vmatprep.subr.mxu0 0.0
        %3112 = vmatpush1.msra.mxu0 0.0
        %3113 = vmatprep.subr.mxu0 0.0
        %3114 = vmatpush1.msra.mxu0 0.0
        %3115 = vmatprep.subr.mxu0 0.0
        %3116 = vmatpush1.msra.mxu0 0.0
        %3117 = vmatprep.subr.mxu0 0.0
        %3118 = vmatpush1.msra.mxu0 0.0
        %3119 = vmatprep.subr.mxu0 0.0
        %3120 = vmatpush1.msra.mxu0 0.0
        %3121 = vmatprep.subr.mxu0 0.0
        %3122 = vmatpush1.msra.mxu0 0.0
        %3123 = vmatprep.subr.mxu0 0.0
        %3124 = vmatpush1.msra.mxu0 0.0
        %3125 = vmatprep.subr.mxu0 0.0
        %3126 = vmatpush1.msra.mxu0 0.0
        %3127 = vmatprep.subr.mxu0 0.0
        %3128 = vmatpush1.msra.mxu0 0.0
        %3129 = vmatprep.mubr.f32.mxu0 0.0
        %3130 = vmatmul.mubr.f32.gmra.mrb[0].mxu0 %v3063
        %v3131 = vpop.f32.mrb[0].mxu0
        %v3132 = vadd.f32 0.0, %v3131
        %v3133 = vpop.f32.mrb[0].mxu0
        %3134 = vdwg.mxu0
        %3135 = vrot.lane.b32.xlu0 %v638, 40
        %v3136 = vpop.permute.xlu0 %3135
        %v3139 = vsel %vm653, %v2980, 0
        %3141 = vmatprep.subr.mxu0 0.0
        %3142 = vmatpush1.msra.mxu0 %v3136
        %3143 = vmatprep.subr.mxu0 0.0
        %3144 = vmatpush1.msra.mxu0 0.0
        %3145 = vmatprep.subr.mxu0 0.0
        %3146 = vmatpush1.msra.mxu0 0.0
        %3147 = vmatprep.subr.mxu0 0.0
        %3148 = vmatpush1.msra.mxu0 0.0
        %3149 = vmatprep.subr.mxu0 0.0
        %3150 = vmatpush1.msra.mxu0 0.0
        %3151 = vmatprep.subr.mxu0 0.0
        %3152 = vmatpush1.msra.mxu0 0.0
        %3153 = vmatprep.subr.mxu0 0.0
        %3154 = vmatpush1.msra.mxu0 0.0
        %3155 = vmatprep.subr.mxu0 0.0
        %3156 = vmatpush1.msra.mxu0 0.0
        %3157 = vmatprep.subr.mxu0 0.0
        %3158 = vmatpush1.msra.mxu0 0.0
        %3159 = vmatprep.subr.mxu0 0.0
        %3160 = vmatpush1.msra.mxu0 0.0
        %3161 = vmatprep.subr.mxu0 0.0
        %3162 = vmatpush1.msra.mxu0 0.0
        %3163 = vmatprep.subr.mxu0 0.0
        %3164 = vmatpush1.msra.mxu0 0.0
        %3165 = vmatprep.subr.mxu0 0.0
        %3166 = vmatpush1.msra.mxu0 0.0
        %3167 = vmatprep.subr.mxu0 0.0
        %3168 = vmatpush1.msra.mxu0 0.0
        %3169 = vmatprep.subr.mxu0 0.0
        %3170 = vmatpush1.msra.mxu0 0.0
        %3171 = vmatprep.subr.mxu0 0.0
        %3172 = vmatpush1.msra.mxu0 0.0
        %3173 = vmatprep.subr.mxu0 0.0
        %3174 = vmatpush1.msra.mxu0 0.0
        %3175 = vmatprep.subr.mxu0 0.0
        %3176 = vmatpush1.msra.mxu0 0.0
        %3177 = vmatprep.subr.mxu0 0.0
        %3178 = vmatpush1.msra.mxu0 0.0
        %3179 = vmatprep.subr.mxu0 0.0
        %3180 = vmatpush1.msra.mxu0 0.0
        %3181 = vmatprep.subr.mxu0 0.0
        %3182 = vmatpush1.msra.mxu0 0.0
        %3183 = vmatprep.subr.mxu0 0.0
        %3184 = vmatpush1.msra.mxu0 0.0
        %3185 = vmatprep.subr.mxu0 0.0
        %3186 = vmatpush1.msra.mxu0 0.0
        %3187 = vmatprep.subr.mxu0 0.0
        %3188 = vmatpush1.msra.mxu0 0.0
        %3189 = vmatprep.subr.mxu0 0.0
        %3190 = vmatpush1.msra.mxu0 0.0
        %3191 = vmatprep.subr.mxu0 0.0
        %3192 = vmatpush1.msra.mxu0 0.0
        %3193 = vmatprep.subr.mxu0 0.0
        %3194 = vmatpush1.msra.mxu0 0.0
        %3195 = vmatprep.subr.mxu0 0.0
        %3196 = vmatpush1.msra.mxu0 0.0
        %3197 = vmatprep.subr.mxu0 0.0
        %3198 = vmatpush1.msra.mxu0 0.0
        %3199 = vmatprep.subr.mxu0 0.0
        %3200 = vmatpush1.msra.mxu0 0.0
        %3201 = vmatprep.subr.mxu0 0.0
        %3202 = vmatpush1.msra.mxu0 0.0
        %3203 = vmatprep.subr.mxu0 0.0
        %3204 = vmatpush1.msra.mxu0 0.0
        %3205 = vmatprep.mubr.f32.mxu0 0.0
        %3206 = vmatmul.mubr.f32.gmra.mrb[0].mxu0 %v3139
        %v3207 = vpop.f32.mrb[0].mxu0
        %v3208 = vadd.f32 0.0, %v3207
        %v3209 = vpop.f32.mrb[0].mxu0
        %3210 = vdwg.mxu0
        %3211 = vrot.lane.b32.xlu0 %v643, 40
        %v3212 = vpop.permute.xlu0 %3211
        %v3215 = vsel %vm653, %v2982, 0
        %3217 = vmatprep.subr.mxu0 0.0
        %3218 = vmatpush1.msra.mxu0 %v3212
        %3219 = vmatprep.subr.mxu0 0.0
        %3220 = vmatpush1.msra.mxu0 0.0
        %3221 = vmatprep.subr.mxu0 0.0
        %3222 = vmatpush1.msra.mxu0 0.0
        %3223 = vmatprep.subr.mxu0 0.0
        %3224 = vmatpush1.msra.mxu0 0.0
        %3225 = vmatprep.subr.mxu0 0.0
        %3226 = vmatpush1.msra.mxu0 0.0
        %3227 = vmatprep.subr.mxu0 0.0
        %3228 = vmatpush1.msra.mxu0 0.0
        %3229 = vmatprep.subr.mxu0 0.0
        %3230 = vmatpush1.msra.mxu0 0.0
        %3231 = vmatprep.subr.mxu0 0.0
        %3232 = vmatpush1.msra.mxu0 0.0
        %3233 = vmatprep.subr.mxu0 0.0
        %3234 = vmatpush1.msra.mxu0 0.0
        %3235 = vmatprep.subr.mxu0 0.0
        %3236 = vmatpush1.msra.mxu0 0.0
        %3237 = vmatprep.subr.mxu0 0.0
        %3238 = vmatpush1.msra.mxu0 0.0
        %3239 = vmatprep.subr.mxu0 0.0
        %3240 = vmatpush1.msra.mxu0 0.0
        %3241 = vmatprep.subr.mxu0 0.0
        %3242 = vmatpush1.msra.mxu0 0.0
        %3243 = vmatprep.subr.mxu0 0.0
        %3244 = vmatpush1.msra.mxu0 0.0
        %3245 = vmatprep.subr.mxu0 0.0
        %3246 = vmatpush1.msra.mxu0 0.0
        %3247 = vmatprep.subr.mxu0 0.0
        %3248 = vmatpush1.msra.mxu0 0.0
        %3249 = vmatprep.subr.mxu0 0.0
        %3250 = vmatpush1.msra.mxu0 0.0
        %3251 = vmatprep.subr.mxu0 0.0
        %3252 = vmatpush1.msra.mxu0 0.0
        %3253 = vmatprep.subr.mxu0 0.0
        %3254 = vmatpush1.msra.mxu0 0.0
        %3255 = vmatprep.subr.mxu0 0.0
        %3256 = vmatpush1.msra.mxu0 0.0
        %3257 = vmatprep.subr.mxu0 0.0
        %3258 = vmatpush1.msra.mxu0 0.0
        %3259 = vmatprep.subr.mxu0 0.0
        %3260 = vmatpush1.msra.mxu0 0.0
        %3261 = vmatprep.subr.mxu0 0.0
        %3262 = vmatpush1.msra.mxu0 0.0
        %3263 = vmatprep.subr.mxu0 0.0
        %3264 = vmatpush1.msra.mxu0 0.0
        %3265 = vmatprep.subr.mxu0 0.0
        %3266 = vmatpush1.msra.mxu0 0.0
        %3267 = vmatprep.subr.mxu0 0.0
        %3268 = vmatpush1.msra.mxu0 0.0
        %3269 = vmatprep.subr.mxu0 0.0
        %3270 = vmatpush1.msra.mxu0 0.0
        %3271 = vmatprep.subr.mxu0 0.0
        %3272 = vmatpush1.msra.mxu0 0.0
        %3273 = vmatprep.subr.mxu0 0.0
        %3274 = vmatpush1.msra.mxu0 0.0
        %3275 = vmatprep.subr.mxu0 0.0
        %3276 = vmatpush1.msra.mxu0 0.0
        %3277 = vmatprep.subr.mxu0 0.0
        %3278 = vmatpush1.msra.mxu0 0.0
        %3279 = vmatprep.subr.mxu0 0.0
        %3280 = vmatpush1.msra.mxu0 0.0
        %3281 = vmatprep.mubr.f32.mxu0 0.0
        %3282 = vmatmul.mubr.f32.gmra.mrb[0].mxu0 %v3215
        %v3283 = vpop.f32.mrb[0].mxu0
        %v3284 = vadd.f32 0.0, %v3283
        %v3285 = vpop.f32.mrb[0].mxu0
        %3286 = vdwg.mxu0
        %3291 = vrot.lane.b32.xlu0 %v1736, 8
        %v3292 = vpop.permute.xlu0 %3291
        %3293 = vrot.lane.b32.xlu0 %v1812, 8
        %v3294 = vpop.permute.xlu0 %3293
        %3295 = vrot.lane.b32.xlu0 %v1888, 8
        %v3296 = vpop.permute.xlu0 %3295
        %3297 = vrot.lane.b32.xlu0 %v1964, 8
        %v3298 = vpop.permute.xlu0 %3297
        %3307 = vrot.lane.b32.xlu0 %v2396, 16
        %v3308 = vpop.permute.xlu0 %3307
        %3309 = vrot.lane.b32.xlu0 %v2472, 16
        %v3310 = vpop.permute.xlu0 %3309
        %3311 = vrot.lane.b32.xlu0 %v2548, 16
        %v3312 = vpop.permute.xlu0 %3311
        %3313 = vrot.lane.b32.xlu0 %v2624, 16
        %v3314 = vpop.permute.xlu0 %3313
        %3323 = vrot.lane.b32.xlu0 %v3056, 24
        %v3324 = vpop.permute.xlu0 %3323
        %3325 = vrot.lane.b32.xlu0 %v3132, 24
        %v3326 = vpop.permute.xlu0 %3325
        %3327 = vrot.lane.b32.xlu0 %v3208, 24
        %v3328 = vpop.permute.xlu0 %3327
        %3329 = vrot.lane.b32.xlu0 %v3284, 24
        %v3330 = vpop.permute.xlu0 %3329
        %v3335 = vsel %vm653, %v1076, %v3292
        %v3336 = vsel %vm653, %v1152, %v3294
        %v3337 = vsel %vm653, %v1228, %v3296
        %v3338 = vsel %vm653, %v1304, %v3298
        %vm3339 = vcmask 130048
        %v3340 = vsel %vm3339, %v3335, %v3308
        %v3341 = vsel %vm3339, %v3336, %v3310
        %v3342 = vsel %vm3339, %v3337, %v3312
        %v3343 = vsel %vm3339, %v3338, %v3314
        %vm3344 = vcmask 195584
        %v3345 = vsel %vm3344, %v3340, %v3324
        %v3346 = vsel %vm3344, %v3341, %v3326
        %v3347 = vsel %vm3344, %v3342, %v3328
        %v3348 = vsel %vm3344, %v3343, %v3330
        %v3349 = vld [vmem:[#allocation2] sm:$0x1]
        %v3350 = vld [vmem:[#allocation4] sm:$0x1]
        %v3351 = vsel %vm471, %v3345, 0.0
        %3352 = vadd.xlane.f32.xlu0 %v3351
        %v3353 = vpop.xlane.xlu0 %3352
        %v3354 = vsel %vm471, %v3346, 0.0
        %3355 = vadd.xlane.f32.xlu0 %v3354
        %v3356 = vpop.xlane.xlu0 %3355
        %v3357 = vsel %vm471, %v3347, 0.0
        %3358 = vadd.xlane.f32.xlu0 %v3357
        %v3359 = vpop.xlane.xlu0 %3358
        %v3360 = vsel %vm471, %v3348, 0.0
        %3361 = vadd.xlane.f32.xlu0 %v3360
        %v3362 = vpop.xlane.xlu0 %3361
        %v3363 = vmul.f32 %v3353, %v484
        %v3364 = vmul.f32 %v3356, %v484
        %v3365 = vmul.f32 %v3359, %v484
        %v3366 = vmul.f32 %v3362, %v484
        %v3367 = vsub.f32 %v3345, %v3363
        %v3368 = vsub.f32 %v3346, %v3364
        %v3369 = vsub.f32 %v3347, %v3365
        %v3370 = vsub.f32 %v3348, %v3366
        %v3371 = vmul.f32 %v3367, %v3367
        %v3372 = vmul.f32 %v3368, %v3368
        %v3373 = vmul.f32 %v3369, %v3369
        %v3374 = vmul.f32 %v3370, %v3370
        %v3375 = vsel %vm471, %v3371, 0.0
        %3376 = vadd.xlane.f32.xlu0 %v3375
        %v3377 = vpop.xlane.xlu0 %3376
        %v3378 = vsel %vm471, %v3372, 0.0
        %3379 = vadd.xlane.f32.xlu0 %v3378
        %v3380 = vpop.xlane.xlu0 %3379
        %v3381 = vsel %vm471, %v3373, 0.0
        %3382 = vadd.xlane.f32.xlu0 %v3381
        %v3383 = vpop.xlane.xlu0 %3382
        %v3384 = vsel %vm471, %v3374, 0.0
        %3385 = vadd.xlane.f32.xlu0 %v3384
        %v3386 = vpop.xlane.xlu0 %3385
        %v3387 = vmul.f32 %v3377, %v484
        %v3388 = vmul.f32 %v3380, %v484
        %v3389 = vmul.f32 %v3383, %v484
        %v3390 = vmul.f32 %v3386, %v484
        %v3391 = vadd.f32 %v3387, 1e-05
        %v3392 = vadd.f32 %v3388, 1e-05
        %v3393 = vadd.f32 %v3389, 1e-05
        %v3394 = vadd.f32 %v3390, 1e-05
        %v3395 = vrsqrt.pop %v3391
        %v3396 = vrsqrt.pop %v3392
        %v3397 = vrsqrt.pop %v3393
        %v3398 = vrsqrt.pop %v3394
        %v3399 = vmul.f32 %v3367, %v3395
        %v3400 = vmul.f32 %v3368, %v3396
        %v3401 = vmul.f32 %v3369, %v3397
        %v3402 = vmul.f32 %v3370, %v3398
        %v3404 = vlaneseq
        %v3405 = vshrl.u32 %v3404, 7
        %v3406 = vsub.s32 0, %v3405
        %v3407 = vrot.slane %v3349, %v3406
        %v3409 = vmul.f32 %v3399, %v3407
        %v3410 = vmul.f32 %v3400, %v3407
        %v3411 = vmul.f32 %v3401, %v3407
        %v3412 = vmul.f32 %v3402, %v3407
        %v3414 = vlaneseq
        %v3415 = vshrl.u32 %v3414, 7
        %v3416 = vsub.s32 0, %v3415
        %v3417 = vrot.slane %v3350, %v3416
        %v3419 = vadd.f32 %v3409, %v3417
        %v3420 = vadd.f32 %v3410, %v3417
        %v3421 = vadd.f32 %v3411, %v3417
        %v3422 = vadd.f32 %v3412, %v3417
        %v3423 = vld [vmem:[#allocation6] sm:$0xff]
        %v3424 = vld [vmem:[#allocation6 + $0x8] sm:$0xff]
        %v3425 = vld [vmem:[#allocation6 + $0x10] sm:$0xff]
        %v3426 = vld [vmem:[#allocation6 + $0x18] sm:$0xff]
        %v3427 = vld [vmem:[#allocation7] sm:$0x1]
        %v3429 = vlaneseq
        %v3430 = vshrl.u32 %v3429, 7
        %v3431 = vsub.s32 0, %v3430
        %v3432 = vrot.slane %v3427, %v3431
        %v3435 = vsel %vm471, %v3419, 0
        %v3438 = vsel %vm471, %v3420, 0
        %v3441 = vsel %vm471, %v3421, 0
        %v3444 = vsel %vm471, %v3422, 0
        %3446 = vmatprep.subr.mxu0 0.0
        %3447 = vmatpush1.msra.mxu0 %v3423
        %3448 = vmatprep.subr.mxu0 0.0
        %3449 = vmatpush1.msra.mxu0 %v3424
        %3450 = vmatprep.subr.mxu0 0.0
        %3451 = vmatpush1.msra.mxu0 %v3425
        %3452 = vmatprep.subr.mxu0 0.0
        %3453 = vmatpush1.msra.mxu0 %v3426
        %3454 = vmatprep.subr.mxu0 0.0
        %3455 = vmatpush1.msra.mxu0 0.0
        %3456 = vmatprep.subr.mxu0 0.0
        %3457 = vmatpush1.msra.mxu0 0.0
        %3458 = vmatprep.subr.mxu0 0.0
        %3459 = vmatpush1.msra.mxu0 0.0
        %3460 = vmatprep.subr.mxu0 0.0
        %3461 = vmatpush1.msra.mxu0 0.0
        %3462 = vmatprep.subr.mxu0 0.0
        %3463 = vmatpush1.msra.mxu0 0.0
        %3464 = vmatprep.subr.mxu0 0.0
        %3465 = vmatpush1.msra.mxu0 0.0
        %3466 = vmatprep.subr.mxu0 0.0
        %3467 = vmatpush1.msra.mxu0 0.0
        %3468 = vmatprep.subr.mxu0 0.0
        %3469 = vmatpush1.msra.mxu0 0.0
        %3470 = vmatprep.subr.mxu0 0.0
        %3471 = vmatpush1.msra.mxu0 0.0
        %3472 = vmatprep.subr.mxu0 0.0
        %3473 = vmatpush1.msra.mxu0 0.0
        %3474 = vmatprep.subr.mxu0 0.0
        %3475 = vmatpush1.msra.mxu0 0.0
        %3476 = vmatprep.subr.mxu0 0.0
        %3477 = vmatpush1.msra.mxu0 0.0
        %3478 = vmatprep.subr.mxu0 0.0
        %3479 = vmatpush1.msra.mxu0 0.0
        %3480 = vmatprep.subr.mxu0 0.0
        %3481 = vmatpush1.msra.mxu0 0.0
        %3482 = vmatprep.subr.mxu0 0.0
        %3483 = vmatpush1.msra.mxu0 0.0
        %3484 = vmatprep.subr.mxu0 0.0
        %3485 = vmatpush1.msra.mxu0 0.0
        %3486 = vmatprep.subr.mxu0 0.0
        %3487 = vmatpush1.msra.mxu0 0.0
        %3488 = vmatprep.subr.mxu0 0.0
        %3489 = vmatpush1.msra.mxu0 0.0
        %3490 = vmatprep.subr.mxu0 0.0
        %3491 = vmatpush1.msra.mxu0 0.0
        %3492 = vmatprep.subr.mxu0 0.0
        %3493 = vmatpush1.msra.mxu0 0.0
        %3494 = vmatprep.subr.mxu0 0.0
        %3495 = vmatpush1.msra.mxu0 0.0
        %3496 = vmatprep.subr.mxu0 0.0
        %3497 = vmatpush1.msra.mxu0 0.0
        %3498 = vmatprep.subr.mxu0 0.0
        %3499 = vmatpush1.msra.mxu0 0.0
        %3500 = vmatprep.subr.mxu0 0.0
        %3501 = vmatpush1.msra.mxu0 0.0
        %3502 = vmatprep.subr.mxu0 0.0
        %3503 = vmatpush1.msra.mxu0 0.0
        %3504 = vmatprep.subr.mxu0 0.0
        %3505 = vmatpush1.msra.mxu0 0.0
        %3506 = vmatprep.subr.mxu0 0.0
        %3507 = vmatpush1.msra.mxu0 0.0
        %3508 = vmatprep.subr.mxu0 0.0
        %3509 = vmatpush1.msra.mxu0 0.0
        %3510 = vmatprep.mubr.f32.mxu0 0.0
        %3511 = vmatmul.mubr.f32.gmra.mrb[0].mxu0 %v3435
        %v3512 = vpop.f32.mrb[0].mxu0
        %v3513 = vadd.f32 %v3432, %v3512
        %v3514 = vpop.f32.mrb[0].mxu0
        %3515 = vmatprep.mubr.f32.mxu0 0.0
        %3516 = vmatmul.mubr.f32.gmra.mrb[0].mxu0 %v3438
        %v3517 = vpop.f32.mrb[0].mxu0
        %v3518 = vadd.f32 %v3432, %v3517
        %v3519 = vpop.f32.mrb[0].mxu0
        %3520 = vmatprep.mubr.f32.mxu0 0.0
        %3521 = vmatmul.mubr.f32.gmra.mrb[0].mxu0 %v3441
        %v3522 = vpop.f32.mrb[0].mxu0
        %v3523 = vadd.f32 %v3432, %v3522
        %v3524 = vpop.f32.mrb[0].mxu0
        %3525 = vmatprep.mubr.f32.mxu0 0.0
        %3526 = vmatmul.mubr.f32.gmra.mrb[0].mxu0 %v3444
        %v3527 = vpop.f32.mrb[0].mxu0
        %v3528 = vadd.f32 %v3432, %v3527
        %v3529 = vpop.f32.mrb[0].mxu0
        %3530 = vdwg.mxu0
        %v3531 = vxor.u32 %v3513, 2147483648
        %v3532 = vxor.u32 %v3518, 2147483648
        %v3533 = vxor.u32 %v3523, 2147483648
        %v3534 = vxor.u32 %v3528, 2147483648
        %v3535 = vmul.f32 %v3531, 1.442695
        %v3536 = vpow.pop %v3535
        %v3537 = vmul.f32 %v3532, 1.442695
        %v3538 = vpow.pop %v3537
        %v3539 = vmul.f32 %v3533, 1.442695
        %v3540 = vpow.pop %v3539
        %v3541 = vmul.f32 %v3534, 1.442695
        %v3542 = vpow.pop %v3541
        %v3543 = vadd.f32 %v3536, 1.0
        %v3544 = vadd.f32 %v3538, 1.0
        %v3545 = vadd.f32 %v3540, 1.0
        %v3546 = vadd.f32 %v3542, 1.0
        %v3547 = vrcp.pop %v3543
        %v3548 = vmul.f32 1.0, %v3547
        %v3549 = vrcp.pop %v3544
        %v3550 = vmul.f32 1.0, %v3549
        %v3551 = vrcp.pop %v3545
        %v3552 = vmul.f32 1.0, %v3551
        %v3553 = vrcp.pop %v3546
        %v3554 = vmul.f32 1.0, %v3553
        %v3555 = vmul.f32 %v3513, %v3548
        %v3556 = vmul.f32 %v3518, %v3550
        %v3557 = vmul.f32 %v3523, %v3552
        %v3558 = vmul.f32 %v3528, %v3554
        %v3559 = vld [vmem:[%s9] sm:$0xff]
        %v3560 = vld [vmem:[%s9 + $0x8] sm:$0xff]
        %v3561 = vld [vmem:[%s9 + $0x10] sm:$0xff]
        %v3562 = vld [vmem:[%s9 + $0x18] sm:$0xff]
        %v3563 = vld [vmem:[%s10] sm:$0x1]
        %v3565 = vlaneseq
        %v3566 = vshrl.u32 %v3565, 7
        %v3567 = vsub.s32 0, %v3566
        %v3568 = vrot.slane %v3563, %v3567
        %v3571 = vsel %vm471, %v3555, 0
        %v3574 = vsel %vm471, %v3556, 0
        %v3577 = vsel %vm471, %v3557, 0
        %v3580 = vsel %vm471, %v3558, 0
        %3582 = vmatprep.subr.mxu0 0.0
        %3583 = vmatpush1.msra.mxu0 %v3559
        %3584 = vmatprep.subr.mxu0 0.0
        %3585 = vmatpush1.msra.mxu0 %v3560
        %3586 = vmatprep.subr.mxu0 0.0
        %3587 = vmatpush1.msra.mxu0 %v3561
        %3588 = vmatprep.subr.mxu0 0.0
        %3589 = vmatpush1.msra.mxu0 %v3562
        %3590 = vmatprep.subr.mxu0 0.0
        %3591 = vmatpush1.msra.mxu0 0.0
        %3592 = vmatprep.subr.mxu0 0.0
        %3593 = vmatpush1.msra.mxu0 0.0
        %3594 = vmatprep.subr.mxu0 0.0
        %3595 = vmatpush1.msra.mxu0 0.0
        %3596 = vmatprep.subr.mxu0 0.0
        %3597 = vmatpush1.msra.mxu0 0.0
        %3598 = vmatprep.subr.mxu0 0.0
        %3599 = vmatpush1.msra.mxu0 0.0
        %3600 = vmatprep.subr.mxu0 0.0
        %3601 = vmatpush1.msra.mxu0 0.0
        %3602 = vmatprep.subr.mxu0 0.0
        %3603 = vmatpush1.msra.mxu0 0.0
        %3604 = vmatprep.subr.mxu0 0.0
        %3605 = vmatpush1.msra.mxu0 0.0
        %3606 = vmatprep.subr.mxu0 0.0
        %3607 = vmatpush1.msra.mxu0 0.0
        %3608 = vmatprep.subr.mxu0 0.0
        %3609 = vmatpush1.msra.mxu0 0.0
        %3610 = vmatprep.subr.mxu0 0.0
        %3611 = vmatpush1.msra.mxu0 0.0
        %3612 = vmatprep.subr.mxu0 0.0
        %3613 = vmatpush1.msra.mxu0 0.0
        %3614 = vmatprep.subr.mxu0 0.0
        %3615 = vmatpush1.msra.mxu0 0.0
        %3616 = vmatprep.subr.mxu0 0.0
        %3617 = vmatpush1.msra.mxu0 0.0
        %3618 = vmatprep.subr.mxu0 0.0
        %3619 = vmatpush1.msra.mxu0 0.0
        %3620 = vmatprep.subr.mxu0 0.0
        %3621 = vmatpush1.msra.mxu0 0.0
        %3622 = vmatprep.subr.mxu0 0.0
        %3623 = vmatpush1.msra.mxu0 0.0
        %3624 = vmatprep.subr.mxu0 0.0
        %3625 = vmatpush1.msra.mxu0 0.0
        %3626 = vmatprep.subr.mxu0 0.0
        %3627 = vmatpush1.msra.mxu0 0.0
        %3628 = vmatprep.subr.mxu0 0.0
        %3629 = vmatpush1.msra.mxu0 0.0
        %3630 = vmatprep.subr.mxu0 0.0
        %3631 = vmatpush1.msra.mxu0 0.0
        %3632 = vmatprep.subr.mxu0 0.0
        %3633 = vmatpush1.msra.mxu0 0.0
        %3634 = vmatprep.subr.mxu0 0.0
        %3635 = vmatpush1.msra.mxu0 0.0
        %3636 = vmatprep.subr.mxu0 0.0
        %3637 = vmatpush1.msra.mxu0 0.0
        %3638 = vmatprep.subr.mxu0 0.0
        %3639 = vmatpush1.msra.mxu0 0.0
        %3640 = vmatprep.subr.mxu0 0.0
        %3641 = vmatpush1.msra.mxu0 0.0
        %3642 = vmatprep.subr.mxu0 0.0
        %3643 = vmatpush1.msra.mxu0 0.0
        %3644 = vmatprep.subr.mxu0 0.0
        %3645 = vmatpush1.msra.mxu0 0.0
        %3646 = vmatprep.mubr.f32.mxu0 0.0
        %3647 = vmatmul.mubr.f32.gmra.mrb[0].mxu0 %v3571
        %v3648 = vpop.f32.mrb[0].mxu0
        %v3649 = vadd.f32 %v3568, %v3648
        %v3650 = vpop.f32.mrb[0].mxu0
        %3651 = vmatprep.mubr.f32.mxu0 0.0
        %3652 = vmatmul.mubr.f32.gmra.mrb[0].mxu0 %v3574
        %v3653 = vpop.f32.mrb[0].mxu0
        %v3654 = vadd.f32 %v3568, %v3653
        %v3655 = vpop.f32.mrb[0].mxu0
        %3656 = vmatprep.mubr.f32.mxu0 0.0
        %3657 = vmatmul.mubr.f32.gmra.mrb[0].mxu0 %v3577
        %v3658 = vpop.f32.mrb[0].mxu0
        %v3659 = vadd.f32 %v3568, %v3658
        %v3660 = vpop.f32.mrb[0].mxu0
        %3661 = vmatprep.mubr.f32.mxu0 0.0
        %3662 = vmatmul.mubr.f32.gmra.mrb[0].mxu0 %v3580
        %v3663 = vpop.f32.mrb[0].mxu0
        %v3664 = vadd.f32 %v3568, %v3663
        %v3665 = vpop.f32.mrb[0].mxu0
        %3666 = vdwg.mxu0
        %v3667 = vxor.u32 %v3649, 2147483648
        %v3668 = vxor.u32 %v3654, 2147483648
        %v3669 = vxor.u32 %v3659, 2147483648
        %v3670 = vxor.u32 %v3664, 2147483648
        %v3671 = vmul.f32 %v3667, 1.442695
        %v3672 = vpow.pop %v3671
        %v3673 = vmul.f32 %v3668, 1.442695
        %v3674 = vpow.pop %v3673
        %v3675 = vmul.f32 %v3669, 1.442695
        %v3676 = vpow.pop %v3675
        %v3677 = vmul.f32 %v3670, 1.442695
        %v3678 = vpow.pop %v3677
        %v3679 = vadd.f32 %v3672, 1.0
        %v3680 = vadd.f32 %v3674, 1.0
        %v3681 = vadd.f32 %v3676, 1.0
        %v3682 = vadd.f32 %v3678, 1.0
        %v3683 = vrcp.pop %v3679
        %v3684 = vmul.f32 1.0, %v3683
        %v3685 = vrcp.pop %v3680
        %v3686 = vmul.f32 1.0, %v3685
        %v3687 = vrcp.pop %v3681
        %v3688 = vmul.f32 1.0, %v3687
        %v3689 = vrcp.pop %v3682
        %v3690 = vmul.f32 1.0, %v3689
        %v3691 = vmul.f32 %v3649, %v3684
        %v3692 = vmul.f32 %v3654, %v3686
        %v3693 = vmul.f32 %v3659, %v3688
        %v3694 = vmul.f32 %v3664, %v3690
        %v3695 = vsel %vm471, %v3691, 0.0
        %3696 = vadd.xlane.f32.xlu0 %v3695
        %v3697 = vpop.xlane.xlu0 %3696
        %v3698 = vsel %vm471, %v3692, 0.0
        %3699 = vadd.xlane.f32.xlu0 %v3698
        %v3700 = vpop.xlane.xlu0 %3699
        %v3701 = vsel %vm471, %v3693, 0.0
        %3702 = vadd.xlane.f32.xlu0 %v3701
        %v3703 = vpop.xlane.xlu0 %3702
        %v3704 = vsel %vm471, %v3694, 0.0
        %3705 = vadd.xlane.f32.xlu0 %v3704
        %v3706 = vpop.xlane.xlu0 %3705
        %v3707 = vmul.f32 %v3697, %v484
        %v3708 = vmul.f32 %v3700, %v484
        %v3709 = vmul.f32 %v3703, %v484
        %v3710 = vmul.f32 %v3706, %v484
        %v3711 = vsub.f32 %v3691, %v3707
        %v3712 = vsub.f32 %v3692, %v3708
        %v3713 = vsub.f32 %v3693, %v3709
        %v3714 = vsub.f32 %v3694, %v3710
        %v3715 = vmul.f32 %v3711, %v3711
        %v3716 = vmul.f32 %v3712, %v3712
        %v3717 = vmul.f32 %v3713, %v3713
        %v3718 = vmul.f32 %v3714, %v3714
        %v3719 = vsel %vm471, %v3715, 0.0
        %3720 = vadd.xlane.f32.xlu0 %v3719
        %v3721 = vpop.xlane.xlu0 %3720
        %v3722 = vsel %vm471, %v3716, 0.0
        %3723 = vadd.xlane.f32.xlu0 %v3722
        %v3724 = vpop.xlane.xlu0 %3723
        %v3725 = vsel %vm471, %v3717, 0.0
        %3726 = vadd.xlane.f32.xlu0 %v3725
        %v3727 = vpop.xlane.xlu0 %3726
        %v3728 = vsel %vm471, %v3718, 0.0
        %3729 = vadd.xlane.f32.xlu0 %v3728
        %v3730 = vpop.xlane.xlu0 %3729
        %v3731 = vmul.f32 %v3721, %v484
        %v3732 = vmul.f32 %v3724, %v484
        %v3733 = vmul.f32 %v3727, %v484
        %v3734 = vmul.f32 %v3730, %v484
        %v3735 = vadd.f32 %v3731, 1e-05
        %v3736 = vadd.f32 %v3732, 1e-05
        %v3737 = vadd.f32 %v3733, 1e-05
        %v3738 = vadd.f32 %v3734, 1e-05
        %v3739 = vrsqrt.pop %v3735
        %v3740 = vrsqrt.pop %v3736
        %v3741 = vrsqrt.pop %v3737
        %v3742 = vrsqrt.pop %v3738
        %v3743 = vmul.f32 %v3711, %v3739
        %v3744 = vmul.f32 %v3712, %v3740
        %v3745 = vmul.f32 %v3713, %v3741
        %v3746 = vmul.f32 %v3714, %v3742
        %v3747 = vmul.f32 %v3743, %v529
        %v3748 = vmul.f32 %v3744, %v529
        %v3749 = vmul.f32 %v3745, %v529
        %v3750 = vmul.f32 %v3746, %v529
        %v3751 = vadd.f32 %v3747, %v539
        %v3752 = vadd.f32 %v3748, %v539
        %v3753 = vadd.f32 %v3749, %v539
        %v3754 = vadd.f32 %v3750, %v539
        %3755 = vst.msk [vmem:[%s463] sm:$0xff] %vm471, %v3751
        %3756 = vst.msk [vmem:[%s463 + $0x8] sm:$0xff] %vm471, %v3752
        %3757 = vst.msk [vmem:[%s463 + $0x10] sm:$0xff] %vm471, %v3753
        %3758 = vst.msk [vmem:[%s463 + $0x18] sm:$0xff] %vm471, %v3754
        %s3759 = smul.u32 4, %s25
        %p3760 = scmp.lt.s32.totalorder %s3759, 7
        %s3761 = scalar_select %p3760, %s3759, 7
        %s3762 = smul.addr %s3761, 8
        %s3763 = scalar_lea.vmem %s11, %s3762
        // Predicated region
        $region81: #{tpu_custom_call.1} parent=63 // pred_check
          %p3764 = pneg %p284
        $region82: #{tpu_custom_call.1} parent=63 // pred_check_branch
          %3766 = sbr.rel (%p3764) target = $region84
        $region83: #{tpu_custom_call.1} parent=63 // pred_region
          %s3767 = smul.u32 4, %s25
        $region84: #{tpu_custom_call.1} parent=63 // pred_fallthru
          _
      $region64: #{tpu_custom_call.1} parent=5 // pred_fallthru
        _
      %p3768 = scmp.le.s32.totalorder 2, %s20
      // Predicated region
      $region85: #{tpu_custom_call.1} parent=5 // pred_check
        %p3769 = pneg %p3768
      $region86: #{tpu_custom_call.1} parent=5 // pred_check_branch
        %3771 = sbr.rel (%p3769) target = $region88
      $region87: #{tpu_custom_call.1} parent=5 // pred_region
        %s3772 = ssub.s32 %s20, 2
        // Predicated region
        $region89: #{tpu_custom_call.1} parent=87 // pred_check
          %p3773 = pneg %p290
        $region90: #{tpu_custom_call.1} parent=87 // pred_check_branch
          %3775 = sbr.rel (%p3773) target = $region92
        $region91: #{tpu_custom_call.1} parent=87 // pred_region
          %s3776 = smul.u32 4, %s26
          %p3777 = scmp.lt.s32.totalorder %s3776, 7
          %s3778 = scalar_select %p3777, %s3776, 7
          %s3779 = smul.addr %s3778, 8
          %s3780 = scalar_lea.vmem %s11, %s3779
        $region92: #{tpu_custom_call.1} parent=87 // pred_fallthru
          _
      $region88: #{tpu_custom_call.1} parent=5 // pred_fallthru
        _
    $region6: #{tpu_custom_call.1} parent=1 // loop_footer
      %s24 = sadd.s32 1, %s20
    $region7: #{tpu_custom_call.1} parent=1 // loop_footer_branch
      %19 = sbr.rel target = $region3
    $region8: #{tpu_custom_call.1} parent=1 // loop_exit
      _
    %3781 = vsyncpa [#allocation3], 1
    %s3782 = scalar_lea.sflag [#allocation3], 1
    %3783 = vsyncpa %s3782, 1
    %3784 = vsyncpa [#allocation5], 1
    %3785 = vsyncpa [#allocation8], 1

</llo_original>
